<compile_context>
chip_gen: v7x
topology: tpu7x:2x2x1
jax: 0.10.0
libtpu: 0.0.40
codegen_flags: <defaults>
</compile_context>

<pallas_src>
import numpy as np
import jax
import jax.numpy as jnp
from jax import lax
from jax.experimental import pallas as pl
from jax.experimental.pallas import tpu as pltpu


# ----------------------------------------------------------------------------
# sinusoid position table (same formula as get_sinusoid_encoding_table)
# ----------------------------------------------------------------------------
def get_sinusoid_encoding_table(n_position, d_hid, padding_idx=None):
    pos = np.arange(n_position, dtype=np.float64)[:, None]
    idx = np.arange(d_hid, dtype=np.float64)[None, :]
    table = pos / np.power(10000.0, 2.0 * (np.floor(idx / 2.0)) / d_hid)
    table[:, 0::2] = np.sin(table[:, 0::2])
    table[:, 1::2] = np.cos(table[:, 1::2])
    if padding_idx is not None:
        table[padding_idx] = 0.0
    return jnp.asarray(table, dtype=jnp.float32)


# ----------------------------------------------------------------------------
# Kernel 1: CNN sentence encoder — all sentences in one call, packed conv weight
# ----------------------------------------------------------------------------
def encoder_conv(x_unf, w_flat, b_flat, thresh, BN, L, KCo):
    """x_unf: (BN*L, k_max*E) im2col rows; w_flat: (k_max*E, KCo) packed filters;
    b_flat: (1, KCo); thresh: (1, KCo) int32 max valid time index per channel.
    Returns pooled sentence embeddings (BN, KCo)."""

    def kernel(x_ref, w_ref, b_ref, th_ref, o_ref):
        # one big matmul for every conv window of every sentence
        acc = jnp.dot(x_ref[...], w_ref[...],
                      preferred_element_type=jnp.float32)          # (BN*L, KCo)
        acc = jnp.maximum(acc + b_ref[...], 0.0)                   # bias + ReLU
        acc3 = acc.reshape(BN, L, KCo)                             # (BN, L, KCo)
        # zero-out windows that are invalid for the given kernel size (after
        # ReLU values are >= 0, so zeroing never changes the valid max-pool)
        t_idx = lax.broadcasted_iota(jnp.int32, (BN, L, KCo), 1)
        acc3 = jnp.where(t_idx <= th_ref[...], acc3, 0.0)
        o_ref[...] = jnp.max(acc3, axis=1)                         # (BN, KCo)

    return pl.pallas_call(
        kernel,
        out_shape=jax.ShapeDtypeStruct((BN, KCo), jnp.float32),
    )(x_unf, w_flat, b_flat, thresh)


# ----------------------------------------------------------------------------
# Kernel 2: fused projection + n_layers pre-LN transformer layers + head
# ----------------------------------------------------------------------------
LAYER_KEYS = ('ln1_g', 'ln1_b', 'wq', 'bq', 'wk', 'bk', 'wv', 'bv',
              'wo', 'bo', 'ln2_g', 'ln2_b', 'w1', 'b1', 'w2', 'b2')


def make_fused_kernel(*, n_layers, n_head, d_k, n_last=4, eps=1e-5):
    scale = float(d_k) ** -0.5

    def layer_norm(z, g, b):
        mu = jnp.mean(z, axis=-1, keepdims=True)
        var = jnp.mean((z - mu) ** 2, axis=-1, keepdims=True)
        return (z - mu) * lax.rsqrt(var + eps) * g + b

    def kernel(*refs):
        sent_ref, pos_ref, kp_ref, pw_ref, pb_ref = refs[:5]
        (ln1g, ln1b, wq, bq, wk, bk, wv, bv, wo, bo,
         ln2g, ln2b, w1, b1, w2, b2) = refs[5:21]
        whw_ref, whb_ref, o_ref = refs[21], refs[22], refs[23]

        # projection + document position embedding
        x = (jnp.dot(sent_ref[0], pw_ref[...],
                     preferred_element_type=jnp.float32)
             + pb_ref[...] + pos_ref[0])                            # (N, H)
        kp = kp_ref[0]                      # (1, N), 1.0 where key is padding
        neg = jnp.float32(-1e30)
        dec = jnp.zeros_like(x)             # running sum of last n_last layers

        for l in range(n_layers):
            # --- pre-LN multi-head self attention ---
            xn = layer_norm(x, ln1g[l], ln1b[l])
            q = (jnp.dot(xn, wq[l], preferred_element_type=jnp.float32)
                 + bq[l]) * scale
            k = jnp.dot(xn, wk[l], preferred_element_type=jnp.float32) + bk[l]
            v = jnp.dot(xn, wv[l], preferred_element_type=jnp.float32) + bv[l]
            wo_l = wo[l]
            attn = jnp.zeros_like(x)
            for h in range(n_head):
                lo, hi = h * d_k, (h + 1) * d_k
                s = lax.dot_general(q[:, lo:hi], k[:, lo:hi],
                                    (((1,), (1,)), ((), ())),
                                    preferred_element_type=jnp.float32)  # (N, N)
                s = jnp.where(kp > 0.5, neg, s)
                s = s - jnp.max(s, axis=-1, keepdims=True)
                p = jnp.exp(s)
                p = p * pl.reciprocal(jnp.sum(p, axis=-1, keepdims=True),
                                      approx=True)
                head = jnp.dot(p, v[:, lo:hi],
                               preferred_element_type=jnp.float32)       # (N, d_k)
                # accumulate head @ Wo[rows of this head] — no lane concat
                attn = attn + jnp.dot(head, wo_l[lo:hi, :],
                                      preferred_element_type=jnp.float32)
            x = x + attn + bo[l]            # residual (dropout = eval no-op)

            # --- pre-LN FFN ---
            xn2 = layer_norm(x, ln2g[l], ln2b[l])
            hdn = jnp.maximum(
                jnp.dot(xn2, w1[l], preferred_element_type=jnp.float32) + b1[l],
                0.0)
            x = x + jnp.dot(hdn, w2[l],
                            preferred_element_type=jnp.float32) + b2[l]

            if l >= n_layers - n_last:      # sum of the last 4 layer outputs
                dec = dec + x

        # final linear head (weight lane-padded to 128 → lane-dense store)
        o_ref[0] = (jnp.dot(dec, whw_ref[...],
                            preferred_element_type=jnp.float32) + whb_ref[...])

    return kernel


def fused_transformer(sent_emb, pos_emb, key_pad, proj_w, proj_b,
                      stacked, wh_w_pad, wh_b_pad, *, n_layers, n_head):
    B, N, S = sent_emb.shape
    H = proj_w.shape[1]
    C_pad = wh_w_pad.shape[1]
    d_k = H // n_head

    layer_ws = [stacked[key] for key in LAYER_KEYS]
    args = [sent_emb, pos_emb, key_pad, proj_w, proj_b] + layer_ws \
        + [wh_w_pad, wh_b_pad]

    in_specs = [
        pl.BlockSpec((1, N, S), lambda i: (i, 0, 0)),
        pl.BlockSpec((1, N, H), lambda i: (i, 0, 0)),
        pl.BlockSpec((1, 1, N), lambda i: (i, 0, 0)),
        pl.BlockSpec(proj_w.shape, lambda i: (0, 0)),
        pl.BlockSpec(proj_b.shape, lambda i: (0, 0)),
    ]
    for w in layer_ws:
        in_specs.append(pl.BlockSpec(w.shape, lambda i, nd=w.ndim: (0,) * nd))
    in_specs += [pl.BlockSpec(wh_w_pad.shape, lambda i: (0, 0)),
                 pl.BlockSpec(wh_b_pad.shape, lambda i: (0, 0))]

    return pl.pallas_call(
        make_fused_kernel(n_layers=n_layers, n_head=n_head, d_k=d_k),
        grid=(B,),
        in_specs=in_specs,
        out_specs=pl.BlockSpec((1, N, C_pad), lambda i: (i, 0, 0)),
        out_shape=jax.ShapeDtypeStruct((B, N, C_pad), jnp.float32),
        compiler_params=pltpu.CompilerParams(
            dimension_semantics=("parallel",)),   # dual-TC (v7x) batch split
    )(*args)


# ----------------------------------------------------------------------------
# full forward (embedding gathers, im2col and argmax are plain-JAX glue)
# ----------------------------------------------------------------------------
def transformer_model_forward(params, words, seq_len, hps):
    B, N, L = words.shape
    E = params['word_embed'].shape[1]
    H = hps['hidden_size']
    n_layers, n_head = hps['n_layers'], hps['n_head']

    # ----- CNN sentence encoder -----
    words_flat = words.reshape(B * N, L)
    word_emb = params['word_embed'][words_flat]                       # (BN, L, E)
    sentlen = (words_flat != 0).sum(axis=1)                           # (BN,)
    pos_ids = jnp.where(jnp.arange(L)[None, :] < sentlen[:, None],
                        jnp.arange(1, L + 1)[None, :], 0)
    conv_in = (word_emb + params['word_pos_table'][pos_ids]).astype(jnp.float32)

    kernel_sizes = [int(w.shape[0]) for (w, _) in params['convs']]
    K = len(kernel_sizes)
    Co = params['convs'][0][1].shape[-1]
    k_max = max(kernel_sizes)
    P = k_max - 1

    # im2col: rows are (sentence, window-start), features are k_max shifted embeds
    x_pad = jnp.pad(conv_in, ((0, 0), (0, P), (0, 0)))
    x_unf = jnp.concatenate([x_pad[:, d:d + L, :] for d in range(k_max)],
                            axis=-1)                                  # (BN, L, kE)
    x_unf = x_unf.reshape(B * N * L, k_max * E)

    # pack all conv filters into one zero-padded weight + bias + validity thresh
    w_flat = jnp.zeros((k_max * E, K * Co), jnp.float32)
    b_parts, th_parts = [], []
    for ki, (w, b) in enumerate(params['convs']):
        ksz = int(w.shape[0])
        w_flat = w_flat.at[:ksz * E, ki * Co:(ki + 1) * Co].set(
            w.reshape(ksz * E, Co))
        b_parts.append(b)
        th_parts.append(jnp.full((1, Co), L - ksz, jnp.int32))
    b_flat = jnp.concatenate(b_parts, axis=-1)                        # (1, K*Co)
    thresh = jnp.concatenate(th_parts, axis=-1)                       # (1, K*Co)

    sent_emb = encoder_conv(x_unf, w_flat, b_flat, thresh,
                            B * N, L, K * Co)                         # (BN, K*Co)
    sent_emb = sent_emb.reshape(B, N, K * Co)

    # ----- masks & document positions -----
    input_len = seq_len.astype(jnp.float32)                           # (B, N)
    key_pad = (input_len == 0.0).astype(jnp.float32)[:, None, :]      # (B, 1, N)
    doc_len = input_len.sum(axis=1).astype(jnp.int32)
    sent_pos = jnp.where(jnp.arange(N)[None, :] < doc_len[:, None],
                         jnp.arange(1, N + 1)[None, :], 0)
    sent_pos_emb = params['sent_pos_table'][sent_pos]                 # (B, N, H)

    # ----- stack per-layer weights along a leading layer axis -----
    stacked = {key: jnp.stack([lp[key] for lp in params['layers']], axis=0)
               for key in LAYER_KEYS}

    # ----- lane-pad the 2-class head so the only HBM store is lane-dense -----
    C = params['wh_w'].shape[1]
    C_pad = 128
    wh_w_pad = jnp.zeros((H, C_pad), jnp.float32).at[:, :C].set(params['wh_w'])
    wh_b_pad = jnp.zeros((1, C_pad), jnp.float32).at[:, :C].set(params['wh_b'])

    # ----- fused projection + transformer stack + last-4 sum + head -----
    logits_pad = fused_transformer(sent_emb, sent_pos_emb, key_pad,
                                   params['proj_w'], params['proj_b'],
                                   stacked, wh_w_pad, wh_b_pad,
                                   n_layers=n_layers, n_head=n_head)  # (B, N, 128)
    p_sent = logits_pad[:, :, :C]                                     # (B, N, 2)

    # prediction (hps.m == 0 path)
    prediction = jnp.argmax(p_sent, axis=-1).astype(jnp.int32)        # (B, N)
    # TODO(synk): hps.m != 0 branch (exp/topk/scatter prediction) not implemented; m=0 used.
    return {'pred': p_sent, 'prediction': prediction, 'pred_idx': None}


# ----------------------------------------------------------------------------
# deterministic parameter init (synthetic; shapes follow the module __init__)
# ----------------------------------------------------------------------------
def init_params(key, hps):
    V, E = hps['vocab_size'], hps['word_emb_dim']
    H, Fd = hps['hidden_size'], hps['ffn_inner_hidden_size']
    Co = hps['output_channel']
    ks = iter(jax.random.split(key, 64))

    def nrm(shape, scale=0.1):
        return (scale * jax.random.normal(next(ks), shape)).astype(jnp.float32)

    params = {}
    we = nrm((V, E))
    params['word_embed'] = we.at[0].set(0.0)                          # padding_idx=0
    params['word_pos_table'] = get_sinusoid_encoding_table(hps['sent_max_len'] + 1, E, 0)

    convs = []
    for k in range(hps['min_kernel_size'], hps['max_kernel_size'] + 1):
        convs.append((nrm((k, E, Co), 0.2), nrm((1, Co), 0.05)))
    params['convs'] = convs
    S = (hps['max_kernel_size'] - hps['min_kernel_size'] + 1) * Co

    params['proj_w'] = nrm((S, H))
    params['proj_b'] = nrm((1, H), 0.02)
    params['sent_pos_table'] = get_sinusoid_encoding_table(hps['doc_max_timesteps'] + 1, H, 0)

    layers = []
    for _ in range(hps['n_layers']):
        layers.append(dict(
            ln1_g=jnp.ones((1, H), jnp.float32), ln1_b=jnp.zeros((1, H), jnp.float32),
            wq=nrm((H, H)), bq=nrm((1, H), 0.02),
            wk=nrm((H, H)), bk=nrm((1, H), 0.02),
            wv=nrm((H, H)), bv=nrm((1, H), 0.02),
            wo=nrm((H, H)), bo=nrm((1, H), 0.02),
            ln2_g=jnp.ones((1, H), jnp.float32), ln2_b=jnp.zeros((1, H), jnp.float32),
            w1=nrm((H, Fd)), b1=nrm((1, Fd), 0.02),
            w2=nrm((Fd, H)), b2=nrm((1, H), 0.02),
        ))
    params['layers'] = layers
    params['wh_w'] = nrm((H, 2))
    params['wh_b'] = nrm((1, 2), 0.02)
    return params


# ----------------------------------------------------------------------------
if __name__ == "__main__":
    hps = dict(
        vocab_size=50, word_emb_dim=16, sent_max_len=16,
        min_kernel_size=1, max_kernel_size=3, output_channel=8,
        hidden_size=32, n_layers=4, n_head=4, ffn_inner_hidden_size=64,
        atten_dropout_prob=0.0, doc_max_timesteps=8, m=0,
    )
    B, N, L = 2, hps['doc_max_timesteps'], hps['sent_max_len']

    key = jax.random.PRNGKey(0)
    kp, kw = jax.random.split(key)
    params = init_params(kp, hps)

    # synthetic batch: first n_real[b] sentences are real, the rest are padding
    n_real = jnp.array([6, 4], dtype=jnp.int32)
    words = jax.random.randint(kw, (B, N, L), 1, hps['vocab_size'], dtype=jnp.int32)
    word_mask = (jnp.arange(L)[None, None, :] < (L - 3)).astype(jnp.int32)   # short sentences
    words = words * word_mask
    sent_mask = (jnp.arange(N)[None, :] < n_real[:, None]).astype(jnp.int32)
    words = words * sent_mask[:, :, None]
    seq_len = sent_mask.astype(jnp.float32)    # [B, N], 1.0 for real sentences, 0.0 for pad

    fwd = jax.jit(lambda p, w, s: transformer_model_forward(p, w, s, hps))
    out = fwd(params, words, seq_len)
    jax.block_until_ready(out['pred'])
    jax.block_until_ready(out['prediction'])
    assert out['pred'].shape == (B, N, 2) and out['prediction'].shape == (B, N)
    print("KERNEL_OK")
</pallas_src>

<mosaic_0001>
module attributes {stable_mosaic.version = 11 : i64} {
  func.func @kernel(%arg0: i32, %arg1: memref<1x8x24xf32, #tpu.memory_space<vmem>>, %arg2: memref<1x8x32xf32, #tpu.memory_space<vmem>>, %arg3: memref<1x1x8xf32, #tpu.memory_space<vmem>>, %arg4: memref<24x32xf32, #tpu.memory_space<vmem>>, %arg5: memref<1x32xf32, #tpu.memory_space<vmem>>, %arg6: memref<4x1x32xf32, #tpu.memory_space<vmem>>, %arg7: memref<4x1x32xf32, #tpu.memory_space<vmem>>, %arg8: memref<4x32x32xf32, #tpu.memory_space<vmem>>, %arg9: memref<4x1x32xf32, #tpu.memory_space<vmem>>, %arg10: memref<4x32x32xf32, #tpu.memory_space<vmem>>, %arg11: memref<4x1x32xf32, #tpu.memory_space<vmem>>, %arg12: memref<4x32x32xf32, #tpu.memory_space<vmem>>, %arg13: memref<4x1x32xf32, #tpu.memory_space<vmem>>, %arg14: memref<4x32x32xf32, #tpu.memory_space<vmem>>, %arg15: memref<4x1x32xf32, #tpu.memory_space<vmem>>, %arg16: memref<4x1x32xf32, #tpu.memory_space<vmem>>, %arg17: memref<4x1x32xf32, #tpu.memory_space<vmem>>, %arg18: memref<4x32x64xf32, #tpu.memory_space<vmem>>, %arg19: memref<4x1x64xf32, #tpu.memory_space<vmem>>, %arg20: memref<4x64x32xf32, #tpu.memory_space<vmem>>, %arg21: memref<4x1x32xf32, #tpu.memory_space<vmem>>, %arg22: memref<32x128xf32, #tpu.memory_space<vmem>>, %arg23: memref<1x128xf32, #tpu.memory_space<vmem>>, %arg24: memref<1x8x128xf32, #tpu.memory_space<vmem>>) attributes {dimension_semantics = [#tpu.dimension_semantics<parallel>], iteration_bounds = array<i64: 2>, scalar_prefetch = 0 : i64, scratch_operands = 0 : i64, tpu.core_type = #tpu.core_type<tc>, window_params = [{transform_indices = @transform_0, window_bounds = array<i64: 1, 8, 24>}, {transform_indices = @transform_1, window_bounds = array<i64: 1, 8, 32>}, {transform_indices = @transform_2, window_bounds = array<i64: 1, 1, 8>}, {pipeline_mode = #tpu.pipeline_mode<synchronous>, transform_indices = @transform_3, window_bounds = array<i64: 24, 32>}, {pipeline_mode = #tpu.pipeline_mode<synchronous>, transform_indices = @transform_4, window_bounds = array<i64: 1, 32>}, {pipeline_mode = #tpu.pipeline_mode<synchronous>, transform_indices = @transform_5, window_bounds = array<i64: 4, 1, 32>}, {pipeline_mode = #tpu.pipeline_mode<synchronous>, transform_indices = @transform_6, window_bounds = array<i64: 4, 1, 32>}, {pipeline_mode = #tpu.pipeline_mode<synchronous>, transform_indices = @transform_7, window_bounds = array<i64: 4, 32, 32>}, {pipeline_mode = #tpu.pipeline_mode<synchronous>, transform_indices = @transform_8, window_bounds = array<i64: 4, 1, 32>}, {pipeline_mode = #tpu.pipeline_mode<synchronous>, transform_indices = @transform_9, window_bounds = array<i64: 4, 32, 32>}, {pipeline_mode = #tpu.pipeline_mode<synchronous>, transform_indices = @transform_10, window_bounds = array<i64: 4, 1, 32>}, {pipeline_mode = #tpu.pipeline_mode<synchronous>, transform_indices = @transform_11, window_bounds = array<i64: 4, 32, 32>}, {pipeline_mode = #tpu.pipeline_mode<synchronous>, transform_indices = @transform_12, window_bounds = array<i64: 4, 1, 32>}, {pipeline_mode = #tpu.pipeline_mode<synchronous>, transform_indices = @transform_13, window_bounds = array<i64: 4, 32, 32>}, {pipeline_mode = #tpu.pipeline_mode<synchronous>, transform_indices = @transform_14, window_bounds = array<i64: 4, 1, 32>}, {pipeline_mode = #tpu.pipeline_mode<synchronous>, transform_indices = @transform_15, window_bounds = array<i64: 4, 1, 32>}, {pipeline_mode = #tpu.pipeline_mode<synchronous>, transform_indices = @transform_16, window_bounds = array<i64: 4, 1, 32>}, {pipeline_mode = #tpu.pipeline_mode<synchronous>, transform_indices = @transform_17, window_bounds = array<i64: 4, 32, 64>}, {pipeline_mode = #tpu.pipeline_mode<synchronous>, transform_indices = @transform_18, window_bounds = array<i64: 4, 1, 64>}, {pipeline_mode = #tpu.pipeline_mode<synchronous>, transform_indices = @transform_19, window_bounds = array<i64: 4, 64, 32>}, {pipeline_mode = #tpu.pipeline_mode<synchronous>, transform_indices = @transform_20, window_bounds = array<i64: 4, 1, 32>}, {pipeline_mode = #tpu.pipeline_mode<synchronous>, transform_indices = @transform_21, window_bounds = array<i64: 32, 128>}, {pipeline_mode = #tpu.pipeline_mode<synchronous>, transform_indices = @transform_22, window_bounds = array<i64: 1, 128>}, {transform_indices = @transform_23, window_bounds = array<i64: 1, 8, 128>}]} {
    %c0 = arith.constant 0 : index
    %c0_0 = arith.constant 0 : index
    %c0_1 = arith.constant 0 : index
    %0 = vector.load %arg1[%c0, %c0_0, %c0_1] : memref<1x8x24xf32, #tpu.memory_space<vmem>>, vector<1x8x24xf32>
    %1 = vector.shape_cast %0 : vector<1x8x24xf32> to vector<8x24xf32>
    %c0_2 = arith.constant 0 : index
    %c0_3 = arith.constant 0 : index
    %2 = vector.load %arg4[%c0_2, %c0_3] : memref<24x32xf32, #tpu.memory_space<vmem>>, vector<24x32xf32>
    %cst = arith.constant dense<0.000000e+00> : vector<8x32xf32>
    %3 = tpu.matmul %1, %2, %cst {dimension_numbers = #tpu.dot_dimension_numbers<[1], [0], [0], [1], [0, 0, 1, 1], [], []>} : vector<8x24xf32>, vector<24x32xf32>, vector<8x32xf32> -> vector<8x32xf32>
    %c0_4 = arith.constant 0 : index
    %c0_5 = arith.constant 0 : index
    %4 = vector.load %arg5[%c0_4, %c0_5] : memref<1x32xf32, #tpu.memory_space<vmem>>, vector<1x32xf32>
    %5 = vector.broadcast %4 : vector<1x32xf32> to vector<8x32xf32>
    %6 = arith.addf %3, %5 : vector<8x32xf32>
    %c0_6 = arith.constant 0 : index
    %c0_7 = arith.constant 0 : index
    %c0_8 = arith.constant 0 : index
    %7 = vector.load %arg2[%c0_6, %c0_7, %c0_8] : memref<1x8x32xf32, #tpu.memory_space<vmem>>, vector<1x8x32xf32>
    %8 = vector.shape_cast %7 : vector<1x8x32xf32> to vector<8x32xf32>
    %9 = arith.addf %6, %8 : vector<8x32xf32>
    %c0_9 = arith.constant 0 : index
    %c0_10 = arith.constant 0 : index
    %c0_11 = arith.constant 0 : index
    %10 = vector.load %arg3[%c0_9, %c0_10, %c0_11] : memref<1x1x8xf32, #tpu.memory_space<vmem>>, vector<1x1x8xf32>
    %11 = vector.shape_cast %10 : vector<1x1x8xf32> to vector<1x8xf32>
    %cst_12 = arith.constant 0.000000e+00 : f32
    %12 = vector.broadcast %cst_12 : f32 to vector<8x32xf32>
    %c0_13 = arith.constant 0 : index
    %c0_14 = arith.constant 0 : index
    %c0_15 = arith.constant 0 : index
    %13 = vector.load %arg6[%c0_13, %c0_14, %c0_15] : memref<4x1x32xf32, #tpu.memory_space<vmem>>, vector<1x1x32xf32>
    %14 = vector.shape_cast %13 : vector<1x1x32xf32> to vector<1x32xf32>
    %c0_16 = arith.constant 0 : index
    %c0_17 = arith.constant 0 : index
    %c0_18 = arith.constant 0 : index
    %15 = vector.load %arg7[%c0_16, %c0_17, %c0_18] : memref<4x1x32xf32, #tpu.memory_space<vmem>>, vector<1x1x32xf32>
    %16 = vector.shape_cast %15 : vector<1x1x32xf32> to vector<1x32xf32>
    %cst_19 = arith.constant dense<0.000000e+00> : vector<8xf32>
    %17 = vector.multi_reduction <add>, %9, %cst_19 [1] : vector<8x32xf32> to vector<8xf32>
    %18 = vector.shape_cast %17 : vector<8xf32> to vector<8x1xf32>
    %cst_20 = arith.constant 3.200000e+01 : f32
    %19 = vector.broadcast %cst_20 : f32 to vector<8x1xf32>
    %20 = arith.divf %18, %19 : vector<8x1xf32>
    %21 = vector.broadcast %20 : vector<8x1xf32> to vector<8x32xf32>
    %22 = arith.subf %9, %21 : vector<8x32xf32>
    %23 = arith.mulf %22, %22 : vector<8x32xf32>
    %cst_21 = arith.constant dense<0.000000e+00> : vector<8xf32>
    %24 = vector.multi_reduction <add>, %23, %cst_21 [1] : vector<8x32xf32> to vector<8xf32>
    %25 = vector.shape_cast %24 : vector<8xf32> to vector<8x1xf32>
    %cst_22 = arith.constant 3.200000e+01 : f32
    %26 = vector.broadcast %cst_22 : f32 to vector<8x1xf32>
    %27 = arith.divf %25, %26 : vector<8x1xf32>
    %28 = vector.broadcast %20 : vector<8x1xf32> to vector<8x32xf32>
    %29 = arith.subf %9, %28 : vector<8x32xf32>
    %cst_23 = arith.constant 9.99999974E-6 : f32
    %30 = vector.broadcast %cst_23 : f32 to vector<8x1xf32>
    %31 = arith.addf %27, %30 : vector<8x1xf32>
    %32 = math.rsqrt %31 : vector<8x1xf32>
    %33 = vector.broadcast %32 : vector<8x1xf32> to vector<8x32xf32>
    %34 = arith.mulf %29, %33 : vector<8x32xf32>
    %35 = vector.broadcast %14 : vector<1x32xf32> to vector<8x32xf32>
    %36 = arith.mulf %34, %35 : vector<8x32xf32>
    %37 = vector.broadcast %16 : vector<1x32xf32> to vector<8x32xf32>
    %38 = arith.addf %36, %37 : vector<8x32xf32>
    %c0_24 = arith.constant 0 : index
    %c0_25 = arith.constant 0 : index
    %c0_26 = arith.constant 0 : index
    %39 = vector.load %arg8[%c0_24, %c0_25, %c0_26] : memref<4x32x32xf32, #tpu.memory_space<vmem>>, vector<1x32x32xf32>
    %40 = vector.shape_cast %39 : vector<1x32x32xf32> to vector<32x32xf32>
    %cst_27 = arith.constant dense<0.000000e+00> : vector<8x32xf32>
    %41 = tpu.matmul %38, %40, %cst_27 {dimension_numbers = #tpu.dot_dimension_numbers<[1], [0], [0], [1], [0, 0, 1, 1], [], []>} : vector<8x32xf32>, vector<32x32xf32>, vector<8x32xf32> -> vector<8x32xf32>
    %c0_28 = arith.constant 0 : index
    %c0_29 = arith.constant 0 : index
    %c0_30 = arith.constant 0 : index
    %42 = vector.load %arg9[%c0_28, %c0_29, %c0_30] : memref<4x1x32xf32, #tpu.memory_space<vmem>>, vector<1x1x32xf32>
    %43 = vector.shape_cast %42 : vector<1x1x32xf32> to vector<1x32xf32>
    %44 = vector.broadcast %43 : vector<1x32xf32> to vector<8x32xf32>
    %45 = arith.addf %41, %44 : vector<8x32xf32>
    %cst_31 = arith.constant 0.353553385 : f32
    %46 = vector.broadcast %cst_31 : f32 to vector<8x32xf32>
    %47 = arith.mulf %45, %46 : vector<8x32xf32>
    %c0_32 = arith.constant 0 : index
    %c0_33 = arith.constant 0 : index
    %c0_34 = arith.constant 0 : index
    %48 = vector.load %arg10[%c0_32, %c0_33, %c0_34] : memref<4x32x32xf32, #tpu.memory_space<vmem>>, vector<1x32x32xf32>
    %49 = vector.shape_cast %48 : vector<1x32x32xf32> to vector<32x32xf32>
    %cst_35 = arith.constant dense<0.000000e+00> : vector<8x32xf32>
    %50 = tpu.matmul %38, %49, %cst_35 {dimension_numbers = #tpu.dot_dimension_numbers<[1], [0], [0], [1], [0, 0, 1, 1], [], []>} : vector<8x32xf32>, vector<32x32xf32>, vector<8x32xf32> -> vector<8x32xf32>
    %c0_36 = arith.constant 0 : index
    %c0_37 = arith.constant 0 : index
    %c0_38 = arith.constant 0 : index
    %51 = vector.load %arg11[%c0_36, %c0_37, %c0_38] : memref<4x1x32xf32, #tpu.memory_space<vmem>>, vector<1x1x32xf32>
    %52 = vector.shape_cast %51 : vector<1x1x32xf32> to vector<1x32xf32>
    %53 = vector.broadcast %52 : vector<1x32xf32> to vector<8x32xf32>
    %54 = arith.addf %50, %53 : vector<8x32xf32>
    %c0_39 = arith.constant 0 : index
    %c0_40 = arith.constant 0 : index
    %c0_41 = arith.constant 0 : index
    %55 = vector.load %arg12[%c0_39, %c0_40, %c0_41] : memref<4x32x32xf32, #tpu.memory_space<vmem>>, vector<1x32x32xf32>
    %56 = vector.shape_cast %55 : vector<1x32x32xf32> to vector<32x32xf32>
    %cst_42 = arith.constant dense<0.000000e+00> : vector<8x32xf32>
    %57 = tpu.matmul %38, %56, %cst_42 {dimension_numbers = #tpu.dot_dimension_numbers<[1], [0], [0], [1], [0, 0, 1, 1], [], []>} : vector<8x32xf32>, vector<32x32xf32>, vector<8x32xf32> -> vector<8x32xf32>
    %c0_43 = arith.constant 0 : index
    %c0_44 = arith.constant 0 : index
    %c0_45 = arith.constant 0 : index
    %58 = vector.load %arg13[%c0_43, %c0_44, %c0_45] : memref<4x1x32xf32, #tpu.memory_space<vmem>>, vector<1x1x32xf32>
    %59 = vector.shape_cast %58 : vector<1x1x32xf32> to vector<1x32xf32>
    %60 = vector.broadcast %59 : vector<1x32xf32> to vector<8x32xf32>
    %61 = arith.addf %57, %60 : vector<8x32xf32>
    %c0_46 = arith.constant 0 : index
    %c0_47 = arith.constant 0 : index
    %c0_48 = arith.constant 0 : index
    %62 = vector.load %arg14[%c0_46, %c0_47, %c0_48] : memref<4x32x32xf32, #tpu.memory_space<vmem>>, vector<1x32x32xf32>
    %63 = vector.shape_cast %62 : vector<1x32x32xf32> to vector<32x32xf32>
    %cst_49 = arith.constant 0.000000e+00 : f32
    %64 = vector.broadcast %cst_49 : f32 to vector<8x32xf32>
    %65 = vector.extract_strided_slice %47 {offsets = [0, 0], sizes = [8, 8], strides = [1, 1]} : vector<8x32xf32> to vector<8x8xf32>
    %66 = vector.extract_strided_slice %54 {offsets = [0, 0], sizes = [8, 8], strides = [1, 1]} : vector<8x32xf32> to vector<8x8xf32>
    %cst_50 = arith.constant dense<0.000000e+00> : vector<8x8xf32>
    %67 = tpu.matmul %65, %66, %cst_50 {dimension_numbers = #tpu.dot_dimension_numbers<[1], [1], [0], [0], [0, 0, 1, 0], [], []>} : vector<8x8xf32>, vector<8x8xf32>, vector<8x8xf32> -> vector<8x8xf32>
    %cst_51 = arith.constant 5.000000e-01 : f32
    %68 = vector.broadcast %cst_51 : f32 to vector<1x8xf32>
    %69 = arith.cmpf ogt, %11, %68 : vector<1x8xf32>
    %cst_52 = arith.constant -1.000000e+30 : f32
    %70 = vector.shape_cast %69 : vector<1x8xi1> to vector<1x8xi1>
    %71 = vector.broadcast %70 : vector<1x8xi1> to vector<8x8xi1>
    %72 = vector.broadcast %cst_52 : f32 to vector<8x8xf32>
    %73 = arith.select %71, %72, %67 : vector<8x8xi1>, vector<8x8xf32>
    %cst_53 = arith.constant dense<0xFF800000> : vector<8xf32>
    %74 = vector.multi_reduction <maximumf>, %73, %cst_53 [1] : vector<8x8xf32> to vector<8xf32>
    %75 = vector.shape_cast %74 : vector<8xf32> to vector<8x1xf32>
    %76 = vector.broadcast %75 : vector<8x1xf32> to vector<8x8xf32>
    %77 = arith.subf %73, %76 : vector<8x8xf32>
    %78 = math.exp %77 : vector<8x8xf32>
    %cst_54 = arith.constant dense<0.000000e+00> : vector<8xf32>
    %79 = vector.multi_reduction <add>, %78, %cst_54 [1] : vector<8x8xf32> to vector<8xf32>
    %80 = vector.shape_cast %79 : vector<8xf32> to vector<8x1xf32>
    %81 = tpu.reciprocal %80 {approx = true} : vector<8x1xf32> -> vector<8x1xf32>
    %82 = vector.broadcast %81 : vector<8x1xf32> to vector<8x8xf32>
    %83 = arith.mulf %78, %82 : vector<8x8xf32>
    %84 = vector.extract_strided_slice %61 {offsets = [0, 0], sizes = [8, 8], strides = [1, 1]} : vector<8x32xf32> to vector<8x8xf32>
    %cst_55 = arith.constant dense<0.000000e+00> : vector<8x8xf32>
    %85 = tpu.matmul %83, %84, %cst_55 {dimension_numbers = #tpu.dot_dimension_numbers<[1], [0], [0], [1], [0, 0, 1, 1], [], []>} : vector<8x8xf32>, vector<8x8xf32>, vector<8x8xf32> -> vector<8x8xf32>
    %86 = vector.extract_strided_slice %63 {offsets = [0, 0], sizes = [8, 32], strides = [1, 1]} : vector<32x32xf32> to vector<8x32xf32>
    %cst_56 = arith.constant dense<0.000000e+00> : vector<8x32xf32>
    %87 = tpu.matmul %85, %86, %cst_56 {dimension_numbers = #tpu.dot_dimension_numbers<[1], [0], [0], [1], [0, 0, 1, 1], [], []>} : vector<8x8xf32>, vector<8x32xf32>, vector<8x32xf32> -> vector<8x32xf32>
    %88 = arith.addf %64, %87 : vector<8x32xf32>
    %89 = vector.extract_strided_slice %47 {offsets = [0, 8], sizes = [8, 8], strides = [1, 1]} : vector<8x32xf32> to vector<8x8xf32>
    %90 = vector.extract_strided_slice %54 {offsets = [0, 8], sizes = [8, 8], strides = [1, 1]} : vector<8x32xf32> to vector<8x8xf32>
    %cst_57 = arith.constant dense<0.000000e+00> : vector<8x8xf32>
    %91 = tpu.matmul %89, %90, %cst_57 {dimension_numbers = #tpu.dot_dimension_numbers<[1], [1], [0], [0], [0, 0, 1, 0], [], []>} : vector<8x8xf32>, vector<8x8xf32>, vector<8x8xf32> -> vector<8x8xf32>
    %cst_58 = arith.constant 5.000000e-01 : f32
    %92 = vector.broadcast %cst_58 : f32 to vector<1x8xf32>
    %93 = arith.cmpf ogt, %11, %92 : vector<1x8xf32>
    %cst_59 = arith.constant -1.000000e+30 : f32
    %94 = vector.shape_cast %93 : vector<1x8xi1> to vector<1x8xi1>
    %95 = vector.broadcast %94 : vector<1x8xi1> to vector<8x8xi1>
    %96 = vector.broadcast %cst_59 : f32 to vector<8x8xf32>
    %97 = arith.select %95, %96, %91 : vector<8x8xi1>, vector<8x8xf32>
    %cst_60 = arith.constant dense<0xFF800000> : vector<8xf32>
    %98 = vector.multi_reduction <maximumf>, %97, %cst_60 [1] : vector<8x8xf32> to vector<8xf32>
    %99 = vector.shape_cast %98 : vector<8xf32> to vector<8x1xf32>
    %100 = vector.broadcast %99 : vector<8x1xf32> to vector<8x8xf32>
    %101 = arith.subf %97, %100 : vector<8x8xf32>
    %102 = math.exp %101 : vector<8x8xf32>
    %cst_61 = arith.constant dense<0.000000e+00> : vector<8xf32>
    %103 = vector.multi_reduction <add>, %102, %cst_61 [1] : vector<8x8xf32> to vector<8xf32>
    %104 = vector.shape_cast %103 : vector<8xf32> to vector<8x1xf32>
    %105 = tpu.reciprocal %104 {approx = true} : vector<8x1xf32> -> vector<8x1xf32>
    %106 = vector.broadcast %105 : vector<8x1xf32> to vector<8x8xf32>
    %107 = arith.mulf %102, %106 : vector<8x8xf32>
    %108 = vector.extract_strided_slice %61 {offsets = [0, 8], sizes = [8, 8], strides = [1, 1]} : vector<8x32xf32> to vector<8x8xf32>
    %cst_62 = arith.constant dense<0.000000e+00> : vector<8x8xf32>
    %109 = tpu.matmul %107, %108, %cst_62 {dimension_numbers = #tpu.dot_dimension_numbers<[1], [0], [0], [1], [0, 0, 1, 1], [], []>} : vector<8x8xf32>, vector<8x8xf32>, vector<8x8xf32> -> vector<8x8xf32>
    %110 = vector.extract_strided_slice %63 {offsets = [8, 0], sizes = [8, 32], strides = [1, 1]} : vector<32x32xf32> to vector<8x32xf32>
    %cst_63 = arith.constant dense<0.000000e+00> : vector<8x32xf32>
    %111 = tpu.matmul %109, %110, %cst_63 {dimension_numbers = #tpu.dot_dimension_numbers<[1], [0], [0], [1], [0, 0, 1, 1], [], []>} : vector<8x8xf32>, vector<8x32xf32>, vector<8x32xf32> -> vector<8x32xf32>
    %112 = arith.addf %88, %111 : vector<8x32xf32>
    %113 = vector.extract_strided_slice %47 {offsets = [0, 16], sizes = [8, 8], strides = [1, 1]} : vector<8x32xf32> to vector<8x8xf32>
    %114 = vector.extract_strided_slice %54 {offsets = [0, 16], sizes = [8, 8], strides = [1, 1]} : vector<8x32xf32> to vector<8x8xf32>
    %cst_64 = arith.constant dense<0.000000e+00> : vector<8x8xf32>
    %115 = tpu.matmul %113, %114, %cst_64 {dimension_numbers = #tpu.dot_dimension_numbers<[1], [1], [0], [0], [0, 0, 1, 0], [], []>} : vector<8x8xf32>, vector<8x8xf32>, vector<8x8xf32> -> vector<8x8xf32>
    %cst_65 = arith.constant 5.000000e-01 : f32
    %116 = vector.broadcast %cst_65 : f32 to vector<1x8xf32>
    %117 = arith.cmpf ogt, %11, %116 : vector<1x8xf32>
    %cst_66 = arith.constant -1.000000e+30 : f32
    %118 = vector.shape_cast %117 : vector<1x8xi1> to vector<1x8xi1>
    %119 = vector.broadcast %118 : vector<1x8xi1> to vector<8x8xi1>
    %120 = vector.broadcast %cst_66 : f32 to vector<8x8xf32>
    %121 = arith.select %119, %120, %115 : vector<8x8xi1>, vector<8x8xf32>
    %cst_67 = arith.constant dense<0xFF800000> : vector<8xf32>
    %122 = vector.multi_reduction <maximumf>, %121, %cst_67 [1] : vector<8x8xf32> to vector<8xf32>
    %123 = vector.shape_cast %122 : vector<8xf32> to vector<8x1xf32>
    %124 = vector.broadcast %123 : vector<8x1xf32> to vector<8x8xf32>
    %125 = arith.subf %121, %124 : vector<8x8xf32>
    %126 = math.exp %125 : vector<8x8xf32>
    %cst_68 = arith.constant dense<0.000000e+00> : vector<8xf32>
    %127 = vector.multi_reduction <add>, %126, %cst_68 [1] : vector<8x8xf32> to vector<8xf32>
    %128 = vector.shape_cast %127 : vector<8xf32> to vector<8x1xf32>
    %129 = tpu.reciprocal %128 {approx = true} : vector<8x1xf32> -> vector<8x1xf32>
    %130 = vector.broadcast %129 : vector<8x1xf32> to vector<8x8xf32>
    %131 = arith.mulf %126, %130 : vector<8x8xf32>
    %132 = vector.extract_strided_slice %61 {offsets = [0, 16], sizes = [8, 8], strides = [1, 1]} : vector<8x32xf32> to vector<8x8xf32>
    %cst_69 = arith.constant dense<0.000000e+00> : vector<8x8xf32>
    %133 = tpu.matmul %131, %132, %cst_69 {dimension_numbers = #tpu.dot_dimension_numbers<[1], [0], [0], [1], [0, 0, 1, 1], [], []>} : vector<8x8xf32>, vector<8x8xf32>, vector<8x8xf32> -> vector<8x8xf32>
    %134 = vector.extract_strided_slice %63 {offsets = [16, 0], sizes = [8, 32], strides = [1, 1]} : vector<32x32xf32> to vector<8x32xf32>
    %cst_70 = arith.constant dense<0.000000e+00> : vector<8x32xf32>
    %135 = tpu.matmul %133, %134, %cst_70 {dimension_numbers = #tpu.dot_dimension_numbers<[1], [0], [0], [1], [0, 0, 1, 1], [], []>} : vector<8x8xf32>, vector<8x32xf32>, vector<8x32xf32> -> vector<8x32xf32>
    %136 = arith.addf %112, %135 : vector<8x32xf32>
    %137 = vector.extract_strided_slice %47 {offsets = [0, 24], sizes = [8, 8], strides = [1, 1]} : vector<8x32xf32> to vector<8x8xf32>
    %138 = vector.extract_strided_slice %54 {offsets = [0, 24], sizes = [8, 8], strides = [1, 1]} : vector<8x32xf32> to vector<8x8xf32>
    %cst_71 = arith.constant dense<0.000000e+00> : vector<8x8xf32>
    %139 = tpu.matmul %137, %138, %cst_71 {dimension_numbers = #tpu.dot_dimension_numbers<[1], [1], [0], [0], [0, 0, 1, 0], [], []>} : vector<8x8xf32>, vector<8x8xf32>, vector<8x8xf32> -> vector<8x8xf32>
    %cst_72 = arith.constant 5.000000e-01 : f32
    %140 = vector.broadcast %cst_72 : f32 to vector<1x8xf32>
    %141 = arith.cmpf ogt, %11, %140 : vector<1x8xf32>
    %cst_73 = arith.constant -1.000000e+30 : f32
    %142 = vector.shape_cast %141 : vector<1x8xi1> to vector<1x8xi1>
    %143 = vector.broadcast %142 : vector<1x8xi1> to vector<8x8xi1>
    %144 = vector.broadcast %cst_73 : f32 to vector<8x8xf32>
    %145 = arith.select %143, %144, %139 : vector<8x8xi1>, vector<8x8xf32>
    %cst_74 = arith.constant dense<0xFF800000> : vector<8xf32>
    %146 = vector.multi_reduction <maximumf>, %145, %cst_74 [1] : vector<8x8xf32> to vector<8xf32>
    %147 = vector.shape_cast %146 : vector<8xf32> to vector<8x1xf32>
    %148 = vector.broadcast %147 : vector<8x1xf32> to vector<8x8xf32>
    %149 = arith.subf %145, %148 : vector<8x8xf32>
    %150 = math.exp %149 : vector<8x8xf32>
    %cst_75 = arith.constant dense<0.000000e+00> : vector<8xf32>
    %151 = vector.multi_reduction <add>, %150, %cst_75 [1] : vector<8x8xf32> to vector<8xf32>
    %152 = vector.shape_cast %151 : vector<8xf32> to vector<8x1xf32>
    %153 = tpu.reciprocal %152 {approx = true} : vector<8x1xf32> -> vector<8x1xf32>
    %154 = vector.broadcast %153 : vector<8x1xf32> to vector<8x8xf32>
    %155 = arith.mulf %150, %154 : vector<8x8xf32>
    %156 = vector.extract_strided_slice %61 {offsets = [0, 24], sizes = [8, 8], strides = [1, 1]} : vector<8x32xf32> to vector<8x8xf32>
    %cst_76 = arith.constant dense<0.000000e+00> : vector<8x8xf32>
    %157 = tpu.matmul %155, %156, %cst_76 {dimension_numbers = #tpu.dot_dimension_numbers<[1], [0], [0], [1], [0, 0, 1, 1], [], []>} : vector<8x8xf32>, vector<8x8xf32>, vector<8x8xf32> -> vector<8x8xf32>
    %158 = vector.extract_strided_slice %63 {offsets = [24, 0], sizes = [8, 32], strides = [1, 1]} : vector<32x32xf32> to vector<8x32xf32>
    %cst_77 = arith.constant dense<0.000000e+00> : vector<8x32xf32>
    %159 = tpu.matmul %157, %158, %cst_77 {dimension_numbers = #tpu.dot_dimension_numbers<[1], [0], [0], [1], [0, 0, 1, 1], [], []>} : vector<8x8xf32>, vector<8x32xf32>, vector<8x32xf32> -> vector<8x32xf32>
    %160 = arith.addf %136, %159 : vector<8x32xf32>
    %161 = arith.addf %9, %160 : vector<8x32xf32>
    %c0_78 = arith.constant 0 : index
    %c0_79 = arith.constant 0 : index
    %c0_80 = arith.constant 0 : index
    %162 = vector.load %arg15[%c0_78, %c0_79, %c0_80] : memref<4x1x32xf32, #tpu.memory_space<vmem>>, vector<1x1x32xf32>
    %163 = vector.shape_cast %162 : vector<1x1x32xf32> to vector<1x32xf32>
    %164 = vector.broadcast %163 : vector<1x32xf32> to vector<8x32xf32>
    %165 = arith.addf %161, %164 : vector<8x32xf32>
    %c0_81 = arith.constant 0 : index
    %c0_82 = arith.constant 0 : index
    %c0_83 = arith.constant 0 : index
    %166 = vector.load %arg16[%c0_81, %c0_82, %c0_83] : memref<4x1x32xf32, #tpu.memory_space<vmem>>, vector<1x1x32xf32>
    %167 = vector.shape_cast %166 : vector<1x1x32xf32> to vector<1x32xf32>
    %c0_84 = arith.constant 0 : index
    %c0_85 = arith.constant 0 : index
    %c0_86 = arith.constant 0 : index
    %168 = vector.load %arg17[%c0_84, %c0_85, %c0_86] : memref<4x1x32xf32, #tpu.memory_space<vmem>>, vector<1x1x32xf32>
    %169 = vector.shape_cast %168 : vector<1x1x32xf32> to vector<1x32xf32>
    %cst_87 = arith.constant dense<0.000000e+00> : vector<8xf32>
    %170 = vector.multi_reduction <add>, %165, %cst_87 [1] : vector<8x32xf32> to vector<8xf32>
    %171 = vector.shape_cast %170 : vector<8xf32> to vector<8x1xf32>
    %cst_88 = arith.constant 3.200000e+01 : f32
    %172 = vector.broadcast %cst_88 : f32 to vector<8x1xf32>
    %173 = arith.divf %171, %172 : vector<8x1xf32>
    %174 = vector.broadcast %173 : vector<8x1xf32> to vector<8x32xf32>
    %175 = arith.subf %165, %174 : vector<8x32xf32>
    %176 = arith.mulf %175, %175 : vector<8x32xf32>
    %cst_89 = arith.constant dense<0.000000e+00> : vector<8xf32>
    %177 = vector.multi_reduction <add>, %176, %cst_89 [1] : vector<8x32xf32> to vector<8xf32>
    %178 = vector.shape_cast %177 : vector<8xf32> to vector<8x1xf32>
    %cst_90 = arith.constant 3.200000e+01 : f32
    %179 = vector.broadcast %cst_90 : f32 to vector<8x1xf32>
    %180 = arith.divf %178, %179 : vector<8x1xf32>
    %181 = vector.broadcast %173 : vector<8x1xf32> to vector<8x32xf32>
    %182 = arith.subf %165, %181 : vector<8x32xf32>
    %cst_91 = arith.constant 9.99999974E-6 : f32
    %183 = vector.broadcast %cst_91 : f32 to vector<8x1xf32>
    %184 = arith.addf %180, %183 : vector<8x1xf32>
    %185 = math.rsqrt %184 : vector<8x1xf32>
    %186 = vector.broadcast %185 : vector<8x1xf32> to vector<8x32xf32>
    %187 = arith.mulf %182, %186 : vector<8x32xf32>
    %188 = vector.broadcast %167 : vector<1x32xf32> to vector<8x32xf32>
    %189 = arith.mulf %187, %188 : vector<8x32xf32>
    %190 = vector.broadcast %169 : vector<1x32xf32> to vector<8x32xf32>
    %191 = arith.addf %189, %190 : vector<8x32xf32>
    %c0_92 = arith.constant 0 : index
    %c0_93 = arith.constant 0 : index
    %c0_94 = arith.constant 0 : index
    %192 = vector.load %arg18[%c0_92, %c0_93, %c0_94] : memref<4x32x64xf32, #tpu.memory_space<vmem>>, vector<1x32x64xf32>
    %193 = vector.shape_cast %192 : vector<1x32x64xf32> to vector<32x64xf32>
    %cst_95 = arith.constant dense<0.000000e+00> : vector<8x64xf32>
    %194 = tpu.matmul %191, %193, %cst_95 {dimension_numbers = #tpu.dot_dimension_numbers<[1], [0], [0], [1], [0, 0, 1, 1], [], []>} : vector<8x32xf32>, vector<32x64xf32>, vector<8x64xf32> -> vector<8x64xf32>
    %c0_96 = arith.constant 0 : index
    %c0_97 = arith.constant 0 : index
    %c0_98 = arith.constant 0 : index
    %195 = vector.load %arg19[%c0_96, %c0_97, %c0_98] : memref<4x1x64xf32, #tpu.memory_space<vmem>>, vector<1x1x64xf32>
    %196 = vector.shape_cast %195 : vector<1x1x64xf32> to vector<1x64xf32>
    %197 = vector.broadcast %196 : vector<1x64xf32> to vector<8x64xf32>
    %198 = arith.addf %194, %197 : vector<8x64xf32>
    %cst_99 = arith.constant 0.000000e+00 : f32
    %199 = vector.broadcast %cst_99 : f32 to vector<8x64xf32>
    %200 = arith.maximumf %198, %199 : vector<8x64xf32>
    %c0_100 = arith.constant 0 : index
    %c0_101 = arith.constant 0 : index
    %c0_102 = arith.constant 0 : index
    %201 = vector.load %arg20[%c0_100, %c0_101, %c0_102] : memref<4x64x32xf32, #tpu.memory_space<vmem>>, vector<1x64x32xf32>
    %202 = vector.shape_cast %201 : vector<1x64x32xf32> to vector<64x32xf32>
    %cst_103 = arith.constant dense<0.000000e+00> : vector<8x32xf32>
    %203 = tpu.matmul %200, %202, %cst_103 {dimension_numbers = #tpu.dot_dimension_numbers<[1], [0], [0], [1], [0, 0, 1, 1], [], []>} : vector<8x64xf32>, vector<64x32xf32>, vector<8x32xf32> -> vector<8x32xf32>
    %204 = arith.addf %165, %203 : vector<8x32xf32>
    %c0_104 = arith.constant 0 : index
    %c0_105 = arith.constant 0 : index
    %c0_106 = arith.constant 0 : index
    %205 = vector.load %arg21[%c0_104, %c0_105, %c0_106] : memref<4x1x32xf32, #tpu.memory_space<vmem>>, vector<1x1x32xf32>
    %206 = vector.shape_cast %205 : vector<1x1x32xf32> to vector<1x32xf32>
    %207 = vector.broadcast %206 : vector<1x32xf32> to vector<8x32xf32>
    %208 = arith.addf %204, %207 : vector<8x32xf32>
    %209 = arith.addf %12, %208 : vector<8x32xf32>
    %c1 = arith.constant 1 : index
    %c0_107 = arith.constant 0 : index
    %c0_108 = arith.constant 0 : index
    %210 = vector.load %arg6[%c1, %c0_107, %c0_108] : memref<4x1x32xf32, #tpu.memory_space<vmem>>, vector<1x1x32xf32>
    %211 = vector.shape_cast %210 : vector<1x1x32xf32> to vector<1x32xf32>
    %c1_109 = arith.constant 1 : index
    %c0_110 = arith.constant 0 : index
    %c0_111 = arith.constant 0 : index
    %212 = vector.load %arg7[%c1_109, %c0_110, %c0_111] : memref<4x1x32xf32, #tpu.memory_space<vmem>>, vector<1x1x32xf32>
    %213 = vector.shape_cast %212 : vector<1x1x32xf32> to vector<1x32xf32>
    %cst_112 = arith.constant dense<0.000000e+00> : vector<8xf32>
    %214 = vector.multi_reduction <add>, %208, %cst_112 [1] : vector<8x32xf32> to vector<8xf32>
    %215 = vector.shape_cast %214 : vector<8xf32> to vector<8x1xf32>
    %cst_113 = arith.constant 3.200000e+01 : f32
    %216 = vector.broadcast %cst_113 : f32 to vector<8x1xf32>
    %217 = arith.divf %215, %216 : vector<8x1xf32>
    %218 = vector.broadcast %217 : vector<8x1xf32> to vector<8x32xf32>
    %219 = arith.subf %208, %218 : vector<8x32xf32>
    %220 = arith.mulf %219, %219 : vector<8x32xf32>
    %cst_114 = arith.constant dense<0.000000e+00> : vector<8xf32>
    %221 = vector.multi_reduction <add>, %220, %cst_114 [1] : vector<8x32xf32> to vector<8xf32>
    %222 = vector.shape_cast %221 : vector<8xf32> to vector<8x1xf32>
    %cst_115 = arith.constant 3.200000e+01 : f32
    %223 = vector.broadcast %cst_115 : f32 to vector<8x1xf32>
    %224 = arith.divf %222, %223 : vector<8x1xf32>
    %225 = vector.broadcast %217 : vector<8x1xf32> to vector<8x32xf32>
    %226 = arith.subf %208, %225 : vector<8x32xf32>
    %cst_116 = arith.constant 9.99999974E-6 : f32
    %227 = vector.broadcast %cst_116 : f32 to vector<8x1xf32>
    %228 = arith.addf %224, %227 : vector<8x1xf32>
    %229 = math.rsqrt %228 : vector<8x1xf32>
    %230 = vector.broadcast %229 : vector<8x1xf32> to vector<8x32xf32>
    %231 = arith.mulf %226, %230 : vector<8x32xf32>
    %232 = vector.broadcast %211 : vector<1x32xf32> to vector<8x32xf32>
    %233 = arith.mulf %231, %232 : vector<8x32xf32>
    %234 = vector.broadcast %213 : vector<1x32xf32> to vector<8x32xf32>
    %235 = arith.addf %233, %234 : vector<8x32xf32>
    %c1_117 = arith.constant 1 : index
    %c0_118 = arith.constant 0 : index
    %c0_119 = arith.constant 0 : index
    %236 = vector.load %arg8[%c1_117, %c0_118, %c0_119] : memref<4x32x32xf32, #tpu.memory_space<vmem>>, vector<1x32x32xf32>
    %237 = vector.shape_cast %236 : vector<1x32x32xf32> to vector<32x32xf32>
    %cst_120 = arith.constant dense<0.000000e+00> : vector<8x32xf32>
    %238 = tpu.matmul %235, %237, %cst_120 {dimension_numbers = #tpu.dot_dimension_numbers<[1], [0], [0], [1], [0, 0, 1, 1], [], []>} : vector<8x32xf32>, vector<32x32xf32>, vector<8x32xf32> -> vector<8x32xf32>
    %c1_121 = arith.constant 1 : index
    %c0_122 = arith.constant 0 : index
    %c0_123 = arith.constant 0 : index
    %239 = vector.load %arg9[%c1_121, %c0_122, %c0_123] : memref<4x1x32xf32, #tpu.memory_space<vmem>>, vector<1x1x32xf32>
    %240 = vector.shape_cast %239 : vector<1x1x32xf32> to vector<1x32xf32>
    %241 = vector.broadcast %240 : vector<1x32xf32> to vector<8x32xf32>
    %242 = arith.addf %238, %241 : vector<8x32xf32>
    %cst_124 = arith.constant 0.353553385 : f32
    %243 = vector.broadcast %cst_124 : f32 to vector<8x32xf32>
    %244 = arith.mulf %242, %243 : vector<8x32xf32>
    %c1_125 = arith.constant 1 : index
    %c0_126 = arith.constant 0 : index
    %c0_127 = arith.constant 0 : index
    %245 = vector.load %arg10[%c1_125, %c0_126, %c0_127] : memref<4x32x32xf32, #tpu.memory_space<vmem>>, vector<1x32x32xf32>
    %246 = vector.shape_cast %245 : vector<1x32x32xf32> to vector<32x32xf32>
    %cst_128 = arith.constant dense<0.000000e+00> : vector<8x32xf32>
    %247 = tpu.matmul %235, %246, %cst_128 {dimension_numbers = #tpu.dot_dimension_numbers<[1], [0], [0], [1], [0, 0, 1, 1], [], []>} : vector<8x32xf32>, vector<32x32xf32>, vector<8x32xf32> -> vector<8x32xf32>
    %c1_129 = arith.constant 1 : index
    %c0_130 = arith.constant 0 : index
    %c0_131 = arith.constant 0 : index
    %248 = vector.load %arg11[%c1_129, %c0_130, %c0_131] : memref<4x1x32xf32, #tpu.memory_space<vmem>>, vector<1x1x32xf32>
    %249 = vector.shape_cast %248 : vector<1x1x32xf32> to vector<1x32xf32>
    %250 = vector.broadcast %249 : vector<1x32xf32> to vector<8x32xf32>
    %251 = arith.addf %247, %250 : vector<8x32xf32>
    %c1_132 = arith.constant 1 : index
    %c0_133 = arith.constant 0 : index
    %c0_134 = arith.constant 0 : index
    %252 = vector.load %arg12[%c1_132, %c0_133, %c0_134] : memref<4x32x32xf32, #tpu.memory_space<vmem>>, vector<1x32x32xf32>
    %253 = vector.shape_cast %252 : vector<1x32x32xf32> to vector<32x32xf32>
    %cst_135 = arith.constant dense<0.000000e+00> : vector<8x32xf32>
    %254 = tpu.matmul %235, %253, %cst_135 {dimension_numbers = #tpu.dot_dimension_numbers<[1], [0], [0], [1], [0, 0, 1, 1], [], []>} : vector<8x32xf32>, vector<32x32xf32>, vector<8x32xf32> -> vector<8x32xf32>
    %c1_136 = arith.constant 1 : index
    %c0_137 = arith.constant 0 : index
    %c0_138 = arith.constant 0 : index
    %255 = vector.load %arg13[%c1_136, %c0_137, %c0_138] : memref<4x1x32xf32, #tpu.memory_space<vmem>>, vector<1x1x32xf32>
    %256 = vector.shape_cast %255 : vector<1x1x32xf32> to vector<1x32xf32>
    %257 = vector.broadcast %256 : vector<1x32xf32> to vector<8x32xf32>
    %258 = arith.addf %254, %257 : vector<8x32xf32>
    %c1_139 = arith.constant 1 : index
    %c0_140 = arith.constant 0 : index
    %c0_141 = arith.constant 0 : index
    %259 = vector.load %arg14[%c1_139, %c0_140, %c0_141] : memref<4x32x32xf32, #tpu.memory_space<vmem>>, vector<1x32x32xf32>
    %260 = vector.shape_cast %259 : vector<1x32x32xf32> to vector<32x32xf32>
    %cst_142 = arith.constant 0.000000e+00 : f32
    %261 = vector.broadcast %cst_142 : f32 to vector<8x32xf32>
    %262 = vector.extract_strided_slice %244 {offsets = [0, 0], sizes = [8, 8], strides = [1, 1]} : vector<8x32xf32> to vector<8x8xf32>
    %263 = vector.extract_strided_slice %251 {offsets = [0, 0], sizes = [8, 8], strides = [1, 1]} : vector<8x32xf32> to vector<8x8xf32>
    %cst_143 = arith.constant dense<0.000000e+00> : vector<8x8xf32>
    %264 = tpu.matmul %262, %263, %cst_143 {dimension_numbers = #tpu.dot_dimension_numbers<[1], [1], [0], [0], [0, 0, 1, 0], [], []>} : vector<8x8xf32>, vector<8x8xf32>, vector<8x8xf32> -> vector<8x8xf32>
    %cst_144 = arith.constant 5.000000e-01 : f32
    %265 = vector.broadcast %cst_144 : f32 to vector<1x8xf32>
    %266 = arith.cmpf ogt, %11, %265 : vector<1x8xf32>
    %cst_145 = arith.constant -1.000000e+30 : f32
    %267 = vector.shape_cast %266 : vector<1x8xi1> to vector<1x8xi1>
    %268 = vector.broadcast %267 : vector<1x8xi1> to vector<8x8xi1>
    %269 = vector.broadcast %cst_145 : f32 to vector<8x8xf32>
    %270 = arith.select %268, %269, %264 : vector<8x8xi1>, vector<8x8xf32>
    %cst_146 = arith.constant dense<0xFF800000> : vector<8xf32>
    %271 = vector.multi_reduction <maximumf>, %270, %cst_146 [1] : vector<8x8xf32> to vector<8xf32>
    %272 = vector.shape_cast %271 : vector<8xf32> to vector<8x1xf32>
    %273 = vector.broadcast %272 : vector<8x1xf32> to vector<8x8xf32>
    %274 = arith.subf %270, %273 : vector<8x8xf32>
    %275 = math.exp %274 : vector<8x8xf32>
    %cst_147 = arith.constant dense<0.000000e+00> : vector<8xf32>
    %276 = vector.multi_reduction <add>, %275, %cst_147 [1] : vector<8x8xf32> to vector<8xf32>
    %277 = vector.shape_cast %276 : vector<8xf32> to vector<8x1xf32>
    %278 = tpu.reciprocal %277 {approx = true} : vector<8x1xf32> -> vector<8x1xf32>
    %279 = vector.broadcast %278 : vector<8x1xf32> to vector<8x8xf32>
    %280 = arith.mulf %275, %279 : vector<8x8xf32>
    %281 = vector.extract_strided_slice %258 {offsets = [0, 0], sizes = [8, 8], strides = [1, 1]} : vector<8x32xf32> to vector<8x8xf32>
    %cst_148 = arith.constant dense<0.000000e+00> : vector<8x8xf32>
    %282 = tpu.matmul %280, %281, %cst_148 {dimension_numbers = #tpu.dot_dimension_numbers<[1], [0], [0], [1], [0, 0, 1, 1], [], []>} : vector<8x8xf32>, vector<8x8xf32>, vector<8x8xf32> -> vector<8x8xf32>
    %283 = vector.extract_strided_slice %260 {offsets = [0, 0], sizes = [8, 32], strides = [1, 1]} : vector<32x32xf32> to vector<8x32xf32>
    %cst_149 = arith.constant dense<0.000000e+00> : vector<8x32xf32>
    %284 = tpu.matmul %282, %283, %cst_149 {dimension_numbers = #tpu.dot_dimension_numbers<[1], [0], [0], [1], [0, 0, 1, 1], [], []>} : vector<8x8xf32>, vector<8x32xf32>, vector<8x32xf32> -> vector<8x32xf32>
    %285 = arith.addf %261, %284 : vector<8x32xf32>
    %286 = vector.extract_strided_slice %244 {offsets = [0, 8], sizes = [8, 8], strides = [1, 1]} : vector<8x32xf32> to vector<8x8xf32>
    %287 = vector.extract_strided_slice %251 {offsets = [0, 8], sizes = [8, 8], strides = [1, 1]} : vector<8x32xf32> to vector<8x8xf32>
    %cst_150 = arith.constant dense<0.000000e+00> : vector<8x8xf32>
    %288 = tpu.matmul %286, %287, %cst_150 {dimension_numbers = #tpu.dot_dimension_numbers<[1], [1], [0], [0], [0, 0, 1, 0], [], []>} : vector<8x8xf32>, vector<8x8xf32>, vector<8x8xf32> -> vector<8x8xf32>
    %cst_151 = arith.constant 5.000000e-01 : f32
    %289 = vector.broadcast %cst_151 : f32 to vector<1x8xf32>
    %290 = arith.cmpf ogt, %11, %289 : vector<1x8xf32>
    %cst_152 = arith.constant -1.000000e+30 : f32
    %291 = vector.shape_cast %290 : vector<1x8xi1> to vector<1x8xi1>
    %292 = vector.broadcast %291 : vector<1x8xi1> to vector<8x8xi1>
    %293 = vector.broadcast %cst_152 : f32 to vector<8x8xf32>
    %294 = arith.select %292, %293, %288 : vector<8x8xi1>, vector<8x8xf32>
    %cst_153 = arith.constant dense<0xFF800000> : vector<8xf32>
    %295 = vector.multi_reduction <maximumf>, %294, %cst_153 [1] : vector<8x8xf32> to vector<8xf32>
    %296 = vector.shape_cast %295 : vector<8xf32> to vector<8x1xf32>
    %297 = vector.broadcast %296 : vector<8x1xf32> to vector<8x8xf32>
    %298 = arith.subf %294, %297 : vector<8x8xf32>
    %299 = math.exp %298 : vector<8x8xf32>
    %cst_154 = arith.constant dense<0.000000e+00> : vector<8xf32>
    %300 = vector.multi_reduction <add>, %299, %cst_154 [1] : vector<8x8xf32> to vector<8xf32>
    %301 = vector.shape_cast %300 : vector<8xf32> to vector<8x1xf32>
    %302 = tpu.reciprocal %301 {approx = true} : vector<8x1xf32> -> vector<8x1xf32>
    %303 = vector.broadcast %302 : vector<8x1xf32> to vector<8x8xf32>
    %304 = arith.mulf %299, %303 : vector<8x8xf32>
    %305 = vector.extract_strided_slice %258 {offsets = [0, 8], sizes = [8, 8], strides = [1, 1]} : vector<8x32xf32> to vector<8x8xf32>
    %cst_155 = arith.constant dense<0.000000e+00> : vector<8x8xf32>
    %306 = tpu.matmul %304, %305, %cst_155 {dimension_numbers = #tpu.dot_dimension_numbers<[1], [0], [0], [1], [0, 0, 1, 1], [], []>} : vector<8x8xf32>, vector<8x8xf32>, vector<8x8xf32> -> vector<8x8xf32>
    %307 = vector.extract_strided_slice %260 {offsets = [8, 0], sizes = [8, 32], strides = [1, 1]} : vector<32x32xf32> to vector<8x32xf32>
    %cst_156 = arith.constant dense<0.000000e+00> : vector<8x32xf32>
    %308 = tpu.matmul %306, %307, %cst_156 {dimension_numbers = #tpu.dot_dimension_numbers<[1], [0], [0], [1], [0, 0, 1, 1], [], []>} : vector<8x8xf32>, vector<8x32xf32>, vector<8x32xf32> -> vector<8x32xf32>
    %309 = arith.addf %285, %308 : vector<8x32xf32>
    %310 = vector.extract_strided_slice %244 {offsets = [0, 16], sizes = [8, 8], strides = [1, 1]} : vector<8x32xf32> to vector<8x8xf32>
    %311 = vector.extract_strided_slice %251 {offsets = [0, 16], sizes = [8, 8], strides = [1, 1]} : vector<8x32xf32> to vector<8x8xf32>
    %cst_157 = arith.constant dense<0.000000e+00> : vector<8x8xf32>
    %312 = tpu.matmul %310, %311, %cst_157 {dimension_numbers = #tpu.dot_dimension_numbers<[1], [1], [0], [0], [0, 0, 1, 0], [], []>} : vector<8x8xf32>, vector<8x8xf32>, vector<8x8xf32> -> vector<8x8xf32>
    %cst_158 = arith.constant 5.000000e-01 : f32
    %313 = vector.broadcast %cst_158 : f32 to vector<1x8xf32>
    %314 = arith.cmpf ogt, %11, %313 : vector<1x8xf32>
    %cst_159 = arith.constant -1.000000e+30 : f32
    %315 = vector.shape_cast %314 : vector<1x8xi1> to vector<1x8xi1>
    %316 = vector.broadcast %315 : vector<1x8xi1> to vector<8x8xi1>
    %317 = vector.broadcast %cst_159 : f32 to vector<8x8xf32>
    %318 = arith.select %316, %317, %312 : vector<8x8xi1>, vector<8x8xf32>
    %cst_160 = arith.constant dense<0xFF800000> : vector<8xf32>
    %319 = vector.multi_reduction <maximumf>, %318, %cst_160 [1] : vector<8x8xf32> to vector<8xf32>
    %320 = vector.shape_cast %319 : vector<8xf32> to vector<8x1xf32>
    %321 = vector.broadcast %320 : vector<8x1xf32> to vector<8x8xf32>
    %322 = arith.subf %318, %321 : vector<8x8xf32>
    %323 = math.exp %322 : vector<8x8xf32>
    %cst_161 = arith.constant dense<0.000000e+00> : vector<8xf32>
    %324 = vector.multi_reduction <add>, %323, %cst_161 [1] : vector<8x8xf32> to vector<8xf32>
    %325 = vector.shape_cast %324 : vector<8xf32> to vector<8x1xf32>
    %326 = tpu.reciprocal %325 {approx = true} : vector<8x1xf32> -> vector<8x1xf32>
    %327 = vector.broadcast %326 : vector<8x1xf32> to vector<8x8xf32>
    %328 = arith.mulf %323, %327 : vector<8x8xf32>
    %329 = vector.extract_strided_slice %258 {offsets = [0, 16], sizes = [8, 8], strides = [1, 1]} : vector<8x32xf32> to vector<8x8xf32>
    %cst_162 = arith.constant dense<0.000000e+00> : vector<8x8xf32>
    %330 = tpu.matmul %328, %329, %cst_162 {dimension_numbers = #tpu.dot_dimension_numbers<[1], [0], [0], [1], [0, 0, 1, 1], [], []>} : vector<8x8xf32>, vector<8x8xf32>, vector<8x8xf32> -> vector<8x8xf32>
    %331 = vector.extract_strided_slice %260 {offsets = [16, 0], sizes = [8, 32], strides = [1, 1]} : vector<32x32xf32> to vector<8x32xf32>
    %cst_163 = arith.constant dense<0.000000e+00> : vector<8x32xf32>
    %332 = tpu.matmul %330, %331, %cst_163 {dimension_numbers = #tpu.dot_dimension_numbers<[1], [0], [0], [1], [0, 0, 1, 1], [], []>} : vector<8x8xf32>, vector<8x32xf32>, vector<8x32xf32> -> vector<8x32xf32>
    %333 = arith.addf %309, %332 : vector<8x32xf32>
    %334 = vector.extract_strided_slice %244 {offsets = [0, 24], sizes = [8, 8], strides = [1, 1]} : vector<8x32xf32> to vector<8x8xf32>
    %335 = vector.extract_strided_slice %251 {offsets = [0, 24], sizes = [8, 8], strides = [1, 1]} : vector<8x32xf32> to vector<8x8xf32>
    %cst_164 = arith.constant dense<0.000000e+00> : vector<8x8xf32>
    %336 = tpu.matmul %334, %335, %cst_164 {dimension_numbers = #tpu.dot_dimension_numbers<[1], [1], [0], [0], [0, 0, 1, 0], [], []>} : vector<8x8xf32>, vector<8x8xf32>, vector<8x8xf32> -> vector<8x8xf32>
    %cst_165 = arith.constant 5.000000e-01 : f32
    %337 = vector.broadcast %cst_165 : f32 to vector<1x8xf32>
    %338 = arith.cmpf ogt, %11, %337 : vector<1x8xf32>
    %cst_166 = arith.constant -1.000000e+30 : f32
    %339 = vector.shape_cast %338 : vector<1x8xi1> to vector<1x8xi1>
    %340 = vector.broadcast %339 : vector<1x8xi1> to vector<8x8xi1>
    %341 = vector.broadcast %cst_166 : f32 to vector<8x8xf32>
    %342 = arith.select %340, %341, %336 : vector<8x8xi1>, vector<8x8xf32>
    %cst_167 = arith.constant dense<0xFF800000> : vector<8xf32>
    %343 = vector.multi_reduction <maximumf>, %342, %cst_167 [1] : vector<8x8xf32> to vector<8xf32>
    %344 = vector.shape_cast %343 : vector<8xf32> to vector<8x1xf32>
    %345 = vector.broadcast %344 : vector<8x1xf32> to vector<8x8xf32>
    %346 = arith.subf %342, %345 : vector<8x8xf32>
    %347 = math.exp %346 : vector<8x8xf32>
    %cst_168 = arith.constant dense<0.000000e+00> : vector<8xf32>
    %348 = vector.multi_reduction <add>, %347, %cst_168 [1] : vector<8x8xf32> to vector<8xf32>
    %349 = vector.shape_cast %348 : vector<8xf32> to vector<8x1xf32>
    %350 = tpu.reciprocal %349 {approx = true} : vector<8x1xf32> -> vector<8x1xf32>
    %351 = vector.broadcast %350 : vector<8x1xf32> to vector<8x8xf32>
    %352 = arith.mulf %347, %351 : vector<8x8xf32>
    %353 = vector.extract_strided_slice %258 {offsets = [0, 24], sizes = [8, 8], strides = [1, 1]} : vector<8x32xf32> to vector<8x8xf32>
    %cst_169 = arith.constant dense<0.000000e+00> : vector<8x8xf32>
    %354 = tpu.matmul %352, %353, %cst_169 {dimension_numbers = #tpu.dot_dimension_numbers<[1], [0], [0], [1], [0, 0, 1, 1], [], []>} : vector<8x8xf32>, vector<8x8xf32>, vector<8x8xf32> -> vector<8x8xf32>
    %355 = vector.extract_strided_slice %260 {offsets = [24, 0], sizes = [8, 32], strides = [1, 1]} : vector<32x32xf32> to vector<8x32xf32>
    %cst_170 = arith.constant dense<0.000000e+00> : vector<8x32xf32>
    %356 = tpu.matmul %354, %355, %cst_170 {dimension_numbers = #tpu.dot_dimension_numbers<[1], [0], [0], [1], [0, 0, 1, 1], [], []>} : vector<8x8xf32>, vector<8x32xf32>, vector<8x32xf32> -> vector<8x32xf32>
    %357 = arith.addf %333, %356 : vector<8x32xf32>
    %358 = arith.addf %208, %357 : vector<8x32xf32>
    %c1_171 = arith.constant 1 : index
    %c0_172 = arith.constant 0 : index
    %c0_173 = arith.constant 0 : index
    %359 = vector.load %arg15[%c1_171, %c0_172, %c0_173] : memref<4x1x32xf32, #tpu.memory_space<vmem>>, vector<1x1x32xf32>
    %360 = vector.shape_cast %359 : vector<1x1x32xf32> to vector<1x32xf32>
    %361 = vector.broadcast %360 : vector<1x32xf32> to vector<8x32xf32>
    %362 = arith.addf %358, %361 : vector<8x32xf32>
    %c1_174 = arith.constant 1 : index
    %c0_175 = arith.constant 0 : index
    %c0_176 = arith.constant 0 : index
    %363 = vector.load %arg16[%c1_174, %c0_175, %c0_176] : memref<4x1x32xf32, #tpu.memory_space<vmem>>, vector<1x1x32xf32>
    %364 = vector.shape_cast %363 : vector<1x1x32xf32> to vector<1x32xf32>
    %c1_177 = arith.constant 1 : index
    %c0_178 = arith.constant 0 : index
    %c0_179 = arith.constant 0 : index
    %365 = vector.load %arg17[%c1_177, %c0_178, %c0_179] : memref<4x1x32xf32, #tpu.memory_space<vmem>>, vector<1x1x32xf32>
    %366 = vector.shape_cast %365 : vector<1x1x32xf32> to vector<1x32xf32>
    %cst_180 = arith.constant dense<0.000000e+00> : vector<8xf32>
    %367 = vector.multi_reduction <add>, %362, %cst_180 [1] : vector<8x32xf32> to vector<8xf32>
    %368 = vector.shape_cast %367 : vector<8xf32> to vector<8x1xf32>
    %cst_181 = arith.constant 3.200000e+01 : f32
    %369 = vector.broadcast %cst_181 : f32 to vector<8x1xf32>
    %370 = arith.divf %368, %369 : vector<8x1xf32>
    %371 = vector.broadcast %370 : vector<8x1xf32> to vector<8x32xf32>
    %372 = arith.subf %362, %371 : vector<8x32xf32>
    %373 = arith.mulf %372, %372 : vector<8x32xf32>
    %cst_182 = arith.constant dense<0.000000e+00> : vector<8xf32>
    %374 = vector.multi_reduction <add>, %373, %cst_182 [1] : vector<8x32xf32> to vector<8xf32>
    %375 = vector.shape_cast %374 : vector<8xf32> to vector<8x1xf32>
    %cst_183 = arith.constant 3.200000e+01 : f32
    %376 = vector.broadcast %cst_183 : f32 to vector<8x1xf32>
    %377 = arith.divf %375, %376 : vector<8x1xf32>
    %378 = vector.broadcast %370 : vector<8x1xf32> to vector<8x32xf32>
    %379 = arith.subf %362, %378 : vector<8x32xf32>
    %cst_184 = arith.constant 9.99999974E-6 : f32
    %380 = vector.broadcast %cst_184 : f32 to vector<8x1xf32>
    %381 = arith.addf %377, %380 : vector<8x1xf32>
    %382 = math.rsqrt %381 : vector<8x1xf32>
    %383 = vector.broadcast %382 : vector<8x1xf32> to vector<8x32xf32>
    %384 = arith.mulf %379, %383 : vector<8x32xf32>
    %385 = vector.broadcast %364 : vector<1x32xf32> to vector<8x32xf32>
    %386 = arith.mulf %384, %385 : vector<8x32xf32>
    %387 = vector.broadcast %366 : vector<1x32xf32> to vector<8x32xf32>
    %388 = arith.addf %386, %387 : vector<8x32xf32>
    %c1_185 = arith.constant 1 : index
    %c0_186 = arith.constant 0 : index
    %c0_187 = arith.constant 0 : index
    %389 = vector.load %arg18[%c1_185, %c0_186, %c0_187] : memref<4x32x64xf32, #tpu.memory_space<vmem>>, vector<1x32x64xf32>
    %390 = vector.shape_cast %389 : vector<1x32x64xf32> to vector<32x64xf32>
    %cst_188 = arith.constant dense<0.000000e+00> : vector<8x64xf32>
    %391 = tpu.matmul %388, %390, %cst_188 {dimension_numbers = #tpu.dot_dimension_numbers<[1], [0], [0], [1], [0, 0, 1, 1], [], []>} : vector<8x32xf32>, vector<32x64xf32>, vector<8x64xf32> -> vector<8x64xf32>
    %c1_189 = arith.constant 1 : index
    %c0_190 = arith.constant 0 : index
    %c0_191 = arith.constant 0 : index
    %392 = vector.load %arg19[%c1_189, %c0_190, %c0_191] : memref<4x1x64xf32, #tpu.memory_space<vmem>>, vector<1x1x64xf32>
    %393 = vector.shape_cast %392 : vector<1x1x64xf32> to vector<1x64xf32>
    %394 = vector.broadcast %393 : vector<1x64xf32> to vector<8x64xf32>
    %395 = arith.addf %391, %394 : vector<8x64xf32>
    %cst_192 = arith.constant 0.000000e+00 : f32
    %396 = vector.broadcast %cst_192 : f32 to vector<8x64xf32>
    %397 = arith.maximumf %395, %396 : vector<8x64xf32>
    %c1_193 = arith.constant 1 : index
    %c0_194 = arith.constant 0 : index
    %c0_195 = arith.constant 0 : index
    %398 = vector.load %arg20[%c1_193, %c0_194, %c0_195] : memref<4x64x32xf32, #tpu.memory_space<vmem>>, vector<1x64x32xf32>
    %399 = vector.shape_cast %398 : vector<1x64x32xf32> to vector<64x32xf32>
    %cst_196 = arith.constant dense<0.000000e+00> : vector<8x32xf32>
    %400 = tpu.matmul %397, %399, %cst_196 {dimension_numbers = #tpu.dot_dimension_numbers<[1], [0], [0], [1], [0, 0, 1, 1], [], []>} : vector<8x64xf32>, vector<64x32xf32>, vector<8x32xf32> -> vector<8x32xf32>
    %401 = arith.addf %362, %400 : vector<8x32xf32>
    %c1_197 = arith.constant 1 : index
    %c0_198 = arith.constant 0 : index
    %c0_199 = arith.constant 0 : index
    %402 = vector.load %arg21[%c1_197, %c0_198, %c0_199] : memref<4x1x32xf32, #tpu.memory_space<vmem>>, vector<1x1x32xf32>
    %403 = vector.shape_cast %402 : vector<1x1x32xf32> to vector<1x32xf32>
    %404 = vector.broadcast %403 : vector<1x32xf32> to vector<8x32xf32>
    %405 = arith.addf %401, %404 : vector<8x32xf32>
    %406 = arith.addf %209, %405 : vector<8x32xf32>
    %c2 = arith.constant 2 : index
    %c0_200 = arith.constant 0 : index
    %c0_201 = arith.constant 0 : index
    %407 = vector.load %arg6[%c2, %c0_200, %c0_201] : memref<4x1x32xf32, #tpu.memory_space<vmem>>, vector<1x1x32xf32>
    %408 = vector.shape_cast %407 : vector<1x1x32xf32> to vector<1x32xf32>
    %c2_202 = arith.constant 2 : index
    %c0_203 = arith.constant 0 : index
    %c0_204 = arith.constant 0 : index
    %409 = vector.load %arg7[%c2_202, %c0_203, %c0_204] : memref<4x1x32xf32, #tpu.memory_space<vmem>>, vector<1x1x32xf32>
    %410 = vector.shape_cast %409 : vector<1x1x32xf32> to vector<1x32xf32>
    %cst_205 = arith.constant dense<0.000000e+00> : vector<8xf32>
    %411 = vector.multi_reduction <add>, %405, %cst_205 [1] : vector<8x32xf32> to vector<8xf32>
    %412 = vector.shape_cast %411 : vector<8xf32> to vector<8x1xf32>
    %cst_206 = arith.constant 3.200000e+01 : f32
    %413 = vector.broadcast %cst_206 : f32 to vector<8x1xf32>
    %414 = arith.divf %412, %413 : vector<8x1xf32>
    %415 = vector.broadcast %414 : vector<8x1xf32> to vector<8x32xf32>
    %416 = arith.subf %405, %415 : vector<8x32xf32>
    %417 = arith.mulf %416, %416 : vector<8x32xf32>
    %cst_207 = arith.constant dense<0.000000e+00> : vector<8xf32>
    %418 = vector.multi_reduction <add>, %417, %cst_207 [1] : vector<8x32xf32> to vector<8xf32>
    %419 = vector.shape_cast %418 : vector<8xf32> to vector<8x1xf32>
    %cst_208 = arith.constant 3.200000e+01 : f32
    %420 = vector.broadcast %cst_208 : f32 to vector<8x1xf32>
    %421 = arith.divf %419, %420 : vector<8x1xf32>
    %422 = vector.broadcast %414 : vector<8x1xf32> to vector<8x32xf32>
    %423 = arith.subf %405, %422 : vector<8x32xf32>
    %cst_209 = arith.constant 9.99999974E-6 : f32
    %424 = vector.broadcast %cst_209 : f32 to vector<8x1xf32>
    %425 = arith.addf %421, %424 : vector<8x1xf32>
    %426 = math.rsqrt %425 : vector<8x1xf32>
    %427 = vector.broadcast %426 : vector<8x1xf32> to vector<8x32xf32>
    %428 = arith.mulf %423, %427 : vector<8x32xf32>
    %429 = vector.broadcast %408 : vector<1x32xf32> to vector<8x32xf32>
    %430 = arith.mulf %428, %429 : vector<8x32xf32>
    %431 = vector.broadcast %410 : vector<1x32xf32> to vector<8x32xf32>
    %432 = arith.addf %430, %431 : vector<8x32xf32>
    %c2_210 = arith.constant 2 : index
    %c0_211 = arith.constant 0 : index
    %c0_212 = arith.constant 0 : index
    %433 = vector.load %arg8[%c2_210, %c0_211, %c0_212] : memref<4x32x32xf32, #tpu.memory_space<vmem>>, vector<1x32x32xf32>
    %434 = vector.shape_cast %433 : vector<1x32x32xf32> to vector<32x32xf32>
    %cst_213 = arith.constant dense<0.000000e+00> : vector<8x32xf32>
    %435 = tpu.matmul %432, %434, %cst_213 {dimension_numbers = #tpu.dot_dimension_numbers<[1], [0], [0], [1], [0, 0, 1, 1], [], []>} : vector<8x32xf32>, vector<32x32xf32>, vector<8x32xf32> -> vector<8x32xf32>
    %c2_214 = arith.constant 2 : index
    %c0_215 = arith.constant 0 : index
    %c0_216 = arith.constant 0 : index
    %436 = vector.load %arg9[%c2_214, %c0_215, %c0_216] : memref<4x1x32xf32, #tpu.memory_space<vmem>>, vector<1x1x32xf32>
    %437 = vector.shape_cast %436 : vector<1x1x32xf32> to vector<1x32xf32>
    %438 = vector.broadcast %437 : vector<1x32xf32> to vector<8x32xf32>
    %439 = arith.addf %435, %438 : vector<8x32xf32>
    %cst_217 = arith.constant 0.353553385 : f32
    %440 = vector.broadcast %cst_217 : f32 to vector<8x32xf32>
    %441 = arith.mulf %439, %440 : vector<8x32xf32>
    %c2_218 = arith.constant 2 : index
    %c0_219 = arith.constant 0 : index
    %c0_220 = arith.constant 0 : index
    %442 = vector.load %arg10[%c2_218, %c0_219, %c0_220] : memref<4x32x32xf32, #tpu.memory_space<vmem>>, vector<1x32x32xf32>
    %443 = vector.shape_cast %442 : vector<1x32x32xf32> to vector<32x32xf32>
    %cst_221 = arith.constant dense<0.000000e+00> : vector<8x32xf32>
    %444 = tpu.matmul %432, %443, %cst_221 {dimension_numbers = #tpu.dot_dimension_numbers<[1], [0], [0], [1], [0, 0, 1, 1], [], []>} : vector<8x32xf32>, vector<32x32xf32>, vector<8x32xf32> -> vector<8x32xf32>
    %c2_222 = arith.constant 2 : index
    %c0_223 = arith.constant 0 : index
    %c0_224 = arith.constant 0 : index
    %445 = vector.load %arg11[%c2_222, %c0_223, %c0_224] : memref<4x1x32xf32, #tpu.memory_space<vmem>>, vector<1x1x32xf32>
    %446 = vector.shape_cast %445 : vector<1x1x32xf32> to vector<1x32xf32>
    %447 = vector.broadcast %446 : vector<1x32xf32> to vector<8x32xf32>
    %448 = arith.addf %444, %447 : vector<8x32xf32>
    %c2_225 = arith.constant 2 : index
    %c0_226 = arith.constant 0 : index
    %c0_227 = arith.constant 0 : index
    %449 = vector.load %arg12[%c2_225, %c0_226, %c0_227] : memref<4x32x32xf32, #tpu.memory_space<vmem>>, vector<1x32x32xf32>
    %450 = vector.shape_cast %449 : vector<1x32x32xf32> to vector<32x32xf32>
    %cst_228 = arith.constant dense<0.000000e+00> : vector<8x32xf32>
    %451 = tpu.matmul %432, %450, %cst_228 {dimension_numbers = #tpu.dot_dimension_numbers<[1], [0], [0], [1], [0, 0, 1, 1], [], []>} : vector<8x32xf32>, vector<32x32xf32>, vector<8x32xf32> -> vector<8x32xf32>
    %c2_229 = arith.constant 2 : index
    %c0_230 = arith.constant 0 : index
    %c0_231 = arith.constant 0 : index
    %452 = vector.load %arg13[%c2_229, %c0_230, %c0_231] : memref<4x1x32xf32, #tpu.memory_space<vmem>>, vector<1x1x32xf32>
    %453 = vector.shape_cast %452 : vector<1x1x32xf32> to vector<1x32xf32>
    %454 = vector.broadcast %453 : vector<1x32xf32> to vector<8x32xf32>
    %455 = arith.addf %451, %454 : vector<8x32xf32>
    %c2_232 = arith.constant 2 : index
    %c0_233 = arith.constant 0 : index
    %c0_234 = arith.constant 0 : index
    %456 = vector.load %arg14[%c2_232, %c0_233, %c0_234] : memref<4x32x32xf32, #tpu.memory_space<vmem>>, vector<1x32x32xf32>
    %457 = vector.shape_cast %456 : vector<1x32x32xf32> to vector<32x32xf32>
    %cst_235 = arith.constant 0.000000e+00 : f32
    %458 = vector.broadcast %cst_235 : f32 to vector<8x32xf32>
    %459 = vector.extract_strided_slice %441 {offsets = [0, 0], sizes = [8, 8], strides = [1, 1]} : vector<8x32xf32> to vector<8x8xf32>
    %460 = vector.extract_strided_slice %448 {offsets = [0, 0], sizes = [8, 8], strides = [1, 1]} : vector<8x32xf32> to vector<8x8xf32>
    %cst_236 = arith.constant dense<0.000000e+00> : vector<8x8xf32>
    %461 = tpu.matmul %459, %460, %cst_236 {dimension_numbers = #tpu.dot_dimension_numbers<[1], [1], [0], [0], [0, 0, 1, 0], [], []>} : vector<8x8xf32>, vector<8x8xf32>, vector<8x8xf32> -> vector<8x8xf32>
    %cst_237 = arith.constant 5.000000e-01 : f32
    %462 = vector.broadcast %cst_237 : f32 to vector<1x8xf32>
    %463 = arith.cmpf ogt, %11, %462 : vector<1x8xf32>
    %cst_238 = arith.constant -1.000000e+30 : f32
    %464 = vector.shape_cast %463 : vector<1x8xi1> to vector<1x8xi1>
    %465 = vector.broadcast %464 : vector<1x8xi1> to vector<8x8xi1>
    %466 = vector.broadcast %cst_238 : f32 to vector<8x8xf32>
    %467 = arith.select %465, %466, %461 : vector<8x8xi1>, vector<8x8xf32>
    %cst_239 = arith.constant dense<0xFF800000> : vector<8xf32>
    %468 = vector.multi_reduction <maximumf>, %467, %cst_239 [1] : vector<8x8xf32> to vector<8xf32>
    %469 = vector.shape_cast %468 : vector<8xf32> to vector<8x1xf32>
    %470 = vector.broadcast %469 : vector<8x1xf32> to vector<8x8xf32>
    %471 = arith.subf %467, %470 : vector<8x8xf32>
    %472 = math.exp %471 : vector<8x8xf32>
    %cst_240 = arith.constant dense<0.000000e+00> : vector<8xf32>
    %473 = vector.multi_reduction <add>, %472, %cst_240 [1] : vector<8x8xf32> to vector<8xf32>
    %474 = vector.shape_cast %473 : vector<8xf32> to vector<8x1xf32>
    %475 = tpu.reciprocal %474 {approx = true} : vector<8x1xf32> -> vector<8x1xf32>
    %476 = vector.broadcast %475 : vector<8x1xf32> to vector<8x8xf32>
    %477 = arith.mulf %472, %476 : vector<8x8xf32>
    %478 = vector.extract_strided_slice %455 {offsets = [0, 0], sizes = [8, 8], strides = [1, 1]} : vector<8x32xf32> to vector<8x8xf32>
    %cst_241 = arith.constant dense<0.000000e+00> : vector<8x8xf32>
    %479 = tpu.matmul %477, %478, %cst_241 {dimension_numbers = #tpu.dot_dimension_numbers<[1], [0], [0], [1], [0, 0, 1, 1], [], []>} : vector<8x8xf32>, vector<8x8xf32>, vector<8x8xf32> -> vector<8x8xf32>
    %480 = vector.extract_strided_slice %457 {offsets = [0, 0], sizes = [8, 32], strides = [1, 1]} : vector<32x32xf32> to vector<8x32xf32>
    %cst_242 = arith.constant dense<0.000000e+00> : vector<8x32xf32>
    %481 = tpu.matmul %479, %480, %cst_242 {dimension_numbers = #tpu.dot_dimension_numbers<[1], [0], [0], [1], [0, 0, 1, 1], [], []>} : vector<8x8xf32>, vector<8x32xf32>, vector<8x32xf32> -> vector<8x32xf32>
    %482 = arith.addf %458, %481 : vector<8x32xf32>
    %483 = vector.extract_strided_slice %441 {offsets = [0, 8], sizes = [8, 8], strides = [1, 1]} : vector<8x32xf32> to vector<8x8xf32>
    %484 = vector.extract_strided_slice %448 {offsets = [0, 8], sizes = [8, 8], strides = [1, 1]} : vector<8x32xf32> to vector<8x8xf32>
    %cst_243 = arith.constant dense<0.000000e+00> : vector<8x8xf32>
    %485 = tpu.matmul %483, %484, %cst_243 {dimension_numbers = #tpu.dot_dimension_numbers<[1], [1], [0], [0], [0, 0, 1, 0], [], []>} : vector<8x8xf32>, vector<8x8xf32>, vector<8x8xf32> -> vector<8x8xf32>
    %cst_244 = arith.constant 5.000000e-01 : f32
    %486 = vector.broadcast %cst_244 : f32 to vector<1x8xf32>
    %487 = arith.cmpf ogt, %11, %486 : vector<1x8xf32>
    %cst_245 = arith.constant -1.000000e+30 : f32
    %488 = vector.shape_cast %487 : vector<1x8xi1> to vector<1x8xi1>
    %489 = vector.broadcast %488 : vector<1x8xi1> to vector<8x8xi1>
    %490 = vector.broadcast %cst_245 : f32 to vector<8x8xf32>
    %491 = arith.select %489, %490, %485 : vector<8x8xi1>, vector<8x8xf32>
    %cst_246 = arith.constant dense<0xFF800000> : vector<8xf32>
    %492 = vector.multi_reduction <maximumf>, %491, %cst_246 [1] : vector<8x8xf32> to vector<8xf32>
    %493 = vector.shape_cast %492 : vector<8xf32> to vector<8x1xf32>
    %494 = vector.broadcast %493 : vector<8x1xf32> to vector<8x8xf32>
    %495 = arith.subf %491, %494 : vector<8x8xf32>
    %496 = math.exp %495 : vector<8x8xf32>
    %cst_247 = arith.constant dense<0.000000e+00> : vector<8xf32>
    %497 = vector.multi_reduction <add>, %496, %cst_247 [1] : vector<8x8xf32> to vector<8xf32>
    %498 = vector.shape_cast %497 : vector<8xf32> to vector<8x1xf32>
    %499 = tpu.reciprocal %498 {approx = true} : vector<8x1xf32> -> vector<8x1xf32>
    %500 = vector.broadcast %499 : vector<8x1xf32> to vector<8x8xf32>
    %501 = arith.mulf %496, %500 : vector<8x8xf32>
    %502 = vector.extract_strided_slice %455 {offsets = [0, 8], sizes = [8, 8], strides = [1, 1]} : vector<8x32xf32> to vector<8x8xf32>
    %cst_248 = arith.constant dense<0.000000e+00> : vector<8x8xf32>
    %503 = tpu.matmul %501, %502, %cst_248 {dimension_numbers = #tpu.dot_dimension_numbers<[1], [0], [0], [1], [0, 0, 1, 1], [], []>} : vector<8x8xf32>, vector<8x8xf32>, vector<8x8xf32> -> vector<8x8xf32>
    %504 = vector.extract_strided_slice %457 {offsets = [8, 0], sizes = [8, 32], strides = [1, 1]} : vector<32x32xf32> to vector<8x32xf32>
    %cst_249 = arith.constant dense<0.000000e+00> : vector<8x32xf32>
    %505 = tpu.matmul %503, %504, %cst_249 {dimension_numbers = #tpu.dot_dimension_numbers<[1], [0], [0], [1], [0, 0, 1, 1], [], []>} : vector<8x8xf32>, vector<8x32xf32>, vector<8x32xf32> -> vector<8x32xf32>
    %506 = arith.addf %482, %505 : vector<8x32xf32>
    %507 = vector.extract_strided_slice %441 {offsets = [0, 16], sizes = [8, 8], strides = [1, 1]} : vector<8x32xf32> to vector<8x8xf32>
    %508 = vector.extract_strided_slice %448 {offsets = [0, 16], sizes = [8, 8], strides = [1, 1]} : vector<8x32xf32> to vector<8x8xf32>
    %cst_250 = arith.constant dense<0.000000e+00> : vector<8x8xf32>
    %509 = tpu.matmul %507, %508, %cst_250 {dimension_numbers = #tpu.dot_dimension_numbers<[1], [1], [0], [0], [0, 0, 1, 0], [], []>} : vector<8x8xf32>, vector<8x8xf32>, vector<8x8xf32> -> vector<8x8xf32>
    %cst_251 = arith.constant 5.000000e-01 : f32
    %510 = vector.broadcast %cst_251 : f32 to vector<1x8xf32>
    %511 = arith.cmpf ogt, %11, %510 : vector<1x8xf32>
    %cst_252 = arith.constant -1.000000e+30 : f32
    %512 = vector.shape_cast %511 : vector<1x8xi1> to vector<1x8xi1>
    %513 = vector.broadcast %512 : vector<1x8xi1> to vector<8x8xi1>
    %514 = vector.broadcast %cst_252 : f32 to vector<8x8xf32>
    %515 = arith.select %513, %514, %509 : vector<8x8xi1>, vector<8x8xf32>
    %cst_253 = arith.constant dense<0xFF800000> : vector<8xf32>
    %516 = vector.multi_reduction <maximumf>, %515, %cst_253 [1] : vector<8x8xf32> to vector<8xf32>
    %517 = vector.shape_cast %516 : vector<8xf32> to vector<8x1xf32>
    %518 = vector.broadcast %517 : vector<8x1xf32> to vector<8x8xf32>
    %519 = arith.subf %515, %518 : vector<8x8xf32>
    %520 = math.exp %519 : vector<8x8xf32>
    %cst_254 = arith.constant dense<0.000000e+00> : vector<8xf32>
    %521 = vector.multi_reduction <add>, %520, %cst_254 [1] : vector<8x8xf32> to vector<8xf32>
    %522 = vector.shape_cast %521 : vector<8xf32> to vector<8x1xf32>
    %523 = tpu.reciprocal %522 {approx = true} : vector<8x1xf32> -> vector<8x1xf32>
    %524 = vector.broadcast %523 : vector<8x1xf32> to vector<8x8xf32>
    %525 = arith.mulf %520, %524 : vector<8x8xf32>
    %526 = vector.extract_strided_slice %455 {offsets = [0, 16], sizes = [8, 8], strides = [1, 1]} : vector<8x32xf32> to vector<8x8xf32>
    %cst_255 = arith.constant dense<0.000000e+00> : vector<8x8xf32>
    %527 = tpu.matmul %525, %526, %cst_255 {dimension_numbers = #tpu.dot_dimension_numbers<[1], [0], [0], [1], [0, 0, 1, 1], [], []>} : vector<8x8xf32>, vector<8x8xf32>, vector<8x8xf32> -> vector<8x8xf32>
    %528 = vector.extract_strided_slice %457 {offsets = [16, 0], sizes = [8, 32], strides = [1, 1]} : vector<32x32xf32> to vector<8x32xf32>
    %cst_256 = arith.constant dense<0.000000e+00> : vector<8x32xf32>
    %529 = tpu.matmul %527, %528, %cst_256 {dimension_numbers = #tpu.dot_dimension_numbers<[1], [0], [0], [1], [0, 0, 1, 1], [], []>} : vector<8x8xf32>, vector<8x32xf32>, vector<8x32xf32> -> vector<8x32xf32>
    %530 = arith.addf %506, %529 : vector<8x32xf32>
    %531 = vector.extract_strided_slice %441 {offsets = [0, 24], sizes = [8, 8], strides = [1, 1]} : vector<8x32xf32> to vector<8x8xf32>
    %532 = vector.extract_strided_slice %448 {offsets = [0, 24], sizes = [8, 8], strides = [1, 1]} : vector<8x32xf32> to vector<8x8xf32>
    %cst_257 = arith.constant dense<0.000000e+00> : vector<8x8xf32>
    %533 = tpu.matmul %531, %532, %cst_257 {dimension_numbers = #tpu.dot_dimension_numbers<[1], [1], [0], [0], [0, 0, 1, 0], [], []>} : vector<8x8xf32>, vector<8x8xf32>, vector<8x8xf32> -> vector<8x8xf32>
    %cst_258 = arith.constant 5.000000e-01 : f32
    %534 = vector.broadcast %cst_258 : f32 to vector<1x8xf32>
    %535 = arith.cmpf ogt, %11, %534 : vector<1x8xf32>
    %cst_259 = arith.constant -1.000000e+30 : f32
    %536 = vector.shape_cast %535 : vector<1x8xi1> to vector<1x8xi1>
    %537 = vector.broadcast %536 : vector<1x8xi1> to vector<8x8xi1>
    %538 = vector.broadcast %cst_259 : f32 to vector<8x8xf32>
    %539 = arith.select %537, %538, %533 : vector<8x8xi1>, vector<8x8xf32>
    %cst_260 = arith.constant dense<0xFF800000> : vector<8xf32>
    %540 = vector.multi_reduction <maximumf>, %539, %cst_260 [1] : vector<8x8xf32> to vector<8xf32>
    %541 = vector.shape_cast %540 : vector<8xf32> to vector<8x1xf32>
    %542 = vector.broadcast %541 : vector<8x1xf32> to vector<8x8xf32>
    %543 = arith.subf %539, %542 : vector<8x8xf32>
    %544 = math.exp %543 : vector<8x8xf32>
    %cst_261 = arith.constant dense<0.000000e+00> : vector<8xf32>
    %545 = vector.multi_reduction <add>, %544, %cst_261 [1] : vector<8x8xf32> to vector<8xf32>
    %546 = vector.shape_cast %545 : vector<8xf32> to vector<8x1xf32>
    %547 = tpu.reciprocal %546 {approx = true} : vector<8x1xf32> -> vector<8x1xf32>
    %548 = vector.broadcast %547 : vector<8x1xf32> to vector<8x8xf32>
    %549 = arith.mulf %544, %548 : vector<8x8xf32>
    %550 = vector.extract_strided_slice %455 {offsets = [0, 24], sizes = [8, 8], strides = [1, 1]} : vector<8x32xf32> to vector<8x8xf32>
    %cst_262 = arith.constant dense<0.000000e+00> : vector<8x8xf32>
    %551 = tpu.matmul %549, %550, %cst_262 {dimension_numbers = #tpu.dot_dimension_numbers<[1], [0], [0], [1], [0, 0, 1, 1], [], []>} : vector<8x8xf32>, vector<8x8xf32>, vector<8x8xf32> -> vector<8x8xf32>
    %552 = vector.extract_strided_slice %457 {offsets = [24, 0], sizes = [8, 32], strides = [1, 1]} : vector<32x32xf32> to vector<8x32xf32>
    %cst_263 = arith.constant dense<0.000000e+00> : vector<8x32xf32>
    %553 = tpu.matmul %551, %552, %cst_263 {dimension_numbers = #tpu.dot_dimension_numbers<[1], [0], [0], [1], [0, 0, 1, 1], [], []>} : vector<8x8xf32>, vector<8x32xf32>, vector<8x32xf32> -> vector<8x32xf32>
    %554 = arith.addf %530, %553 : vector<8x32xf32>
    %555 = arith.addf %405, %554 : vector<8x32xf32>
    %c2_264 = arith.constant 2 : index
    %c0_265 = arith.constant 0 : index
    %c0_266 = arith.constant 0 : index
    %556 = vector.load %arg15[%c2_264, %c0_265, %c0_266] : memref<4x1x32xf32, #tpu.memory_space<vmem>>, vector<1x1x32xf32>
    %557 = vector.shape_cast %556 : vector<1x1x32xf32> to vector<1x32xf32>
    %558 = vector.broadcast %557 : vector<1x32xf32> to vector<8x32xf32>
    %559 = arith.addf %555, %558 : vector<8x32xf32>
    %c2_267 = arith.constant 2 : index
    %c0_268 = arith.constant 0 : index
    %c0_269 = arith.constant 0 : index
    %560 = vector.load %arg16[%c2_267, %c0_268, %c0_269] : memref<4x1x32xf32, #tpu.memory_space<vmem>>, vector<1x1x32xf32>
    %561 = vector.shape_cast %560 : vector<1x1x32xf32> to vector<1x32xf32>
    %c2_270 = arith.constant 2 : index
    %c0_271 = arith.constant 0 : index
    %c0_272 = arith.constant 0 : index
    %562 = vector.load %arg17[%c2_270, %c0_271, %c0_272] : memref<4x1x32xf32, #tpu.memory_space<vmem>>, vector<1x1x32xf32>
    %563 = vector.shape_cast %562 : vector<1x1x32xf32> to vector<1x32xf32>
    %cst_273 = arith.constant dense<0.000000e+00> : vector<8xf32>
    %564 = vector.multi_reduction <add>, %559, %cst_273 [1] : vector<8x32xf32> to vector<8xf32>
    %565 = vector.shape_cast %564 : vector<8xf32> to vector<8x1xf32>
    %cst_274 = arith.constant 3.200000e+01 : f32
    %566 = vector.broadcast %cst_274 : f32 to vector<8x1xf32>
    %567 = arith.divf %565, %566 : vector<8x1xf32>
    %568 = vector.broadcast %567 : vector<8x1xf32> to vector<8x32xf32>
    %569 = arith.subf %559, %568 : vector<8x32xf32>
    %570 = arith.mulf %569, %569 : vector<8x32xf32>
    %cst_275 = arith.constant dense<0.000000e+00> : vector<8xf32>
    %571 = vector.multi_reduction <add>, %570, %cst_275 [1] : vector<8x32xf32> to vector<8xf32>
    %572 = vector.shape_cast %571 : vector<8xf32> to vector<8x1xf32>
    %cst_276 = arith.constant 3.200000e+01 : f32
    %573 = vector.broadcast %cst_276 : f32 to vector<8x1xf32>
    %574 = arith.divf %572, %573 : vector<8x1xf32>
    %575 = vector.broadcast %567 : vector<8x1xf32> to vector<8x32xf32>
    %576 = arith.subf %559, %575 : vector<8x32xf32>
    %cst_277 = arith.constant 9.99999974E-6 : f32
    %577 = vector.broadcast %cst_277 : f32 to vector<8x1xf32>
    %578 = arith.addf %574, %577 : vector<8x1xf32>
    %579 = math.rsqrt %578 : vector<8x1xf32>
    %580 = vector.broadcast %579 : vector<8x1xf32> to vector<8x32xf32>
    %581 = arith.mulf %576, %580 : vector<8x32xf32>
    %582 = vector.broadcast %561 : vector<1x32xf32> to vector<8x32xf32>
    %583 = arith.mulf %581, %582 : vector<8x32xf32>
    %584 = vector.broadcast %563 : vector<1x32xf32> to vector<8x32xf32>
    %585 = arith.addf %583, %584 : vector<8x32xf32>
    %c2_278 = arith.constant 2 : index
    %c0_279 = arith.constant 0 : index
    %c0_280 = arith.constant 0 : index
    %586 = vector.load %arg18[%c2_278, %c0_279, %c0_280] : memref<4x32x64xf32, #tpu.memory_space<vmem>>, vector<1x32x64xf32>
    %587 = vector.shape_cast %586 : vector<1x32x64xf32> to vector<32x64xf32>
    %cst_281 = arith.constant dense<0.000000e+00> : vector<8x64xf32>
    %588 = tpu.matmul %585, %587, %cst_281 {dimension_numbers = #tpu.dot_dimension_numbers<[1], [0], [0], [1], [0, 0, 1, 1], [], []>} : vector<8x32xf32>, vector<32x64xf32>, vector<8x64xf32> -> vector<8x64xf32>
    %c2_282 = arith.constant 2 : index
    %c0_283 = arith.constant 0 : index
    %c0_284 = arith.constant 0 : index
    %589 = vector.load %arg19[%c2_282, %c0_283, %c0_284] : memref<4x1x64xf32, #tpu.memory_space<vmem>>, vector<1x1x64xf32>
    %590 = vector.shape_cast %589 : vector<1x1x64xf32> to vector<1x64xf32>
    %591 = vector.broadcast %590 : vector<1x64xf32> to vector<8x64xf32>
    %592 = arith.addf %588, %591 : vector<8x64xf32>
    %cst_285 = arith.constant 0.000000e+00 : f32
    %593 = vector.broadcast %cst_285 : f32 to vector<8x64xf32>
    %594 = arith.maximumf %592, %593 : vector<8x64xf32>
    %c2_286 = arith.constant 2 : index
    %c0_287 = arith.constant 0 : index
    %c0_288 = arith.constant 0 : index
    %595 = vector.load %arg20[%c2_286, %c0_287, %c0_288] : memref<4x64x32xf32, #tpu.memory_space<vmem>>, vector<1x64x32xf32>
    %596 = vector.shape_cast %595 : vector<1x64x32xf32> to vector<64x32xf32>
    %cst_289 = arith.constant dense<0.000000e+00> : vector<8x32xf32>
    %597 = tpu.matmul %594, %596, %cst_289 {dimension_numbers = #tpu.dot_dimension_numbers<[1], [0], [0], [1], [0, 0, 1, 1], [], []>} : vector<8x64xf32>, vector<64x32xf32>, vector<8x32xf32> -> vector<8x32xf32>
    %598 = arith.addf %559, %597 : vector<8x32xf32>
    %c2_290 = arith.constant 2 : index
    %c0_291 = arith.constant 0 : index
    %c0_292 = arith.constant 0 : index
    %599 = vector.load %arg21[%c2_290, %c0_291, %c0_292] : memref<4x1x32xf32, #tpu.memory_space<vmem>>, vector<1x1x32xf32>
    %600 = vector.shape_cast %599 : vector<1x1x32xf32> to vector<1x32xf32>
    %601 = vector.broadcast %600 : vector<1x32xf32> to vector<8x32xf32>
    %602 = arith.addf %598, %601 : vector<8x32xf32>
    %603 = arith.addf %406, %602 : vector<8x32xf32>
    %c3 = arith.constant 3 : index
    %c0_293 = arith.constant 0 : index
    %c0_294 = arith.constant 0 : index
    %604 = vector.load %arg6[%c3, %c0_293, %c0_294] : memref<4x1x32xf32, #tpu.memory_space<vmem>>, vector<1x1x32xf32>
    %605 = vector.shape_cast %604 : vector<1x1x32xf32> to vector<1x32xf32>
    %c3_295 = arith.constant 3 : index
    %c0_296 = arith.constant 0 : index
    %c0_297 = arith.constant 0 : index
    %606 = vector.load %arg7[%c3_295, %c0_296, %c0_297] : memref<4x1x32xf32, #tpu.memory_space<vmem>>, vector<1x1x32xf32>
    %607 = vector.shape_cast %606 : vector<1x1x32xf32> to vector<1x32xf32>
    %cst_298 = arith.constant dense<0.000000e+00> : vector<8xf32>
    %608 = vector.multi_reduction <add>, %602, %cst_298 [1] : vector<8x32xf32> to vector<8xf32>
    %609 = vector.shape_cast %608 : vector<8xf32> to vector<8x1xf32>
    %cst_299 = arith.constant 3.200000e+01 : f32
    %610 = vector.broadcast %cst_299 : f32 to vector<8x1xf32>
    %611 = arith.divf %609, %610 : vector<8x1xf32>
    %612 = vector.broadcast %611 : vector<8x1xf32> to vector<8x32xf32>
    %613 = arith.subf %602, %612 : vector<8x32xf32>
    %614 = arith.mulf %613, %613 : vector<8x32xf32>
    %cst_300 = arith.constant dense<0.000000e+00> : vector<8xf32>
    %615 = vector.multi_reduction <add>, %614, %cst_300 [1] : vector<8x32xf32> to vector<8xf32>
    %616 = vector.shape_cast %615 : vector<8xf32> to vector<8x1xf32>
    %cst_301 = arith.constant 3.200000e+01 : f32
    %617 = vector.broadcast %cst_301 : f32 to vector<8x1xf32>
    %618 = arith.divf %616, %617 : vector<8x1xf32>
    %619 = vector.broadcast %611 : vector<8x1xf32> to vector<8x32xf32>
    %620 = arith.subf %602, %619 : vector<8x32xf32>
    %cst_302 = arith.constant 9.99999974E-6 : f32
    %621 = vector.broadcast %cst_302 : f32 to vector<8x1xf32>
    %622 = arith.addf %618, %621 : vector<8x1xf32>
    %623 = math.rsqrt %622 : vector<8x1xf32>
    %624 = vector.broadcast %623 : vector<8x1xf32> to vector<8x32xf32>
    %625 = arith.mulf %620, %624 : vector<8x32xf32>
    %626 = vector.broadcast %605 : vector<1x32xf32> to vector<8x32xf32>
    %627 = arith.mulf %625, %626 : vector<8x32xf32>
    %628 = vector.broadcast %607 : vector<1x32xf32> to vector<8x32xf32>
    %629 = arith.addf %627, %628 : vector<8x32xf32>
    %c3_303 = arith.constant 3 : index
    %c0_304 = arith.constant 0 : index
    %c0_305 = arith.constant 0 : index
    %630 = vector.load %arg8[%c3_303, %c0_304, %c0_305] : memref<4x32x32xf32, #tpu.memory_space<vmem>>, vector<1x32x32xf32>
    %631 = vector.shape_cast %630 : vector<1x32x32xf32> to vector<32x32xf32>
    %cst_306 = arith.constant dense<0.000000e+00> : vector<8x32xf32>
    %632 = tpu.matmul %629, %631, %cst_306 {dimension_numbers = #tpu.dot_dimension_numbers<[1], [0], [0], [1], [0, 0, 1, 1], [], []>} : vector<8x32xf32>, vector<32x32xf32>, vector<8x32xf32> -> vector<8x32xf32>
    %c3_307 = arith.constant 3 : index
    %c0_308 = arith.constant 0 : index
    %c0_309 = arith.constant 0 : index
    %633 = vector.load %arg9[%c3_307, %c0_308, %c0_309] : memref<4x1x32xf32, #tpu.memory_space<vmem>>, vector<1x1x32xf32>
    %634 = vector.shape_cast %633 : vector<1x1x32xf32> to vector<1x32xf32>
    %635 = vector.broadcast %634 : vector<1x32xf32> to vector<8x32xf32>
    %636 = arith.addf %632, %635 : vector<8x32xf32>
    %cst_310 = arith.constant 0.353553385 : f32
    %637 = vector.broadcast %cst_310 : f32 to vector<8x32xf32>
    %638 = arith.mulf %636, %637 : vector<8x32xf32>
    %c3_311 = arith.constant 3 : index
    %c0_312 = arith.constant 0 : index
    %c0_313 = arith.constant 0 : index
    %639 = vector.load %arg10[%c3_311, %c0_312, %c0_313] : memref<4x32x32xf32, #tpu.memory_space<vmem>>, vector<1x32x32xf32>
    %640 = vector.shape_cast %639 : vector<1x32x32xf32> to vector<32x32xf32>
    %cst_314 = arith.constant dense<0.000000e+00> : vector<8x32xf32>
    %641 = tpu.matmul %629, %640, %cst_314 {dimension_numbers = #tpu.dot_dimension_numbers<[1], [0], [0], [1], [0, 0, 1, 1], [], []>} : vector<8x32xf32>, vector<32x32xf32>, vector<8x32xf32> -> vector<8x32xf32>
    %c3_315 = arith.constant 3 : index
    %c0_316 = arith.constant 0 : index
    %c0_317 = arith.constant 0 : index
    %642 = vector.load %arg11[%c3_315, %c0_316, %c0_317] : memref<4x1x32xf32, #tpu.memory_space<vmem>>, vector<1x1x32xf32>
    %643 = vector.shape_cast %642 : vector<1x1x32xf32> to vector<1x32xf32>
    %644 = vector.broadcast %643 : vector<1x32xf32> to vector<8x32xf32>
    %645 = arith.addf %641, %644 : vector<8x32xf32>
    %c3_318 = arith.constant 3 : index
    %c0_319 = arith.constant 0 : index
    %c0_320 = arith.constant 0 : index
    %646 = vector.load %arg12[%c3_318, %c0_319, %c0_320] : memref<4x32x32xf32, #tpu.memory_space<vmem>>, vector<1x32x32xf32>
    %647 = vector.shape_cast %646 : vector<1x32x32xf32> to vector<32x32xf32>
    %cst_321 = arith.constant dense<0.000000e+00> : vector<8x32xf32>
    %648 = tpu.matmul %629, %647, %cst_321 {dimension_numbers = #tpu.dot_dimension_numbers<[1], [0], [0], [1], [0, 0, 1, 1], [], []>} : vector<8x32xf32>, vector<32x32xf32>, vector<8x32xf32> -> vector<8x32xf32>
    %c3_322 = arith.constant 3 : index
    %c0_323 = arith.constant 0 : index
    %c0_324 = arith.constant 0 : index
    %649 = vector.load %arg13[%c3_322, %c0_323, %c0_324] : memref<4x1x32xf32, #tpu.memory_space<vmem>>, vector<1x1x32xf32>
    %650 = vector.shape_cast %649 : vector<1x1x32xf32> to vector<1x32xf32>
    %651 = vector.broadcast %650 : vector<1x32xf32> to vector<8x32xf32>
    %652 = arith.addf %648, %651 : vector<8x32xf32>
    %c3_325 = arith.constant 3 : index
    %c0_326 = arith.constant 0 : index
    %c0_327 = arith.constant 0 : index
    %653 = vector.load %arg14[%c3_325, %c0_326, %c0_327] : memref<4x32x32xf32, #tpu.memory_space<vmem>>, vector<1x32x32xf32>
    %654 = vector.shape_cast %653 : vector<1x32x32xf32> to vector<32x32xf32>
    %cst_328 = arith.constant 0.000000e+00 : f32
    %655 = vector.broadcast %cst_328 : f32 to vector<8x32xf32>
    %656 = vector.extract_strided_slice %638 {offsets = [0, 0], sizes = [8, 8], strides = [1, 1]} : vector<8x32xf32> to vector<8x8xf32>
    %657 = vector.extract_strided_slice %645 {offsets = [0, 0], sizes = [8, 8], strides = [1, 1]} : vector<8x32xf32> to vector<8x8xf32>
    %cst_329 = arith.constant dense<0.000000e+00> : vector<8x8xf32>
    %658 = tpu.matmul %656, %657, %cst_329 {dimension_numbers = #tpu.dot_dimension_numbers<[1], [1], [0], [0], [0, 0, 1, 0], [], []>} : vector<8x8xf32>, vector<8x8xf32>, vector<8x8xf32> -> vector<8x8xf32>
    %cst_330 = arith.constant 5.000000e-01 : f32
    %659 = vector.broadcast %cst_330 : f32 to vector<1x8xf32>
    %660 = arith.cmpf ogt, %11, %659 : vector<1x8xf32>
    %cst_331 = arith.constant -1.000000e+30 : f32
    %661 = vector.shape_cast %660 : vector<1x8xi1> to vector<1x8xi1>
    %662 = vector.broadcast %661 : vector<1x8xi1> to vector<8x8xi1>
    %663 = vector.broadcast %cst_331 : f32 to vector<8x8xf32>
    %664 = arith.select %662, %663, %658 : vector<8x8xi1>, vector<8x8xf32>
    %cst_332 = arith.constant dense<0xFF800000> : vector<8xf32>
    %665 = vector.multi_reduction <maximumf>, %664, %cst_332 [1] : vector<8x8xf32> to vector<8xf32>
    %666 = vector.shape_cast %665 : vector<8xf32> to vector<8x1xf32>
    %667 = vector.broadcast %666 : vector<8x1xf32> to vector<8x8xf32>
    %668 = arith.subf %664, %667 : vector<8x8xf32>
    %669 = math.exp %668 : vector<8x8xf32>
    %cst_333 = arith.constant dense<0.000000e+00> : vector<8xf32>
    %670 = vector.multi_reduction <add>, %669, %cst_333 [1] : vector<8x8xf32> to vector<8xf32>
    %671 = vector.shape_cast %670 : vector<8xf32> to vector<8x1xf32>
    %672 = tpu.reciprocal %671 {approx = true} : vector<8x1xf32> -> vector<8x1xf32>
    %673 = vector.broadcast %672 : vector<8x1xf32> to vector<8x8xf32>
    %674 = arith.mulf %669, %673 : vector<8x8xf32>
    %675 = vector.extract_strided_slice %652 {offsets = [0, 0], sizes = [8, 8], strides = [1, 1]} : vector<8x32xf32> to vector<8x8xf32>
    %cst_334 = arith.constant dense<0.000000e+00> : vector<8x8xf32>
    %676 = tpu.matmul %674, %675, %cst_334 {dimension_numbers = #tpu.dot_dimension_numbers<[1], [0], [0], [1], [0, 0, 1, 1], [], []>} : vector<8x8xf32>, vector<8x8xf32>, vector<8x8xf32> -> vector<8x8xf32>
    %677 = vector.extract_strided_slice %654 {offsets = [0, 0], sizes = [8, 32], strides = [1, 1]} : vector<32x32xf32> to vector<8x32xf32>
    %cst_335 = arith.constant dense<0.000000e+00> : vector<8x32xf32>
    %678 = tpu.matmul %676, %677, %cst_335 {dimension_numbers = #tpu.dot_dimension_numbers<[1], [0], [0], [1], [0, 0, 1, 1], [], []>} : vector<8x8xf32>, vector<8x32xf32>, vector<8x32xf32> -> vector<8x32xf32>
    %679 = arith.addf %655, %678 : vector<8x32xf32>
    %680 = vector.extract_strided_slice %638 {offsets = [0, 8], sizes = [8, 8], strides = [1, 1]} : vector<8x32xf32> to vector<8x8xf32>
    %681 = vector.extract_strided_slice %645 {offsets = [0, 8], sizes = [8, 8], strides = [1, 1]} : vector<8x32xf32> to vector<8x8xf32>
    %cst_336 = arith.constant dense<0.000000e+00> : vector<8x8xf32>
    %682 = tpu.matmul %680, %681, %cst_336 {dimension_numbers = #tpu.dot_dimension_numbers<[1], [1], [0], [0], [0, 0, 1, 0], [], []>} : vector<8x8xf32>, vector<8x8xf32>, vector<8x8xf32> -> vector<8x8xf32>
    %cst_337 = arith.constant 5.000000e-01 : f32
    %683 = vector.broadcast %cst_337 : f32 to vector<1x8xf32>
    %684 = arith.cmpf ogt, %11, %683 : vector<1x8xf32>
    %cst_338 = arith.constant -1.000000e+30 : f32
    %685 = vector.shape_cast %684 : vector<1x8xi1> to vector<1x8xi1>
    %686 = vector.broadcast %685 : vector<1x8xi1> to vector<8x8xi1>
    %687 = vector.broadcast %cst_338 : f32 to vector<8x8xf32>
    %688 = arith.select %686, %687, %682 : vector<8x8xi1>, vector<8x8xf32>
    %cst_339 = arith.constant dense<0xFF800000> : vector<8xf32>
    %689 = vector.multi_reduction <maximumf>, %688, %cst_339 [1] : vector<8x8xf32> to vector<8xf32>
    %690 = vector.shape_cast %689 : vector<8xf32> to vector<8x1xf32>
    %691 = vector.broadcast %690 : vector<8x1xf32> to vector<8x8xf32>
    %692 = arith.subf %688, %691 : vector<8x8xf32>
    %693 = math.exp %692 : vector<8x8xf32>
    %cst_340 = arith.constant dense<0.000000e+00> : vector<8xf32>
    %694 = vector.multi_reduction <add>, %693, %cst_340 [1] : vector<8x8xf32> to vector<8xf32>
    %695 = vector.shape_cast %694 : vector<8xf32> to vector<8x1xf32>
    %696 = tpu.reciprocal %695 {approx = true} : vector<8x1xf32> -> vector<8x1xf32>
    %697 = vector.broadcast %696 : vector<8x1xf32> to vector<8x8xf32>
    %698 = arith.mulf %693, %697 : vector<8x8xf32>
    %699 = vector.extract_strided_slice %652 {offsets = [0, 8], sizes = [8, 8], strides = [1, 1]} : vector<8x32xf32> to vector<8x8xf32>
    %cst_341 = arith.constant dense<0.000000e+00> : vector<8x8xf32>
    %700 = tpu.matmul %698, %699, %cst_341 {dimension_numbers = #tpu.dot_dimension_numbers<[1], [0], [0], [1], [0, 0, 1, 1], [], []>} : vector<8x8xf32>, vector<8x8xf32>, vector<8x8xf32> -> vector<8x8xf32>
    %701 = vector.extract_strided_slice %654 {offsets = [8, 0], sizes = [8, 32], strides = [1, 1]} : vector<32x32xf32> to vector<8x32xf32>
    %cst_342 = arith.constant dense<0.000000e+00> : vector<8x32xf32>
    %702 = tpu.matmul %700, %701, %cst_342 {dimension_numbers = #tpu.dot_dimension_numbers<[1], [0], [0], [1], [0, 0, 1, 1], [], []>} : vector<8x8xf32>, vector<8x32xf32>, vector<8x32xf32> -> vector<8x32xf32>
    %703 = arith.addf %679, %702 : vector<8x32xf32>
    %704 = vector.extract_strided_slice %638 {offsets = [0, 16], sizes = [8, 8], strides = [1, 1]} : vector<8x32xf32> to vector<8x8xf32>
    %705 = vector.extract_strided_slice %645 {offsets = [0, 16], sizes = [8, 8], strides = [1, 1]} : vector<8x32xf32> to vector<8x8xf32>
    %cst_343 = arith.constant dense<0.000000e+00> : vector<8x8xf32>
    %706 = tpu.matmul %704, %705, %cst_343 {dimension_numbers = #tpu.dot_dimension_numbers<[1], [1], [0], [0], [0, 0, 1, 0], [], []>} : vector<8x8xf32>, vector<8x8xf32>, vector<8x8xf32> -> vector<8x8xf32>
    %cst_344 = arith.constant 5.000000e-01 : f32
    %707 = vector.broadcast %cst_344 : f32 to vector<1x8xf32>
    %708 = arith.cmpf ogt, %11, %707 : vector<1x8xf32>
    %cst_345 = arith.constant -1.000000e+30 : f32
    %709 = vector.shape_cast %708 : vector<1x8xi1> to vector<1x8xi1>
    %710 = vector.broadcast %709 : vector<1x8xi1> to vector<8x8xi1>
    %711 = vector.broadcast %cst_345 : f32 to vector<8x8xf32>
    %712 = arith.select %710, %711, %706 : vector<8x8xi1>, vector<8x8xf32>
    %cst_346 = arith.constant dense<0xFF800000> : vector<8xf32>
    %713 = vector.multi_reduction <maximumf>, %712, %cst_346 [1] : vector<8x8xf32> to vector<8xf32>
    %714 = vector.shape_cast %713 : vector<8xf32> to vector<8x1xf32>
    %715 = vector.broadcast %714 : vector<8x1xf32> to vector<8x8xf32>
    %716 = arith.subf %712, %715 : vector<8x8xf32>
    %717 = math.exp %716 : vector<8x8xf32>
    %cst_347 = arith.constant dense<0.000000e+00> : vector<8xf32>
    %718 = vector.multi_reduction <add>, %717, %cst_347 [1] : vector<8x8xf32> to vector<8xf32>
    %719 = vector.shape_cast %718 : vector<8xf32> to vector<8x1xf32>
    %720 = tpu.reciprocal %719 {approx = true} : vector<8x1xf32> -> vector<8x1xf32>
    %721 = vector.broadcast %720 : vector<8x1xf32> to vector<8x8xf32>
    %722 = arith.mulf %717, %721 : vector<8x8xf32>
    %723 = vector.extract_strided_slice %652 {offsets = [0, 16], sizes = [8, 8], strides = [1, 1]} : vector<8x32xf32> to vector<8x8xf32>
    %cst_348 = arith.constant dense<0.000000e+00> : vector<8x8xf32>
    %724 = tpu.matmul %722, %723, %cst_348 {dimension_numbers = #tpu.dot_dimension_numbers<[1], [0], [0], [1], [0, 0, 1, 1], [], []>} : vector<8x8xf32>, vector<8x8xf32>, vector<8x8xf32> -> vector<8x8xf32>
    %725 = vector.extract_strided_slice %654 {offsets = [16, 0], sizes = [8, 32], strides = [1, 1]} : vector<32x32xf32> to vector<8x32xf32>
    %cst_349 = arith.constant dense<0.000000e+00> : vector<8x32xf32>
    %726 = tpu.matmul %724, %725, %cst_349 {dimension_numbers = #tpu.dot_dimension_numbers<[1], [0], [0], [1], [0, 0, 1, 1], [], []>} : vector<8x8xf32>, vector<8x32xf32>, vector<8x32xf32> -> vector<8x32xf32>
    %727 = arith.addf %703, %726 : vector<8x32xf32>
    %728 = vector.extract_strided_slice %638 {offsets = [0, 24], sizes = [8, 8], strides = [1, 1]} : vector<8x32xf32> to vector<8x8xf32>
    %729 = vector.extract_strided_slice %645 {offsets = [0, 24], sizes = [8, 8], strides = [1, 1]} : vector<8x32xf32> to vector<8x8xf32>
    %cst_350 = arith.constant dense<0.000000e+00> : vector<8x8xf32>
    %730 = tpu.matmul %728, %729, %cst_350 {dimension_numbers = #tpu.dot_dimension_numbers<[1], [1], [0], [0], [0, 0, 1, 0], [], []>} : vector<8x8xf32>, vector<8x8xf32>, vector<8x8xf32> -> vector<8x8xf32>
    %cst_351 = arith.constant 5.000000e-01 : f32
    %731 = vector.broadcast %cst_351 : f32 to vector<1x8xf32>
    %732 = arith.cmpf ogt, %11, %731 : vector<1x8xf32>
    %cst_352 = arith.constant -1.000000e+30 : f32
    %733 = vector.shape_cast %732 : vector<1x8xi1> to vector<1x8xi1>
    %734 = vector.broadcast %733 : vector<1x8xi1> to vector<8x8xi1>
    %735 = vector.broadcast %cst_352 : f32 to vector<8x8xf32>
    %736 = arith.select %734, %735, %730 : vector<8x8xi1>, vector<8x8xf32>
    %cst_353 = arith.constant dense<0xFF800000> : vector<8xf32>
    %737 = vector.multi_reduction <maximumf>, %736, %cst_353 [1] : vector<8x8xf32> to vector<8xf32>
    %738 = vector.shape_cast %737 : vector<8xf32> to vector<8x1xf32>
    %739 = vector.broadcast %738 : vector<8x1xf32> to vector<8x8xf32>
    %740 = arith.subf %736, %739 : vector<8x8xf32>
    %741 = math.exp %740 : vector<8x8xf32>
    %cst_354 = arith.constant dense<0.000000e+00> : vector<8xf32>
    %742 = vector.multi_reduction <add>, %741, %cst_354 [1] : vector<8x8xf32> to vector<8xf32>
    %743 = vector.shape_cast %742 : vector<8xf32> to vector<8x1xf32>
    %744 = tpu.reciprocal %743 {approx = true} : vector<8x1xf32> -> vector<8x1xf32>
    %745 = vector.broadcast %744 : vector<8x1xf32> to vector<8x8xf32>
    %746 = arith.mulf %741, %745 : vector<8x8xf32>
    %747 = vector.extract_strided_slice %652 {offsets = [0, 24], sizes = [8, 8], strides = [1, 1]} : vector<8x32xf32> to vector<8x8xf32>
    %cst_355 = arith.constant dense<0.000000e+00> : vector<8x8xf32>
    %748 = tpu.matmul %746, %747, %cst_355 {dimension_numbers = #tpu.dot_dimension_numbers<[1], [0], [0], [1], [0, 0, 1, 1], [], []>} : vector<8x8xf32>, vector<8x8xf32>, vector<8x8xf32> -> vector<8x8xf32>
    %749 = vector.extract_strided_slice %654 {offsets = [24, 0], sizes = [8, 32], strides = [1, 1]} : vector<32x32xf32> to vector<8x32xf32>
    %cst_356 = arith.constant dense<0.000000e+00> : vector<8x32xf32>
    %750 = tpu.matmul %748, %749, %cst_356 {dimension_numbers = #tpu.dot_dimension_numbers<[1], [0], [0], [1], [0, 0, 1, 1], [], []>} : vector<8x8xf32>, vector<8x32xf32>, vector<8x32xf32> -> vector<8x32xf32>
    %751 = arith.addf %727, %750 : vector<8x32xf32>
    %752 = arith.addf %602, %751 : vector<8x32xf32>
    %c3_357 = arith.constant 3 : index
    %c0_358 = arith.constant 0 : index
    %c0_359 = arith.constant 0 : index
    %753 = vector.load %arg15[%c3_357, %c0_358, %c0_359] : memref<4x1x32xf32, #tpu.memory_space<vmem>>, vector<1x1x32xf32>
    %754 = vector.shape_cast %753 : vector<1x1x32xf32> to vector<1x32xf32>
    %755 = vector.broadcast %754 : vector<1x32xf32> to vector<8x32xf32>
    %756 = arith.addf %752, %755 : vector<8x32xf32>
    %c3_360 = arith.constant 3 : index
    %c0_361 = arith.constant 0 : index
    %c0_362 = arith.constant 0 : index
    %757 = vector.load %arg16[%c3_360, %c0_361, %c0_362] : memref<4x1x32xf32, #tpu.memory_space<vmem>>, vector<1x1x32xf32>
    %758 = vector.shape_cast %757 : vector<1x1x32xf32> to vector<1x32xf32>
    %c3_363 = arith.constant 3 : index
    %c0_364 = arith.constant 0 : index
    %c0_365 = arith.constant 0 : index
    %759 = vector.load %arg17[%c3_363, %c0_364, %c0_365] : memref<4x1x32xf32, #tpu.memory_space<vmem>>, vector<1x1x32xf32>
    %760 = vector.shape_cast %759 : vector<1x1x32xf32> to vector<1x32xf32>
    %cst_366 = arith.constant dense<0.000000e+00> : vector<8xf32>
    %761 = vector.multi_reduction <add>, %756, %cst_366 [1] : vector<8x32xf32> to vector<8xf32>
    %762 = vector.shape_cast %761 : vector<8xf32> to vector<8x1xf32>
    %cst_367 = arith.constant 3.200000e+01 : f32
    %763 = vector.broadcast %cst_367 : f32 to vector<8x1xf32>
    %764 = arith.divf %762, %763 : vector<8x1xf32>
    %765 = vector.broadcast %764 : vector<8x1xf32> to vector<8x32xf32>
    %766 = arith.subf %756, %765 : vector<8x32xf32>
    %767 = arith.mulf %766, %766 : vector<8x32xf32>
    %cst_368 = arith.constant dense<0.000000e+00> : vector<8xf32>
    %768 = vector.multi_reduction <add>, %767, %cst_368 [1] : vector<8x32xf32> to vector<8xf32>
    %769 = vector.shape_cast %768 : vector<8xf32> to vector<8x1xf32>
    %cst_369 = arith.constant 3.200000e+01 : f32
    %770 = vector.broadcast %cst_369 : f32 to vector<8x1xf32>
    %771 = arith.divf %769, %770 : vector<8x1xf32>
    %772 = vector.broadcast %764 : vector<8x1xf32> to vector<8x32xf32>
    %773 = arith.subf %756, %772 : vector<8x32xf32>
    %cst_370 = arith.constant 9.99999974E-6 : f32
    %774 = vector.broadcast %cst_370 : f32 to vector<8x1xf32>
    %775 = arith.addf %771, %774 : vector<8x1xf32>
    %776 = math.rsqrt %775 : vector<8x1xf32>
    %777 = vector.broadcast %776 : vector<8x1xf32> to vector<8x32xf32>
    %778 = arith.mulf %773, %777 : vector<8x32xf32>
    %779 = vector.broadcast %758 : vector<1x32xf32> to vector<8x32xf32>
    %780 = arith.mulf %778, %779 : vector<8x32xf32>
    %781 = vector.broadcast %760 : vector<1x32xf32> to vector<8x32xf32>
    %782 = arith.addf %780, %781 : vector<8x32xf32>
    %c3_371 = arith.constant 3 : index
    %c0_372 = arith.constant 0 : index
    %c0_373 = arith.constant 0 : index
    %783 = vector.load %arg18[%c3_371, %c0_372, %c0_373] : memref<4x32x64xf32, #tpu.memory_space<vmem>>, vector<1x32x64xf32>
    %784 = vector.shape_cast %783 : vector<1x32x64xf32> to vector<32x64xf32>
    %cst_374 = arith.constant dense<0.000000e+00> : vector<8x64xf32>
    %785 = tpu.matmul %782, %784, %cst_374 {dimension_numbers = #tpu.dot_dimension_numbers<[1], [0], [0], [1], [0, 0, 1, 1], [], []>} : vector<8x32xf32>, vector<32x64xf32>, vector<8x64xf32> -> vector<8x64xf32>
    %c3_375 = arith.constant 3 : index
    %c0_376 = arith.constant 0 : index
    %c0_377 = arith.constant 0 : index
    %786 = vector.load %arg19[%c3_375, %c0_376, %c0_377] : memref<4x1x64xf32, #tpu.memory_space<vmem>>, vector<1x1x64xf32>
    %787 = vector.shape_cast %786 : vector<1x1x64xf32> to vector<1x64xf32>
    %788 = vector.broadcast %787 : vector<1x64xf32> to vector<8x64xf32>
    %789 = arith.addf %785, %788 : vector<8x64xf32>
    %cst_378 = arith.constant 0.000000e+00 : f32
    %790 = vector.broadcast %cst_378 : f32 to vector<8x64xf32>
    %791 = arith.maximumf %789, %790 : vector<8x64xf32>
    %c3_379 = arith.constant 3 : index
    %c0_380 = arith.constant 0 : index
    %c0_381 = arith.constant 0 : index
    %792 = vector.load %arg20[%c3_379, %c0_380, %c0_381] : memref<4x64x32xf32, #tpu.memory_space<vmem>>, vector<1x64x32xf32>
    %793 = vector.shape_cast %792 : vector<1x64x32xf32> to vector<64x32xf32>
    %cst_382 = arith.constant dense<0.000000e+00> : vector<8x32xf32>
    %794 = tpu.matmul %791, %793, %cst_382 {dimension_numbers = #tpu.dot_dimension_numbers<[1], [0], [0], [1], [0, 0, 1, 1], [], []>} : vector<8x64xf32>, vector<64x32xf32>, vector<8x32xf32> -> vector<8x32xf32>
    %795 = arith.addf %756, %794 : vector<8x32xf32>
    %c3_383 = arith.constant 3 : index
    %c0_384 = arith.constant 0 : index
    %c0_385 = arith.constant 0 : index
    %796 = vector.load %arg21[%c3_383, %c0_384, %c0_385] : memref<4x1x32xf32, #tpu.memory_space<vmem>>, vector<1x1x32xf32>
    %797 = vector.shape_cast %796 : vector<1x1x32xf32> to vector<1x32xf32>
    %798 = vector.broadcast %797 : vector<1x32xf32> to vector<8x32xf32>
    %799 = arith.addf %795, %798 : vector<8x32xf32>
    %800 = arith.addf %603, %799 : vector<8x32xf32>
    %c0_386 = arith.constant 0 : index
    %c0_387 = arith.constant 0 : index
    %801 = vector.load %arg22[%c0_386, %c0_387] : memref<32x128xf32, #tpu.memory_space<vmem>>, vector<32x128xf32>
    %cst_388 = arith.constant dense<0.000000e+00> : vector<8x128xf32>
    %802 = tpu.matmul %800, %801, %cst_388 {dimension_numbers = #tpu.dot_dimension_numbers<[1], [0], [0], [1], [0, 0, 1, 1], [], []>} : vector<8x32xf32>, vector<32x128xf32>, vector<8x128xf32> -> vector<8x128xf32>
    %c0_389 = arith.constant 0 : index
    %c0_390 = arith.constant 0 : index
    %803 = vector.load %arg23[%c0_389, %c0_390] : memref<1x128xf32, #tpu.memory_space<vmem>>, vector<1x128xf32>
    %804 = vector.broadcast %803 : vector<1x128xf32> to vector<8x128xf32>
    %805 = arith.addf %802, %804 : vector<8x128xf32>
    %c0_391 = arith.constant 0 : index
    %c0_392 = arith.constant 0 : index
    %c0_393 = arith.constant 0 : index
    %806 = vector.load %arg24[%c0_391, %c0_392, %c0_393] : memref<1x8x128xf32, #tpu.memory_space<vmem>>, vector<1x8x128xf32>
    %807 = vector.shape_cast %806 : vector<1x8x128xf32> to vector<8x128xf32>
    %808 = vector.shape_cast %805 : vector<8x128xf32> to vector<1x8x128xf32>
    tpu.vector_store %arg24[%c0_391, %c0_392, %c0_393], %808 {strides = array<i32>} : memref<1x8x128xf32, #tpu.memory_space<vmem>>, vector<1x8x128xf32>,
    return
  }
  func.func @transform_0(%arg0: i32) -> (i32, i32, i32) {
    %c0_i32 = arith.constant 0 : i32
    %c0_i32_0 = arith.constant 0 : i32
    %c0_i32_1 = arith.constant 0 : i32
    return %arg0, %c0_i32, %c0_i32_0 : i32, i32, i32
  }
  func.func @transform_1(%arg0: i32) -> (i32, i32, i32) {
    %c0_i32 = arith.constant 0 : i32
    %c0_i32_0 = arith.constant 0 : i32
    %c0_i32_1 = arith.constant 0 : i32
    return %arg0, %c0_i32, %c0_i32_0 : i32, i32, i32
  }
  func.func @transform_2(%arg0: i32) -> (i32, i32, i32) {
    %c0_i32 = arith.constant 0 : i32
    %c0_i32_0 = arith.constant 0 : i32
    %c0_i32_1 = arith.constant 0 : i32
    return %arg0, %c0_i32, %c0_i32_0 : i32, i32, i32
  }
  func.func @transform_3(%arg0: i32) -> (i32, i32) {
    %c0_i32 = arith.constant 0 : i32
    %c0_i32_0 = arith.constant 0 : i32
    %c0_i32_1 = arith.constant 0 : i32
    return %c0_i32, %c0_i32_0 : i32, i32
  }
  func.func @transform_4(%arg0: i32) -> (i32, i32) {
    %c0_i32 = arith.constant 0 : i32
    %c0_i32_0 = arith.constant 0 : i32
    %c0_i32_1 = arith.constant 0 : i32
    return %c0_i32, %c0_i32_0 : i32, i32
  }
  func.func @transform_5(%arg0: i32) -> (i32, i32, i32) {
    %c0_i32 = arith.constant 0 : i32
    %c0_i32_0 = arith.constant 0 : i32
    %c0_i32_1 = arith.constant 0 : i32
    %c0_i32_2 = arith.constant 0 : i32
    return %c0_i32, %c0_i32_0, %c0_i32_1 : i32, i32, i32
  }
  func.func @transform_6(%arg0: i32) -> (i32, i32, i32) {
    %c0_i32 = arith.constant 0 : i32
    %c0_i32_0 = arith.constant 0 : i32
    %c0_i32_1 = arith.constant 0 : i32
    %c0_i32_2 = arith.constant 0 : i32
    return %c0_i32, %c0_i32_0, %c0_i32_1 : i32, i32, i32
  }
  func.func @transform_7(%arg0: i32) -> (i32, i32, i32) {
    %c0_i32 = arith.constant 0 : i32
    %c0_i32_0 = arith.constant 0 : i32
    %c0_i32_1 = arith.constant 0 : i32
    %c0_i32_2 = arith.constant 0 : i32
    return %c0_i32, %c0_i32_0, %c0_i32_1 : i32, i32, i32
  }
  func.func @transform_8(%arg0: i32) -> (i32, i32, i32) {
    %c0_i32 = arith.constant 0 : i32
    %c0_i32_0 = arith.constant 0 : i32
    %c0_i32_1 = arith.constant 0 : i32
    %c0_i32_2 = arith.constant 0 : i32
    return %c0_i32, %c0_i32_0, %c0_i32_1 : i32, i32, i32
  }
  func.func @transform_9(%arg0: i32) -> (i32, i32, i32) {
    %c0_i32 = arith.constant 0 : i32
    %c0_i32_0 = arith.constant 0 : i32
    %c0_i32_1 = arith.constant 0 : i32
    %c0_i32_2 = arith.constant 0 : i32
    return %c0_i32, %c0_i32_0, %c0_i32_1 : i32, i32, i32
  }
  func.func @transform_10(%arg0: i32) -> (i32, i32, i32) {
    %c0_i32 = arith.constant 0 : i32
    %c0_i32_0 = arith.constant 0 : i32
    %c0_i32_1 = arith.constant 0 : i32
    %c0_i32_2 = arith.constant 0 : i32
    return %c0_i32, %c0_i32_0, %c0_i32_1 : i32, i32, i32
  }
  func.func @transform_11(%arg0: i32) -> (i32, i32, i32) {
    %c0_i32 = arith.constant 0 : i32
    %c0_i32_0 = arith.constant 0 : i32
    %c0_i32_1 = arith.constant 0 : i32
    %c0_i32_2 = arith.constant 0 : i32
    return %c0_i32, %c0_i32_0, %c0_i32_1 : i32, i32, i32
  }
  func.func @transform_12(%arg0: i32) -> (i32, i32, i32) {
    %c0_i32 = arith.constant 0 : i32
    %c0_i32_0 = arith.constant 0 : i32
    %c0_i32_1 = arith.constant 0 : i32
    %c0_i32_2 = arith.constant 0 : i32
    return %c0_i32, %c0_i32_0, %c0_i32_1 : i32, i32, i32
  }
  func.func @transform_13(%arg0: i32) -> (i32, i32, i32) {
    %c0_i32 = arith.constant 0 : i32
    %c0_i32_0 = arith.constant 0 : i32
    %c0_i32_1 = arith.constant 0 : i32
    %c0_i32_2 = arith.constant 0 : i32
    return %c0_i32, %c0_i32_0, %c0_i32_1 : i32, i32, i32
  }
  func.func @transform_14(%arg0: i32) -> (i32, i32, i32) {
    %c0_i32 = arith.constant 0 : i32
    %c0_i32_0 = arith.constant 0 : i32
    %c0_i32_1 = arith.constant 0 : i32
    %c0_i32_2 = arith.constant 0 : i32
    return %c0_i32, %c0_i32_0, %c0_i32_1 : i32, i32, i32
  }
  func.func @transform_15(%arg0: i32) -> (i32, i32, i32) {
    %c0_i32 = arith.constant 0 : i32
    %c0_i32_0 = arith.constant 0 : i32
    %c0_i32_1 = arith.constant 0 : i32
    %c0_i32_2 = arith.constant 0 : i32
    return %c0_i32, %c0_i32_0, %c0_i32_1 : i32, i32, i32
  }
  func.func @transform_16(%arg0: i32) -> (i32, i32, i32) {
    %c0_i32 = arith.constant 0 : i32
    %c0_i32_0 = arith.constant 0 : i32
    %c0_i32_1 = arith.constant 0 : i32
    %c0_i32_2 = arith.constant 0 : i32
    return %c0_i32, %c0_i32_0, %c0_i32_1 : i32, i32, i32
  }
  func.func @transform_17(%arg0: i32) -> (i32, i32, i32) {
    %c0_i32 = arith.constant 0 : i32
    %c0_i32_0 = arith.constant 0 : i32
    %c0_i32_1 = arith.constant 0 : i32
    %c0_i32_2 = arith.constant 0 : i32
    return %c0_i32, %c0_i32_0, %c0_i32_1 : i32, i32, i32
  }
  func.func @transform_18(%arg0: i32) -> (i32, i32, i32) {
    %c0_i32 = arith.constant 0 : i32
    %c0_i32_0 = arith.constant 0 : i32
    %c0_i32_1 = arith.constant 0 : i32
    %c0_i32_2 = arith.constant 0 : i32
    return %c0_i32, %c0_i32_0, %c0_i32_1 : i32, i32, i32
  }
  func.func @transform_19(%arg0: i32) -> (i32, i32, i32) {
    %c0_i32 = arith.constant 0 : i32
    %c0_i32_0 = arith.constant 0 : i32
    %c0_i32_1 = arith.constant 0 : i32
    %c0_i32_2 = arith.constant 0 : i32
    return %c0_i32, %c0_i32_0, %c0_i32_1 : i32, i32, i32
  }
  func.func @transform_20(%arg0: i32) -> (i32, i32, i32) {
    %c0_i32 = arith.constant 0 : i32
    %c0_i32_0 = arith.constant 0 : i32
    %c0_i32_1 = arith.constant 0 : i32
    %c0_i32_2 = arith.constant 0 : i32
    return %c0_i32, %c0_i32_0, %c0_i32_1 : i32, i32, i32
  }
  func.func @transform_21(%arg0: i32) -> (i32, i32) {
    %c0_i32 = arith.constant 0 : i32
    %c0_i32_0 = arith.constant 0 : i32
    %c0_i32_1 = arith.constant 0 : i32
    return %c0_i32, %c0_i32_0 : i32, i32
  }
  func.func @transform_22(%arg0: i32) -> (i32, i32) {
    %c0_i32 = arith.constant 0 : i32
    %c0_i32_0 = arith.constant 0 : i32
    %c0_i32_1 = arith.constant 0 : i32
    return %c0_i32, %c0_i32_0 : i32, i32
  }
  func.func @transform_23(%arg0: i32) -> (i32, i32, i32) {
    %c0_i32 = arith.constant 0 : i32
    %c0_i32_0 = arith.constant 0 : i32
    %c0_i32_1 = arith.constant 0 : i32
    return %arg0, %c0_i32, %c0_i32_0 : i32, i32, i32
  }
}

module attributes {stable_mosaic.version = 11 : i64} {
  func.func @kernel(%arg0: memref<256x48xf32, #tpu.memory_space<vmem>>, %arg1: memref<48x24xf32, #tpu.memory_space<vmem>>, %arg2: memref<1x24xf32, #tpu.memory_space<vmem>>, %arg3: memref<1x24xi32, #tpu.memory_space<vmem>>, %arg4: memref<16x24xf32, #tpu.memory_space<vmem>>) attributes {dimension_semantics = [], scalar_prefetch = 0 : i64, scratch_operands = 0 : i64, tpu.core_type = #tpu.core_type<tc>} {
    %c0 = arith.constant 0 : index
    %c0_0 = arith.constant 0 : index
    %0 = vector.load %arg0[%c0, %c0_0] : memref<256x48xf32, #tpu.memory_space<vmem>>, vector<256x48xf32>
    %c0_1 = arith.constant 0 : index
    %c0_2 = arith.constant 0 : index
    %1 = vector.load %arg1[%c0_1, %c0_2] : memref<48x24xf32, #tpu.memory_space<vmem>>, vector<48x24xf32>
    %cst = arith.constant dense<0.000000e+00> : vector<256x24xf32>
    %2 = tpu.matmul %0, %1, %cst {dimension_numbers = #tpu.dot_dimension_numbers<[1], [0], [0], [1], [0, 0, 1, 1], [], []>} : vector<256x48xf32>, vector<48x24xf32>, vector<256x24xf32> -> vector<256x24xf32>
    %c0_3 = arith.constant 0 : index
    %c0_4 = arith.constant 0 : index
    %3 = vector.load %arg2[%c0_3, %c0_4] : memref<1x24xf32, #tpu.memory_space<vmem>>, vector<1x24xf32>
    %4 = vector.broadcast %3 : vector<1x24xf32> to vector<256x24xf32>
    %5 = arith.addf %2, %4 : vector<256x24xf32>
    %cst_5 = arith.constant 0.000000e+00 : f32
    %6 = vector.broadcast %cst_5 : f32 to vector<256x24xf32>
    %7 = arith.maximumf %5, %6 : vector<256x24xf32>
    %8 = vector.shape_cast %7 : vector<256x24xf32> to vector<16x16x24xf32>
    %9 = tpu.iota {dimensions = array<i32: 1>} : vector<16x16x24xi32>
    %c0_6 = arith.constant 0 : index
    %c0_7 = arith.constant 0 : index
    %10 = vector.load %arg3[%c0_6, %c0_7] : memref<1x24xi32, #tpu.memory_space<vmem>>, vector<1x24xi32>
    %11 = vector.shape_cast %10 : vector<1x24xi32> to vector<1x1x24xi32>
    %12 = vector.broadcast %11 : vector<1x1x24xi32> to vector<16x16x24xi32>
    %13 = arith.cmpi sle, %9, %12 : vector<16x16x24xi32>
    %cst_8 = arith.constant 0.000000e+00 : f32
    %14 = vector.broadcast %cst_8 : f32 to vector<16x16x24xf32>
    %15 = arith.select %13, %8, %14 : vector<16x16x24xi1>, vector<16x16x24xf32>
    %cst_9 = arith.constant dense<0xFF800000> : vector<16x24xf32>
    %16 = vector.multi_reduction <maximumf>, %15, %cst_9 [1] : vector<16x16x24xf32> to vector<16x24xf32>
    %c0_10 = arith.constant 0 : index
    %c0_11 = arith.constant 0 : index
    %17 = vector.load %arg4[%c0_10, %c0_11] : memref<16x24xf32, #tpu.memory_space<vmem>>, vector<16x24xf32>
    tpu.vector_store %arg4[%c0_10, %c0_11], %16 {strides = array<i32>} : memref<16x24xf32, #tpu.memory_space<vmem>>, vector<16x24xf32>,
    return
  }
}

</mosaic_0001>

<llo_original>
// kernel: _lambda_.2
$region0: #{_lambda_.2}
  #allocation0 [shape = 'u32[]', space=smem, size = 0x4, offset = 0x4, fixed_abs, tag = 'smem constant byte address 0x4 - core index']
  #allocation1 [shape = 'u32[144,128]{1,0:T(1,128)}', space=vmem, size = 0x12000, scoped, tag = 'internal scratch']
  %s0 = inlined_call_operand.vmem [shape: f32[256,48], index: 0, kind: input, shape index: {}]
  %s1 = inlined_call_operand.vmem [shape: f32[48,24], index: 1, kind: input, shape index: {}]
  %s2 = inlined_call_operand.vmem [shape: f32[1,24], index: 2, kind: input, shape index: {}]
  %s3 = inlined_call_operand.vmem [shape: s32[1,24], index: 3, kind: input, shape index: {}]
  %s4 = inlined_call_operand.vmem [shape: f32[16,24], index: 4, kind: output, shape index: {}]
  %s5 = sld [smem:[#allocation0]]
  $region26: #{_lambda_.2} parent=0
    _
  %s7 = ssub.s32 1, %s5
  %s8 = scalar_select 0, %s7, %s5
  // Predicated region
  $region2: #{_lambda_.2} parent=0 // pred_check
    _
  $region3: #{_lambda_.2} parent=0 // pred_check_branch
    %10 = sbr.rel (0) target = $region5
  $region4: #{_lambda_.2} parent=0 // pred_region
    _
  $region5: #{_lambda_.2} parent=0 // pred_fallthru
    _
  // Predicated region
  $region6: #{_lambda_.2} parent=0 // pred_check
    _
  $region7: #{_lambda_.2} parent=0 // pred_check_branch
    %12 = sbr.rel (0) target = $region9
  $region8: #{_lambda_.2} parent=0 // pred_region
    _
  $region9: #{_lambda_.2} parent=0 // pred_fallthru
    _
  // Predicated region
  $region10: #{_lambda_.2} parent=0 // pred_check
    _
  $region11: #{_lambda_.2} parent=0 // pred_check_branch
    %14 = sbr.rel (0) target = $region13
  $region12: #{_lambda_.2} parent=0 // pred_region
    _
  $region13: #{_lambda_.2} parent=0 // pred_fallthru
    _
  // Predicated region
  $region14: #{_lambda_.2} parent=0 // pred_check
    _
  $region15: #{_lambda_.2} parent=0 // pred_check_branch
    %16 = sbr.rel (0) target = $region17
  $region16: #{_lambda_.2} parent=0 // pred_region
    _
  $region17: #{_lambda_.2} parent=0 // pred_fallthru
    _
  %v17 = vld [vmem:[%s0] sm:$0xff]
  %v18 = vld [vmem:[%s0 + $0x8] sm:$0xff]
  %v19 = vld [vmem:[%s0 + $0x10] sm:$0xff]
  %v20 = vld [vmem:[%s0 + $0x18] sm:$0xff]
  %v21 = vld [vmem:[%s0 + $0x20] sm:$0xff]
  %v22 = vld [vmem:[%s0 + $0x28] sm:$0xff]
  %v23 = vld [vmem:[%s0 + $0x30] sm:$0xff]
  %v24 = vld [vmem:[%s0 + $0x38] sm:$0xff]
  %v25 = vld [vmem:[%s0 + $0x40] sm:$0xff]
  %v26 = vld [vmem:[%s0 + $0x48] sm:$0xff]
  %v27 = vld [vmem:[%s0 + $0x50] sm:$0xff]
  %v28 = vld [vmem:[%s0 + $0x58] sm:$0xff]
  %v29 = vld [vmem:[%s0 + $0x60] sm:$0xff]
  %v30 = vld [vmem:[%s0 + $0x68] sm:$0xff]
  %v31 = vld [vmem:[%s0 + $0x70] sm:$0xff]
  %v32 = vld [vmem:[%s0 + $0x78] sm:$0xff]
  %v33 = vld [vmem:[%s0 + $0x80] sm:$0xff]
  %v34 = vld [vmem:[%s0 + $0x88] sm:$0xff]
  %v35 = vld [vmem:[%s0 + $0x90] sm:$0xff]
  %v36 = vld [vmem:[%s0 + $0x98] sm:$0xff]
  %v37 = vld [vmem:[%s0 + $0xa0] sm:$0xff]
  %v38 = vld [vmem:[%s0 + $0xa8] sm:$0xff]
  %v39 = vld [vmem:[%s0 + $0xb0] sm:$0xff]
  %v40 = vld [vmem:[%s0 + $0xb8] sm:$0xff]
  %v41 = vld [vmem:[%s0 + $0xc0] sm:$0xff]
  %v42 = vld [vmem:[%s0 + $0xc8] sm:$0xff]
  %v43 = vld [vmem:[%s0 + $0xd0] sm:$0xff]
  %v44 = vld [vmem:[%s0 + $0xd8] sm:$0xff]
  %v45 = vld [vmem:[%s0 + $0xe0] sm:$0xff]
  %v46 = vld [vmem:[%s0 + $0xe8] sm:$0xff]
  %v47 = vld [vmem:[%s0 + $0xf0] sm:$0xff]
  %v48 = vld [vmem:[%s0 + $0xf8] sm:$0xff]
  %v49 = vld [vmem:[%s1] sm:$0xff]
  %v50 = vld [vmem:[%s1 + $0x8] sm:$0xff]
  %v51 = vld [vmem:[%s1 + $0x10] sm:$0xff]
  %v52 = vld [vmem:[%s1 + $0x18] sm:$0xff]
  %v53 = vld [vmem:[%s1 + $0x20] sm:$0xff]
  %v54 = vld [vmem:[%s1 + $0x28] sm:$0xff]
  %v55 = vld [vmem:[%s2] sm:$0x1]
  %v57 = vlaneseq
  %v58 = vshrl.u32 %v57, 7
  %v59 = vsub.s32 0, %v58
  %v60 = vrot.slane %v55, %v59
  %vm62 = vcmask 392192
  %v64 = vsel %vm62, %v17, 0
  %v67 = vsel %vm62, %v18, 0
  %v70 = vsel %vm62, %v19, 0
  %v73 = vsel %vm62, %v20, 0
  %v76 = vsel %vm62, %v21, 0
  %v79 = vsel %vm62, %v22, 0
  %v82 = vsel %vm62, %v23, 0
  %v85 = vsel %vm62, %v24, 0
  %v88 = vsel %vm62, %v25, 0
  %v91 = vsel %vm62, %v26, 0
  %v94 = vsel %vm62, %v27, 0
  %v97 = vsel %vm62, %v28, 0
  %v100 = vsel %vm62, %v29, 0
  %v103 = vsel %vm62, %v30, 0
  %v106 = vsel %vm62, %v31, 0
  %v109 = vsel %vm62, %v32, 0
  %v112 = vsel %vm62, %v33, 0
  %v115 = vsel %vm62, %v34, 0
  %v118 = vsel %vm62, %v35, 0
  %v121 = vsel %vm62, %v36, 0
  %v124 = vsel %vm62, %v37, 0
  %v127 = vsel %vm62, %v38, 0
  %v130 = vsel %vm62, %v39, 0
  %v133 = vsel %vm62, %v40, 0
  %v136 = vsel %vm62, %v41, 0
  %v139 = vsel %vm62, %v42, 0
  %v142 = vsel %vm62, %v43, 0
  %v145 = vsel %vm62, %v44, 0
  %v148 = vsel %vm62, %v45, 0
  %v151 = vsel %vm62, %v46, 0
  %v154 = vsel %vm62, %v47, 0
  %v157 = vsel %vm62, %v48, 0
  %159 = vmatprep.subr.mxu0 0.0
  %160 = vmatpush1.msra.mxu0 %v49
  %161 = vmatprep.subr.mxu0 0.0
  %162 = vmatpush1.msra.mxu0 %v50
  %163 = vmatprep.subr.mxu0 0.0
  %164 = vmatpush1.msra.mxu0 %v51
  %165 = vmatprep.subr.mxu0 0.0
  %166 = vmatpush1.msra.mxu0 %v52
  %167 = vmatprep.subr.mxu0 0.0
  %168 = vmatpush1.msra.mxu0 %v53
  %169 = vmatprep.subr.mxu0 0.0
  %170 = vmatpush1.msra.mxu0 %v54
  %171 = vmatprep.subr.mxu0 0.0
  %172 = vmatpush1.msra.mxu0 0.0
  %173 = vmatprep.subr.mxu0 0.0
  %174 = vmatpush1.msra.mxu0 0.0
  %175 = vmatprep.subr.mxu0 0.0
  %176 = vmatpush1.msra.mxu0 0.0
  %177 = vmatprep.subr.mxu0 0.0
  %178 = vmatpush1.msra.mxu0 0.0
  %179 = vmatprep.subr.mxu0 0.0
  %180 = vmatpush1.msra.mxu0 0.0
  %181 = vmatprep.subr.mxu0 0.0
  %182 = vmatpush1.msra.mxu0 0.0
  %183 = vmatprep.subr.mxu0 0.0
  %184 = vmatpush1.msra.mxu0 0.0
  %185 = vmatprep.subr.mxu0 0.0
  %186 = vmatpush1.msra.mxu0 0.0
  %187 = vmatprep.subr.mxu0 0.0
  %188 = vmatpush1.msra.mxu0 0.0
  %189 = vmatprep.subr.mxu0 0.0
  %190 = vmatpush1.msra.mxu0 0.0
  %191 = vmatprep.subr.mxu0 0.0
  %192 = vmatpush1.msra.mxu0 0.0
  %193 = vmatprep.subr.mxu0 0.0
  %194 = vmatpush1.msra.mxu0 0.0
  %195 = vmatprep.subr.mxu0 0.0
  %196 = vmatpush1.msra.mxu0 0.0
  %197 = vmatprep.subr.mxu0 0.0
  %198 = vmatpush1.msra.mxu0 0.0
  %199 = vmatprep.subr.mxu0 0.0
  %200 = vmatpush1.msra.mxu0 0.0
  %201 = vmatprep.subr.mxu0 0.0
  %202 = vmatpush1.msra.mxu0 0.0
  %203 = vmatprep.subr.mxu0 0.0
  %204 = vmatpush1.msra.mxu0 0.0
  %205 = vmatprep.subr.mxu0 0.0
  %206 = vmatpush1.msra.mxu0 0.0
  %207 = vmatprep.subr.mxu0 0.0
  %208 = vmatpush1.msra.mxu0 0.0
  %209 = vmatprep.subr.mxu0 0.0
  %210 = vmatpush1.msra.mxu0 0.0
  %211 = vmatprep.subr.mxu0 0.0
  %212 = vmatpush1.msra.mxu0 0.0
  %213 = vmatprep.subr.mxu0 0.0
  %214 = vmatpush1.msra.mxu0 0.0
  %215 = vmatprep.subr.mxu0 0.0
  %216 = vmatpush1.msra.mxu0 0.0
  %217 = vmatprep.subr.mxu0 0.0
  %218 = vmatpush1.msra.mxu0 0.0
  %219 = vmatprep.subr.mxu0 0.0
  %220 = vmatpush1.msra.mxu0 0.0
  %221 = vmatprep.subr.mxu0 0.0
  %222 = vmatpush1.msra.mxu0 0.0
  %223 = vmatprep.mubr.f32.mxu0 0.0
  %224 = vmatmul.mubr.f32.gmra.mrb[0].mxu0 %v64
  %v225 = vpop.f32.mrb[0].mxu0
  %v226 = vadd.f32 %v60, %v225
  %v227 = vpop.f32.mrb[0].mxu0
  %228 = vmatprep.mubr.f32.mxu0 0.0
  %229 = vmatmul.mubr.f32.gmra.mrb[0].mxu0 %v67
  %v230 = vpop.f32.mrb[0].mxu0
  %v231 = vadd.f32 %v60, %v230
  %v232 = vpop.f32.mrb[0].mxu0
  %233 = vmatprep.mubr.f32.mxu0 0.0
  %234 = vmatmul.mubr.f32.gmra.mrb[0].mxu0 %v70
  %v235 = vpop.f32.mrb[0].mxu0
  %v236 = vadd.f32 %v60, %v235
  %v237 = vpop.f32.mrb[0].mxu0
  %238 = vmatprep.mubr.f32.mxu0 0.0
  %239 = vmatmul.mubr.f32.gmra.mrb[0].mxu0 %v73
  %v240 = vpop.f32.mrb[0].mxu0
  %v241 = vadd.f32 %v60, %v240
  %v242 = vpop.f32.mrb[0].mxu0
  %243 = vmatprep.mubr.f32.mxu0 0.0
  %244 = vmatmul.mubr.f32.gmra.mrb[0].mxu0 %v76
  %v245 = vpop.f32.mrb[0].mxu0
  %v246 = vadd.f32 %v60, %v245
  %v247 = vpop.f32.mrb[0].mxu0
  %248 = vmatprep.mubr.f32.mxu0 0.0
  %249 = vmatmul.mubr.f32.gmra.mrb[0].mxu0 %v79
  %v250 = vpop.f32.mrb[0].mxu0
  %v251 = vadd.f32 %v60, %v250
  %v252 = vpop.f32.mrb[0].mxu0
  %253 = vmatprep.mubr.f32.mxu0 0.0
  %254 = vmatmul.mubr.f32.gmra.mrb[0].mxu0 %v82
  %v255 = vpop.f32.mrb[0].mxu0
  %v256 = vadd.f32 %v60, %v255
  %v257 = vpop.f32.mrb[0].mxu0
  %258 = vmatprep.mubr.f32.mxu0 0.0
  %259 = vmatmul.mubr.f32.gmra.mrb[0].mxu0 %v85
  %v260 = vpop.f32.mrb[0].mxu0
  %v261 = vadd.f32 %v60, %v260
  %v262 = vpop.f32.mrb[0].mxu0
  %263 = vmatprep.mubr.f32.mxu0 0.0
  %264 = vmatmul.mubr.f32.gmra.mrb[0].mxu0 %v88
  %v265 = vpop.f32.mrb[0].mxu0
  %v266 = vadd.f32 %v60, %v265
  %v267 = vpop.f32.mrb[0].mxu0
  %268 = vmatprep.mubr.f32.mxu0 0.0
  %269 = vmatmul.mubr.f32.gmra.mrb[0].mxu0 %v91
  %v270 = vpop.f32.mrb[0].mxu0
  %v271 = vadd.f32 %v60, %v270
  %v272 = vpop.f32.mrb[0].mxu0
  %273 = vmatprep.mubr.f32.mxu0 0.0
  %274 = vmatmul.mubr.f32.gmra.mrb[0].mxu0 %v94
  %v275 = vpop.f32.mrb[0].mxu0
  %v276 = vadd.f32 %v60, %v275
  %v277 = vpop.f32.mrb[0].mxu0
  %278 = vmatprep.mubr.f32.mxu0 0.0
  %279 = vmatmul.mubr.f32.gmra.mrb[0].mxu0 %v97
  %v280 = vpop.f32.mrb[0].mxu0
  %v281 = vadd.f32 %v60, %v280
  %v282 = vpop.f32.mrb[0].mxu0
  %283 = vmatprep.mubr.f32.mxu0 0.0
  %284 = vmatmul.mubr.f32.gmra.mrb[0].mxu0 %v100
  %v285 = vpop.f32.mrb[0].mxu0
  %v286 = vadd.f32 %v60, %v285
  %v287 = vpop.f32.mrb[0].mxu0
  %288 = vmatprep.mubr.f32.mxu0 0.0
  %289 = vmatmul.mubr.f32.gmra.mrb[0].mxu0 %v103
  %v290 = vpop.f32.mrb[0].mxu0
  %v291 = vadd.f32 %v60, %v290
  %v292 = vpop.f32.mrb[0].mxu0
  %293 = vmatprep.mubr.f32.mxu0 0.0
  %294 = vmatmul.mubr.f32.gmra.mrb[0].mxu0 %v106
  %v295 = vpop.f32.mrb[0].mxu0
  %v296 = vadd.f32 %v60, %v295
  %v297 = vpop.f32.mrb[0].mxu0
  %298 = vmatprep.mubr.f32.mxu0 0.0
  %299 = vmatmul.mubr.f32.gmra.mrb[0].mxu0 %v109
  %v300 = vpop.f32.mrb[0].mxu0
  %v301 = vadd.f32 %v60, %v300
  %v302 = vpop.f32.mrb[0].mxu0
  %303 = vmatprep.mubr.f32.mxu0 0.0
  %304 = vmatmul.mubr.f32.gmra.mrb[0].mxu0 %v112
  %v305 = vpop.f32.mrb[0].mxu0
  %v306 = vadd.f32 %v60, %v305
  %v307 = vpop.f32.mrb[0].mxu0
  %308 = vmatprep.mubr.f32.mxu0 0.0
  %309 = vmatmul.mubr.f32.gmra.mrb[0].mxu0 %v115
  %v310 = vpop.f32.mrb[0].mxu0
  %v311 = vadd.f32 %v60, %v310
  %v312 = vpop.f32.mrb[0].mxu0
  %313 = vmatprep.mubr.f32.mxu0 0.0
  %314 = vmatmul.mubr.f32.gmra.mrb[0].mxu0 %v118
  %v315 = vpop.f32.mrb[0].mxu0
  %v316 = vadd.f32 %v60, %v315
  %v317 = vpop.f32.mrb[0].mxu0
  %318 = vmatprep.mubr.f32.mxu0 0.0
  %319 = vmatmul.mubr.f32.gmra.mrb[0].mxu0 %v121
  %v320 = vpop.f32.mrb[0].mxu0
  %v321 = vadd.f32 %v60, %v320
  %v322 = vpop.f32.mrb[0].mxu0
  %323 = vmatprep.mubr.f32.mxu0 0.0
  %324 = vmatmul.mubr.f32.gmra.mrb[0].mxu0 %v124
  %v325 = vpop.f32.mrb[0].mxu0
  %v326 = vadd.f32 %v60, %v325
  %v327 = vpop.f32.mrb[0].mxu0
  %328 = vmatprep.mubr.f32.mxu0 0.0
  %329 = vmatmul.mubr.f32.gmra.mrb[0].mxu0 %v127
  %v330 = vpop.f32.mrb[0].mxu0
  %v331 = vadd.f32 %v60, %v330
  %v332 = vpop.f32.mrb[0].mxu0
  %333 = vmatprep.mubr.f32.mxu0 0.0
  %334 = vmatmul.mubr.f32.gmra.mrb[0].mxu0 %v130
  %v335 = vpop.f32.mrb[0].mxu0
  %v336 = vadd.f32 %v60, %v335
  %v337 = vpop.f32.mrb[0].mxu0
  %338 = vmatprep.mubr.f32.mxu0 0.0
  %339 = vmatmul.mubr.f32.gmra.mrb[0].mxu0 %v133
  %v340 = vpop.f32.mrb[0].mxu0
  %v341 = vadd.f32 %v60, %v340
  %v342 = vpop.f32.mrb[0].mxu0
  %343 = vmatprep.mubr.f32.mxu0 0.0
  %344 = vmatmul.mubr.f32.gmra.mrb[0].mxu0 %v136
  %v345 = vpop.f32.mrb[0].mxu0
  %v346 = vadd.f32 %v60, %v345
  %v347 = vpop.f32.mrb[0].mxu0
  %348 = vmatprep.mubr.f32.mxu0 0.0
  %349 = vmatmul.mubr.f32.gmra.mrb[0].mxu0 %v139
  %v350 = vpop.f32.mrb[0].mxu0
  %v351 = vadd.f32 %v60, %v350
  %v352 = vpop.f32.mrb[0].mxu0
  %353 = vmatprep.mubr.f32.mxu0 0.0
  %354 = vmatmul.mubr.f32.gmra.mrb[0].mxu0 %v142
  %v355 = vpop.f32.mrb[0].mxu0
  %v356 = vadd.f32 %v60, %v355
  %v357 = vpop.f32.mrb[0].mxu0
  %358 = vmatprep.mubr.f32.mxu0 0.0
  %359 = vmatmul.mubr.f32.gmra.mrb[0].mxu0 %v145
  %v360 = vpop.f32.mrb[0].mxu0
  %v361 = vadd.f32 %v60, %v360
  %v362 = vpop.f32.mrb[0].mxu0
  %363 = vmatprep.mubr.f32.mxu0 0.0
  %364 = vmatmul.mubr.f32.gmra.mrb[0].mxu0 %v148
  %v365 = vpop.f32.mrb[0].mxu0
  %v366 = vadd.f32 %v60, %v365
  %v367 = vpop.f32.mrb[0].mxu0
  %368 = vmatprep.mubr.f32.mxu0 0.0
  %369 = vmatmul.mubr.f32.gmra.mrb[0].mxu0 %v151
  %v370 = vpop.f32.mrb[0].mxu0
  %v371 = vadd.f32 %v60, %v370
  %v372 = vpop.f32.mrb[0].mxu0
  %373 = vmatprep.mubr.f32.mxu0 0.0
  %374 = vmatmul.mubr.f32.gmra.mrb[0].mxu0 %v154
  %v375 = vpop.f32.mrb[0].mxu0
  %v376 = vadd.f32 %v60, %v375
  %v377 = vpop.f32.mrb[0].mxu0
  %378 = vmatprep.mubr.f32.mxu0 0.0
  %379 = vmatmul.mubr.f32.gmra.mrb[0].mxu0 %v157
  %v380 = vpop.f32.mrb[0].mxu0
  %v381 = vadd.f32 %v60, %v380
  %v382 = vpop.f32.mrb[0].mxu0
  %383 = vdwg.mxu0
  %v384 = vmax.f32 %v226, 0.0
  %v385 = vmax.f32 %v231, 0.0
  %v386 = vmax.f32 %v236, 0.0
  %v387 = vmax.f32 %v241, 0.0
  %v388 = vmax.f32 %v246, 0.0
  %v389 = vmax.f32 %v251, 0.0
  %v390 = vmax.f32 %v256, 0.0
  %v391 = vmax.f32 %v261, 0.0
  %v392 = vmax.f32 %v266, 0.0
  %v393 = vmax.f32 %v271, 0.0
  %v394 = vmax.f32 %v276, 0.0
  %v395 = vmax.f32 %v281, 0.0
  %v396 = vmax.f32 %v286, 0.0
  %v397 = vmax.f32 %v291, 0.0
  %v398 = vmax.f32 %v296, 0.0
  %v399 = vmax.f32 %v301, 0.0
  %v400 = vmax.f32 %v306, 0.0
  %v401 = vmax.f32 %v311, 0.0
  %v402 = vmax.f32 %v316, 0.0
  %v403 = vmax.f32 %v321, 0.0
  %v404 = vmax.f32 %v326, 0.0
  %v405 = vmax.f32 %v331, 0.0
  %v406 = vmax.f32 %v336, 0.0
  %v407 = vmax.f32 %v341, 0.0
  %v408 = vmax.f32 %v346, 0.0
  %v409 = vmax.f32 %v351, 0.0
  %v410 = vmax.f32 %v356, 0.0
  %v411 = vmax.f32 %v361, 0.0
  %v412 = vmax.f32 %v366, 0.0
  %v413 = vmax.f32 %v371, 0.0
  %v414 = vmax.f32 %v376, 0.0
  %v415 = vmax.f32 %v381, 0.0
  %v416 = vlaneseq
  %v417 = vshrl.u32 %v416, 7
  %v418 = vadd.s32 %v417, 8
  %v419 = vld [vmem:[%s3] sm:$0x1]
  %v420 = vlaneseq
  %v421 = vshrl.u32 %v420, 7
  %v422 = vsub.s32 0, %v421
  %v423 = vrot.slane %v419, %v422
  %vm424 = vcmp.le.s32.totalorder %v417, %v423
  %vm425 = vcmp.le.s32.totalorder %v418, %v423
  %v426 = vsel %vm424, %v384, 0.0
  %v427 = vsel %vm425, %v385, 0.0
  %v428 = vsel %vm424, %v386, 0.0
  %v429 = vsel %vm425, %v387, 0.0
  %v430 = vsel %vm424, %v388, 0.0
  %v431 = vsel %vm425, %v389, 0.0
  %v432 = vsel %vm424, %v390, 0.0
  %v433 = vsel %vm425, %v391, 0.0
  %v434 = vsel %vm424, %v392, 0.0
  %v435 = vsel %vm425, %v393, 0.0
  %v436 = vsel %vm424, %v394, 0.0
  %v437 = vsel %vm425, %v395, 0.0
  %v438 = vsel %vm424, %v396, 0.0
  %v439 = vsel %vm425, %v397, 0.0
  %v440 = vsel %vm424, %v398, 0.0
  %v441 = vsel %vm425, %v399, 0.0
  %v442 = vsel %vm424, %v400, 0.0
  %v443 = vsel %vm425, %v401, 0.0
  %v444 = vsel %vm424, %v402, 0.0
  %v445 = vsel %vm425, %v403, 0.0
  %v446 = vsel %vm424, %v404, 0.0
  %v447 = vsel %vm425, %v405, 0.0
  %v448 = vsel %vm424, %v406, 0.0
  %v449 = vsel %vm425, %v407, 0.0
  %v450 = vsel %vm424, %v408, 0.0
  %v451 = vsel %vm425, %v409, 0.0
  %v452 = vsel %vm424, %v410, 0.0
  %v453 = vsel %vm425, %v411, 0.0
  %v454 = vsel %vm424, %v412, 0.0
  %v455 = vsel %vm425, %v413, 0.0
  %v456 = vsel %vm424, %v414, 0.0
  %v457 = vsel %vm425, %v415, 0.0
  %vm458 = vcmask 195584
  %v459 = vsel %vm458, %v426, -inf
  %v460 = vsel %vm458, %v427, -inf
  %v461 = vmax.f32 %v459, %v460
  %v462 = vrot.slane %v461, 4
  %v463 = vmax.f32 %v461, %v462
  %v464 = vrot.slane %v463, 2
  %v465 = vmax.f32 %v463, %v464
  %v466 = vrot.slane %v465, 1
  %v467 = vmax.f32 %v465, %v466
  %v468 = vsel %vm458, %v428, -inf
  %v469 = vsel %vm458, %v429, -inf
  %v470 = vmax.f32 %v468, %v469
  %v471 = vrot.slane %v470, 4
  %v472 = vmax.f32 %v470, %v471
  %v473 = vrot.slane %v472, 2
  %v474 = vmax.f32 %v472, %v473
  %v475 = vrot.slane %v474, 1
  %v476 = vmax.f32 %v474, %v475
  %v477 = vsel %vm458, %v430, -inf
  %v478 = vsel %vm458, %v431, -inf
  %v479 = vmax.f32 %v477, %v478
  %v480 = vrot.slane %v479, 4
  %v481 = vmax.f32 %v479, %v480
  %v482 = vrot.slane %v481, 2
  %v483 = vmax.f32 %v481, %v482
  %v484 = vrot.slane %v483, 1
  %v485 = vmax.f32 %v483, %v484
  %v486 = vsel %vm458, %v432, -inf
  %v487 = vsel %vm458, %v433, -inf
  %v488 = vmax.f32 %v486, %v487
  %v489 = vrot.slane %v488, 4
  %v490 = vmax.f32 %v488, %v489
  %v491 = vrot.slane %v490, 2
  %v492 = vmax.f32 %v490, %v491
  %v493 = vrot.slane %v492, 1
  %v494 = vmax.f32 %v492, %v493
  %v495 = vsel %vm458, %v434, -inf
  %v496 = vsel %vm458, %v435, -inf
  %v497 = vmax.f32 %v495, %v496
  %v498 = vrot.slane %v497, 4
  %v499 = vmax.f32 %v497, %v498
  %v500 = vrot.slane %v499, 2
  %v501 = vmax.f32 %v499, %v500
  %v502 = vrot.slane %v501, 1
  %v503 = vmax.f32 %v501, %v502
  %v504 = vsel %vm458, %v436, -inf
  %v505 = vsel %vm458, %v437, -inf
  %v506 = vmax.f32 %v504, %v505
  %v507 = vrot.slane %v506, 4
  %v508 = vmax.f32 %v506, %v507
  %v509 = vrot.slane %v508, 2
  %v510 = vmax.f32 %v508, %v509
  %v511 = vrot.slane %v510, 1
  %v512 = vmax.f32 %v510, %v511
  %v513 = vsel %vm458, %v438, -inf
  %v514 = vsel %vm458, %v439, -inf
  %v515 = vmax.f32 %v513, %v514
  %v516 = vrot.slane %v515, 4
  %v517 = vmax.f32 %v515, %v516
  %v518 = vrot.slane %v517, 2
  %v519 = vmax.f32 %v517, %v518
  %v520 = vrot.slane %v519, 1
  %v521 = vmax.f32 %v519, %v520
  %v522 = vsel %vm458, %v440, -inf
  %v523 = vsel %vm458, %v441, -inf
  %v524 = vmax.f32 %v522, %v523
  %v525 = vrot.slane %v524, 4
  %v526 = vmax.f32 %v524, %v525
  %v527 = vrot.slane %v526, 2
  %v528 = vmax.f32 %v526, %v527
  %v529 = vrot.slane %v528, 1
  %v530 = vmax.f32 %v528, %v529
  %v531 = vsel %vm458, %v442, -inf
  %v532 = vsel %vm458, %v443, -inf
  %v533 = vmax.f32 %v531, %v532
  %v534 = vrot.slane %v533, 4
  %v535 = vmax.f32 %v533, %v534
  %v536 = vrot.slane %v535, 2
  %v537 = vmax.f32 %v535, %v536
  %v538 = vrot.slane %v537, 1
  %v539 = vmax.f32 %v537, %v538
  %v540 = vsel %vm458, %v444, -inf
  %v541 = vsel %vm458, %v445, -inf
  %v542 = vmax.f32 %v540, %v541
  %v543 = vrot.slane %v542, 4
  %v544 = vmax.f32 %v542, %v543
  %v545 = vrot.slane %v544, 2
  %v546 = vmax.f32 %v544, %v545
  %v547 = vrot.slane %v546, 1
  %v548 = vmax.f32 %v546, %v547
  %v549 = vsel %vm458, %v446, -inf
  %v550 = vsel %vm458, %v447, -inf
  %v551 = vmax.f32 %v549, %v550
  %v552 = vrot.slane %v551, 4
  %v553 = vmax.f32 %v551, %v552
  %v554 = vrot.slane %v553, 2
  %v555 = vmax.f32 %v553, %v554
  %v556 = vrot.slane %v555, 1
  %v557 = vmax.f32 %v555, %v556
  %v558 = vsel %vm458, %v448, -inf
  %v559 = vsel %vm458, %v449, -inf
  %v560 = vmax.f32 %v558, %v559
  %v561 = vrot.slane %v560, 4
  %v562 = vmax.f32 %v560, %v561
  %v563 = vrot.slane %v562, 2
  %v564 = vmax.f32 %v562, %v563
  %v565 = vrot.slane %v564, 1
  %v566 = vmax.f32 %v564, %v565
  %v567 = vsel %vm458, %v450, -inf
  %v568 = vsel %vm458, %v451, -inf
  %v569 = vmax.f32 %v567, %v568
  %v570 = vrot.slane %v569, 4
  %v571 = vmax.f32 %v569, %v570
  %v572 = vrot.slane %v571, 2
  %v573 = vmax.f32 %v571, %v572
  %v574 = vrot.slane %v573, 1
  %v575 = vmax.f32 %v573, %v574
  %v576 = vsel %vm458, %v452, -inf
  %v577 = vsel %vm458, %v453, -inf
  %v578 = vmax.f32 %v576, %v577
  %v579 = vrot.slane %v578, 4
  %v580 = vmax.f32 %v578, %v579
  %v581 = vrot.slane %v580, 2
  %v582 = vmax.f32 %v580, %v581
  %v583 = vrot.slane %v582, 1
  %v584 = vmax.f32 %v582, %v583
  %v585 = vsel %vm458, %v454, -inf
  %v586 = vsel %vm458, %v455, -inf
  %v587 = vmax.f32 %v585, %v586
  %v588 = vrot.slane %v587, 4
  %v589 = vmax.f32 %v587, %v588
  %v590 = vrot.slane %v589, 2
  %v591 = vmax.f32 %v589, %v590
  %v592 = vrot.slane %v591, 1
  %v593 = vmax.f32 %v591, %v592
  %v594 = vsel %vm458, %v456, -inf
  %v595 = vsel %vm458, %v457, -inf
  %v596 = vmax.f32 %v594, %v595
  %v597 = vrot.slane %v596, 4
  %v598 = vmax.f32 %v596, %v597
  %v599 = vrot.slane %v598, 2
  %v600 = vmax.f32 %v598, %v599
  %v601 = vrot.slane %v600, 1
  %v602 = vmax.f32 %v600, %v601
  %vm619 = vcmask 1041409
  %v620 = vsel %vm619, %v476, %v467
  %vm621 = vcmask 1042434
  %v622 = vsel %vm621, %v485, %v620
  %vm623 = vcmask 1043459
  %v624 = vsel %vm623, %v494, %v622
  %vm625 = vcmask 1044484
  %v626 = vsel %vm625, %v503, %v624
  %vm627 = vcmask 1045509
  %v628 = vsel %vm627, %v512, %v626
  %vm629 = vcmask 1046534
  %v630 = vsel %vm629, %v521, %v628
  %vm631 = vcmask 1047559
  %v632 = vsel %vm631, %v530, %v630
  %v633 = vsel %vm619, %v548, %v539
  %v634 = vsel %vm621, %v557, %v633
  %v635 = vsel %vm623, %v566, %v634
  %v636 = vsel %vm625, %v575, %v635
  %v637 = vsel %vm627, %v584, %v636
  %v638 = vsel %vm629, %v593, %v637
  %v639 = vsel %vm631, %v602, %v638
  %642 = vst.msk [vmem:[%s4] sm:$0xff] %vm458, %v632
  %643 = vst.msk [vmem:[%s4 + $0x8] sm:$0xff] %vm458, %v639
  // Predicated region
  $region18: #{_lambda_.2} parent=0 // pred_check
    _
  $region19: #{_lambda_.2} parent=0 // pred_check_branch
    %645 = sbr.rel (0) target = $region21
  $region20: #{_lambda_.2} parent=0 // pred_region
    _
  $region21: #{_lambda_.2} parent=0 // pred_fallthru
    _
  // Predicated region
  $region22: #{_lambda_.2} parent=0 // pred_check
    _
  $region23: #{_lambda_.2} parent=0 // pred_check_branch
    %647 = sbr.rel (0) target = $region25
  $region24: #{_lambda_.2} parent=0 // pred_region
    _
  $region25: #{_lambda_.2} parent=0 // pred_fallthru
    _

// kernel: _lambda_.3
$region0: #{_lambda_.3}
  #allocation0 [shape = 'u32[]', space=smem, size = 0x4, offset = 0x4, fixed_abs, tag = 'smem constant byte address 0x4 - core index']
  #allocation1 [shape = 'u32[144,128]{1,0:T(1,128)}', space=vmem, size = 0x12000, scoped, tag = 'internal scratch']
  %s0 = inlined_call_operand.vmem [shape: f32[2,8,24], index: 0, kind: input, shape index: {}]
  %s1 = inlined_call_operand.vmem [shape: f32[2,8,32], index: 1, kind: input, shape index: {}]
  %s2 = inlined_call_operand.vmem [shape: f32[2,1,8], index: 2, kind: input, shape index: {}]
  %s3 = inlined_call_operand.vmem [shape: f32[24,32], index: 3, kind: input, shape index: {}]
  %s4 = inlined_call_operand.vmem [shape: f32[1,32], index: 4, kind: input, shape index: {}]
  %s5 = inlined_call_operand.vmem [shape: f32[4,1,32], index: 5, kind: input, shape index: {}]
  %s6 = inlined_call_operand.vmem [shape: f32[4,1,32], index: 6, kind: input, shape index: {}]
  %s7 = inlined_call_operand.vmem [shape: f32[4,32,32], index: 7, kind: input, shape index: {}]
  %s8 = inlined_call_operand.vmem [shape: f32[4,1,32], index: 8, kind: input, shape index: {}]
  %s9 = inlined_call_operand.vmem [shape: f32[4,32,32], index: 9, kind: input, shape index: {}]
  %s10 = inlined_call_operand.vmem [shape: f32[4,1,32], index: 10, kind: input, shape index: {}]
  %s11 = inlined_call_operand.vmem [shape: f32[4,32,32], index: 11, kind: input, shape index: {}]
  %s12 = inlined_call_operand.vmem [shape: f32[4,1,32], index: 12, kind: input, shape index: {}]
  %s13 = inlined_call_operand.vmem [shape: f32[4,32,32], index: 13, kind: input, shape index: {}]
  %s14 = inlined_call_operand.vmem [shape: f32[4,1,32], index: 14, kind: input, shape index: {}]
  %s15 = inlined_call_operand.vmem [shape: f32[4,1,32], index: 15, kind: input, shape index: {}]
  %s16 = inlined_call_operand.vmem [shape: f32[4,1,32], index: 16, kind: input, shape index: {}]
  %s17 = inlined_call_operand.vmem [shape: f32[4,32,64], index: 17, kind: input, shape index: {}]
  %s18 = inlined_call_operand.vmem [shape: f32[4,1,64], index: 18, kind: input, shape index: {}]
  %s19 = inlined_call_operand.vmem [shape: f32[4,64,32], index: 19, kind: input, shape index: {}]
  %s20 = inlined_call_operand.vmem [shape: f32[4,1,32], index: 20, kind: input, shape index: {}]
  %s21 = inlined_call_operand.vmem [shape: f32[32,128], index: 21, kind: input, shape index: {}]
  %s22 = inlined_call_operand.vmem [shape: f32[1,128], index: 22, kind: input, shape index: {}]
  %s23 = inlined_call_operand.vmem [shape: f32[2,8,128], index: 23, kind: output, shape index: {}]
  %s24 = sld [smem:[#allocation0]]
  $region125: #{_lambda_.3} parent=0
    _
  %s26 = ssub.s32 1, %s24
  %s27 = scalar_select 0, %s26, %s24
  loop: start=0, step=1, limit=4
  $region2: #{_lambda_.3} parent=0 // loop_pre_header
    _
  $region3: #{_lambda_.3} parent=0 // loop_header
    %s29 = sphi 0, %s33
    %p30 = scmp.ge.s32.totalorder %s29, 4
    %s39 = sphi 0, %s41
    %s42 = sphi 0, %s39
    %s43 = sphi 0, %s42
    %s59 = sphi 0, %s43
    %s65 = sphi 0, %s67
    %s68 = sphi 0, %s65
    %s69 = sphi 0, %s68
    %s85 = sphi 0, %s69
    %s91 = sphi 0, %s93
    %s94 = sphi 0, %s91
    %s95 = sphi 0, %s94
    %s111 = sphi 0, %s95
    %s115 = sphi 0, %s115
    %s117 = sphi 0, %s115
    %s118 = sphi 0, %s117
    %s132 = sphi 0, %s118
    %s136 = sphi 0, %s136
    %s138 = sphi 0, %s136
    %s139 = sphi 0, %s138
    %s153 = sphi 0, %s139
    %s157 = sphi 0, %s157
    %s159 = sphi 0, %s157
    %s160 = sphi 0, %s159
    %s174 = sphi 0, %s160
    %s178 = sphi 0, %s178
    %s180 = sphi 0, %s178
    %s181 = sphi 0, %s180
    %s195 = sphi 0, %s181
    %s199 = sphi 0, %s199
    %s201 = sphi 0, %s199
    %s202 = sphi 0, %s201
    %s216 = sphi 0, %s202
    %s220 = sphi 0, %s220
    %s222 = sphi 0, %s220
    %s223 = sphi 0, %s222
    %s237 = sphi 0, %s223
    %s241 = sphi 0, %s241
    %s243 = sphi 0, %s241
    %s244 = sphi 0, %s243
    %s258 = sphi 0, %s244
    %s262 = sphi 0, %s262
    %s264 = sphi 0, %s262
    %s265 = sphi 0, %s264
    %s279 = sphi 0, %s265
    %s283 = sphi 0, %s283
    %s285 = sphi 0, %s283
    %s286 = sphi 0, %s285
    %s300 = sphi 0, %s286
    %s304 = sphi 0, %s304
    %s306 = sphi 0, %s304
    %s307 = sphi 0, %s306
    %s321 = sphi 0, %s307
    %s325 = sphi 0, %s325
    %s327 = sphi 0, %s325
    %s328 = sphi 0, %s327
    %s342 = sphi 0, %s328
    %s346 = sphi 0, %s346
    %s348 = sphi 0, %s346
    %s349 = sphi 0, %s348
    %s363 = sphi 0, %s349
    %s367 = sphi 0, %s367
    %s369 = sphi 0, %s367
    %s370 = sphi 0, %s369
    %s384 = sphi 0, %s370
    %s388 = sphi 0, %s388
    %s390 = sphi 0, %s388
    %s391 = sphi 0, %s390
    %s405 = sphi 0, %s391
    %s409 = sphi 0, %s409
    %s411 = sphi 0, %s409
    %s412 = sphi 0, %s411
    %s426 = sphi 0, %s412
    %s430 = sphi 0, %s430
    %s432 = sphi 0, %s430
    %s433 = sphi 0, %s432
    %s447 = sphi 0, %s433
    %s451 = sphi 0, %s451
    %s453 = sphi 0, %s451
    %s454 = sphi 0, %s453
    %s468 = sphi 0, %s454
    %s472 = sphi 0, %s472
    %s474 = sphi 0, %s472
    %s475 = sphi 0, %s474
    %s489 = sphi 0, %s475
    %s493 = sphi 0, %s493
    %s495 = sphi 0, %s493
    %s496 = sphi 0, %s495
    %s510 = sphi 0, %s496
    %s514 = sphi 0, %s514
    %s516 = sphi 0, %s514
    %s517 = sphi 0, %s516
    %s531 = sphi 0, %s517
    %s537 = sphi 0, %s539
    %s540 = sphi 0, %s537
    %s541 = sphi 0, %s540
    %s557 = sphi 0, %s541
  $region4: #{_lambda_.3} parent=0 // loop_header_branch
    %32 = sbr.rel (%p30) target = $region8
  $region5: #{_lambda_.3} parent=0 // loop_body
    %s34 = ssub.s32 %s29, 1
    %s35 = ssub.s32 %s29, 2
    %s36 = sadd.s32 %s29, 1
    %s37 = ssub.s32 %s29, %s36
    %p38 = scmp.eq.s32.totalorder %s37, 0
    %s40 = sadd.s32 %s39, 1
    %s41 = scalar_select %p38, %s39, %s40
    %p44 = pneg %p38
    %p45 = scmp.eq.s32.totalorder %s29, 1
    %p46 = por %p44, %p45
    %p47 = scmp.ne.s32.totalorder %s39, %s42
    %p48 = scmp.eq.s32.totalorder %s29, 0
    %p49 = por %p47, %p48
    %p50 = scmp.ne.s32.totalorder %s39, %s42
    %p51 = scmp.eq.s32.totalorder %s34, 1
    %p52 = por %p50, %p51
    %p53 = scmp.ne.s32.totalorder %s42, %s43
    %p54 = scmp.eq.s32.totalorder %s34, 0
    %p55 = por %p53, %p54
    %p56 = scmp.ne.s32.totalorder %s42, %s43
    %p57 = scmp.eq.s32.totalorder %s35, 1
    %p58 = por %p56, %p57
    %p60 = scmp.ne.s32.totalorder %s43, %s59
    %p61 = scmp.eq.s32.totalorder %s35, 0
    %p62 = por %p60, %p61
    %s63 = ssub.s32 %s29, %s36
    %p64 = scmp.eq.s32.totalorder %s63, 0
    %s66 = sadd.s32 %s65, 1
    %s67 = scalar_select %p64, %s65, %s66
    %p70 = pneg %p64
    %p71 = scmp.eq.s32.totalorder %s29, 1
    %p72 = por %p70, %p71
    %p73 = scmp.ne.s32.totalorder %s65, %s68
    %p74 = scmp.eq.s32.totalorder %s29, 0
    %p75 = por %p73, %p74
    %p76 = scmp.ne.s32.totalorder %s65, %s68
    %p77 = scmp.eq.s32.totalorder %s34, 1
    %p78 = por %p76, %p77
    %p79 = scmp.ne.s32.totalorder %s68, %s69
    %p80 = scmp.eq.s32.totalorder %s34, 0
    %p81 = por %p79, %p80
    %p82 = scmp.ne.s32.totalorder %s68, %s69
    %p83 = scmp.eq.s32.totalorder %s35, 1
    %p84 = por %p82, %p83
    %p86 = scmp.ne.s32.totalorder %s69, %s85
    %p87 = scmp.eq.s32.totalorder %s35, 0
    %p88 = por %p86, %p87
    %s89 = ssub.s32 %s29, %s36
    %p90 = scmp.eq.s32.totalorder %s89, 0
    %s92 = sadd.s32 %s91, 1
    %s93 = scalar_select %p90, %s91, %s92
    %p96 = pneg %p90
    %p97 = scmp.eq.s32.totalorder %s29, 1
    %p98 = por %p96, %p97
    %p99 = scmp.ne.s32.totalorder %s91, %s94
    %p100 = scmp.eq.s32.totalorder %s29, 0
    %p101 = por %p99, %p100
    %p102 = scmp.ne.s32.totalorder %s91, %s94
    %p103 = scmp.eq.s32.totalorder %s34, 1
    %p104 = por %p102, %p103
    %p105 = scmp.ne.s32.totalorder %s94, %s95
    %p106 = scmp.eq.s32.totalorder %s34, 0
    %p107 = por %p105, %p106
    %p108 = scmp.ne.s32.totalorder %s94, %s95
    %p109 = scmp.eq.s32.totalorder %s35, 1
    %p110 = por %p108, %p109
    %p112 = scmp.ne.s32.totalorder %s95, %s111
    %p113 = scmp.eq.s32.totalorder %s35, 0
    %p114 = por %p112, %p113
    %s116 = sadd.s32 %s115, 1
    %p119 = scmp.eq.s32.totalorder %s29, 1
    %p120 = scmp.ne.s32.totalorder %s115, %s117
    %p121 = scmp.eq.s32.totalorder %s29, 0
    %p122 = por %p120, %p121
    %p123 = scmp.ne.s32.totalorder %s115, %s117
    %p124 = scmp.eq.s32.totalorder %s34, 1
    %p125 = por %p123, %p124
    %p126 = scmp.ne.s32.totalorder %s117, %s118
    %p127 = scmp.eq.s32.totalorder %s34, 0
    %p128 = por %p126, %p127
    %p129 = scmp.ne.s32.totalorder %s117, %s118
    %p130 = scmp.eq.s32.totalorder %s35, 1
    %p131 = por %p129, %p130
    %p133 = scmp.ne.s32.totalorder %s118, %s132
    %p134 = scmp.eq.s32.totalorder %s35, 0
    %p135 = por %p133, %p134
    %s137 = sadd.s32 %s136, 1
    %p140 = scmp.eq.s32.totalorder %s29, 1
    %p141 = scmp.ne.s32.totalorder %s136, %s138
    %p142 = scmp.eq.s32.totalorder %s29, 0
    %p143 = por %p141, %p142
    %p144 = scmp.ne.s32.totalorder %s136, %s138
    %p145 = scmp.eq.s32.totalorder %s34, 1
    %p146 = por %p144, %p145
    %p147 = scmp.ne.s32.totalorder %s138, %s139
    %p148 = scmp.eq.s32.totalorder %s34, 0
    %p149 = por %p147, %p148
    %p150 = scmp.ne.s32.totalorder %s138, %s139
    %p151 = scmp.eq.s32.totalorder %s35, 1
    %p152 = por %p150, %p151
    %p154 = scmp.ne.s32.totalorder %s139, %s153
    %p155 = scmp.eq.s32.totalorder %s35, 0
    %p156 = por %p154, %p155
    %s158 = sadd.s32 %s157, 1
    %p161 = scmp.eq.s32.totalorder %s29, 1
    %p162 = scmp.ne.s32.totalorder %s157, %s159
    %p163 = scmp.eq.s32.totalorder %s29, 0
    %p164 = por %p162, %p163
    %p165 = scmp.ne.s32.totalorder %s157, %s159
    %p166 = scmp.eq.s32.totalorder %s34, 1
    %p167 = por %p165, %p166
    %p168 = scmp.ne.s32.totalorder %s159, %s160
    %p169 = scmp.eq.s32.totalorder %s34, 0
    %p170 = por %p168, %p169
    %p171 = scmp.ne.s32.totalorder %s159, %s160
    %p172 = scmp.eq.s32.totalorder %s35, 1
    %p173 = por %p171, %p172
    %p175 = scmp.ne.s32.totalorder %s160, %s174
    %p176 = scmp.eq.s32.totalorder %s35, 0
    %p177 = por %p175, %p176
    %s179 = sadd.s32 %s178, 1
    %p182 = scmp.eq.s32.totalorder %s29, 1
    %p183 = scmp.ne.s32.totalorder %s178, %s180
    %p184 = scmp.eq.s32.totalorder %s29, 0
    %p185 = por %p183, %p184
    %p186 = scmp.ne.s32.totalorder %s178, %s180
    %p187 = scmp.eq.s32.totalorder %s34, 1
    %p188 = por %p186, %p187
    %p189 = scmp.ne.s32.totalorder %s180, %s181
    %p190 = scmp.eq.s32.totalorder %s34, 0
    %p191 = por %p189, %p190
    %p192 = scmp.ne.s32.totalorder %s180, %s181
    %p193 = scmp.eq.s32.totalorder %s35, 1
    %p194 = por %p192, %p193
    %p196 = scmp.ne.s32.totalorder %s181, %s195
    %p197 = scmp.eq.s32.totalorder %s35, 0
    %p198 = por %p196, %p197
    %s200 = sadd.s32 %s199, 1
    %p203 = scmp.eq.s32.totalorder %s29, 1
    %p204 = scmp.ne.s32.totalorder %s199, %s201
    %p205 = scmp.eq.s32.totalorder %s29, 0
    %p206 = por %p204, %p205
    %p207 = scmp.ne.s32.totalorder %s199, %s201
    %p208 = scmp.eq.s32.totalorder %s34, 1
    %p209 = por %p207, %p208
    %p210 = scmp.ne.s32.totalorder %s201, %s202
    %p211 = scmp.eq.s32.totalorder %s34, 0
    %p212 = por %p210, %p211
    %p213 = scmp.ne.s32.totalorder %s201, %s202
    %p214 = scmp.eq.s32.totalorder %s35, 1
    %p215 = por %p213, %p214
    %p217 = scmp.ne.s32.totalorder %s202, %s216
    %p218 = scmp.eq.s32.totalorder %s35, 0
    %p219 = por %p217, %p218
    %s221 = sadd.s32 %s220, 1
    %p224 = scmp.eq.s32.totalorder %s29, 1
    %p225 = scmp.ne.s32.totalorder %s220, %s222
    %p226 = scmp.eq.s32.totalorder %s29, 0
    %p227 = por %p225, %p226
    %p228 = scmp.ne.s32.totalorder %s220, %s222
    %p229 = scmp.eq.s32.totalorder %s34, 1
    %p230 = por %p228, %p229
    %p231 = scmp.ne.s32.totalorder %s222, %s223
    %p232 = scmp.eq.s32.totalorder %s34, 0
    %p233 = por %p231, %p232
    %p234 = scmp.ne.s32.totalorder %s222, %s223
    %p235 = scmp.eq.s32.totalorder %s35, 1
    %p236 = por %p234, %p235
    %p238 = scmp.ne.s32.totalorder %s223, %s237
    %p239 = scmp.eq.s32.totalorder %s35, 0
    %p240 = por %p238, %p239
    %s242 = sadd.s32 %s241, 1
    %p245 = scmp.eq.s32.totalorder %s29, 1
    %p246 = scmp.ne.s32.totalorder %s241, %s243
    %p247 = scmp.eq.s32.totalorder %s29, 0
    %p248 = por %p246, %p247
    %p249 = scmp.ne.s32.totalorder %s241, %s243
    %p250 = scmp.eq.s32.totalorder %s34, 1
    %p251 = por %p249, %p250
    %p252 = scmp.ne.s32.totalorder %s243, %s244
    %p253 = scmp.eq.s32.totalorder %s34, 0
    %p254 = por %p252, %p253
    %p255 = scmp.ne.s32.totalorder %s243, %s244
    %p256 = scmp.eq.s32.totalorder %s35, 1
    %p257 = por %p255, %p256
    %p259 = scmp.ne.s32.totalorder %s244, %s258
    %p260 = scmp.eq.s32.totalorder %s35, 0
    %p261 = por %p259, %p260
    %s263 = sadd.s32 %s262, 1
    %p266 = scmp.eq.s32.totalorder %s29, 1
    %p267 = scmp.ne.s32.totalorder %s262, %s264
    %p268 = scmp.eq.s32.totalorder %s29, 0
    %p269 = por %p267, %p268
    %p270 = scmp.ne.s32.totalorder %s262, %s264
    %p271 = scmp.eq.s32.totalorder %s34, 1
    %p272 = por %p270, %p271
    %p273 = scmp.ne.s32.totalorder %s264, %s265
    %p274 = scmp.eq.s32.totalorder %s34, 0
    %p275 = por %p273, %p274
    %p276 = scmp.ne.s32.totalorder %s264, %s265
    %p277 = scmp.eq.s32.totalorder %s35, 1
    %p278 = por %p276, %p277
    %p280 = scmp.ne.s32.totalorder %s265, %s279
    %p281 = scmp.eq.s32.totalorder %s35, 0
    %p282 = por %p280, %p281
    %s284 = sadd.s32 %s283, 1
    %p287 = scmp.eq.s32.totalorder %s29, 1
    %p288 = scmp.ne.s32.totalorder %s283, %s285
    %p289 = scmp.eq.s32.totalorder %s29, 0
    %p290 = por %p288, %p289
    %p291 = scmp.ne.s32.totalorder %s283, %s285
    %p292 = scmp.eq.s32.totalorder %s34, 1
    %p293 = por %p291, %p292
    %p294 = scmp.ne.s32.totalorder %s285, %s286
    %p295 = scmp.eq.s32.totalorder %s34, 0
    %p296 = por %p294, %p295
    %p297 = scmp.ne.s32.totalorder %s285, %s286
    %p298 = scmp.eq.s32.totalorder %s35, 1
    %p299 = por %p297, %p298
    %p301 = scmp.ne.s32.totalorder %s286, %s300
    %p302 = scmp.eq.s32.totalorder %s35, 0
    %p303 = por %p301, %p302
    %s305 = sadd.s32 %s304, 1
    %p308 = scmp.eq.s32.totalorder %s29, 1
    %p309 = scmp.ne.s32.totalorder %s304, %s306
    %p310 = scmp.eq.s32.totalorder %s29, 0
    %p311 = por %p309, %p310
    %p312 = scmp.ne.s32.totalorder %s304, %s306
    %p313 = scmp.eq.s32.totalorder %s34, 1
    %p314 = por %p312, %p313
    %p315 = scmp.ne.s32.totalorder %s306, %s307
    %p316 = scmp.eq.s32.totalorder %s34, 0
    %p317 = por %p315, %p316
    %p318 = scmp.ne.s32.totalorder %s306, %s307
    %p319 = scmp.eq.s32.totalorder %s35, 1
    %p320 = por %p318, %p319
    %p322 = scmp.ne.s32.totalorder %s307, %s321
    %p323 = scmp.eq.s32.totalorder %s35, 0
    %p324 = por %p322, %p323
    %s326 = sadd.s32 %s325, 1
    %p329 = scmp.eq.s32.totalorder %s29, 1
    %p330 = scmp.ne.s32.totalorder %s325, %s327
    %p331 = scmp.eq.s32.totalorder %s29, 0
    %p332 = por %p330, %p331
    %p333 = scmp.ne.s32.totalorder %s325, %s327
    %p334 = scmp.eq.s32.totalorder %s34, 1
    %p335 = por %p333, %p334
    %p336 = scmp.ne.s32.totalorder %s327, %s328
    %p337 = scmp.eq.s32.totalorder %s34, 0
    %p338 = por %p336, %p337
    %p339 = scmp.ne.s32.totalorder %s327, %s328
    %p340 = scmp.eq.s32.totalorder %s35, 1
    %p341 = por %p339, %p340
    %p343 = scmp.ne.s32.totalorder %s328, %s342
    %p344 = scmp.eq.s32.totalorder %s35, 0
    %p345 = por %p343, %p344
    %s347 = sadd.s32 %s346, 1
    %p350 = scmp.eq.s32.totalorder %s29, 1
    %p351 = scmp.ne.s32.totalorder %s346, %s348
    %p352 = scmp.eq.s32.totalorder %s29, 0
    %p353 = por %p351, %p352
    %p354 = scmp.ne.s32.totalorder %s346, %s348
    %p355 = scmp.eq.s32.totalorder %s34, 1
    %p356 = por %p354, %p355
    %p357 = scmp.ne.s32.totalorder %s348, %s349
    %p358 = scmp.eq.s32.totalorder %s34, 0
    %p359 = por %p357, %p358
    %p360 = scmp.ne.s32.totalorder %s348, %s349
    %p361 = scmp.eq.s32.totalorder %s35, 1
    %p362 = por %p360, %p361
    %p364 = scmp.ne.s32.totalorder %s349, %s363
    %p365 = scmp.eq.s32.totalorder %s35, 0
    %p366 = por %p364, %p365
    %s368 = sadd.s32 %s367, 1
    %p371 = scmp.eq.s32.totalorder %s29, 1
    %p372 = scmp.ne.s32.totalorder %s367, %s369
    %p373 = scmp.eq.s32.totalorder %s29, 0
    %p374 = por %p372, %p373
    %p375 = scmp.ne.s32.totalorder %s367, %s369
    %p376 = scmp.eq.s32.totalorder %s34, 1
    %p377 = por %p375, %p376
    %p378 = scmp.ne.s32.totalorder %s369, %s370
    %p379 = scmp.eq.s32.totalorder %s34, 0
    %p380 = por %p378, %p379
    %p381 = scmp.ne.s32.totalorder %s369, %s370
    %p382 = scmp.eq.s32.totalorder %s35, 1
    %p383 = por %p381, %p382
    %p385 = scmp.ne.s32.totalorder %s370, %s384
    %p386 = scmp.eq.s32.totalorder %s35, 0
    %p387 = por %p385, %p386
    %s389 = sadd.s32 %s388, 1
    %p392 = scmp.eq.s32.totalorder %s29, 1
    %p393 = scmp.ne.s32.totalorder %s388, %s390
    %p394 = scmp.eq.s32.totalorder %s29, 0
    %p395 = por %p393, %p394
    %p396 = scmp.ne.s32.totalorder %s388, %s390
    %p397 = scmp.eq.s32.totalorder %s34, 1
    %p398 = por %p396, %p397
    %p399 = scmp.ne.s32.totalorder %s390, %s391
    %p400 = scmp.eq.s32.totalorder %s34, 0
    %p401 = por %p399, %p400
    %p402 = scmp.ne.s32.totalorder %s390, %s391
    %p403 = scmp.eq.s32.totalorder %s35, 1
    %p404 = por %p402, %p403
    %p406 = scmp.ne.s32.totalorder %s391, %s405
    %p407 = scmp.eq.s32.totalorder %s35, 0
    %p408 = por %p406, %p407
    %s410 = sadd.s32 %s409, 1
    %p413 = scmp.eq.s32.totalorder %s29, 1
    %p414 = scmp.ne.s32.totalorder %s409, %s411
    %p415 = scmp.eq.s32.totalorder %s29, 0
    %p416 = por %p414, %p415
    %p417 = scmp.ne.s32.totalorder %s409, %s411
    %p418 = scmp.eq.s32.totalorder %s34, 1
    %p419 = por %p417, %p418
    %p420 = scmp.ne.s32.totalorder %s411, %s412
    %p421 = scmp.eq.s32.totalorder %s34, 0
    %p422 = por %p420, %p421
    %p423 = scmp.ne.s32.totalorder %s411, %s412
    %p424 = scmp.eq.s32.totalorder %s35, 1
    %p425 = por %p423, %p424
    %p427 = scmp.ne.s32.totalorder %s412, %s426
    %p428 = scmp.eq.s32.totalorder %s35, 0
    %p429 = por %p427, %p428
    %s431 = sadd.s32 %s430, 1
    %p434 = scmp.eq.s32.totalorder %s29, 1
    %p435 = scmp.ne.s32.totalorder %s430, %s432
    %p436 = scmp.eq.s32.totalorder %s29, 0
    %p437 = por %p435, %p436
    %p438 = scmp.ne.s32.totalorder %s430, %s432
    %p439 = scmp.eq.s32.totalorder %s34, 1
    %p440 = por %p438, %p439
    %p441 = scmp.ne.s32.totalorder %s432, %s433
    %p442 = scmp.eq.s32.totalorder %s34, 0
    %p443 = por %p441, %p442
    %p444 = scmp.ne.s32.totalorder %s432, %s433
    %p445 = scmp.eq.s32.totalorder %s35, 1
    %p446 = por %p444, %p445
    %p448 = scmp.ne.s32.totalorder %s433, %s447
    %p449 = scmp.eq.s32.totalorder %s35, 0
    %p450 = por %p448, %p449
    %s452 = sadd.s32 %s451, 1
    %p455 = scmp.eq.s32.totalorder %s29, 1
    %p456 = scmp.ne.s32.totalorder %s451, %s453
    %p457 = scmp.eq.s32.totalorder %s29, 0
    %p458 = por %p456, %p457
    %p459 = scmp.ne.s32.totalorder %s451, %s453
    %p460 = scmp.eq.s32.totalorder %s34, 1
    %p461 = por %p459, %p460
    %p462 = scmp.ne.s32.totalorder %s453, %s454
    %p463 = scmp.eq.s32.totalorder %s34, 0
    %p464 = por %p462, %p463
    %p465 = scmp.ne.s32.totalorder %s453, %s454
    %p466 = scmp.eq.s32.totalorder %s35, 1
    %p467 = por %p465, %p466
    %p469 = scmp.ne.s32.totalorder %s454, %s468
    %p470 = scmp.eq.s32.totalorder %s35, 0
    %p471 = por %p469, %p470
    %s473 = sadd.s32 %s472, 1
    %p476 = scmp.eq.s32.totalorder %s29, 1
    %p477 = scmp.ne.s32.totalorder %s472, %s474
    %p478 = scmp.eq.s32.totalorder %s29, 0
    %p479 = por %p477, %p478
    %p480 = scmp.ne.s32.totalorder %s472, %s474
    %p481 = scmp.eq.s32.totalorder %s34, 1
    %p482 = por %p480, %p481
    %p483 = scmp.ne.s32.totalorder %s474, %s475
    %p484 = scmp.eq.s32.totalorder %s34, 0
    %p485 = por %p483, %p484
    %p486 = scmp.ne.s32.totalorder %s474, %s475
    %p487 = scmp.eq.s32.totalorder %s35, 1
    %p488 = por %p486, %p487
    %p490 = scmp.ne.s32.totalorder %s475, %s489
    %p491 = scmp.eq.s32.totalorder %s35, 0
    %p492 = por %p490, %p491
    %s494 = sadd.s32 %s493, 1
    %p497 = scmp.eq.s32.totalorder %s29, 1
    %p498 = scmp.ne.s32.totalorder %s493, %s495
    %p499 = scmp.eq.s32.totalorder %s29, 0
    %p500 = por %p498, %p499
    %p501 = scmp.ne.s32.totalorder %s493, %s495
    %p502 = scmp.eq.s32.totalorder %s34, 1
    %p503 = por %p501, %p502
    %p504 = scmp.ne.s32.totalorder %s495, %s496
    %p505 = scmp.eq.s32.totalorder %s34, 0
    %p506 = por %p504, %p505
    %p507 = scmp.ne.s32.totalorder %s495, %s496
    %p508 = scmp.eq.s32.totalorder %s35, 1
    %p509 = por %p507, %p508
    %p511 = scmp.ne.s32.totalorder %s496, %s510
    %p512 = scmp.eq.s32.totalorder %s35, 0
    %p513 = por %p511, %p512
    %s515 = sadd.s32 %s514, 1
    %p518 = scmp.eq.s32.totalorder %s29, 1
    %p519 = scmp.ne.s32.totalorder %s514, %s516
    %p520 = scmp.eq.s32.totalorder %s29, 0
    %p521 = por %p519, %p520
    %p522 = scmp.ne.s32.totalorder %s514, %s516
    %p523 = scmp.eq.s32.totalorder %s34, 1
    %p524 = por %p522, %p523
    %p525 = scmp.ne.s32.totalorder %s516, %s517
    %p526 = scmp.eq.s32.totalorder %s34, 0
    %p527 = por %p525, %p526
    %p528 = scmp.ne.s32.totalorder %s516, %s517
    %p529 = scmp.eq.s32.totalorder %s35, 1
    %p530 = por %p528, %p529
    %p532 = scmp.ne.s32.totalorder %s517, %s531
    %p533 = scmp.eq.s32.totalorder %s35, 0
    %p534 = por %p532, %p533
    %s535 = ssub.s32 %s29, %s36
    %p536 = scmp.eq.s32.totalorder %s535, 0
    %s538 = sadd.s32 %s537, 1
    %s539 = scalar_select %p536, %s537, %s538
    %p542 = pneg %p536
    %p543 = scmp.eq.s32.totalorder %s29, 1
    %p544 = por %p542, %p543
    %p545 = scmp.ne.s32.totalorder %s537, %s540
    %p546 = scmp.eq.s32.totalorder %s29, 0
    %p547 = por %p545, %p546
    %p548 = scmp.ne.s32.totalorder %s537, %s540
    %p549 = scmp.eq.s32.totalorder %s34, 1
    %p550 = por %p548, %p549
    %p551 = scmp.ne.s32.totalorder %s540, %s541
    %p552 = scmp.eq.s32.totalorder %s34, 0
    %p553 = por %p551, %p552
    %p554 = scmp.ne.s32.totalorder %s540, %s541
    %p555 = scmp.eq.s32.totalorder %s35, 1
    %p556 = por %p554, %p555
    %p558 = scmp.ne.s32.totalorder %s541, %s557
    %p559 = scmp.eq.s32.totalorder %s35, 0
    %p560 = por %p558, %p559
    %p561 = scmp.le.s32.totalorder 1, %s29
    %p562 = scmp.lt.s32.totalorder %s29, 3
    %p563 = pnand %p561, %p562
    %p564 = pneg %p563
    // Predicated region
    $region9: #{_lambda_.3} parent=5 // pred_check
      _
    $region10: #{_lambda_.3} parent=5 // pred_check_branch
      %566 = sbr.rel (%p563) target = $region12
    $region11: #{_lambda_.3} parent=5 // pred_region
      %s567 = ssub.s32 %s29, 1
      // Predicated region
      $region13: #{_lambda_.3} parent=11 // pred_check
        %p568 = pneg %p128
      $region14: #{_lambda_.3} parent=11 // pred_check_branch
        %570 = sbr.rel (%p568) target = $region16
      $region15: #{_lambda_.3} parent=11 // pred_region
        _
      $region16: #{_lambda_.3} parent=11 // pred_fallthru
        _
      // Predicated region
      $region17: #{_lambda_.3} parent=11 // pred_check
        %p571 = pneg %p149
      $region18: #{_lambda_.3} parent=11 // pred_check_branch
        %573 = sbr.rel (%p571) target = $region20
      $region19: #{_lambda_.3} parent=11 // pred_region
        _
      $region20: #{_lambda_.3} parent=11 // pred_fallthru
        _
      // Predicated region
      $region21: #{_lambda_.3} parent=11 // pred_check
        %p574 = pneg %p170
      $region22: #{_lambda_.3} parent=11 // pred_check_branch
        %576 = sbr.rel (%p574) target = $region24
      $region23: #{_lambda_.3} parent=11 // pred_region
        _
      $region24: #{_lambda_.3} parent=11 // pred_fallthru
        _
      // Predicated region
      $region25: #{_lambda_.3} parent=11 // pred_check
        %p577 = pneg %p191
      $region26: #{_lambda_.3} parent=11 // pred_check_branch
        %579 = sbr.rel (%p577) target = $region28
      $region27: #{_lambda_.3} parent=11 // pred_region
        _
      $region28: #{_lambda_.3} parent=11 // pred_fallthru
        _
      // Predicated region
      $region29: #{_lambda_.3} parent=11 // pred_check
        %p580 = pneg %p212
      $region30: #{_lambda_.3} parent=11 // pred_check_branch
        %582 = sbr.rel (%p580) target = $region32
      $region31: #{_lambda_.3} parent=11 // pred_region
        _
      $region32: #{_lambda_.3} parent=11 // pred_fallthru
        _
      // Predicated region
      $region33: #{_lambda_.3} parent=11 // pred_check
        %p583 = pneg %p233
      $region34: #{_lambda_.3} parent=11 // pred_check_branch
        %585 = sbr.rel (%p583) target = $region36
      $region35: #{_lambda_.3} parent=11 // pred_region
        _
      $region36: #{_lambda_.3} parent=11 // pred_fallthru
        _
      // Predicated region
      $region37: #{_lambda_.3} parent=11 // pred_check
        %p586 = pneg %p254
      $region38: #{_lambda_.3} parent=11 // pred_check_branch
        %588 = sbr.rel (%p586) target = $region40
      $region39: #{_lambda_.3} parent=11 // pred_region
        _
      $region40: #{_lambda_.3} parent=11 // pred_fallthru
        _
      // Predicated region
      $region41: #{_lambda_.3} parent=11 // pred_check
        %p589 = pneg %p275
      $region42: #{_lambda_.3} parent=11 // pred_check_branch
        %591 = sbr.rel (%p589) target = $region44
      $region43: #{_lambda_.3} parent=11 // pred_region
        _
      $region44: #{_lambda_.3} parent=11 // pred_fallthru
        _
      // Predicated region
      $region45: #{_lambda_.3} parent=11 // pred_check
        %p592 = pneg %p296
      $region46: #{_lambda_.3} parent=11 // pred_check_branch
        %594 = sbr.rel (%p592) target = $region48
      $region47: #{_lambda_.3} parent=11 // pred_region
        _
      $region48: #{_lambda_.3} parent=11 // pred_fallthru
        _
      // Predicated region
      $region49: #{_lambda_.3} parent=11 // pred_check
        %p595 = pneg %p317
      $region50: #{_lambda_.3} parent=11 // pred_check_branch
        %597 = sbr.rel (%p595) target = $region52
      $region51: #{_lambda_.3} parent=11 // pred_region
        _
      $region52: #{_lambda_.3} parent=11 // pred_fallthru
        _
      // Predicated region
      $region53: #{_lambda_.3} parent=11 // pred_check
        %p598 = pneg %p338
      $region54: #{_lambda_.3} parent=11 // pred_check_branch
        %600 = sbr.rel (%p598) target = $region56
      $region55: #{_lambda_.3} parent=11 // pred_region
        _
      $region56: #{_lambda_.3} parent=11 // pred_fallthru
        _
      // Predicated region
      $region57: #{_lambda_.3} parent=11 // pred_check
        %p601 = pneg %p359
      $region58: #{_lambda_.3} parent=11 // pred_check_branch
        %603 = sbr.rel (%p601) target = $region60
      $region59: #{_lambda_.3} parent=11 // pred_region
        _
      $region60: #{_lambda_.3} parent=11 // pred_fallthru
        _
      // Predicated region
      $region61: #{_lambda_.3} parent=11 // pred_check
        %p604 = pneg %p380
      $region62: #{_lambda_.3} parent=11 // pred_check_branch
        %606 = sbr.rel (%p604) target = $region64
      $region63: #{_lambda_.3} parent=11 // pred_region
        _
      $region64: #{_lambda_.3} parent=11 // pred_fallthru
        _
      // Predicated region
      $region65: #{_lambda_.3} parent=11 // pred_check
        %p607 = pneg %p401
      $region66: #{_lambda_.3} parent=11 // pred_check_branch
        %609 = sbr.rel (%p607) target = $region68
      $region67: #{_lambda_.3} parent=11 // pred_region
        _
      $region68: #{_lambda_.3} parent=11 // pred_fallthru
        _
      // Predicated region
      $region69: #{_lambda_.3} parent=11 // pred_check
        %p610 = pneg %p422
      $region70: #{_lambda_.3} parent=11 // pred_check_branch
        %612 = sbr.rel (%p610) target = $region72
      $region71: #{_lambda_.3} parent=11 // pred_region
        _
      $region72: #{_lambda_.3} parent=11 // pred_fallthru
        _
      // Predicated region
      $region73: #{_lambda_.3} parent=11 // pred_check
        %p613 = pneg %p443
      $region74: #{_lambda_.3} parent=11 // pred_check_branch
        %615 = sbr.rel (%p613) target = $region76
      $region75: #{_lambda_.3} parent=11 // pred_region
        _
      $region76: #{_lambda_.3} parent=11 // pred_fallthru
        _
      // Predicated region
      $region77: #{_lambda_.3} parent=11 // pred_check
        %p616 = pneg %p464
      $region78: #{_lambda_.3} parent=11 // pred_check_branch
        %618 = sbr.rel (%p616) target = $region80
      $region79: #{_lambda_.3} parent=11 // pred_region
        _
      $region80: #{_lambda_.3} parent=11 // pred_fallthru
        _
      // Predicated region
      $region81: #{_lambda_.3} parent=11 // pred_check
        %p619 = pneg %p485
      $region82: #{_lambda_.3} parent=11 // pred_check_branch
        %621 = sbr.rel (%p619) target = $region84
      $region83: #{_lambda_.3} parent=11 // pred_region
        _
      $region84: #{_lambda_.3} parent=11 // pred_fallthru
        _
      // Predicated region
      $region85: #{_lambda_.3} parent=11 // pred_check
        %p622 = pneg %p506
      $region86: #{_lambda_.3} parent=11 // pred_check_branch
        %624 = sbr.rel (%p622) target = $region88
      $region87: #{_lambda_.3} parent=11 // pred_region
        _
      $region88: #{_lambda_.3} parent=11 // pred_fallthru
        _
      // Predicated region
      $region89: #{_lambda_.3} parent=11 // pred_check
        %p625 = pneg %p527
      $region90: #{_lambda_.3} parent=11 // pred_check_branch
        %627 = sbr.rel (%p625) target = $region92
      $region91: #{_lambda_.3} parent=11 // pred_region
        _
      $region92: #{_lambda_.3} parent=11 // pred_fallthru
        _
    $region12: #{_lambda_.3} parent=5 // pred_fallthru
      _
    %p628 = scmp.lt.s32.totalorder %s29, 2
    // Predicated region
    $region93: #{_lambda_.3} parent=5 // pred_check
      %p629 = pneg %p628
    $region94: #{_lambda_.3} parent=5 // pred_check_branch
      %631 = sbr.rel (%p629) target = $region96
    $region95: #{_lambda_.3} parent=5 // pred_region
      // Predicated region
      $region97: #{_lambda_.3} parent=95 // pred_check
        %p632 = pneg %p49
      $region98: #{_lambda_.3} parent=95 // pred_check_branch
        %634 = sbr.rel (%p632) target = $region100
      $region99: #{_lambda_.3} parent=95 // pred_region
        %p635 = scmp.lt.s32.totalorder %s29, 1
        %s636 = scalar_select %p635, %s29, 1
        %s637 = smul.addr %s636, 8
        %s638 = scalar_lea.vmem %s0, %s637
      $region100: #{_lambda_.3} parent=95 // pred_fallthru
        _
      // Predicated region
      $region101: #{_lambda_.3} parent=95 // pred_check
        %p639 = pneg %p75
      $region102: #{_lambda_.3} parent=95 // pred_check_branch
        %641 = sbr.rel (%p639) target = $region104
      $region103: #{_lambda_.3} parent=95 // pred_region
        %p642 = scmp.lt.s32.totalorder %s29, 1
        %s643 = scalar_select %p642, %s29, 1
        %s644 = smul.addr %s643, 8
        %s645 = scalar_lea.vmem %s1, %s644
      $region104: #{_lambda_.3} parent=95 // pred_fallthru
        _
      // Predicated region
      $region105: #{_lambda_.3} parent=95 // pred_check
        %p646 = pneg %p101
      $region106: #{_lambda_.3} parent=95 // pred_check_branch
        %648 = sbr.rel (%p646) target = $region108
      $region107: #{_lambda_.3} parent=95 // pred_region
        %p649 = scmp.lt.s32.totalorder %s29, 1
        %s650 = scalar_select %p649, %s29, 1
        %s651 = scalar_lea.vmem %s2, %s650
      $region108: #{_lambda_.3} parent=95 // pred_fallthru
        _
    $region96: #{_lambda_.3} parent=5 // pred_fallthru
      _
    %p652 = scmp.le.s32.totalorder 1, %s29
    %p653 = scmp.lt.s32.totalorder %s29, 3
    %p654 = pnand %p652, %p653
    %p655 = pneg %p654
    // Predicated region
    $region109: #{_lambda_.3} parent=5 // pred_check
      _
    $region110: #{_lambda_.3} parent=5 // pred_check_branch
      %657 = sbr.rel (%p654) target = $region112
    $region111: #{_lambda_.3} parent=5 // pred_region
      %s658 = ssub.s32 %s29, 1
      %p659 = scmp.lt.s32.totalorder %s34, 1
      %s660 = scalar_select %p659, %s34, 1
      %s661 = smul.addr %s660, 8
      %s662 = scalar_lea.vmem %s0, %s661
      %p663 = pneg %p55
      %p664 = pneg %p52
      %p665 = scmp.lt.s32.totalorder %s34, 1
      %s666 = scalar_select %p665, %s34, 1
      %s667 = smul.addr %s666, 8
      %s668 = scalar_lea.vmem %s1, %s667
      %p669 = pneg %p81
      %p670 = pneg %p78
      %p671 = scmp.lt.s32.totalorder %s34, 1
      %s672 = scalar_select %p671, %s34, 1
      %s673 = scalar_lea.vmem %s2, %s672
      %p674 = pneg %p107
      %p675 = pneg %p104
      %p676 = pneg %p128
      %p677 = pneg %p125
      %p678 = pneg %p149
      %p679 = pneg %p146
      %p680 = pneg %p170
      %p681 = pneg %p167
      %p682 = pneg %p191
      %p683 = pneg %p188
      %p684 = pneg %p212
      %p685 = pneg %p209
      %p686 = pneg %p233
      %p687 = pneg %p230
      %p688 = pneg %p254
      %p689 = pneg %p251
      %p690 = pneg %p275
      %p691 = pneg %p272
      %p692 = pneg %p296
      %p693 = pneg %p293
      %p694 = pneg %p317
      %p695 = pneg %p314
      %p696 = pneg %p338
      %p697 = pneg %p335
      %p698 = pneg %p359
      %p699 = pneg %p356
      %p700 = pneg %p380
      %p701 = pneg %p377
      %p702 = pneg %p401
      %p703 = pneg %p398
      %p704 = pneg %p422
      %p705 = pneg %p419
      %p706 = pneg %p443
      %p707 = pneg %p440
      %p708 = pneg %p464
      %p709 = pneg %p461
      %p710 = pneg %p485
      %p711 = pneg %p482
      %p712 = pneg %p506
      %p713 = pneg %p503
      %p714 = pneg %p527
      %p715 = pneg %p524
      %p716 = pneg %p553
      %p717 = pneg %p550
      %p718 = scmp.lt.s32.totalorder %s34, 1
      %s719 = scalar_select %p718, %s34, 1
      %s720 = smul.addr %s719, 8
      %s721 = scalar_lea.vmem %s23, %s720
      %p722 = scmp.lt.s32.totalorder %s34, 1
      %s723 = scalar_select %p722, %s34, 1
      %s724 = smul.addr %s723, 8
      %s725 = scalar_lea.vmem %s0, %s724
      %p726 = scmp.lt.s32.totalorder %s34, 1
      %s727 = scalar_select %p726, %s34, 1
      %s728 = smul.addr %s727, 8
      %s729 = scalar_lea.vmem %s1, %s728
      %p730 = scmp.lt.s32.totalorder %s34, 1
      %s731 = scalar_select %p730, %s34, 1
      %s732 = scalar_lea.vmem %s2, %s731
      %p733 = scmp.lt.s32.totalorder %s34, 1
      %s734 = scalar_select %p733, %s34, 1
      %s735 = smul.addr %s734, 8
      %s736 = scalar_lea.vmem %s23, %s735
      %v737 = vld [vmem:[%s725] sm:$0xff]
      %v738 = vld [vmem:[%s3] sm:$0xff]
      %v739 = vld [vmem:[%s3 + $0x8] sm:$0xff]
      %v740 = vld [vmem:[%s3 + $0x10] sm:$0xff]
      %v741 = vld [vmem:[%s4] sm:$0x1]
      %v743 = vlaneseq
      %v744 = vshrl.u32 %v743, 7
      %v745 = vsub.s32 0, %v744
      %v746 = vrot.slane %v741, %v745
      %vm748 = vcmask 195584
      %v750 = vsel %vm748, %v737, 0
      %752 = vmatprep.subr.mxu0 0.0
      %753 = vmatpush1.msra.mxu0 %v738
      %754 = vmatprep.subr.mxu0 0.0
      %755 = vmatpush1.msra.mxu0 %v739
      %756 = vmatprep.subr.mxu0 0.0
      %757 = vmatpush1.msra.mxu0 %v740
      %758 = vmatprep.subr.mxu0 0.0
      %759 = vmatpush1.msra.mxu0 0.0
      %760 = vmatprep.subr.mxu0 0.0
      %761 = vmatpush1.msra.mxu0 0.0
      %762 = vmatprep.subr.mxu0 0.0
      %763 = vmatpush1.msra.mxu0 0.0
      %764 = vmatprep.subr.mxu0 0.0
      %765 = vmatpush1.msra.mxu0 0.0
      %766 = vmatprep.subr.mxu0 0.0
      %767 = vmatpush1.msra.mxu0 0.0
      %768 = vmatprep.subr.mxu0 0.0
      %769 = vmatpush1.msra.mxu0 0.0
      %770 = vmatprep.subr.mxu0 0.0
      %771 = vmatpush1.msra.mxu0 0.0
      %772 = vmatprep.subr.mxu0 0.0
      %773 = vmatpush1.msra.mxu0 0.0
      %774 = vmatprep.subr.mxu0 0.0
      %775 = vmatpush1.msra.mxu0 0.0
      %776 = vmatprep.subr.mxu0 0.0
      %777 = vmatpush1.msra.mxu0 0.0
      %778 = vmatprep.subr.mxu0 0.0
      %779 = vmatpush1.msra.mxu0 0.0
      %780 = vmatprep.subr.mxu0 0.0
      %781 = vmatpush1.msra.mxu0 0.0
      %782 = vmatprep.subr.mxu0 0.0
      %783 = vmatpush1.msra.mxu0 0.0
      %784 = vmatprep.subr.mxu0 0.0
      %785 = vmatpush1.msra.mxu0 0.0
      %786 = vmatprep.subr.mxu0 0.0
      %787 = vmatpush1.msra.mxu0 0.0
      %788 = vmatprep.subr.mxu0 0.0
      %789 = vmatpush1.msra.mxu0 0.0
      %790 = vmatprep.subr.mxu0 0.0
      %791 = vmatpush1.msra.mxu0 0.0
      %792 = vmatprep.subr.mxu0 0.0
      %793 = vmatpush1.msra.mxu0 0.0
      %794 = vmatprep.subr.mxu0 0.0
      %795 = vmatpush1.msra.mxu0 0.0
      %796 = vmatprep.subr.mxu0 0.0
      %797 = vmatpush1.msra.mxu0 0.0
      %798 = vmatprep.subr.mxu0 0.0
      %799 = vmatpush1.msra.mxu0 0.0
      %800 = vmatprep.subr.mxu0 0.0
      %801 = vmatpush1.msra.mxu0 0.0
      %802 = vmatprep.subr.mxu0 0.0
      %803 = vmatpush1.msra.mxu0 0.0
      %804 = vmatprep.subr.mxu0 0.0
      %805 = vmatpush1.msra.mxu0 0.0
      %806 = vmatprep.subr.mxu0 0.0
      %807 = vmatpush1.msra.mxu0 0.0
      %808 = vmatprep.subr.mxu0 0.0
      %809 = vmatpush1.msra.mxu0 0.0
      %810 = vmatprep.subr.mxu0 0.0
      %811 = vmatpush1.msra.mxu0 0.0
      %812 = vmatprep.subr.mxu0 0.0
      %813 = vmatpush1.msra.mxu0 0.0
      %814 = vmatprep.subr.mxu0 0.0
      %815 = vmatpush1.msra.mxu0 0.0
      %816 = vmatprep.mubr.f32.mxu0 0.0
      %817 = vmatmul.mubr.f32.gmra.mrb[0].mxu0 %v750
      %v818 = vpop.f32.mrb[0].mxu0
      %v819 = vadd.f32 %v746, %v818
      %v820 = vpop.f32.mrb[0].mxu0
      %821 = vdwg.mxu0
      %v822 = vld [vmem:[%s729] sm:$0xff]
      %v823 = vadd.f32 %v819, %v822
      %v824 = vld [vmem:[%s732] sm:$0x1]
      %v825 = vld [vmem:[%s5] sm:$0x1]
      %v826 = vld [vmem:[%s6] sm:$0x1]
      %vm827 = vcmask 261120
      %v828 = vsel %vm827, %v823, 0.0
      %829 = vadd.xlane.f32.xlu0 %v828
      %v830 = vpop.xlane.xlu0 %829
      %v831 = vrcp.pop 32.0
      %v832 = vmul.f32 %v830, %v831
      %v833 = vsub.f32 %v823, %v832
      %v834 = vmul.f32 %v833, %v833
      %v835 = vsel %vm827, %v834, 0.0
      %836 = vadd.xlane.f32.xlu0 %v835
      %v837 = vpop.xlane.xlu0 %836
      %v838 = vmul.f32 %v837, %v831
      %v839 = vadd.f32 %v838, 1e-05
      %v840 = vrsqrt.pop %v839
      %v841 = vmul.f32 %v833, %v840
      %v843 = vlaneseq
      %v844 = vshrl.u32 %v843, 7
      %v845 = vsub.s32 0, %v844
      %v846 = vrot.slane %v825, %v845
      %v848 = vmul.f32 %v841, %v846
      %v850 = vlaneseq
      %v851 = vshrl.u32 %v850, 7
      %v852 = vsub.s32 0, %v851
      %v853 = vrot.slane %v826, %v852
      %v855 = vadd.f32 %v848, %v853
      %v856 = vld [vmem:[%s7] sm:$0xff]
      %v857 = vld [vmem:[%s7 + $0x8] sm:$0xff]
      %v858 = vld [vmem:[%s7 + $0x10] sm:$0xff]
      %v859 = vld [vmem:[%s7 + $0x18] sm:$0xff]
      %v860 = vld [vmem:[%s8] sm:$0x1]
      %v862 = vlaneseq
      %v863 = vshrl.u32 %v862, 7
      %v864 = vsub.s32 0, %v863
      %v865 = vrot.slane %v860, %v864
      %v868 = vsel %vm827, %v855, 0
      %870 = vmatprep.subr.mxu0 0.0
      %871 = vmatpush1.msra.mxu0 %v856
      %872 = vmatprep.subr.mxu0 0.0
      %873 = vmatpush1.msra.mxu0 %v857
      %874 = vmatprep.subr.mxu0 0.0
      %875 = vmatpush1.msra.mxu0 %v858
      %876 = vmatprep.subr.mxu0 0.0
      %877 = vmatpush1.msra.mxu0 %v859
      %878 = vmatprep.subr.mxu0 0.0
      %879 = vmatpush1.msra.mxu0 0.0
      %880 = vmatprep.subr.mxu0 0.0
      %881 = vmatpush1.msra.mxu0 0.0
      %882 = vmatprep.subr.mxu0 0.0
      %883 = vmatpush1.msra.mxu0 0.0
      %884 = vmatprep.subr.mxu0 0.0
      %885 = vmatpush1.msra.mxu0 0.0
      %886 = vmatprep.subr.mxu0 0.0
      %887 = vmatpush1.msra.mxu0 0.0
      %888 = vmatprep.subr.mxu0 0.0
      %889 = vmatpush1.msra.mxu0 0.0
      %890 = vmatprep.subr.mxu0 0.0
      %891 = vmatpush1.msra.mxu0 0.0
      %892 = vmatprep.subr.mxu0 0.0
      %893 = vmatpush1.msra.mxu0 0.0
      %894 = vmatprep.subr.mxu0 0.0
      %895 = vmatpush1.msra.mxu0 0.0
      %896 = vmatprep.subr.mxu0 0.0
      %897 = vmatpush1.msra.mxu0 0.0
      %898 = vmatprep.subr.mxu0 0.0
      %899 = vmatpush1.msra.mxu0 0.0
      %900 = vmatprep.subr.mxu0 0.0
      %901 = vmatpush1.msra.mxu0 0.0
      %902 = vmatprep.subr.mxu0 0.0
      %903 = vmatpush1.msra.mxu0 0.0
      %904 = vmatprep.subr.mxu0 0.0
      %905 = vmatpush1.msra.mxu0 0.0
      %906 = vmatprep.subr.mxu0 0.0
      %907 = vmatpush1.msra.mxu0 0.0
      %908 = vmatprep.subr.mxu0 0.0
      %909 = vmatpush1.msra.mxu0 0.0
      %910 = vmatprep.subr.mxu0 0.0
      %911 = vmatpush1.msra.mxu0 0.0
      %912 = vmatprep.subr.mxu0 0.0
      %913 = vmatpush1.msra.mxu0 0.0
      %914 = vmatprep.subr.mxu0 0.0
      %915 = vmatpush1.msra.mxu0 0.0
      %916 = vmatprep.subr.mxu0 0.0
      %917 = vmatpush1.msra.mxu0 0.0
      %918 = vmatprep.subr.mxu0 0.0
      %919 = vmatpush1.msra.mxu0 0.0
      %920 = vmatprep.subr.mxu0 0.0
      %921 = vmatpush1.msra.mxu0 0.0
      %922 = vmatprep.subr.mxu0 0.0
      %923 = vmatpush1.msra.mxu0 0.0
      %924 = vmatprep.subr.mxu0 0.0
      %925 = vmatpush1.msra.mxu0 0.0
      %926 = vmatprep.subr.mxu0 0.0
      %927 = vmatpush1.msra.mxu0 0.0
      %928 = vmatprep.subr.mxu0 0.0
      %929 = vmatpush1.msra.mxu0 0.0
      %930 = vmatprep.subr.mxu0 0.0
      %931 = vmatpush1.msra.mxu0 0.0
      %932 = vmatprep.subr.mxu0 0.0
      %933 = vmatpush1.msra.mxu0 0.0
      %934 = vmatprep.mubr.f32.mxu0 0.0
      %935 = vmatmul.mubr.f32.gmra.mrb[0].mxu0 %v868
      %v936 = vpop.f32.mrb[0].mxu0
      %v937 = vadd.f32 %v865, %v936
      %v938 = vpop.f32.mrb[0].mxu0
      %939 = vdwg.mxu0
      %v940 = vmul.f32 %v937, 0.35355338
      %v941 = vld [vmem:[%s9] sm:$0xff]
      %v942 = vld [vmem:[%s9 + $0x8] sm:$0xff]
      %v943 = vld [vmem:[%s9 + $0x10] sm:$0xff]
      %v944 = vld [vmem:[%s9 + $0x18] sm:$0xff]
      %v945 = vld [vmem:[%s10] sm:$0x1]
      %v947 = vlaneseq
      %v948 = vshrl.u32 %v947, 7
      %v949 = vsub.s32 0, %v948
      %v950 = vrot.slane %v945, %v949
      %952 = vmatprep.subr.mxu0 0.0
      %953 = vmatpush1.msra.mxu0 %v941
      %954 = vmatprep.subr.mxu0 0.0
      %955 = vmatpush1.msra.mxu0 %v942
      %956 = vmatprep.subr.mxu0 0.0
      %957 = vmatpush1.msra.mxu0 %v943
      %958 = vmatprep.subr.mxu0 0.0
      %959 = vmatpush1.msra.mxu0 %v944
      %960 = vmatprep.subr.mxu0 0.0
      %961 = vmatpush1.msra.mxu0 0.0
      %962 = vmatprep.subr.mxu0 0.0
      %963 = vmatpush1.msra.mxu0 0.0
      %964 = vmatprep.subr.mxu0 0.0
      %965 = vmatpush1.msra.mxu0 0.0
      %966 = vmatprep.subr.mxu0 0.0
      %967 = vmatpush1.msra.mxu0 0.0
      %968 = vmatprep.subr.mxu0 0.0
      %969 = vmatpush1.msra.mxu0 0.0
      %970 = vmatprep.subr.mxu0 0.0
      %971 = vmatpush1.msra.mxu0 0.0
      %972 = vmatprep.subr.mxu0 0.0
      %973 = vmatpush1.msra.mxu0 0.0
      %974 = vmatprep.subr.mxu0 0.0
      %975 = vmatpush1.msra.mxu0 0.0
      %976 = vmatprep.subr.mxu0 0.0
      %977 = vmatpush1.msra.mxu0 0.0
      %978 = vmatprep.subr.mxu0 0.0
      %979 = vmatpush1.msra.mxu0 0.0
      %980 = vmatprep.subr.mxu0 0.0
      %981 = vmatpush1.msra.mxu0 0.0
      %982 = vmatprep.subr.mxu0 0.0
      %983 = vmatpush1.msra.mxu0 0.0
      %984 = vmatprep.subr.mxu0 0.0
      %985 = vmatpush1.msra.mxu0 0.0
      %986 = vmatprep.subr.mxu0 0.0
      %987 = vmatpush1.msra.mxu0 0.0
      %988 = vmatprep.subr.mxu0 0.0
      %989 = vmatpush1.msra.mxu0 0.0
      %990 = vmatprep.subr.mxu0 0.0
      %991 = vmatpush1.msra.mxu0 0.0
      %992 = vmatprep.subr.mxu0 0.0
      %993 = vmatpush1.msra.mxu0 0.0
      %994 = vmatprep.subr.mxu0 0.0
      %995 = vmatpush1.msra.mxu0 0.0
      %996 = vmatprep.subr.mxu0 0.0
      %997 = vmatpush1.msra.mxu0 0.0
      %998 = vmatprep.subr.mxu0 0.0
      %999 = vmatpush1.msra.mxu0 0.0
      %1000 = vmatprep.subr.mxu0 0.0
      %1001 = vmatpush1.msra.mxu0 0.0
      %1002 = vmatprep.subr.mxu0 0.0
      %1003 = vmatpush1.msra.mxu0 0.0
      %1004 = vmatprep.subr.mxu0 0.0
      %1005 = vmatpush1.msra.mxu0 0.0
      %1006 = vmatprep.subr.mxu0 0.0
      %1007 = vmatpush1.msra.mxu0 0.0
      %1008 = vmatprep.subr.mxu0 0.0
      %1009 = vmatpush1.msra.mxu0 0.0
      %1010 = vmatprep.subr.mxu0 0.0
      %1011 = vmatpush1.msra.mxu0 0.0
      %1012 = vmatprep.subr.mxu0 0.0
      %1013 = vmatpush1.msra.mxu0 0.0
      %1014 = vmatprep.subr.mxu0 0.0
      %1015 = vmatpush1.msra.mxu0 0.0
      %1016 = vmatprep.mubr.f32.mxu0 0.0
      %1017 = vmatmul.mubr.f32.gmra.mrb[0].mxu0 %v868
      %v1018 = vpop.f32.mrb[0].mxu0
      %v1019 = vadd.f32 %v950, %v1018
      %v1020 = vpop.f32.mrb[0].mxu0
      %1021 = vdwg.mxu0
      %v1022 = vld [vmem:[%s11] sm:$0xff]
      %v1023 = vld [vmem:[%s11 + $0x8] sm:$0xff]
      %v1024 = vld [vmem:[%s11 + $0x10] sm:$0xff]
      %v1025 = vld [vmem:[%s11 + $0x18] sm:$0xff]
      %v1026 = vld [vmem:[%s12] sm:$0x1]
      %v1028 = vlaneseq
      %v1029 = vshrl.u32 %v1028, 7
      %v1030 = vsub.s32 0, %v1029
      %v1031 = vrot.slane %v1026, %v1030
      %1033 = vmatprep.subr.mxu0 0.0
      %1034 = vmatpush1.msra.mxu0 %v1022
      %1035 = vmatprep.subr.mxu0 0.0
      %1036 = vmatpush1.msra.mxu0 %v1023
      %1037 = vmatprep.subr.mxu0 0.0
      %1038 = vmatpush1.msra.mxu0 %v1024
      %1039 = vmatprep.subr.mxu0 0.0
      %1040 = vmatpush1.msra.mxu0 %v1025
      %1041 = vmatprep.subr.mxu0 0.0
      %1042 = vmatpush1.msra.mxu0 0.0
      %1043 = vmatprep.subr.mxu0 0.0
      %1044 = vmatpush1.msra.mxu0 0.0
      %1045 = vmatprep.subr.mxu0 0.0
      %1046 = vmatpush1.msra.mxu0 0.0
      %1047 = vmatprep.subr.mxu0 0.0
      %1048 = vmatpush1.msra.mxu0 0.0
      %1049 = vmatprep.subr.mxu0 0.0
      %1050 = vmatpush1.msra.mxu0 0.0
      %1051 = vmatprep.subr.mxu0 0.0
      %1052 = vmatpush1.msra.mxu0 0.0
      %1053 = vmatprep.subr.mxu0 0.0
      %1054 = vmatpush1.msra.mxu0 0.0
      %1055 = vmatprep.subr.mxu0 0.0
      %1056 = vmatpush1.msra.mxu0 0.0
      %1057 = vmatprep.subr.mxu0 0.0
      %1058 = vmatpush1.msra.mxu0 0.0
      %1059 = vmatprep.subr.mxu0 0.0
      %1060 = vmatpush1.msra.mxu0 0.0
      %1061 = vmatprep.subr.mxu0 0.0
      %1062 = vmatpush1.msra.mxu0 0.0
      %1063 = vmatprep.subr.mxu0 0.0
      %1064 = vmatpush1.msra.mxu0 0.0
      %1065 = vmatprep.subr.mxu0 0.0
      %1066 = vmatpush1.msra.mxu0 0.0
      %1067 = vmatprep.subr.mxu0 0.0
      %1068 = vmatpush1.msra.mxu0 0.0
      %1069 = vmatprep.subr.mxu0 0.0
      %1070 = vmatpush1.msra.mxu0 0.0
      %1071 = vmatprep.subr.mxu0 0.0
      %1072 = vmatpush1.msra.mxu0 0.0
      %1073 = vmatprep.subr.mxu0 0.0
      %1074 = vmatpush1.msra.mxu0 0.0
      %1075 = vmatprep.subr.mxu0 0.0
      %1076 = vmatpush1.msra.mxu0 0.0
      %1077 = vmatprep.subr.mxu0 0.0
      %1078 = vmatpush1.msra.mxu0 0.0
      %1079 = vmatprep.subr.mxu0 0.0
      %1080 = vmatpush1.msra.mxu0 0.0
      %1081 = vmatprep.subr.mxu0 0.0
      %1082 = vmatpush1.msra.mxu0 0.0
      %1083 = vmatprep.subr.mxu0 0.0
      %1084 = vmatpush1.msra.mxu0 0.0
      %1085 = vmatprep.subr.mxu0 0.0
      %1086 = vmatpush1.msra.mxu0 0.0
      %1087 = vmatprep.subr.mxu0 0.0
      %1088 = vmatpush1.msra.mxu0 0.0
      %1089 = vmatprep.subr.mxu0 0.0
      %1090 = vmatpush1.msra.mxu0 0.0
      %1091 = vmatprep.subr.mxu0 0.0
      %1092 = vmatpush1.msra.mxu0 0.0
      %1093 = vmatprep.subr.mxu0 0.0
      %1094 = vmatpush1.msra.mxu0 0.0
      %1095 = vmatprep.subr.mxu0 0.0
      %1096 = vmatpush1.msra.mxu0 0.0
      %1097 = vmatprep.mubr.f32.mxu0 0.0
      %1098 = vmatmul.mubr.f32.gmra.mrb[0].mxu0 %v868
      %v1099 = vpop.f32.mrb[0].mxu0
      %v1100 = vadd.f32 %v1031, %v1099
      %v1101 = vpop.f32.mrb[0].mxu0
      %1102 = vdwg.mxu0
      %v1103 = vld [vmem:[%s13] sm:$0xff]
      %v1104 = vld [vmem:[%s13 + $0x8] sm:$0xff]
      %v1105 = vld [vmem:[%s13 + $0x10] sm:$0xff]
      %v1106 = vld [vmem:[%s13 + $0x18] sm:$0xff]
      %vm1107 = vcmask 64512
      %v1109 = vsel %vm1107, %v940, 0
      %v1112 = vsel %vm1107, %v1019, 0
      %1114 = vmatprep.subr.mxu0 0.0
      %1115 = vmatpush1.xpose.msra.mxu0 %v1112
      %1116 = vmatprep.subr.mxu0 0.0
      %1117 = vmatpush1.xpose.msra.mxu0 0.0
      %1118 = vmatprep.subr.mxu0 0.0
      %1119 = vmatpush1.xpose.msra.mxu0 0.0
      %1120 = vmatprep.subr.mxu0 0.0
      %1121 = vmatpush1.xpose.msra.mxu0 0.0
      %1122 = vmatprep.subr.mxu0 0.0
      %1123 = vmatpush1.xpose.msra.mxu0 0.0
      %1124 = vmatprep.subr.mxu0 0.0
      %1125 = vmatpush1.xpose.msra.mxu0 0.0
      %1126 = vmatprep.subr.mxu0 0.0
      %1127 = vmatpush1.xpose.msra.mxu0 0.0
      %1128 = vmatprep.subr.mxu0 0.0
      %1129 = vmatpush1.xpose.msra.mxu0 0.0
      %1130 = vmatprep.subr.mxu0 0.0
      %1131 = vmatpush1.xpose.msra.mxu0 0.0
      %1132 = vmatprep.subr.mxu0 0.0
      %1133 = vmatpush1.xpose.msra.mxu0 0.0
      %1134 = vmatprep.subr.mxu0 0.0
      %1135 = vmatpush1.xpose.msra.mxu0 0.0
      %1136 = vmatprep.subr.mxu0 0.0
      %1137 = vmatpush1.xpose.msra.mxu0 0.0
      %1138 = vmatprep.subr.mxu0 0.0
      %1139 = vmatpush1.xpose.msra.mxu0 0.0
      %1140 = vmatprep.subr.mxu0 0.0
      %1141 = vmatpush1.xpose.msra.mxu0 0.0
      %1142 = vmatprep.subr.mxu0 0.0
      %1143 = vmatpush1.xpose.msra.mxu0 0.0
      %1144 = vmatprep.subr.mxu0 0.0
      %1145 = vmatpush1.xpose.msra.mxu0 0.0
      %1146 = vmatprep.subr.mxu0 0.0
      %1147 = vmatpush1.xpose.msra.mxu0 0.0
      %1148 = vmatprep.subr.mxu0 0.0
      %1149 = vmatpush1.xpose.msra.mxu0 0.0
      %1150 = vmatprep.subr.mxu0 0.0
      %1151 = vmatpush1.xpose.msra.mxu0 0.0
      %1152 = vmatprep.subr.mxu0 0.0
      %1153 = vmatpush1.xpose.msra.mxu0 0.0
      %1154 = vmatprep.subr.mxu0 0.0
      %1155 = vmatpush1.xpose.msra.mxu0 0.0
      %1156 = vmatprep.subr.mxu0 0.0
      %1157 = vmatpush1.xpose.msra.mxu0 0.0
      %1158 = vmatprep.subr.mxu0 0.0
      %1159 = vmatpush1.xpose.msra.mxu0 0.0
      %1160 = vmatprep.subr.mxu0 0.0
      %1161 = vmatpush1.xpose.msra.mxu0 0.0
      %1162 = vmatprep.subr.mxu0 0.0
      %1163 = vmatpush1.xpose.msra.mxu0 0.0
      %1164 = vmatprep.subr.mxu0 0.0
      %1165 = vmatpush1.xpose.msra.mxu0 0.0
      %1166 = vmatprep.subr.mxu0 0.0
      %1167 = vmatpush1.xpose.msra.mxu0 0.0
      %1168 = vmatprep.subr.mxu0 0.0
      %1169 = vmatpush1.xpose.msra.mxu0 0.0
      %1170 = vmatprep.subr.mxu0 0.0
      %1171 = vmatpush1.xpose.msra.mxu0 0.0
      %1172 = vmatprep.subr.mxu0 0.0
      %1173 = vmatpush1.xpose.msra.mxu0 0.0
      %1174 = vmatprep.subr.mxu0 0.0
      %1175 = vmatpush1.xpose.msra.mxu0 0.0
      %1176 = vmatprep.subr.mxu0 0.0
      %1177 = vmatpush1.xpose.msra.mxu0 0.0
      %1178 = vmatprep.mubr.f32.mxu0 0.0
      %1179 = vmatmul.mubr.f32.gmra.mrb[0].mxu0 %v1109
      %v1180 = vpop.f32.mrb[0].mxu0
      %v1181 = vadd.f32 0.0, %v1180
      %v1182 = vpop.f32.mrb[0].mxu0
      %1183 = vdwg.mxu0
      %vm1184 = vcmp.gt.f32.partialorder %v824, 0.5
      %v1185 = vsel %vm1184, 1, 0
      %v1186 = vlaneseq
      %v1187 = vshrl.u32 %v1186, 7
      %v1188 = vsub.s32 0, %v1187
      %v1189 = vrot.slane %v1185, %v1188
      %vm1190 = vcmp.eq.s32.totalorder %v1189, 1
      %v1191 = vsel %vm1190, -1e+30, %v1181
      %v1192 = vsel %vm1107, %v1191, -inf
      %1193 = vmax.xlane.f32.xlu0 %v1192
      %v1194 = vpop.xlane.xlu0 %1193
      %v1195 = vsub.f32 %v1191, %v1194
      %v1196 = vmul.f32 %v1195, 1.442695
      %v1197 = vpow.pop %v1196
      %v1198 = vsel %vm1107, %v1197, 0.0
      %1199 = vadd.xlane.f32.xlu0 %v1198
      %v1200 = vpop.xlane.xlu0 %1199
      %v1201 = vrcp.pop %v1200
      %v1202 = vmul.f32 %v1197, %v1201
      %v1204 = vsel %vm1107, %v1202, 0
      %1206 = vmatprep.subr.mxu0 0.0
      %1207 = vmatpush1.msra.mxu0 %v1100
      %1208 = vmatprep.subr.mxu0 0.0
      %1209 = vmatpush1.msra.mxu0 0.0
      %1210 = vmatprep.subr.mxu0 0.0
      %1211 = vmatpush1.msra.mxu0 0.0
      %1212 = vmatprep.subr.mxu0 0.0
      %1213 = vmatpush1.msra.mxu0 0.0
      %1214 = vmatprep.subr.mxu0 0.0
      %1215 = vmatpush1.msra.mxu0 0.0
      %1216 = vmatprep.subr.mxu0 0.0
      %1217 = vmatpush1.msra.mxu0 0.0
      %1218 = vmatprep.subr.mxu0 0.0
      %1219 = vmatpush1.msra.mxu0 0.0
      %1220 = vmatprep.subr.mxu0 0.0
      %1221 = vmatpush1.msra.mxu0 0.0
      %1222 = vmatprep.subr.mxu0 0.0
      %1223 = vmatpush1.msra.mxu0 0.0
      %1224 = vmatprep.subr.mxu0 0.0
      %1225 = vmatpush1.msra.mxu0 0.0
      %1226 = vmatprep.subr.mxu0 0.0
      %1227 = vmatpush1.msra.mxu0 0.0
      %1228 = vmatprep.subr.mxu0 0.0
      %1229 = vmatpush1.msra.mxu0 0.0
      %1230 = vmatprep.subr.mxu0 0.0
      %1231 = vmatpush1.msra.mxu0 0.0
      %1232 = vmatprep.subr.mxu0 0.0
      %1233 = vmatpush1.msra.mxu0 0.0
      %1234 = vmatprep.subr.mxu0 0.0
      %1235 = vmatpush1.msra.mxu0 0.0
      %1236 = vmatprep.subr.mxu0 0.0
      %1237 = vmatpush1.msra.mxu0 0.0
      %1238 = vmatprep.subr.mxu0 0.0
      %1239 = vmatpush1.msra.mxu0 0.0
      %1240 = vmatprep.subr.mxu0 0.0
      %1241 = vmatpush1.msra.mxu0 0.0
      %1242 = vmatprep.subr.mxu0 0.0
      %1243 = vmatpush1.msra.mxu0 0.0
      %1244 = vmatprep.subr.mxu0 0.0
      %1245 = vmatpush1.msra.mxu0 0.0
      %1246 = vmatprep.subr.mxu0 0.0
      %1247 = vmatpush1.msra.mxu0 0.0
      %1248 = vmatprep.subr.mxu0 0.0
      %1249 = vmatpush1.msra.mxu0 0.0
      %1250 = vmatprep.subr.mxu0 0.0
      %1251 = vmatpush1.msra.mxu0 0.0
      %1252 = vmatprep.subr.mxu0 0.0
      %1253 = vmatpush1.msra.mxu0 0.0
      %1254 = vmatprep.subr.mxu0 0.0
      %1255 = vmatpush1.msra.mxu0 0.0
      %1256 = vmatprep.subr.mxu0 0.0
      %1257 = vmatpush1.msra.mxu0 0.0
      %1258 = vmatprep.subr.mxu0 0.0
      %1259 = vmatpush1.msra.mxu0 0.0
      %1260 = vmatprep.subr.mxu0 0.0
      %1261 = vmatpush1.msra.mxu0 0.0
      %1262 = vmatprep.subr.mxu0 0.0
      %1263 = vmatpush1.msra.mxu0 0.0
      %1264 = vmatprep.subr.mxu0 0.0
      %1265 = vmatpush1.msra.mxu0 0.0
      %1266 = vmatprep.subr.mxu0 0.0
      %1267 = vmatpush1.msra.mxu0 0.0
      %1268 = vmatprep.subr.mxu0 0.0
      %1269 = vmatpush1.msra.mxu0 0.0
      %1270 = vmatprep.mubr.f32.mxu0 0.0
      %1271 = vmatmul.mubr.f32.gmra.mrb[0].mxu0 %v1204
      %v1272 = vpop.f32.mrb[0].mxu0
      %v1273 = vadd.f32 0.0, %v1272
      %v1274 = vpop.f32.mrb[0].mxu0
      %1275 = vdwg.mxu0
      %1276 = vrot.lane.b32.xlu0 %v940, 120
      %v1277 = vpop.permute.xlu0 %1276
      %1278 = vrot.lane.b32.xlu0 %v1019, 120
      %v1279 = vpop.permute.xlu0 %1278
      %v1280 = vsel %vm1107, %v1277, 0
      %v1282 = vsel %vm1107, %v1279, 0
      %1284 = vmatprep.subr.mxu0 0.0
      %1285 = vmatpush1.xpose.msra.mxu0 %v1282
      %1286 = vmatprep.subr.mxu0 0.0
      %1287 = vmatpush1.xpose.msra.mxu0 0.0
      %1288 = vmatprep.subr.mxu0 0.0
      %1289 = vmatpush1.xpose.msra.mxu0 0.0
      %1290 = vmatprep.subr.mxu0 0.0
      %1291 = vmatpush1.xpose.msra.mxu0 0.0
      %1292 = vmatprep.subr.mxu0 0.0
      %1293 = vmatpush1.xpose.msra.mxu0 0.0
      %1294 = vmatprep.subr.mxu0 0.0
      %1295 = vmatpush1.xpose.msra.mxu0 0.0
      %1296 = vmatprep.subr.mxu0 0.0
      %1297 = vmatpush1.xpose.msra.mxu0 0.0
      %1298 = vmatprep.subr.mxu0 0.0
      %1299 = vmatpush1.xpose.msra.mxu0 0.0
      %1300 = vmatprep.subr.mxu0 0.0
      %1301 = vmatpush1.xpose.msra.mxu0 0.0
      %1302 = vmatprep.subr.mxu0 0.0
      %1303 = vmatpush1.xpose.msra.mxu0 0.0
      %1304 = vmatprep.subr.mxu0 0.0
      %1305 = vmatpush1.xpose.msra.mxu0 0.0
      %1306 = vmatprep.subr.mxu0 0.0
      %1307 = vmatpush1.xpose.msra.mxu0 0.0
      %1308 = vmatprep.subr.mxu0 0.0
      %1309 = vmatpush1.xpose.msra.mxu0 0.0
      %1310 = vmatprep.subr.mxu0 0.0
      %1311 = vmatpush1.xpose.msra.mxu0 0.0
      %1312 = vmatprep.subr.mxu0 0.0
      %1313 = vmatpush1.xpose.msra.mxu0 0.0
      %1314 = vmatprep.subr.mxu0 0.0
      %1315 = vmatpush1.xpose.msra.mxu0 0.0
      %1316 = vmatprep.subr.mxu0 0.0
      %1317 = vmatpush1.xpose.msra.mxu0 0.0
      %1318 = vmatprep.subr.mxu0 0.0
      %1319 = vmatpush1.xpose.msra.mxu0 0.0
      %1320 = vmatprep.subr.mxu0 0.0
      %1321 = vmatpush1.xpose.msra.mxu0 0.0
      %1322 = vmatprep.subr.mxu0 0.0
      %1323 = vmatpush1.xpose.msra.mxu0 0.0
      %1324 = vmatprep.subr.mxu0 0.0
      %1325 = vmatpush1.xpose.msra.mxu0 0.0
      %1326 = vmatprep.subr.mxu0 0.0
      %1327 = vmatpush1.xpose.msra.mxu0 0.0
      %1328 = vmatprep.subr.mxu0 0.0
      %1329 = vmatpush1.xpose.msra.mxu0 0.0
      %1330 = vmatprep.subr.mxu0 0.0
      %1331 = vmatpush1.xpose.msra.mxu0 0.0
      %1332 = vmatprep.subr.mxu0 0.0
      %1333 = vmatpush1.xpose.msra.mxu0 0.0
      %1334 = vmatprep.subr.mxu0 0.0
      %1335 = vmatpush1.xpose.msra.mxu0 0.0
      %1336 = vmatprep.subr.mxu0 0.0
      %1337 = vmatpush1.xpose.msra.mxu0 0.0
      %1338 = vmatprep.subr.mxu0 0.0
      %1339 = vmatpush1.xpose.msra.mxu0 0.0
      %1340 = vmatprep.subr.mxu0 0.0
      %1341 = vmatpush1.xpose.msra.mxu0 0.0
      %1342 = vmatprep.subr.mxu0 0.0
      %1343 = vmatpush1.xpose.msra.mxu0 0.0
      %1344 = vmatprep.subr.mxu0 0.0
      %1345 = vmatpush1.xpose.msra.mxu0 0.0
      %1346 = vmatprep.subr.mxu0 0.0
      %1347 = vmatpush1.xpose.msra.mxu0 0.0
      %1348 = vmatprep.mubr.f32.mxu0 0.0
      %1349 = vmatmul.mubr.f32.gmra.mrb[0].mxu0 %v1280
      %v1350 = vpop.f32.mrb[0].mxu0
      %v1351 = vadd.f32 0.0, %v1350
      %v1352 = vpop.f32.mrb[0].mxu0
      %1353 = vdwg.mxu0
      %v1354 = vsel %vm1190, -1e+30, %v1351
      %v1355 = vsel %vm1107, %v1354, -inf
      %1356 = vmax.xlane.f32.xlu0 %v1355
      %v1357 = vpop.xlane.xlu0 %1356
      %v1358 = vsub.f32 %v1354, %v1357
      %v1359 = vmul.f32 %v1358, 1.442695
      %v1360 = vpow.pop %v1359
      %v1361 = vsel %vm1107, %v1360, 0.0
      %1362 = vadd.xlane.f32.xlu0 %v1361
      %v1363 = vpop.xlane.xlu0 %1362
      %v1364 = vrcp.pop %v1363
      %v1365 = vmul.f32 %v1360, %v1364
      %1367 = vrot.lane.b32.xlu0 %v1100, 120
      %v1368 = vpop.permute.xlu0 %1367
      %v1371 = vsel %vm1107, %v1365, 0
      %1373 = vmatprep.subr.mxu0 0.0
      %1374 = vmatpush1.msra.mxu0 %v1368
      %1375 = vmatprep.subr.mxu0 0.0
      %1376 = vmatpush1.msra.mxu0 0.0
      %1377 = vmatprep.subr.mxu0 0.0
      %1378 = vmatpush1.msra.mxu0 0.0
      %1379 = vmatprep.subr.mxu0 0.0
      %1380 = vmatpush1.msra.mxu0 0.0
      %1381 = vmatprep.subr.mxu0 0.0
      %1382 = vmatpush1.msra.mxu0 0.0
      %1383 = vmatprep.subr.mxu0 0.0
      %1384 = vmatpush1.msra.mxu0 0.0
      %1385 = vmatprep.subr.mxu0 0.0
      %1386 = vmatpush1.msra.mxu0 0.0
      %1387 = vmatprep.subr.mxu0 0.0
      %1388 = vmatpush1.msra.mxu0 0.0
      %1389 = vmatprep.subr.mxu0 0.0
      %1390 = vmatpush1.msra.mxu0 0.0
      %1391 = vmatprep.subr.mxu0 0.0
      %1392 = vmatpush1.msra.mxu0 0.0
      %1393 = vmatprep.subr.mxu0 0.0
      %1394 = vmatpush1.msra.mxu0 0.0
      %1395 = vmatprep.subr.mxu0 0.0
      %1396 = vmatpush1.msra.mxu0 0.0
      %1397 = vmatprep.subr.mxu0 0.0
      %1398 = vmatpush1.msra.mxu0 0.0
      %1399 = vmatprep.subr.mxu0 0.0
      %1400 = vmatpush1.msra.mxu0 0.0
      %1401 = vmatprep.subr.mxu0 0.0
      %1402 = vmatpush1.msra.mxu0 0.0
      %1403 = vmatprep.subr.mxu0 0.0
      %1404 = vmatpush1.msra.mxu0 0.0
      %1405 = vmatprep.subr.mxu0 0.0
      %1406 = vmatpush1.msra.mxu0 0.0
      %1407 = vmatprep.subr.mxu0 0.0
      %1408 = vmatpush1.msra.mxu0 0.0
      %1409 = vmatprep.subr.mxu0 0.0
      %1410 = vmatpush1.msra.mxu0 0.0
      %1411 = vmatprep.subr.mxu0 0.0
      %1412 = vmatpush1.msra.mxu0 0.0
      %1413 = vmatprep.subr.mxu0 0.0
      %1414 = vmatpush1.msra.mxu0 0.0
      %1415 = vmatprep.subr.mxu0 0.0
      %1416 = vmatpush1.msra.mxu0 0.0
      %1417 = vmatprep.subr.mxu0 0.0
      %1418 = vmatpush1.msra.mxu0 0.0
      %1419 = vmatprep.subr.mxu0 0.0
      %1420 = vmatpush1.msra.mxu0 0.0
      %1421 = vmatprep.subr.mxu0 0.0
      %1422 = vmatpush1.msra.mxu0 0.0
      %1423 = vmatprep.subr.mxu0 0.0
      %1424 = vmatpush1.msra.mxu0 0.0
      %1425 = vmatprep.subr.mxu0 0.0
      %1426 = vmatpush1.msra.mxu0 0.0
      %1427 = vmatprep.subr.mxu0 0.0
      %1428 = vmatpush1.msra.mxu0 0.0
      %1429 = vmatprep.subr.mxu0 0.0
      %1430 = vmatpush1.msra.mxu0 0.0
      %1431 = vmatprep.subr.mxu0 0.0
      %1432 = vmatpush1.msra.mxu0 0.0
      %1433 = vmatprep.subr.mxu0 0.0
      %1434 = vmatpush1.msra.mxu0 0.0
      %1435 = vmatprep.subr.mxu0 0.0
      %1436 = vmatpush1.msra.mxu0 0.0
      %1437 = vmatprep.mubr.f32.mxu0 0.0
      %1438 = vmatmul.mubr.f32.gmra.mrb[0].mxu0 %v1371
      %v1439 = vpop.f32.mrb[0].mxu0
      %v1440 = vadd.f32 0.0, %v1439
      %v1441 = vpop.f32.mrb[0].mxu0
      %1442 = vdwg.mxu0
      %v1444 = vsel %vm1107, %v1440, 0
      %1446 = vmatprep.subr.mxu0 0.0
      %1447 = vmatpush1.msra.mxu0 %v1104
      %1448 = vmatprep.subr.mxu0 0.0
      %1449 = vmatpush1.msra.mxu0 0.0
      %1450 = vmatprep.subr.mxu0 0.0
      %1451 = vmatpush1.msra.mxu0 0.0
      %1452 = vmatprep.subr.mxu0 0.0
      %1453 = vmatpush1.msra.mxu0 0.0
      %1454 = vmatprep.subr.mxu0 0.0
      %1455 = vmatpush1.msra.mxu0 0.0
      %1456 = vmatprep.subr.mxu0 0.0
      %1457 = vmatpush1.msra.mxu0 0.0
      %1458 = vmatprep.subr.mxu0 0.0
      %1459 = vmatpush1.msra.mxu0 0.0
      %1460 = vmatprep.subr.mxu0 0.0
      %1461 = vmatpush1.msra.mxu0 0.0
      %1462 = vmatprep.subr.mxu0 0.0
      %1463 = vmatpush1.msra.mxu0 0.0
      %1464 = vmatprep.subr.mxu0 0.0
      %1465 = vmatpush1.msra.mxu0 0.0
      %1466 = vmatprep.subr.mxu0 0.0
      %1467 = vmatpush1.msra.mxu0 0.0
      %1468 = vmatprep.subr.mxu0 0.0
      %1469 = vmatpush1.msra.mxu0 0.0
      %1470 = vmatprep.subr.mxu0 0.0
      %1471 = vmatpush1.msra.mxu0 0.0
      %1472 = vmatprep.subr.mxu0 0.0
      %1473 = vmatpush1.msra.mxu0 0.0
      %1474 = vmatprep.subr.mxu0 0.0
      %1475 = vmatpush1.msra.mxu0 0.0
      %1476 = vmatprep.subr.mxu0 0.0
      %1477 = vmatpush1.msra.mxu0 0.0
      %1478 = vmatprep.subr.mxu0 0.0
      %1479 = vmatpush1.msra.mxu0 0.0
      %1480 = vmatprep.subr.mxu0 0.0
      %1481 = vmatpush1.msra.mxu0 0.0
      %1482 = vmatprep.subr.mxu0 0.0
      %1483 = vmatpush1.msra.mxu0 0.0
      %1484 = vmatprep.subr.mxu0 0.0
      %1485 = vmatpush1.msra.mxu0 0.0
      %1486 = vmatprep.subr.mxu0 0.0
      %1487 = vmatpush1.msra.mxu0 0.0
      %1488 = vmatprep.subr.mxu0 0.0
      %1489 = vmatpush1.msra.mxu0 0.0
      %1490 = vmatprep.subr.mxu0 0.0
      %1491 = vmatpush1.msra.mxu0 0.0
      %1492 = vmatprep.subr.mxu0 0.0
      %1493 = vmatpush1.msra.mxu0 0.0
      %1494 = vmatprep.subr.mxu0 0.0
      %1495 = vmatpush1.msra.mxu0 0.0
      %1496 = vmatprep.subr.mxu0 0.0
      %1497 = vmatpush1.msra.mxu0 0.0
      %1498 = vmatprep.subr.mxu0 0.0
      %1499 = vmatpush1.msra.mxu0 0.0
      %1500 = vmatprep.subr.mxu0 0.0
      %1501 = vmatpush1.msra.mxu0 0.0
      %1502 = vmatprep.subr.mxu0 0.0
      %1503 = vmatpush1.msra.mxu0 0.0
      %1504 = vmatprep.subr.mxu0 0.0
      %1505 = vmatpush1.msra.mxu0 0.0
      %1506 = vmatprep.subr.mxu0 0.0
      %1507 = vmatpush1.msra.mxu0 0.0
      %1508 = vmatprep.subr.mxu0 0.0
      %1509 = vmatpush1.msra.mxu0 0.0
      %1510 = vmatprep.mubr.f32.mxu0 0.0
      %1511 = vmatmul.mubr.f32.gmra.mrb[0].mxu0 %v1444
      %v1512 = vpop.f32.mrb[0].mxu0
      %v1513 = vadd.f32 0.0, %v1512
      %v1514 = vpop.f32.mrb[0].mxu0
      %1515 = vdwg.mxu0
      %v1517 = vsel %vm1107, %v1273, 0
      %1519 = vmatprep.subr.mxu0 0.0
      %1520 = vmatpush1.msra.mxu0 %v1103
      %1521 = vmatprep.subr.mxu0 0.0
      %1522 = vmatpush1.msra.mxu0 0.0
      %1523 = vmatprep.subr.mxu0 0.0
      %1524 = vmatpush1.msra.mxu0 0.0
      %1525 = vmatprep.subr.mxu0 0.0
      %1526 = vmatpush1.msra.mxu0 0.0
      %1527 = vmatprep.subr.mxu0 0.0
      %1528 = vmatpush1.msra.mxu0 0.0
      %1529 = vmatprep.subr.mxu0 0.0
      %1530 = vmatpush1.msra.mxu0 0.0
      %1531 = vmatprep.subr.mxu0 0.0
      %1532 = vmatpush1.msra.mxu0 0.0
      %1533 = vmatprep.subr.mxu0 0.0
      %1534 = vmatpush1.msra.mxu0 0.0
      %1535 = vmatprep.subr.mxu0 0.0
      %1536 = vmatpush1.msra.mxu0 0.0
      %1537 = vmatprep.subr.mxu0 0.0
      %1538 = vmatpush1.msra.mxu0 0.0
      %1539 = vmatprep.subr.mxu0 0.0
      %1540 = vmatpush1.msra.mxu0 0.0
      %1541 = vmatprep.subr.mxu0 0.0
      %1542 = vmatpush1.msra.mxu0 0.0
      %1543 = vmatprep.subr.mxu0 0.0
      %1544 = vmatpush1.msra.mxu0 0.0
      %1545 = vmatprep.subr.mxu0 0.0
      %1546 = vmatpush1.msra.mxu0 0.0
      %1547 = vmatprep.subr.mxu0 0.0
      %1548 = vmatpush1.msra.mxu0 0.0
      %1549 = vmatprep.subr.mxu0 0.0
      %1550 = vmatpush1.msra.mxu0 0.0
      %1551 = vmatprep.subr.mxu0 0.0
      %1552 = vmatpush1.msra.mxu0 0.0
      %1553 = vmatprep.subr.mxu0 0.0
      %1554 = vmatpush1.msra.mxu0 0.0
      %1555 = vmatprep.subr.mxu0 0.0
      %1556 = vmatpush1.msra.mxu0 0.0
      %1557 = vmatprep.subr.mxu0 0.0
      %1558 = vmatpush1.msra.mxu0 0.0
      %1559 = vmatprep.subr.mxu0 0.0
      %1560 = vmatpush1.msra.mxu0 0.0
      %1561 = vmatprep.subr.mxu0 0.0
      %1562 = vmatpush1.msra.mxu0 0.0
      %1563 = vmatprep.subr.mxu0 0.0
      %1564 = vmatpush1.msra.mxu0 0.0
      %1565 = vmatprep.subr.mxu0 0.0
      %1566 = vmatpush1.msra.mxu0 0.0
      %1567 = vmatprep.subr.mxu0 0.0
      %1568 = vmatpush1.msra.mxu0 0.0
      %1569 = vmatprep.subr.mxu0 0.0
      %1570 = vmatpush1.msra.mxu0 0.0
      %1571 = vmatprep.subr.mxu0 0.0
      %1572 = vmatpush1.msra.mxu0 0.0
      %1573 = vmatprep.subr.mxu0 0.0
      %1574 = vmatpush1.msra.mxu0 0.0
      %1575 = vmatprep.subr.mxu0 0.0
      %1576 = vmatpush1.msra.mxu0 0.0
      %1577 = vmatprep.subr.mxu0 0.0
      %1578 = vmatpush1.msra.mxu0 0.0
      %1579 = vmatprep.subr.mxu0 0.0
      %1580 = vmatpush1.msra.mxu0 0.0
      %1581 = vmatprep.subr.mxu0 0.0
      %1582 = vmatpush1.msra.mxu0 0.0
      %1583 = vmatprep.mubr.f32.mxu0 0.0
      %1584 = vmatmul.mubr.f32.gmra.mrb[0].mxu0 %v1517
      %v1585 = vpop.f32.mrb[0].mxu0
      %v1586 = vadd.f32 %v1513, %v1585
      %v1587 = vpop.f32.mrb[0].mxu0
      %1588 = vdwg.mxu0
      %1589 = vrot.lane.b32.xlu0 %v940, 112
      %v1590 = vpop.permute.xlu0 %1589
      %1591 = vrot.lane.b32.xlu0 %v1019, 112
      %v1592 = vpop.permute.xlu0 %1591
      %v1593 = vsel %vm1107, %v1590, 0
      %v1595 = vsel %vm1107, %v1592, 0
      %1597 = vmatprep.subr.mxu0 0.0
      %1598 = vmatpush1.xpose.msra.mxu0 %v1595
      %1599 = vmatprep.subr.mxu0 0.0
      %1600 = vmatpush1.xpose.msra.mxu0 0.0
      %1601 = vmatprep.subr.mxu0 0.0
      %1602 = vmatpush1.xpose.msra.mxu0 0.0
      %1603 = vmatprep.subr.mxu0 0.0
      %1604 = vmatpush1.xpose.msra.mxu0 0.0
      %1605 = vmatprep.subr.mxu0 0.0
      %1606 = vmatpush1.xpose.msra.mxu0 0.0
      %1607 = vmatprep.subr.mxu0 0.0
      %1608 = vmatpush1.xpose.msra.mxu0 0.0
      %1609 = vmatprep.subr.mxu0 0.0
      %1610 = vmatpush1.xpose.msra.mxu0 0.0
      %1611 = vmatprep.subr.mxu0 0.0
      %1612 = vmatpush1.xpose.msra.mxu0 0.0
      %1613 = vmatprep.subr.mxu0 0.0
      %1614 = vmatpush1.xpose.msra.mxu0 0.0
      %1615 = vmatprep.subr.mxu0 0.0
      %1616 = vmatpush1.xpose.msra.mxu0 0.0
      %1617 = vmatprep.subr.mxu0 0.0
      %1618 = vmatpush1.xpose.msra.mxu0 0.0
      %1619 = vmatprep.subr.mxu0 0.0
      %1620 = vmatpush1.xpose.msra.mxu0 0.0
      %1621 = vmatprep.subr.mxu0 0.0
      %1622 = vmatpush1.xpose.msra.mxu0 0.0
      %1623 = vmatprep.subr.mxu0 0.0
      %1624 = vmatpush1.xpose.msra.mxu0 0.0
      %1625 = vmatprep.subr.mxu0 0.0
      %1626 = vmatpush1.xpose.msra.mxu0 0.0
      %1627 = vmatprep.subr.mxu0 0.0
      %1628 = vmatpush1.xpose.msra.mxu0 0.0
      %1629 = vmatprep.subr.mxu0 0.0
      %1630 = vmatpush1.xpose.msra.mxu0 0.0
      %1631 = vmatprep.subr.mxu0 0.0
      %1632 = vmatpush1.xpose.msra.mxu0 0.0
      %1633 = vmatprep.subr.mxu0 0.0
      %1634 = vmatpush1.xpose.msra.mxu0 0.0
      %1635 = vmatprep.subr.mxu0 0.0
      %1636 = vmatpush1.xpose.msra.mxu0 0.0
      %1637 = vmatprep.subr.mxu0 0.0
      %1638 = vmatpush1.xpose.msra.mxu0 0.0
      %1639 = vmatprep.subr.mxu0 0.0
      %1640 = vmatpush1.xpose.msra.mxu0 0.0
      %1641 = vmatprep.subr.mxu0 0.0
      %1642 = vmatpush1.xpose.msra.mxu0 0.0
      %1643 = vmatprep.subr.mxu0 0.0
      %1644 = vmatpush1.xpose.msra.mxu0 0.0
      %1645 = vmatprep.subr.mxu0 0.0
      %1646 = vmatpush1.xpose.msra.mxu0 0.0
      %1647 = vmatprep.subr.mxu0 0.0
      %1648 = vmatpush1.xpose.msra.mxu0 0.0
      %1649 = vmatprep.subr.mxu0 0.0
      %1650 = vmatpush1.xpose.msra.mxu0 0.0
      %1651 = vmatprep.subr.mxu0 0.0
      %1652 = vmatpush1.xpose.msra.mxu0 0.0
      %1653 = vmatprep.subr.mxu0 0.0
      %1654 = vmatpush1.xpose.msra.mxu0 0.0
      %1655 = vmatprep.subr.mxu0 0.0
      %1656 = vmatpush1.xpose.msra.mxu0 0.0
      %1657 = vmatprep.subr.mxu0 0.0
      %1658 = vmatpush1.xpose.msra.mxu0 0.0
      %1659 = vmatprep.subr.mxu0 0.0
      %1660 = vmatpush1.xpose.msra.mxu0 0.0
      %1661 = vmatprep.mubr.f32.mxu0 0.0
      %1662 = vmatmul.mubr.f32.gmra.mrb[0].mxu0 %v1593
      %v1663 = vpop.f32.mrb[0].mxu0
      %v1664 = vadd.f32 0.0, %v1663
      %v1665 = vpop.f32.mrb[0].mxu0
      %1666 = vdwg.mxu0
      %v1667 = vsel %vm1190, -1e+30, %v1664
      %v1668 = vsel %vm1107, %v1667, -inf
      %1669 = vmax.xlane.f32.xlu0 %v1668
      %v1670 = vpop.xlane.xlu0 %1669
      %v1671 = vsub.f32 %v1667, %v1670
      %v1672 = vmul.f32 %v1671, 1.442695
      %v1673 = vpow.pop %v1672
      %v1674 = vsel %vm1107, %v1673, 0.0
      %1675 = vadd.xlane.f32.xlu0 %v1674
      %v1676 = vpop.xlane.xlu0 %1675
      %v1677 = vrcp.pop %v1676
      %v1678 = vmul.f32 %v1673, %v1677
      %1679 = vrot.lane.b32.xlu0 %v1100, 112
      %v1680 = vpop.permute.xlu0 %1679
      %v1683 = vsel %vm1107, %v1678, 0
      %1685 = vmatprep.subr.mxu0 0.0
      %1686 = vmatpush1.msra.mxu0 %v1680
      %1687 = vmatprep.subr.mxu0 0.0
      %1688 = vmatpush1.msra.mxu0 0.0
      %1689 = vmatprep.subr.mxu0 0.0
      %1690 = vmatpush1.msra.mxu0 0.0
      %1691 = vmatprep.subr.mxu0 0.0
      %1692 = vmatpush1.msra.mxu0 0.0
      %1693 = vmatprep.subr.mxu0 0.0
      %1694 = vmatpush1.msra.mxu0 0.0
      %1695 = vmatprep.subr.mxu0 0.0
      %1696 = vmatpush1.msra.mxu0 0.0
      %1697 = vmatprep.subr.mxu0 0.0
      %1698 = vmatpush1.msra.mxu0 0.0
      %1699 = vmatprep.subr.mxu0 0.0
      %1700 = vmatpush1.msra.mxu0 0.0
      %1701 = vmatprep.subr.mxu0 0.0
      %1702 = vmatpush1.msra.mxu0 0.0
      %1703 = vmatprep.subr.mxu0 0.0
      %1704 = vmatpush1.msra.mxu0 0.0
      %1705 = vmatprep.subr.mxu0 0.0
      %1706 = vmatpush1.msra.mxu0 0.0
      %1707 = vmatprep.subr.mxu0 0.0
      %1708 = vmatpush1.msra.mxu0 0.0
      %1709 = vmatprep.subr.mxu0 0.0
      %1710 = vmatpush1.msra.mxu0 0.0
      %1711 = vmatprep.subr.mxu0 0.0
      %1712 = vmatpush1.msra.mxu0 0.0
      %1713 = vmatprep.subr.mxu0 0.0
      %1714 = vmatpush1.msra.mxu0 0.0
      %1715 = vmatprep.subr.mxu0 0.0
      %1716 = vmatpush1.msra.mxu0 0.0
      %1717 = vmatprep.subr.mxu0 0.0
      %1718 = vmatpush1.msra.mxu0 0.0
      %1719 = vmatprep.subr.mxu0 0.0
      %1720 = vmatpush1.msra.mxu0 0.0
      %1721 = vmatprep.subr.mxu0 0.0
      %1722 = vmatpush1.msra.mxu0 0.0
      %1723 = vmatprep.subr.mxu0 0.0
      %1724 = vmatpush1.msra.mxu0 0.0
      %1725 = vmatprep.subr.mxu0 0.0
      %1726 = vmatpush1.msra.mxu0 0.0
      %1727 = vmatprep.subr.mxu0 0.0
      %1728 = vmatpush1.msra.mxu0 0.0
      %1729 = vmatprep.subr.mxu0 0.0
      %1730 = vmatpush1.msra.mxu0 0.0
      %1731 = vmatprep.subr.mxu0 0.0
      %1732 = vmatpush1.msra.mxu0 0.0
      %1733 = vmatprep.subr.mxu0 0.0
      %1734 = vmatpush1.msra.mxu0 0.0
      %1735 = vmatprep.subr.mxu0 0.0
      %1736 = vmatpush1.msra.mxu0 0.0
      %1737 = vmatprep.subr.mxu0 0.0
      %1738 = vmatpush1.msra.mxu0 0.0
      %1739 = vmatprep.subr.mxu0 0.0
      %1740 = vmatpush1.msra.mxu0 0.0
      %1741 = vmatprep.subr.mxu0 0.0
      %1742 = vmatpush1.msra.mxu0 0.0
      %1743 = vmatprep.subr.mxu0 0.0
      %1744 = vmatpush1.msra.mxu0 0.0
      %1745 = vmatprep.subr.mxu0 0.0
      %1746 = vmatpush1.msra.mxu0 0.0
      %1747 = vmatprep.subr.mxu0 0.0
      %1748 = vmatpush1.msra.mxu0 0.0
      %1749 = vmatprep.mubr.f32.mxu0 0.0
      %1750 = vmatmul.mubr.f32.gmra.mrb[0].mxu0 %v1683
      %v1751 = vpop.f32.mrb[0].mxu0
      %v1752 = vadd.f32 0.0, %v1751
      %v1753 = vpop.f32.mrb[0].mxu0
      %1754 = vdwg.mxu0
      %v1756 = vsel %vm1107, %v1752, 0
      %1758 = vmatprep.subr.mxu0 0.0
      %1759 = vmatpush1.msra.mxu0 %v1105
      %1760 = vmatprep.subr.mxu0 0.0
      %1761 = vmatpush1.msra.mxu0 0.0
      %1762 = vmatprep.subr.mxu0 0.0
      %1763 = vmatpush1.msra.mxu0 0.0
      %1764 = vmatprep.subr.mxu0 0.0
      %1765 = vmatpush1.msra.mxu0 0.0
      %1766 = vmatprep.subr.mxu0 0.0
      %1767 = vmatpush1.msra.mxu0 0.0
      %1768 = vmatprep.subr.mxu0 0.0
      %1769 = vmatpush1.msra.mxu0 0.0
      %1770 = vmatprep.subr.mxu0 0.0
      %1771 = vmatpush1.msra.mxu0 0.0
      %1772 = vmatprep.subr.mxu0 0.0
      %1773 = vmatpush1.msra.mxu0 0.0
      %1774 = vmatprep.subr.mxu0 0.0
      %1775 = vmatpush1.msra.mxu0 0.0
      %1776 = vmatprep.subr.mxu0 0.0
      %1777 = vmatpush1.msra.mxu0 0.0
      %1778 = vmatprep.subr.mxu0 0.0
      %1779 = vmatpush1.msra.mxu0 0.0
      %1780 = vmatprep.subr.mxu0 0.0
      %1781 = vmatpush1.msra.mxu0 0.0
      %1782 = vmatprep.subr.mxu0 0.0
      %1783 = vmatpush1.msra.mxu0 0.0
      %1784 = vmatprep.subr.mxu0 0.0
      %1785 = vmatpush1.msra.mxu0 0.0
      %1786 = vmatprep.subr.mxu0 0.0
      %1787 = vmatpush1.msra.mxu0 0.0
      %1788 = vmatprep.subr.mxu0 0.0
      %1789 = vmatpush1.msra.mxu0 0.0
      %1790 = vmatprep.subr.mxu0 0.0
      %1791 = vmatpush1.msra.mxu0 0.0
      %1792 = vmatprep.subr.mxu0 0.0
      %1793 = vmatpush1.msra.mxu0 0.0
      %1794 = vmatprep.subr.mxu0 0.0
      %1795 = vmatpush1.msra.mxu0 0.0
      %1796 = vmatprep.subr.mxu0 0.0
      %1797 = vmatpush1.msra.mxu0 0.0
      %1798 = vmatprep.subr.mxu0 0.0
      %1799 = vmatpush1.msra.mxu0 0.0
      %1800 = vmatprep.subr.mxu0 0.0
      %1801 = vmatpush1.msra.mxu0 0.0
      %1802 = vmatprep.subr.mxu0 0.0
      %1803 = vmatpush1.msra.mxu0 0.0
      %1804 = vmatprep.subr.mxu0 0.0
      %1805 = vmatpush1.msra.mxu0 0.0
      %1806 = vmatprep.subr.mxu0 0.0
      %1807 = vmatpush1.msra.mxu0 0.0
      %1808 = vmatprep.subr.mxu0 0.0
      %1809 = vmatpush1.msra.mxu0 0.0
      %1810 = vmatprep.subr.mxu0 0.0
      %1811 = vmatpush1.msra.mxu0 0.0
      %1812 = vmatprep.subr.mxu0 0.0
      %1813 = vmatpush1.msra.mxu0 0.0
      %1814 = vmatprep.subr.mxu0 0.0
      %1815 = vmatpush1.msra.mxu0 0.0
      %1816 = vmatprep.subr.mxu0 0.0
      %1817 = vmatpush1.msra.mxu0 0.0
      %1818 = vmatprep.subr.mxu0 0.0
      %1819 = vmatpush1.msra.mxu0 0.0
      %1820 = vmatprep.subr.mxu0 0.0
      %1821 = vmatpush1.msra.mxu0 0.0
      %1822 = vmatprep.mubr.f32.mxu0 0.0
      %1823 = vmatmul.mubr.f32.gmra.mrb[0].mxu0 %v1756
      %v1824 = vpop.f32.mrb[0].mxu0
      %v1825 = vadd.f32 0.0, %v1824
      %v1826 = vpop.f32.mrb[0].mxu0
      %1827 = vdwg.mxu0
      %v1828 = vadd.f32 %v1586, %v1825
      %1829 = vrot.lane.b32.xlu0 %v940, 104
      %v1830 = vpop.permute.xlu0 %1829
      %1831 = vrot.lane.b32.xlu0 %v1019, 104
      %v1832 = vpop.permute.xlu0 %1831
      %v1833 = vsel %vm1107, %v1830, 0
      %v1835 = vsel %vm1107, %v1832, 0
      %1837 = vmatprep.subr.mxu0 0.0
      %1838 = vmatpush1.xpose.msra.mxu0 %v1835
      %1839 = vmatprep.subr.mxu0 0.0
      %1840 = vmatpush1.xpose.msra.mxu0 0.0
      %1841 = vmatprep.subr.mxu0 0.0
      %1842 = vmatpush1.xpose.msra.mxu0 0.0
      %1843 = vmatprep.subr.mxu0 0.0
      %1844 = vmatpush1.xpose.msra.mxu0 0.0
      %1845 = vmatprep.subr.mxu0 0.0
      %1846 = vmatpush1.xpose.msra.mxu0 0.0
      %1847 = vmatprep.subr.mxu0 0.0
      %1848 = vmatpush1.xpose.msra.mxu0 0.0
      %1849 = vmatprep.subr.mxu0 0.0
      %1850 = vmatpush1.xpose.msra.mxu0 0.0
      %1851 = vmatprep.subr.mxu0 0.0
      %1852 = vmatpush1.xpose.msra.mxu0 0.0
      %1853 = vmatprep.subr.mxu0 0.0
      %1854 = vmatpush1.xpose.msra.mxu0 0.0
      %1855 = vmatprep.subr.mxu0 0.0
      %1856 = vmatpush1.xpose.msra.mxu0 0.0
      %1857 = vmatprep.subr.mxu0 0.0
      %1858 = vmatpush1.xpose.msra.mxu0 0.0
      %1859 = vmatprep.subr.mxu0 0.0
      %1860 = vmatpush1.xpose.msra.mxu0 0.0
      %1861 = vmatprep.subr.mxu0 0.0
      %1862 = vmatpush1.xpose.msra.mxu0 0.0
      %1863 = vmatprep.subr.mxu0 0.0
      %1864 = vmatpush1.xpose.msra.mxu0 0.0
      %1865 = vmatprep.subr.mxu0 0.0
      %1866 = vmatpush1.xpose.msra.mxu0 0.0
      %1867 = vmatprep.subr.mxu0 0.0
      %1868 = vmatpush1.xpose.msra.mxu0 0.0
      %1869 = vmatprep.subr.mxu0 0.0
      %1870 = vmatpush1.xpose.msra.mxu0 0.0
      %1871 = vmatprep.subr.mxu0 0.0
      %1872 = vmatpush1.xpose.msra.mxu0 0.0
      %1873 = vmatprep.subr.mxu0 0.0
      %1874 = vmatpush1.xpose.msra.mxu0 0.0
      %1875 = vmatprep.subr.mxu0 0.0
      %1876 = vmatpush1.xpose.msra.mxu0 0.0
      %1877 = vmatprep.subr.mxu0 0.0
      %1878 = vmatpush1.xpose.msra.mxu0 0.0
      %1879 = vmatprep.subr.mxu0 0.0
      %1880 = vmatpush1.xpose.msra.mxu0 0.0
      %1881 = vmatprep.subr.mxu0 0.0
      %1882 = vmatpush1.xpose.msra.mxu0 0.0
      %1883 = vmatprep.subr.mxu0 0.0
      %1884 = vmatpush1.xpose.msra.mxu0 0.0
      %1885 = vmatprep.subr.mxu0 0.0
      %1886 = vmatpush1.xpose.msra.mxu0 0.0
      %1887 = vmatprep.subr.mxu0 0.0
      %1888 = vmatpush1.xpose.msra.mxu0 0.0
      %1889 = vmatprep.subr.mxu0 0.0
      %1890 = vmatpush1.xpose.msra.mxu0 0.0
      %1891 = vmatprep.subr.mxu0 0.0
      %1892 = vmatpush1.xpose.msra.mxu0 0.0
      %1893 = vmatprep.subr.mxu0 0.0
      %1894 = vmatpush1.xpose.msra.mxu0 0.0
      %1895 = vmatprep.subr.mxu0 0.0
      %1896 = vmatpush1.xpose.msra.mxu0 0.0
      %1897 = vmatprep.subr.mxu0 0.0
      %1898 = vmatpush1.xpose.msra.mxu0 0.0
      %1899 = vmatprep.subr.mxu0 0.0
      %1900 = vmatpush1.xpose.msra.mxu0 0.0
      %1901 = vmatprep.mubr.f32.mxu0 0.0
      %1902 = vmatmul.mubr.f32.gmra.mrb[0].mxu0 %v1833
      %v1903 = vpop.f32.mrb[0].mxu0
      %v1904 = vadd.f32 0.0, %v1903
      %v1905 = vpop.f32.mrb[0].mxu0
      %1906 = vdwg.mxu0
      %v1907 = vsel %vm1190, -1e+30, %v1904
      %v1908 = vsel %vm1107, %v1907, -inf
      %1909 = vmax.xlane.f32.xlu0 %v1908
      %v1910 = vpop.xlane.xlu0 %1909
      %v1911 = vsub.f32 %v1907, %v1910
      %v1912 = vmul.f32 %v1911, 1.442695
      %v1913 = vpow.pop %v1912
      %v1914 = vsel %vm1107, %v1913, 0.0
      %1915 = vadd.xlane.f32.xlu0 %v1914
      %v1916 = vpop.xlane.xlu0 %1915
      %v1917 = vrcp.pop %v1916
      %v1918 = vmul.f32 %v1913, %v1917
      %1919 = vrot.lane.b32.xlu0 %v1100, 104
      %v1920 = vpop.permute.xlu0 %1919
      %v1923 = vsel %vm1107, %v1918, 0
      %1925 = vmatprep.subr.mxu0 0.0
      %1926 = vmatpush1.msra.mxu0 %v1920
      %1927 = vmatprep.subr.mxu0 0.0
      %1928 = vmatpush1.msra.mxu0 0.0
      %1929 = vmatprep.subr.mxu0 0.0
      %1930 = vmatpush1.msra.mxu0 0.0
      %1931 = vmatprep.subr.mxu0 0.0
      %1932 = vmatpush1.msra.mxu0 0.0
      %1933 = vmatprep.subr.mxu0 0.0
      %1934 = vmatpush1.msra.mxu0 0.0
      %1935 = vmatprep.subr.mxu0 0.0
      %1936 = vmatpush1.msra.mxu0 0.0
      %1937 = vmatprep.subr.mxu0 0.0
      %1938 = vmatpush1.msra.mxu0 0.0
      %1939 = vmatprep.subr.mxu0 0.0
      %1940 = vmatpush1.msra.mxu0 0.0
      %1941 = vmatprep.subr.mxu0 0.0
      %1942 = vmatpush1.msra.mxu0 0.0
      %1943 = vmatprep.subr.mxu0 0.0
      %1944 = vmatpush1.msra.mxu0 0.0
      %1945 = vmatprep.subr.mxu0 0.0
      %1946 = vmatpush1.msra.mxu0 0.0
      %1947 = vmatprep.subr.mxu0 0.0
      %1948 = vmatpush1.msra.mxu0 0.0
      %1949 = vmatprep.subr.mxu0 0.0
      %1950 = vmatpush1.msra.mxu0 0.0
      %1951 = vmatprep.subr.mxu0 0.0
      %1952 = vmatpush1.msra.mxu0 0.0
      %1953 = vmatprep.subr.mxu0 0.0
      %1954 = vmatpush1.msra.mxu0 0.0
      %1955 = vmatprep.subr.mxu0 0.0
      %1956 = vmatpush1.msra.mxu0 0.0
      %1957 = vmatprep.subr.mxu0 0.0
      %1958 = vmatpush1.msra.mxu0 0.0
      %1959 = vmatprep.subr.mxu0 0.0
      %1960 = vmatpush1.msra.mxu0 0.0
      %1961 = vmatprep.subr.mxu0 0.0
      %1962 = vmatpush1.msra.mxu0 0.0
      %1963 = vmatprep.subr.mxu0 0.0
      %1964 = vmatpush1.msra.mxu0 0.0
      %1965 = vmatprep.subr.mxu0 0.0
      %1966 = vmatpush1.msra.mxu0 0.0
      %1967 = vmatprep.subr.mxu0 0.0
      %1968 = vmatpush1.msra.mxu0 0.0
      %1969 = vmatprep.subr.mxu0 0.0
      %1970 = vmatpush1.msra.mxu0 0.0
      %1971 = vmatprep.subr.mxu0 0.0
      %1972 = vmatpush1.msra.mxu0 0.0
      %1973 = vmatprep.subr.mxu0 0.0
      %1974 = vmatpush1.msra.mxu0 0.0
      %1975 = vmatprep.subr.mxu0 0.0
      %1976 = vmatpush1.msra.mxu0 0.0
      %1977 = vmatprep.subr.mxu0 0.0
      %1978 = vmatpush1.msra.mxu0 0.0
      %1979 = vmatprep.subr.mxu0 0.0
      %1980 = vmatpush1.msra.mxu0 0.0
      %1981 = vmatprep.subr.mxu0 0.0
      %1982 = vmatpush1.msra.mxu0 0.0
      %1983 = vmatprep.subr.mxu0 0.0
      %1984 = vmatpush1.msra.mxu0 0.0
      %1985 = vmatprep.subr.mxu0 0.0
      %1986 = vmatpush1.msra.mxu0 0.0
      %1987 = vmatprep.subr.mxu0 0.0
      %1988 = vmatpush1.msra.mxu0 0.0
      %1989 = vmatprep.mubr.f32.mxu0 0.0
      %1990 = vmatmul.mubr.f32.gmra.mrb[0].mxu0 %v1923
      %v1991 = vpop.f32.mrb[0].mxu0
      %v1992 = vadd.f32 0.0, %v1991
      %v1993 = vpop.f32.mrb[0].mxu0
      %1994 = vdwg.mxu0
      %v1996 = vsel %vm1107, %v1992, 0
      %1998 = vmatprep.subr.mxu0 0.0
      %1999 = vmatpush1.msra.mxu0 %v1106
      %2000 = vmatprep.subr.mxu0 0.0
      %2001 = vmatpush1.msra.mxu0 0.0
      %2002 = vmatprep.subr.mxu0 0.0
      %2003 = vmatpush1.msra.mxu0 0.0
      %2004 = vmatprep.subr.mxu0 0.0
      %2005 = vmatpush1.msra.mxu0 0.0
      %2006 = vmatprep.subr.mxu0 0.0
      %2007 = vmatpush1.msra.mxu0 0.0
      %2008 = vmatprep.subr.mxu0 0.0
      %2009 = vmatpush1.msra.mxu0 0.0
      %2010 = vmatprep.subr.mxu0 0.0
      %2011 = vmatpush1.msra.mxu0 0.0
      %2012 = vmatprep.subr.mxu0 0.0
      %2013 = vmatpush1.msra.mxu0 0.0
      %2014 = vmatprep.subr.mxu0 0.0
      %2015 = vmatpush1.msra.mxu0 0.0
      %2016 = vmatprep.subr.mxu0 0.0
      %2017 = vmatpush1.msra.mxu0 0.0
      %2018 = vmatprep.subr.mxu0 0.0
      %2019 = vmatpush1.msra.mxu0 0.0
      %2020 = vmatprep.subr.mxu0 0.0
      %2021 = vmatpush1.msra.mxu0 0.0
      %2022 = vmatprep.subr.mxu0 0.0
      %2023 = vmatpush1.msra.mxu0 0.0
      %2024 = vmatprep.subr.mxu0 0.0
      %2025 = vmatpush1.msra.mxu0 0.0
      %2026 = vmatprep.subr.mxu0 0.0
      %2027 = vmatpush1.msra.mxu0 0.0
      %2028 = vmatprep.subr.mxu0 0.0
      %2029 = vmatpush1.msra.mxu0 0.0
      %2030 = vmatprep.subr.mxu0 0.0
      %2031 = vmatpush1.msra.mxu0 0.0
      %2032 = vmatprep.subr.mxu0 0.0
      %2033 = vmatpush1.msra.mxu0 0.0
      %2034 = vmatprep.subr.mxu0 0.0
      %2035 = vmatpush1.msra.mxu0 0.0
      %2036 = vmatprep.subr.mxu0 0.0
      %2037 = vmatpush1.msra.mxu0 0.0
      %2038 = vmatprep.subr.mxu0 0.0
      %2039 = vmatpush1.msra.mxu0 0.0
      %2040 = vmatprep.subr.mxu0 0.0
      %2041 = vmatpush1.msra.mxu0 0.0
      %2042 = vmatprep.subr.mxu0 0.0
      %2043 = vmatpush1.msra.mxu0 0.0
      %2044 = vmatprep.subr.mxu0 0.0
      %2045 = vmatpush1.msra.mxu0 0.0
      %2046 = vmatprep.subr.mxu0 0.0
      %2047 = vmatpush1.msra.mxu0 0.0
      %2048 = vmatprep.subr.mxu0 0.0
      %2049 = vmatpush1.msra.mxu0 0.0
      %2050 = vmatprep.subr.mxu0 0.0
      %2051 = vmatpush1.msra.mxu0 0.0
      %2052 = vmatprep.subr.mxu0 0.0
      %2053 = vmatpush1.msra.mxu0 0.0
      %2054 = vmatprep.subr.mxu0 0.0
      %2055 = vmatpush1.msra.mxu0 0.0
      %2056 = vmatprep.subr.mxu0 0.0
      %2057 = vmatpush1.msra.mxu0 0.0
      %2058 = vmatprep.subr.mxu0 0.0
      %2059 = vmatpush1.msra.mxu0 0.0
      %2060 = vmatprep.subr.mxu0 0.0
      %2061 = vmatpush1.msra.mxu0 0.0
      %2062 = vmatprep.mubr.f32.mxu0 0.0
      %2063 = vmatmul.mubr.f32.gmra.mrb[0].mxu0 %v1996
      %v2064 = vpop.f32.mrb[0].mxu0
      %v2065 = vadd.f32 0.0, %v2064
      %v2066 = vpop.f32.mrb[0].mxu0
      %2067 = vdwg.mxu0
      %v2068 = vadd.f32 %v1828, %v2065
      %v2069 = vadd.f32 %v823, %v2068
      %v2070 = vld [vmem:[%s14] sm:$0x1]
      %v2072 = vlaneseq
      %v2073 = vshrl.u32 %v2072, 7
      %v2074 = vsub.s32 0, %v2073
      %v2075 = vrot.slane %v2070, %v2074
      %v2077 = vadd.f32 %v2069, %v2075
      %v2078 = vld [vmem:[%s15] sm:$0x1]
      %v2079 = vld [vmem:[%s16] sm:$0x1]
      %v2080 = vsel %vm827, %v2077, 0.0
      %2081 = vadd.xlane.f32.xlu0 %v2080
      %v2082 = vpop.xlane.xlu0 %2081
      %v2083 = vmul.f32 %v2082, %v831
      %v2084 = vsub.f32 %v2077, %v2083
      %v2085 = vmul.f32 %v2084, %v2084
      %v2086 = vsel %vm827, %v2085, 0.0
      %2087 = vadd.xlane.f32.xlu0 %v2086
      %v2088 = vpop.xlane.xlu0 %2087
      %v2089 = vmul.f32 %v2088, %v831
      %v2090 = vadd.f32 %v2089, 1e-05
      %v2091 = vrsqrt.pop %v2090
      %v2092 = vmul.f32 %v2084, %v2091
      %v2094 = vlaneseq
      %v2095 = vshrl.u32 %v2094, 7
      %v2096 = vsub.s32 0, %v2095
      %v2097 = vrot.slane %v2078, %v2096
      %v2099 = vmul.f32 %v2092, %v2097
      %v2101 = vlaneseq
      %v2102 = vshrl.u32 %v2101, 7
      %v2103 = vsub.s32 0, %v2102
      %v2104 = vrot.slane %v2079, %v2103
      %v2106 = vadd.f32 %v2099, %v2104
      %v2107 = vld [vmem:[%s17] sm:$0xff]
      %v2108 = vld [vmem:[%s17 + $0x8] sm:$0xff]
      %v2109 = vld [vmem:[%s17 + $0x10] sm:$0xff]
      %v2110 = vld [vmem:[%s17 + $0x18] sm:$0xff]
      %v2111 = vld [vmem:[%s18] sm:$0x1]
      %v2113 = vlaneseq
      %v2114 = vshrl.u32 %v2113, 7
      %v2115 = vsub.s32 0, %v2114
      %v2116 = vrot.slane %v2111, %v2115
      %v2119 = vsel %vm827, %v2106, 0
      %2121 = vmatprep.subr.mxu0 0.0
      %2122 = vmatpush1.msra.mxu0 %v2107
      %2123 = vmatprep.subr.mxu0 0.0
      %2124 = vmatpush1.msra.mxu0 %v2108
      %2125 = vmatprep.subr.mxu0 0.0
      %2126 = vmatpush1.msra.mxu0 %v2109
      %2127 = vmatprep.subr.mxu0 0.0
      %2128 = vmatpush1.msra.mxu0 %v2110
      %2129 = vmatprep.subr.mxu0 0.0
      %2130 = vmatpush1.msra.mxu0 0.0
      %2131 = vmatprep.subr.mxu0 0.0
      %2132 = vmatpush1.msra.mxu0 0.0
      %2133 = vmatprep.subr.mxu0 0.0
      %2134 = vmatpush1.msra.mxu0 0.0
      %2135 = vmatprep.subr.mxu0 0.0
      %2136 = vmatpush1.msra.mxu0 0.0
      %2137 = vmatprep.subr.mxu0 0.0
      %2138 = vmatpush1.msra.mxu0 0.0
      %2139 = vmatprep.subr.mxu0 0.0
      %2140 = vmatpush1.msra.mxu0 0.0
      %2141 = vmatprep.subr.mxu0 0.0
      %2142 = vmatpush1.msra.mxu0 0.0
      %2143 = vmatprep.subr.mxu0 0.0
      %2144 = vmatpush1.msra.mxu0 0.0
      %2145 = vmatprep.subr.mxu0 0.0
      %2146 = vmatpush1.msra.mxu0 0.0
      %2147 = vmatprep.subr.mxu0 0.0
      %2148 = vmatpush1.msra.mxu0 0.0
      %2149 = vmatprep.subr.mxu0 0.0
      %2150 = vmatpush1.msra.mxu0 0.0
      %2151 = vmatprep.subr.mxu0 0.0
      %2152 = vmatpush1.msra.mxu0 0.0
      %2153 = vmatprep.subr.mxu0 0.0
      %2154 = vmatpush1.msra.mxu0 0.0
      %2155 = vmatprep.subr.mxu0 0.0
      %2156 = vmatpush1.msra.mxu0 0.0
      %2157 = vmatprep.subr.mxu0 0.0
      %2158 = vmatpush1.msra.mxu0 0.0
      %2159 = vmatprep.subr.mxu0 0.0
      %2160 = vmatpush1.msra.mxu0 0.0
      %2161 = vmatprep.subr.mxu0 0.0
      %2162 = vmatpush1.msra.mxu0 0.0
      %2163 = vmatprep.subr.mxu0 0.0
      %2164 = vmatpush1.msra.mxu0 0.0
      %2165 = vmatprep.subr.mxu0 0.0
      %2166 = vmatpush1.msra.mxu0 0.0
      %2167 = vmatprep.subr.mxu0 0.0
      %2168 = vmatpush1.msra.mxu0 0.0
      %2169 = vmatprep.subr.mxu0 0.0
      %2170 = vmatpush1.msra.mxu0 0.0
      %2171 = vmatprep.subr.mxu0 0.0
      %2172 = vmatpush1.msra.mxu0 0.0
      %2173 = vmatprep.subr.mxu0 0.0
      %2174 = vmatpush1.msra.mxu0 0.0
      %2175 = vmatprep.subr.mxu0 0.0
      %2176 = vmatpush1.msra.mxu0 0.0
      %2177 = vmatprep.subr.mxu0 0.0
      %2178 = vmatpush1.msra.mxu0 0.0
      %2179 = vmatprep.subr.mxu0 0.0
      %2180 = vmatpush1.msra.mxu0 0.0
      %2181 = vmatprep.subr.mxu0 0.0
      %2182 = vmatpush1.msra.mxu0 0.0
      %2183 = vmatprep.subr.mxu0 0.0
      %2184 = vmatpush1.msra.mxu0 0.0
      %2185 = vmatprep.mubr.f32.mxu0 0.0
      %2186 = vmatmul.mubr.f32.gmra.mrb[0].mxu0 %v2119
      %v2187 = vpop.f32.mrb[0].mxu0
      %v2188 = vadd.f32 %v2116, %v2187
      %v2189 = vpop.f32.mrb[0].mxu0
      %2190 = vdwg.mxu0
      %v2191 = vmax.f32 %v2188, 0.0
      %v2192 = vld [vmem:[%s19] sm:$0xff]
      %v2193 = vld [vmem:[%s19 + $0x8] sm:$0xff]
      %v2194 = vld [vmem:[%s19 + $0x10] sm:$0xff]
      %v2195 = vld [vmem:[%s19 + $0x18] sm:$0xff]
      %v2196 = vld [vmem:[%s19 + $0x20] sm:$0xff]
      %v2197 = vld [vmem:[%s19 + $0x28] sm:$0xff]
      %v2198 = vld [vmem:[%s19 + $0x30] sm:$0xff]
      %v2199 = vld [vmem:[%s19 + $0x38] sm:$0xff]
      %vm2200 = vcmask 523264
      %v2202 = vsel %vm2200, %v2191, 0
      %2204 = vmatprep.subr.mxu0 0.0
      %2205 = vmatpush1.msra.mxu0 %v2192
      %2206 = vmatprep.subr.mxu0 0.0
      %2207 = vmatpush1.msra.mxu0 %v2193
      %2208 = vmatprep.subr.mxu0 0.0
      %2209 = vmatpush1.msra.mxu0 %v2194
      %2210 = vmatprep.subr.mxu0 0.0
      %2211 = vmatpush1.msra.mxu0 %v2195
      %2212 = vmatprep.subr.mxu0 0.0
      %2213 = vmatpush1.msra.mxu0 %v2196
      %2214 = vmatprep.subr.mxu0 0.0
      %2215 = vmatpush1.msra.mxu0 %v2197
      %2216 = vmatprep.subr.mxu0 0.0
      %2217 = vmatpush1.msra.mxu0 %v2198
      %2218 = vmatprep.subr.mxu0 0.0
      %2219 = vmatpush1.msra.mxu0 %v2199
      %2220 = vmatprep.subr.mxu0 0.0
      %2221 = vmatpush1.msra.mxu0 0.0
      %2222 = vmatprep.subr.mxu0 0.0
      %2223 = vmatpush1.msra.mxu0 0.0
      %2224 = vmatprep.subr.mxu0 0.0
      %2225 = vmatpush1.msra.mxu0 0.0
      %2226 = vmatprep.subr.mxu0 0.0
      %2227 = vmatpush1.msra.mxu0 0.0
      %2228 = vmatprep.subr.mxu0 0.0
      %2229 = vmatpush1.msra.mxu0 0.0
      %2230 = vmatprep.subr.mxu0 0.0
      %2231 = vmatpush1.msra.mxu0 0.0
      %2232 = vmatprep.subr.mxu0 0.0
      %2233 = vmatpush1.msra.mxu0 0.0
      %2234 = vmatprep.subr.mxu0 0.0
      %2235 = vmatpush1.msra.mxu0 0.0
      %2236 = vmatprep.subr.mxu0 0.0
      %2237 = vmatpush1.msra.mxu0 0.0
      %2238 = vmatprep.subr.mxu0 0.0
      %2239 = vmatpush1.msra.mxu0 0.0
      %2240 = vmatprep.subr.mxu0 0.0
      %2241 = vmatpush1.msra.mxu0 0.0
      %2242 = vmatprep.subr.mxu0 0.0
      %2243 = vmatpush1.msra.mxu0 0.0
      %2244 = vmatprep.subr.mxu0 0.0
      %2245 = vmatpush1.msra.mxu0 0.0
      %2246 = vmatprep.subr.mxu0 0.0
      %2247 = vmatpush1.msra.mxu0 0.0
      %2248 = vmatprep.subr.mxu0 0.0
      %2249 = vmatpush1.msra.mxu0 0.0
      %2250 = vmatprep.subr.mxu0 0.0
      %2251 = vmatpush1.msra.mxu0 0.0
      %2252 = vmatprep.subr.mxu0 0.0
      %2253 = vmatpush1.msra.mxu0 0.0
      %2254 = vmatprep.subr.mxu0 0.0
      %2255 = vmatpush1.msra.mxu0 0.0
      %2256 = vmatprep.subr.mxu0 0.0
      %2257 = vmatpush1.msra.mxu0 0.0
      %2258 = vmatprep.subr.mxu0 0.0
      %2259 = vmatpush1.msra.mxu0 0.0
      %2260 = vmatprep.subr.mxu0 0.0
      %2261 = vmatpush1.msra.mxu0 0.0
      %2262 = vmatprep.subr.mxu0 0.0
      %2263 = vmatpush1.msra.mxu0 0.0
      %2264 = vmatprep.subr.mxu0 0.0
      %2265 = vmatpush1.msra.mxu0 0.0
      %2266 = vmatprep.subr.mxu0 0.0
      %2267 = vmatpush1.msra.mxu0 0.0
      %2268 = vmatprep.mubr.f32.mxu0 0.0
      %2269 = vmatmul.mubr.f32.gmra.mrb[0].mxu0 %v2202
      %v2270 = vpop.f32.mrb[0].mxu0
      %v2271 = vadd.f32 0.0, %v2270
      %v2272 = vpop.f32.mrb[0].mxu0
      %2273 = vdwg.mxu0
      %v2274 = vadd.f32 %v2077, %v2271
      %v2275 = vld [vmem:[%s20] sm:$0x1]
      %v2277 = vlaneseq
      %v2278 = vshrl.u32 %v2277, 7
      %v2279 = vsub.s32 0, %v2278
      %v2280 = vrot.slane %v2275, %v2279
      %v2282 = vadd.f32 %v2274, %v2280
      %v2283 = vadd.f32 %v2282, 0.0
      %s2284 = scalar_lea.vmem %s5, 1
      %v2285 = vld [vmem:[%s2284] sm:$0x1]
      %s2286 = scalar_lea.vmem %s6, 1
      %v2287 = vld [vmem:[%s2286] sm:$0x1]
      %v2288 = vsel %vm827, %v2282, 0.0
      %2289 = vadd.xlane.f32.xlu0 %v2288
      %v2290 = vpop.xlane.xlu0 %2289
      %v2291 = vmul.f32 %v2290, %v831
      %v2292 = vsub.f32 %v2282, %v2291
      %v2293 = vmul.f32 %v2292, %v2292
      %v2294 = vsel %vm827, %v2293, 0.0
      %2295 = vadd.xlane.f32.xlu0 %v2294
      %v2296 = vpop.xlane.xlu0 %2295
      %v2297 = vmul.f32 %v2296, %v831
      %v2298 = vadd.f32 %v2297, 1e-05
      %v2299 = vrsqrt.pop %v2298
      %v2300 = vmul.f32 %v2292, %v2299
      %v2302 = vlaneseq
      %v2303 = vshrl.u32 %v2302, 7
      %v2304 = vsub.s32 0, %v2303
      %v2305 = vrot.slane %v2285, %v2304
      %v2307 = vmul.f32 %v2300, %v2305
      %v2309 = vlaneseq
      %v2310 = vshrl.u32 %v2309, 7
      %v2311 = vsub.s32 0, %v2310
      %v2312 = vrot.slane %v2287, %v2311
      %v2314 = vadd.f32 %v2307, %v2312
      %s2315 = scalar_lea.vmem %s7, 32
      %v2316 = vld [vmem:[%s2315] sm:$0xff]
      %v2317 = vld [vmem:[%s2315 + $0x8] sm:$0xff]
      %v2318 = vld [vmem:[%s2315 + $0x10] sm:$0xff]
      %v2319 = vld [vmem:[%s2315 + $0x18] sm:$0xff]
      %s2320 = scalar_lea.vmem %s8, 1
      %v2321 = vld [vmem:[%s2320] sm:$0x1]
      %v2323 = vlaneseq
      %v2324 = vshrl.u32 %v2323, 7
      %v2325 = vsub.s32 0, %v2324
      %v2326 = vrot.slane %v2321, %v2325
      %v2329 = vsel %vm827, %v2314, 0
      %2331 = vmatprep.subr.mxu0 0.0
      %2332 = vmatpush1.msra.mxu0 %v2316
      %2333 = vmatprep.subr.mxu0 0.0
      %2334 = vmatpush1.msra.mxu0 %v2317
      %2335 = vmatprep.subr.mxu0 0.0
      %2336 = vmatpush1.msra.mxu0 %v2318
      %2337 = vmatprep.subr.mxu0 0.0
      %2338 = vmatpush1.msra.mxu0 %v2319
      %2339 = vmatprep.subr.mxu0 0.0
      %2340 = vmatpush1.msra.mxu0 0.0
      %2341 = vmatprep.subr.mxu0 0.0
      %2342 = vmatpush1.msra.mxu0 0.0
      %2343 = vmatprep.subr.mxu0 0.0
      %2344 = vmatpush1.msra.mxu0 0.0
      %2345 = vmatprep.subr.mxu0 0.0
      %2346 = vmatpush1.msra.mxu0 0.0
      %2347 = vmatprep.subr.mxu0 0.0
      %2348 = vmatpush1.msra.mxu0 0.0
      %2349 = vmatprep.subr.mxu0 0.0
      %2350 = vmatpush1.msra.mxu0 0.0
      %2351 = vmatprep.subr.mxu0 0.0
      %2352 = vmatpush1.msra.mxu0 0.0
      %2353 = vmatprep.subr.mxu0 0.0
      %2354 = vmatpush1.msra.mxu0 0.0
      %2355 = vmatprep.subr.mxu0 0.0
      %2356 = vmatpush1.msra.mxu0 0.0
      %2357 = vmatprep.subr.mxu0 0.0
      %2358 = vmatpush1.msra.mxu0 0.0
      %2359 = vmatprep.subr.mxu0 0.0
      %2360 = vmatpush1.msra.mxu0 0.0
      %2361 = vmatprep.subr.mxu0 0.0
      %2362 = vmatpush1.msra.mxu0 0.0
      %2363 = vmatprep.subr.mxu0 0.0
      %2364 = vmatpush1.msra.mxu0 0.0
      %2365 = vmatprep.subr.mxu0 0.0
      %2366 = vmatpush1.msra.mxu0 0.0
      %2367 = vmatprep.subr.mxu0 0.0
      %2368 = vmatpush1.msra.mxu0 0.0
      %2369 = vmatprep.subr.mxu0 0.0
      %2370 = vmatpush1.msra.mxu0 0.0
      %2371 = vmatprep.subr.mxu0 0.0
      %2372 = vmatpush1.msra.mxu0 0.0
      %2373 = vmatprep.subr.mxu0 0.0
      %2374 = vmatpush1.msra.mxu0 0.0
      %2375 = vmatprep.subr.mxu0 0.0
      %2376 = vmatpush1.msra.mxu0 0.0
      %2377 = vmatprep.subr.mxu0 0.0
      %2378 = vmatpush1.msra.mxu0 0.0
      %2379 = vmatprep.subr.mxu0 0.0
      %2380 = vmatpush1.msra.mxu0 0.0
      %2381 = vmatprep.subr.mxu0 0.0
      %2382 = vmatpush1.msra.mxu0 0.0
      %2383 = vmatprep.subr.mxu0 0.0
      %2384 = vmatpush1.msra.mxu0 0.0
      %2385 = vmatprep.subr.mxu0 0.0
      %2386 = vmatpush1.msra.mxu0 0.0
      %2387 = vmatprep.subr.mxu0 0.0
      %2388 = vmatpush1.msra.mxu0 0.0
      %2389 = vmatprep.subr.mxu0 0.0
      %2390 = vmatpush1.msra.mxu0 0.0
      %2391 = vmatprep.subr.mxu0 0.0
      %2392 = vmatpush1.msra.mxu0 0.0
      %2393 = vmatprep.subr.mxu0 0.0
      %2394 = vmatpush1.msra.mxu0 0.0
      %2395 = vmatprep.mubr.f32.mxu0 0.0
      %2396 = vmatmul.mubr.f32.gmra.mrb[0].mxu0 %v2329
      %v2397 = vpop.f32.mrb[0].mxu0
      %v2398 = vadd.f32 %v2326, %v2397
      %v2399 = vpop.f32.mrb[0].mxu0
      %2400 = vdwg.mxu0
      %v2401 = vmul.f32 %v2398, 0.35355338
      %s2402 = scalar_lea.vmem %s9, 32
      %v2403 = vld [vmem:[%s2402] sm:$0xff]
      %v2404 = vld [vmem:[%s2402 + $0x8] sm:$0xff]
      %v2405 = vld [vmem:[%s2402 + $0x10] sm:$0xff]
      %v2406 = vld [vmem:[%s2402 + $0x18] sm:$0xff]
      %s2407 = scalar_lea.vmem %s10, 1
      %v2408 = vld [vmem:[%s2407] sm:$0x1]
      %v2410 = vlaneseq
      %v2411 = vshrl.u32 %v2410, 7
      %v2412 = vsub.s32 0, %v2411
      %v2413 = vrot.slane %v2408, %v2412
      %2415 = vmatprep.subr.mxu0 0.0
      %2416 = vmatpush1.msra.mxu0 %v2403
      %2417 = vmatprep.subr.mxu0 0.0
      %2418 = vmatpush1.msra.mxu0 %v2404
      %2419 = vmatprep.subr.mxu0 0.0
      %2420 = vmatpush1.msra.mxu0 %v2405
      %2421 = vmatprep.subr.mxu0 0.0
      %2422 = vmatpush1.msra.mxu0 %v2406
      %2423 = vmatprep.subr.mxu0 0.0
      %2424 = vmatpush1.msra.mxu0 0.0
      %2425 = vmatprep.subr.mxu0 0.0
      %2426 = vmatpush1.msra.mxu0 0.0
      %2427 = vmatprep.subr.mxu0 0.0
      %2428 = vmatpush1.msra.mxu0 0.0
      %2429 = vmatprep.subr.mxu0 0.0
      %2430 = vmatpush1.msra.mxu0 0.0
      %2431 = vmatprep.subr.mxu0 0.0
      %2432 = vmatpush1.msra.mxu0 0.0
      %2433 = vmatprep.subr.mxu0 0.0
      %2434 = vmatpush1.msra.mxu0 0.0
      %2435 = vmatprep.subr.mxu0 0.0
      %2436 = vmatpush1.msra.mxu0 0.0
      %2437 = vmatprep.subr.mxu0 0.0
      %2438 = vmatpush1.msra.mxu0 0.0
      %2439 = vmatprep.subr.mxu0 0.0
      %2440 = vmatpush1.msra.mxu0 0.0
      %2441 = vmatprep.subr.mxu0 0.0
      %2442 = vmatpush1.msra.mxu0 0.0
      %2443 = vmatprep.subr.mxu0 0.0
      %2444 = vmatpush1.msra.mxu0 0.0
      %2445 = vmatprep.subr.mxu0 0.0
      %2446 = vmatpush1.msra.mxu0 0.0
      %2447 = vmatprep.subr.mxu0 0.0
      %2448 = vmatpush1.msra.mxu0 0.0
      %2449 = vmatprep.subr.mxu0 0.0
      %2450 = vmatpush1.msra.mxu0 0.0
      %2451 = vmatprep.subr.mxu0 0.0
      %2452 = vmatpush1.msra.mxu0 0.0
      %2453 = vmatprep.subr.mxu0 0.0
      %2454 = vmatpush1.msra.mxu0 0.0
      %2455 = vmatprep.subr.mxu0 0.0
      %2456 = vmatpush1.msra.mxu0 0.0
      %2457 = vmatprep.subr.mxu0 0.0
      %2458 = vmatpush1.msra.mxu0 0.0
      %2459 = vmatprep.subr.mxu0 0.0
      %2460 = vmatpush1.msra.mxu0 0.0
      %2461 = vmatprep.subr.mxu0 0.0
      %2462 = vmatpush1.msra.mxu0 0.0
      %2463 = vmatprep.subr.mxu0 0.0
      %2464 = vmatpush1.msra.mxu0 0.0
      %2465 = vmatprep.subr.mxu0 0.0
      %2466 = vmatpush1.msra.mxu0 0.0
      %2467 = vmatprep.subr.mxu0 0.0
      %2468 = vmatpush1.msra.mxu0 0.0
      %2469 = vmatprep.subr.mxu0 0.0
      %2470 = vmatpush1.msra.mxu0 0.0
      %2471 = vmatprep.subr.mxu0 0.0
      %2472 = vmatpush1.msra.mxu0 0.0
      %2473 = vmatprep.subr.mxu0 0.0
      %2474 = vmatpush1.msra.mxu0 0.0
      %2475 = vmatprep.subr.mxu0 0.0
      %2476 = vmatpush1.msra.mxu0 0.0
      %2477 = vmatprep.subr.mxu0 0.0
      %2478 = vmatpush1.msra.mxu0 0.0
      %2479 = vmatprep.mubr.f32.mxu0 0.0
      %2480 = vmatmul.mubr.f32.gmra.mrb[0].mxu0 %v2329
      %v2481 = vpop.f32.mrb[0].mxu0
      %v2482 = vadd.f32 %v2413, %v2481
      %v2483 = vpop.f32.mrb[0].mxu0
      %2484 = vdwg.mxu0
      %s2485 = scalar_lea.vmem %s11, 32
      %v2486 = vld [vmem:[%s2485] sm:$0xff]
      %v2487 = vld [vmem:[%s2485 + $0x8] sm:$0xff]
      %v2488 = vld [vmem:[%s2485 + $0x10] sm:$0xff]
      %v2489 = vld [vmem:[%s2485 + $0x18] sm:$0xff]
      %s2490 = scalar_lea.vmem %s12, 1
      %v2491 = vld [vmem:[%s2490] sm:$0x1]
      %v2493 = vlaneseq
      %v2494 = vshrl.u32 %v2493, 7
      %v2495 = vsub.s32 0, %v2494
      %v2496 = vrot.slane %v2491, %v2495
      %2498 = vmatprep.subr.mxu0 0.0
      %2499 = vmatpush1.msra.mxu0 %v2486
      %2500 = vmatprep.subr.mxu0 0.0
      %2501 = vmatpush1.msra.mxu0 %v2487
      %2502 = vmatprep.subr.mxu0 0.0
      %2503 = vmatpush1.msra.mxu0 %v2488
      %2504 = vmatprep.subr.mxu0 0.0
      %2505 = vmatpush1.msra.mxu0 %v2489
      %2506 = vmatprep.subr.mxu0 0.0
      %2507 = vmatpush1.msra.mxu0 0.0
      %2508 = vmatprep.subr.mxu0 0.0
      %2509 = vmatpush1.msra.mxu0 0.0
      %2510 = vmatprep.subr.mxu0 0.0
      %2511 = vmatpush1.msra.mxu0 0.0
      %2512 = vmatprep.subr.mxu0 0.0
      %2513 = vmatpush1.msra.mxu0 0.0
      %2514 = vmatprep.subr.mxu0 0.0
      %2515 = vmatpush1.msra.mxu0 0.0
      %2516 = vmatprep.subr.mxu0 0.0
      %2517 = vmatpush1.msra.mxu0 0.0
      %2518 = vmatprep.subr.mxu0 0.0
      %2519 = vmatpush1.msra.mxu0 0.0
      %2520 = vmatprep.subr.mxu0 0.0
      %2521 = vmatpush1.msra.mxu0 0.0
      %2522 = vmatprep.subr.mxu0 0.0
      %2523 = vmatpush1.msra.mxu0 0.0
      %2524 = vmatprep.subr.mxu0 0.0
      %2525 = vmatpush1.msra.mxu0 0.0
      %2526 = vmatprep.subr.mxu0 0.0
      %2527 = vmatpush1.msra.mxu0 0.0
      %2528 = vmatprep.subr.mxu0 0.0
      %2529 = vmatpush1.msra.mxu0 0.0
      %2530 = vmatprep.subr.mxu0 0.0
      %2531 = vmatpush1.msra.mxu0 0.0
      %2532 = vmatprep.subr.mxu0 0.0
      %2533 = vmatpush1.msra.mxu0 0.0
      %2534 = vmatprep.subr.mxu0 0.0
      %2535 = vmatpush1.msra.mxu0 0.0
      %2536 = vmatprep.subr.mxu0 0.0
      %2537 = vmatpush1.msra.mxu0 0.0
      %2538 = vmatprep.subr.mxu0 0.0
      %2539 = vmatpush1.msra.mxu0 0.0
      %2540 = vmatprep.subr.mxu0 0.0
      %2541 = vmatpush1.msra.mxu0 0.0
      %2542 = vmatprep.subr.mxu0 0.0
      %2543 = vmatpush1.msra.mxu0 0.0
      %2544 = vmatprep.subr.mxu0 0.0
      %2545 = vmatpush1.msra.mxu0 0.0
      %2546 = vmatprep.subr.mxu0 0.0
      %2547 = vmatpush1.msra.mxu0 0.0
      %2548 = vmatprep.subr.mxu0 0.0
      %2549 = vmatpush1.msra.mxu0 0.0
      %2550 = vmatprep.subr.mxu0 0.0
      %2551 = vmatpush1.msra.mxu0 0.0
      %2552 = vmatprep.subr.mxu0 0.0
      %2553 = vmatpush1.msra.mxu0 0.0
      %2554 = vmatprep.subr.mxu0 0.0
      %2555 = vmatpush1.msra.mxu0 0.0
      %2556 = vmatprep.subr.mxu0 0.0
      %2557 = vmatpush1.msra.mxu0 0.0
      %2558 = vmatprep.subr.mxu0 0.0
      %2559 = vmatpush1.msra.mxu0 0.0
      %2560 = vmatprep.subr.mxu0 0.0
      %2561 = vmatpush1.msra.mxu0 0.0
      %2562 = vmatprep.mubr.f32.mxu0 0.0
      %2563 = vmatmul.mubr.f32.gmra.mrb[0].mxu0 %v2329
      %v2564 = vpop.f32.mrb[0].mxu0
      %v2565 = vadd.f32 %v2496, %v2564
      %v2566 = vpop.f32.mrb[0].mxu0
      %2567 = vdwg.mxu0
      %s2568 = scalar_lea.vmem %s13, 32
      %v2569 = vld [vmem:[%s2568] sm:$0xff]
      %v2570 = vld [vmem:[%s2568 + $0x8] sm:$0xff]
      %v2571 = vld [vmem:[%s2568 + $0x10] sm:$0xff]
      %v2572 = vld [vmem:[%s2568 + $0x18] sm:$0xff]
      %v2574 = vsel %vm1107, %v2401, 0
      %v2577 = vsel %vm1107, %v2482, 0
      %2579 = vmatprep.subr.mxu0 0.0
      %2580 = vmatpush1.xpose.msra.mxu0 %v2577
      %2581 = vmatprep.subr.mxu0 0.0
      %2582 = vmatpush1.xpose.msra.mxu0 0.0
      %2583 = vmatprep.subr.mxu0 0.0
      %2584 = vmatpush1.xpose.msra.mxu0 0.0
      %2585 = vmatprep.subr.mxu0 0.0
      %2586 = vmatpush1.xpose.msra.mxu0 0.0
      %2587 = vmatprep.subr.mxu0 0.0
      %2588 = vmatpush1.xpose.msra.mxu0 0.0
      %2589 = vmatprep.subr.mxu0 0.0
      %2590 = vmatpush1.xpose.msra.mxu0 0.0
      %2591 = vmatprep.subr.mxu0 0.0
      %2592 = vmatpush1.xpose.msra.mxu0 0.0
      %2593 = vmatprep.subr.mxu0 0.0
      %2594 = vmatpush1.xpose.msra.mxu0 0.0
      %2595 = vmatprep.subr.mxu0 0.0
      %2596 = vmatpush1.xpose.msra.mxu0 0.0
      %2597 = vmatprep.subr.mxu0 0.0
      %2598 = vmatpush1.xpose.msra.mxu0 0.0
      %2599 = vmatprep.subr.mxu0 0.0
      %2600 = vmatpush1.xpose.msra.mxu0 0.0
      %2601 = vmatprep.subr.mxu0 0.0
      %2602 = vmatpush1.xpose.msra.mxu0 0.0
      %2603 = vmatprep.subr.mxu0 0.0
      %2604 = vmatpush1.xpose.msra.mxu0 0.0
      %2605 = vmatprep.subr.mxu0 0.0
      %2606 = vmatpush1.xpose.msra.mxu0 0.0
      %2607 = vmatprep.subr.mxu0 0.0
      %2608 = vmatpush1.xpose.msra.mxu0 0.0
      %2609 = vmatprep.subr.mxu0 0.0
      %2610 = vmatpush1.xpose.msra.mxu0 0.0
      %2611 = vmatprep.subr.mxu0 0.0
      %2612 = vmatpush1.xpose.msra.mxu0 0.0
      %2613 = vmatprep.subr.mxu0 0.0
      %2614 = vmatpush1.xpose.msra.mxu0 0.0
      %2615 = vmatprep.subr.mxu0 0.0
      %2616 = vmatpush1.xpose.msra.mxu0 0.0
      %2617 = vmatprep.subr.mxu0 0.0
      %2618 = vmatpush1.xpose.msra.mxu0 0.0
      %2619 = vmatprep.subr.mxu0 0.0
      %2620 = vmatpush1.xpose.msra.mxu0 0.0
      %2621 = vmatprep.subr.mxu0 0.0
      %2622 = vmatpush1.xpose.msra.mxu0 0.0
      %2623 = vmatprep.subr.mxu0 0.0
      %2624 = vmatpush1.xpose.msra.mxu0 0.0
      %2625 = vmatprep.subr.mxu0 0.0
      %2626 = vmatpush1.xpose.msra.mxu0 0.0
      %2627 = vmatprep.subr.mxu0 0.0
      %2628 = vmatpush1.xpose.msra.mxu0 0.0
      %2629 = vmatprep.subr.mxu0 0.0
      %2630 = vmatpush1.xpose.msra.mxu0 0.0
      %2631 = vmatprep.subr.mxu0 0.0
      %2632 = vmatpush1.xpose.msra.mxu0 0.0
      %2633 = vmatprep.subr.mxu0 0.0
      %2634 = vmatpush1.xpose.msra.mxu0 0.0
      %2635 = vmatprep.subr.mxu0 0.0
      %2636 = vmatpush1.xpose.msra.mxu0 0.0
      %2637 = vmatprep.subr.mxu0 0.0
      %2638 = vmatpush1.xpose.msra.mxu0 0.0
      %2639 = vmatprep.subr.mxu0 0.0
      %2640 = vmatpush1.xpose.msra.mxu0 0.0
      %2641 = vmatprep.subr.mxu0 0.0
      %2642 = vmatpush1.xpose.msra.mxu0 0.0
      %2643 = vmatprep.mubr.f32.mxu0 0.0
      %2644 = vmatmul.mubr.f32.gmra.mrb[0].mxu0 %v2574
      %v2645 = vpop.f32.mrb[0].mxu0
      %v2646 = vadd.f32 0.0, %v2645
      %v2647 = vpop.f32.mrb[0].mxu0
      %2648 = vdwg.mxu0
      %v2649 = vsel %vm1190, -1e+30, %v2646
      %v2650 = vsel %vm1107, %v2649, -inf
      %2651 = vmax.xlane.f32.xlu0 %v2650
      %v2652 = vpop.xlane.xlu0 %2651
      %v2653 = vsub.f32 %v2649, %v2652
      %v2654 = vmul.f32 %v2653, 1.442695
      %v2655 = vpow.pop %v2654
      %v2656 = vsel %vm1107, %v2655, 0.0
      %2657 = vadd.xlane.f32.xlu0 %v2656
      %v2658 = vpop.xlane.xlu0 %2657
      %v2659 = vrcp.pop %v2658
      %v2660 = vmul.f32 %v2655, %v2659
      %v2662 = vsel %vm1107, %v2660, 0
      %2664 = vmatprep.subr.mxu0 0.0
      %2665 = vmatpush1.msra.mxu0 %v2565
      %2666 = vmatprep.subr.mxu0 0.0
      %2667 = vmatpush1.msra.mxu0 0.0
      %2668 = vmatprep.subr.mxu0 0.0
      %2669 = vmatpush1.msra.mxu0 0.0
      %2670 = vmatprep.subr.mxu0 0.0
      %2671 = vmatpush1.msra.mxu0 0.0
      %2672 = vmatprep.subr.mxu0 0.0
      %2673 = vmatpush1.msra.mxu0 0.0
      %2674 = vmatprep.subr.mxu0 0.0
      %2675 = vmatpush1.msra.mxu0 0.0
      %2676 = vmatprep.subr.mxu0 0.0
      %2677 = vmatpush1.msra.mxu0 0.0
      %2678 = vmatprep.subr.mxu0 0.0
      %2679 = vmatpush1.msra.mxu0 0.0
      %2680 = vmatprep.subr.mxu0 0.0
      %2681 = vmatpush1.msra.mxu0 0.0
      %2682 = vmatprep.subr.mxu0 0.0
      %2683 = vmatpush1.msra.mxu0 0.0
      %2684 = vmatprep.subr.mxu0 0.0
      %2685 = vmatpush1.msra.mxu0 0.0
      %2686 = vmatprep.subr.mxu0 0.0
      %2687 = vmatpush1.msra.mxu0 0.0
      %2688 = vmatprep.subr.mxu0 0.0
      %2689 = vmatpush1.msra.mxu0 0.0
      %2690 = vmatprep.subr.mxu0 0.0
      %2691 = vmatpush1.msra.mxu0 0.0
      %2692 = vmatprep.subr.mxu0 0.0
      %2693 = vmatpush1.msra.mxu0 0.0
      %2694 = vmatprep.subr.mxu0 0.0
      %2695 = vmatpush1.msra.mxu0 0.0
      %2696 = vmatprep.subr.mxu0 0.0
      %2697 = vmatpush1.msra.mxu0 0.0
      %2698 = vmatprep.subr.mxu0 0.0
      %2699 = vmatpush1.msra.mxu0 0.0
      %2700 = vmatprep.subr.mxu0 0.0
      %2701 = vmatpush1.msra.mxu0 0.0
      %2702 = vmatprep.subr.mxu0 0.0
      %2703 = vmatpush1.msra.mxu0 0.0
      %2704 = vmatprep.subr.mxu0 0.0
      %2705 = vmatpush1.msra.mxu0 0.0
      %2706 = vmatprep.subr.mxu0 0.0
      %2707 = vmatpush1.msra.mxu0 0.0
      %2708 = vmatprep.subr.mxu0 0.0
      %2709 = vmatpush1.msra.mxu0 0.0
      %2710 = vmatprep.subr.mxu0 0.0
      %2711 = vmatpush1.msra.mxu0 0.0
      %2712 = vmatprep.subr.mxu0 0.0
      %2713 = vmatpush1.msra.mxu0 0.0
      %2714 = vmatprep.subr.mxu0 0.0
      %2715 = vmatpush1.msra.mxu0 0.0
      %2716 = vmatprep.subr.mxu0 0.0
      %2717 = vmatpush1.msra.mxu0 0.0
      %2718 = vmatprep.subr.mxu0 0.0
      %2719 = vmatpush1.msra.mxu0 0.0
      %2720 = vmatprep.subr.mxu0 0.0
      %2721 = vmatpush1.msra.mxu0 0.0
      %2722 = vmatprep.subr.mxu0 0.0
      %2723 = vmatpush1.msra.mxu0 0.0
      %2724 = vmatprep.subr.mxu0 0.0
      %2725 = vmatpush1.msra.mxu0 0.0
      %2726 = vmatprep.subr.mxu0 0.0
      %2727 = vmatpush1.msra.mxu0 0.0
      %2728 = vmatprep.mubr.f32.mxu0 0.0
      %2729 = vmatmul.mubr.f32.gmra.mrb[0].mxu0 %v2662
      %v2730 = vpop.f32.mrb[0].mxu0
      %v2731 = vadd.f32 0.0, %v2730
      %v2732 = vpop.f32.mrb[0].mxu0
      %2733 = vdwg.mxu0
      %2734 = vrot.lane.b32.xlu0 %v2401, 120
      %v2735 = vpop.permute.xlu0 %2734
      %2736 = vrot.lane.b32.xlu0 %v2482, 120
      %v2737 = vpop.permute.xlu0 %2736
      %v2738 = vsel %vm1107, %v2735, 0
      %v2740 = vsel %vm1107, %v2737, 0
      %2742 = vmatprep.subr.mxu0 0.0
      %2743 = vmatpush1.xpose.msra.mxu0 %v2740
      %2744 = vmatprep.subr.mxu0 0.0
      %2745 = vmatpush1.xpose.msra.mxu0 0.0
      %2746 = vmatprep.subr.mxu0 0.0
      %2747 = vmatpush1.xpose.msra.mxu0 0.0
      %2748 = vmatprep.subr.mxu0 0.0
      %2749 = vmatpush1.xpose.msra.mxu0 0.0
      %2750 = vmatprep.subr.mxu0 0.0
      %2751 = vmatpush1.xpose.msra.mxu0 0.0
      %2752 = vmatprep.subr.mxu0 0.0
      %2753 = vmatpush1.xpose.msra.mxu0 0.0
      %2754 = vmatprep.subr.mxu0 0.0
      %2755 = vmatpush1.xpose.msra.mxu0 0.0
      %2756 = vmatprep.subr.mxu0 0.0
      %2757 = vmatpush1.xpose.msra.mxu0 0.0
      %2758 = vmatprep.subr.mxu0 0.0
      %2759 = vmatpush1.xpose.msra.mxu0 0.0
      %2760 = vmatprep.subr.mxu0 0.0
      %2761 = vmatpush1.xpose.msra.mxu0 0.0
      %2762 = vmatprep.subr.mxu0 0.0
      %2763 = vmatpush1.xpose.msra.mxu0 0.0
      %2764 = vmatprep.subr.mxu0 0.0
      %2765 = vmatpush1.xpose.msra.mxu0 0.0
      %2766 = vmatprep.subr.mxu0 0.0
      %2767 = vmatpush1.xpose.msra.mxu0 0.0
      %2768 = vmatprep.subr.mxu0 0.0
      %2769 = vmatpush1.xpose.msra.mxu0 0.0
      %2770 = vmatprep.subr.mxu0 0.0
      %2771 = vmatpush1.xpose.msra.mxu0 0.0
      %2772 = vmatprep.subr.mxu0 0.0
      %2773 = vmatpush1.xpose.msra.mxu0 0.0
      %2774 = vmatprep.subr.mxu0 0.0
      %2775 = vmatpush1.xpose.msra.mxu0 0.0
      %2776 = vmatprep.subr.mxu0 0.0
      %2777 = vmatpush1.xpose.msra.mxu0 0.0
      %2778 = vmatprep.subr.mxu0 0.0
      %2779 = vmatpush1.xpose.msra.mxu0 0.0
      %2780 = vmatprep.subr.mxu0 0.0
      %2781 = vmatpush1.xpose.msra.mxu0 0.0
      %2782 = vmatprep.subr.mxu0 0.0
      %2783 = vmatpush1.xpose.msra.mxu0 0.0
      %2784 = vmatprep.subr.mxu0 0.0
      %2785 = vmatpush1.xpose.msra.mxu0 0.0
      %2786 = vmatprep.subr.mxu0 0.0
      %2787 = vmatpush1.xpose.msra.mxu0 0.0
      %2788 = vmatprep.subr.mxu0 0.0
      %2789 = vmatpush1.xpose.msra.mxu0 0.0
      %2790 = vmatprep.subr.mxu0 0.0
      %2791 = vmatpush1.xpose.msra.mxu0 0.0
      %2792 = vmatprep.subr.mxu0 0.0
      %2793 = vmatpush1.xpose.msra.mxu0 0.0
      %2794 = vmatprep.subr.mxu0 0.0
      %2795 = vmatpush1.xpose.msra.mxu0 0.0
      %2796 = vmatprep.subr.mxu0 0.0
      %2797 = vmatpush1.xpose.msra.mxu0 0.0
      %2798 = vmatprep.subr.mxu0 0.0
      %2799 = vmatpush1.xpose.msra.mxu0 0.0
      %2800 = vmatprep.subr.mxu0 0.0
      %2801 = vmatpush1.xpose.msra.mxu0 0.0
      %2802 = vmatprep.subr.mxu0 0.0
      %2803 = vmatpush1.xpose.msra.mxu0 0.0
      %2804 = vmatprep.subr.mxu0 0.0
      %2805 = vmatpush1.xpose.msra.mxu0 0.0
      %2806 = vmatprep.mubr.f32.mxu0 0.0
      %2807 = vmatmul.mubr.f32.gmra.mrb[0].mxu0 %v2738
      %v2808 = vpop.f32.mrb[0].mxu0
      %v2809 = vadd.f32 0.0, %v2808
      %v2810 = vpop.f32.mrb[0].mxu0
      %2811 = vdwg.mxu0
      %v2812 = vsel %vm1190, -1e+30, %v2809
      %v2813 = vsel %vm1107, %v2812, -inf
      %2814 = vmax.xlane.f32.xlu0 %v2813
      %v2815 = vpop.xlane.xlu0 %2814
      %v2816 = vsub.f32 %v2812, %v2815
      %v2817 = vmul.f32 %v2816, 1.442695
      %v2818 = vpow.pop %v2817
      %v2819 = vsel %vm1107, %v2818, 0.0
      %2820 = vadd.xlane.f32.xlu0 %v2819
      %v2821 = vpop.xlane.xlu0 %2820
      %v2822 = vrcp.pop %v2821
      %v2823 = vmul.f32 %v2818, %v2822
      %2825 = vrot.lane.b32.xlu0 %v2565, 120
      %v2826 = vpop.permute.xlu0 %2825
      %v2829 = vsel %vm1107, %v2823, 0
      %2831 = vmatprep.subr.mxu0 0.0
      %2832 = vmatpush1.msra.mxu0 %v2826
      %2833 = vmatprep.subr.mxu0 0.0
      %2834 = vmatpush1.msra.mxu0 0.0
      %2835 = vmatprep.subr.mxu0 0.0
      %2836 = vmatpush1.msra.mxu0 0.0
      %2837 = vmatprep.subr.mxu0 0.0
      %2838 = vmatpush1.msra.mxu0 0.0
      %2839 = vmatprep.subr.mxu0 0.0
      %2840 = vmatpush1.msra.mxu0 0.0
      %2841 = vmatprep.subr.mxu0 0.0
      %2842 = vmatpush1.msra.mxu0 0.0
      %2843 = vmatprep.subr.mxu0 0.0
      %2844 = vmatpush1.msra.mxu0 0.0
      %2845 = vmatprep.subr.mxu0 0.0
      %2846 = vmatpush1.msra.mxu0 0.0
      %2847 = vmatprep.subr.mxu0 0.0
      %2848 = vmatpush1.msra.mxu0 0.0
      %2849 = vmatprep.subr.mxu0 0.0
      %2850 = vmatpush1.msra.mxu0 0.0
      %2851 = vmatprep.subr.mxu0 0.0
      %2852 = vmatpush1.msra.mxu0 0.0
      %2853 = vmatprep.subr.mxu0 0.0
      %2854 = vmatpush1.msra.mxu0 0.0
      %2855 = vmatprep.subr.mxu0 0.0
      %2856 = vmatpush1.msra.mxu0 0.0
      %2857 = vmatprep.subr.mxu0 0.0
      %2858 = vmatpush1.msra.mxu0 0.0
      %2859 = vmatprep.subr.mxu0 0.0
      %2860 = vmatpush1.msra.mxu0 0.0
      %2861 = vmatprep.subr.mxu0 0.0
      %2862 = vmatpush1.msra.mxu0 0.0
      %2863 = vmatprep.subr.mxu0 0.0
      %2864 = vmatpush1.msra.mxu0 0.0
      %2865 = vmatprep.subr.mxu0 0.0
      %2866 = vmatpush1.msra.mxu0 0.0
      %2867 = vmatprep.subr.mxu0 0.0
      %2868 = vmatpush1.msra.mxu0 0.0
      %2869 = vmatprep.subr.mxu0 0.0
      %2870 = vmatpush1.msra.mxu0 0.0
      %2871 = vmatprep.subr.mxu0 0.0
      %2872 = vmatpush1.msra.mxu0 0.0
      %2873 = vmatprep.subr.mxu0 0.0
      %2874 = vmatpush1.msra.mxu0 0.0
      %2875 = vmatprep.subr.mxu0 0.0
      %2876 = vmatpush1.msra.mxu0 0.0
      %2877 = vmatprep.subr.mxu0 0.0
      %2878 = vmatpush1.msra.mxu0 0.0
      %2879 = vmatprep.subr.mxu0 0.0
      %2880 = vmatpush1.msra.mxu0 0.0
      %2881 = vmatprep.subr.mxu0 0.0
      %2882 = vmatpush1.msra.mxu0 0.0
      %2883 = vmatprep.subr.mxu0 0.0
      %2884 = vmatpush1.msra.mxu0 0.0
      %2885 = vmatprep.subr.mxu0 0.0
      %2886 = vmatpush1.msra.mxu0 0.0
      %2887 = vmatprep.subr.mxu0 0.0
      %2888 = vmatpush1.msra.mxu0 0.0
      %2889 = vmatprep.subr.mxu0 0.0
      %2890 = vmatpush1.msra.mxu0 0.0
      %2891 = vmatprep.subr.mxu0 0.0
      %2892 = vmatpush1.msra.mxu0 0.0
      %2893 = vmatprep.subr.mxu0 0.0
      %2894 = vmatpush1.msra.mxu0 0.0
      %2895 = vmatprep.mubr.f32.mxu0 0.0
      %2896 = vmatmul.mubr.f32.gmra.mrb[0].mxu0 %v2829
      %v2897 = vpop.f32.mrb[0].mxu0
      %v2898 = vadd.f32 0.0, %v2897
      %v2899 = vpop.f32.mrb[0].mxu0
      %2900 = vdwg.mxu0
      %v2902 = vsel %vm1107, %v2898, 0
      %2904 = vmatprep.subr.mxu0 0.0
      %2905 = vmatpush1.msra.mxu0 %v2570
      %2906 = vmatprep.subr.mxu0 0.0
      %2907 = vmatpush1.msra.mxu0 0.0
      %2908 = vmatprep.subr.mxu0 0.0
      %2909 = vmatpush1.msra.mxu0 0.0
      %2910 = vmatprep.subr.mxu0 0.0
      %2911 = vmatpush1.msra.mxu0 0.0
      %2912 = vmatprep.subr.mxu0 0.0
      %2913 = vmatpush1.msra.mxu0 0.0
      %2914 = vmatprep.subr.mxu0 0.0
      %2915 = vmatpush1.msra.mxu0 0.0
      %2916 = vmatprep.subr.mxu0 0.0
      %2917 = vmatpush1.msra.mxu0 0.0
      %2918 = vmatprep.subr.mxu0 0.0
      %2919 = vmatpush1.msra.mxu0 0.0
      %2920 = vmatprep.subr.mxu0 0.0
      %2921 = vmatpush1.msra.mxu0 0.0
      %2922 = vmatprep.subr.mxu0 0.0
      %2923 = vmatpush1.msra.mxu0 0.0
      %2924 = vmatprep.subr.mxu0 0.0
      %2925 = vmatpush1.msra.mxu0 0.0
      %2926 = vmatprep.subr.mxu0 0.0
      %2927 = vmatpush1.msra.mxu0 0.0
      %2928 = vmatprep.subr.mxu0 0.0
      %2929 = vmatpush1.msra.mxu0 0.0
      %2930 = vmatprep.subr.mxu0 0.0
      %2931 = vmatpush1.msra.mxu0 0.0
      %2932 = vmatprep.subr.mxu0 0.0
      %2933 = vmatpush1.msra.mxu0 0.0
      %2934 = vmatprep.subr.mxu0 0.0
      %2935 = vmatpush1.msra.mxu0 0.0
      %2936 = vmatprep.subr.mxu0 0.0
      %2937 = vmatpush1.msra.mxu0 0.0
      %2938 = vmatprep.subr.mxu0 0.0
      %2939 = vmatpush1.msra.mxu0 0.0
      %2940 = vmatprep.subr.mxu0 0.0
      %2941 = vmatpush1.msra.mxu0 0.0
      %2942 = vmatprep.subr.mxu0 0.0
      %2943 = vmatpush1.msra.mxu0 0.0
      %2944 = vmatprep.subr.mxu0 0.0
      %2945 = vmatpush1.msra.mxu0 0.0
      %2946 = vmatprep.subr.mxu0 0.0
      %2947 = vmatpush1.msra.mxu0 0.0
      %2948 = vmatprep.subr.mxu0 0.0
      %2949 = vmatpush1.msra.mxu0 0.0
      %2950 = vmatprep.subr.mxu0 0.0
      %2951 = vmatpush1.msra.mxu0 0.0
      %2952 = vmatprep.subr.mxu0 0.0
      %2953 = vmatpush1.msra.mxu0 0.0
      %2954 = vmatprep.subr.mxu0 0.0
      %2955 = vmatpush1.msra.mxu0 0.0
      %2956 = vmatprep.subr.mxu0 0.0
      %2957 = vmatpush1.msra.mxu0 0.0
      %2958 = vmatprep.subr.mxu0 0.0
      %2959 = vmatpush1.msra.mxu0 0.0
      %2960 = vmatprep.subr.mxu0 0.0
      %2961 = vmatpush1.msra.mxu0 0.0
      %2962 = vmatprep.subr.mxu0 0.0
      %2963 = vmatpush1.msra.mxu0 0.0
      %2964 = vmatprep.subr.mxu0 0.0
      %2965 = vmatpush1.msra.mxu0 0.0
      %2966 = vmatprep.subr.mxu0 0.0
      %2967 = vmatpush1.msra.mxu0 0.0
      %2968 = vmatprep.mubr.f32.mxu0 0.0
      %2969 = vmatmul.mubr.f32.gmra.mrb[0].mxu0 %v2902
      %v2970 = vpop.f32.mrb[0].mxu0
      %v2971 = vadd.f32 0.0, %v2970
      %v2972 = vpop.f32.mrb[0].mxu0
      %2973 = vdwg.mxu0
      %v2975 = vsel %vm1107, %v2731, 0
      %2977 = vmatprep.subr.mxu0 0.0
      %2978 = vmatpush1.msra.mxu0 %v2569
      %2979 = vmatprep.subr.mxu0 0.0
      %2980 = vmatpush1.msra.mxu0 0.0
      %2981 = vmatprep.subr.mxu0 0.0
      %2982 = vmatpush1.msra.mxu0 0.0
      %2983 = vmatprep.subr.mxu0 0.0
      %2984 = vmatpush1.msra.mxu0 0.0
      %2985 = vmatprep.subr.mxu0 0.0
      %2986 = vmatpush1.msra.mxu0 0.0
      %2987 = vmatprep.subr.mxu0 0.0
      %2988 = vmatpush1.msra.mxu0 0.0
      %2989 = vmatprep.subr.mxu0 0.0
      %2990 = vmatpush1.msra.mxu0 0.0
      %2991 = vmatprep.subr.mxu0 0.0
      %2992 = vmatpush1.msra.mxu0 0.0
      %2993 = vmatprep.subr.mxu0 0.0
      %2994 = vmatpush1.msra.mxu0 0.0
      %2995 = vmatprep.subr.mxu0 0.0
      %2996 = vmatpush1.msra.mxu0 0.0
      %2997 = vmatprep.subr.mxu0 0.0
      %2998 = vmatpush1.msra.mxu0 0.0
      %2999 = vmatprep.subr.mxu0 0.0
      %3000 = vmatpush1.msra.mxu0 0.0
      %3001 = vmatprep.subr.mxu0 0.0
      %3002 = vmatpush1.msra.mxu0 0.0
      %3003 = vmatprep.subr.mxu0 0.0
      %3004 = vmatpush1.msra.mxu0 0.0
      %3005 = vmatprep.subr.mxu0 0.0
      %3006 = vmatpush1.msra.mxu0 0.0
      %3007 = vmatprep.subr.mxu0 0.0
      %3008 = vmatpush1.msra.mxu0 0.0
      %3009 = vmatprep.subr.mxu0 0.0
      %3010 = vmatpush1.msra.mxu0 0.0
      %3011 = vmatprep.subr.mxu0 0.0
      %3012 = vmatpush1.msra.mxu0 0.0
      %3013 = vmatprep.subr.mxu0 0.0
      %3014 = vmatpush1.msra.mxu0 0.0
      %3015 = vmatprep.subr.mxu0 0.0
      %3016 = vmatpush1.msra.mxu0 0.0
      %3017 = vmatprep.subr.mxu0 0.0
      %3018 = vmatpush1.msra.mxu0 0.0
      %3019 = vmatprep.subr.mxu0 0.0
      %3020 = vmatpush1.msra.mxu0 0.0
      %3021 = vmatprep.subr.mxu0 0.0
      %3022 = vmatpush1.msra.mxu0 0.0
      %3023 = vmatprep.subr.mxu0 0.0
      %3024 = vmatpush1.msra.mxu0 0.0
      %3025 = vmatprep.subr.mxu0 0.0
      %3026 = vmatpush1.msra.mxu0 0.0
      %3027 = vmatprep.subr.mxu0 0.0
      %3028 = vmatpush1.msra.mxu0 0.0
      %3029 = vmatprep.subr.mxu0 0.0
      %3030 = vmatpush1.msra.mxu0 0.0
      %3031 = vmatprep.subr.mxu0 0.0
      %3032 = vmatpush1.msra.mxu0 0.0
      %3033 = vmatprep.subr.mxu0 0.0
      %3034 = vmatpush1.msra.mxu0 0.0
      %3035 = vmatprep.subr.mxu0 0.0
      %3036 = vmatpush1.msra.mxu0 0.0
      %3037 = vmatprep.subr.mxu0 0.0
      %3038 = vmatpush1.msra.mxu0 0.0
      %3039 = vmatprep.subr.mxu0 0.0
      %3040 = vmatpush1.msra.mxu0 0.0
      %3041 = vmatprep.mubr.f32.mxu0 0.0
      %3042 = vmatmul.mubr.f32.gmra.mrb[0].mxu0 %v2975
      %v3043 = vpop.f32.mrb[0].mxu0
      %v3044 = vadd.f32 %v2971, %v3043
      %v3045 = vpop.f32.mrb[0].mxu0
      %3046 = vdwg.mxu0
      %3047 = vrot.lane.b32.xlu0 %v2401, 112
      %v3048 = vpop.permute.xlu0 %3047
      %3049 = vrot.lane.b32.xlu0 %v2482, 112
      %v3050 = vpop.permute.xlu0 %3049
      %v3051 = vsel %vm1107, %v3048, 0
      %v3053 = vsel %vm1107, %v3050, 0
      %3055 = vmatprep.subr.mxu0 0.0
      %3056 = vmatpush1.xpose.msra.mxu0 %v3053
      %3057 = vmatprep.subr.mxu0 0.0
      %3058 = vmatpush1.xpose.msra.mxu0 0.0
      %3059 = vmatprep.subr.mxu0 0.0
      %3060 = vmatpush1.xpose.msra.mxu0 0.0
      %3061 = vmatprep.subr.mxu0 0.0
      %3062 = vmatpush1.xpose.msra.mxu0 0.0
      %3063 = vmatprep.subr.mxu0 0.0
      %3064 = vmatpush1.xpose.msra.mxu0 0.0
      %3065 = vmatprep.subr.mxu0 0.0
      %3066 = vmatpush1.xpose.msra.mxu0 0.0
      %3067 = vmatprep.subr.mxu0 0.0
      %3068 = vmatpush1.xpose.msra.mxu0 0.0
      %3069 = vmatprep.subr.mxu0 0.0
      %3070 = vmatpush1.xpose.msra.mxu0 0.0
      %3071 = vmatprep.subr.mxu0 0.0
      %3072 = vmatpush1.xpose.msra.mxu0 0.0
      %3073 = vmatprep.subr.mxu0 0.0
      %3074 = vmatpush1.xpose.msra.mxu0 0.0
      %3075 = vmatprep.subr.mxu0 0.0
      %3076 = vmatpush1.xpose.msra.mxu0 0.0
      %3077 = vmatprep.subr.mxu0 0.0
      %3078 = vmatpush1.xpose.msra.mxu0 0.0
      %3079 = vmatprep.subr.mxu0 0.0
      %3080 = vmatpush1.xpose.msra.mxu0 0.0
      %3081 = vmatprep.subr.mxu0 0.0
      %3082 = vmatpush1.xpose.msra.mxu0 0.0
      %3083 = vmatprep.subr.mxu0 0.0
      %3084 = vmatpush1.xpose.msra.mxu0 0.0
      %3085 = vmatprep.subr.mxu0 0.0
      %3086 = vmatpush1.xpose.msra.mxu0 0.0
      %3087 = vmatprep.subr.mxu0 0.0
      %3088 = vmatpush1.xpose.msra.mxu0 0.0
      %3089 = vmatprep.subr.mxu0 0.0
      %3090 = vmatpush1.xpose.msra.mxu0 0.0
      %3091 = vmatprep.subr.mxu0 0.0
      %3092 = vmatpush1.xpose.msra.mxu0 0.0
      %3093 = vmatprep.subr.mxu0 0.0
      %3094 = vmatpush1.xpose.msra.mxu0 0.0
      %3095 = vmatprep.subr.mxu0 0.0
      %3096 = vmatpush1.xpose.msra.mxu0 0.0
      %3097 = vmatprep.subr.mxu0 0.0
      %3098 = vmatpush1.xpose.msra.mxu0 0.0
      %3099 = vmatprep.subr.mxu0 0.0
      %3100 = vmatpush1.xpose.msra.mxu0 0.0
      %3101 = vmatprep.subr.mxu0 0.0
      %3102 = vmatpush1.xpose.msra.mxu0 0.0
      %3103 = vmatprep.subr.mxu0 0.0
      %3104 = vmatpush1.xpose.msra.mxu0 0.0
      %3105 = vmatprep.subr.mxu0 0.0
      %3106 = vmatpush1.xpose.msra.mxu0 0.0
      %3107 = vmatprep.subr.mxu0 0.0
      %3108 = vmatpush1.xpose.msra.mxu0 0.0
      %3109 = vmatprep.subr.mxu0 0.0
      %3110 = vmatpush1.xpose.msra.mxu0 0.0
      %3111 = vmatprep.subr.mxu0 0.0
      %3112 = vmatpush1.xpose.msra.mxu0 0.0
      %3113 = vmatprep.subr.mxu0 0.0
      %3114 = vmatpush1.xpose.msra.mxu0 0.0
      %3115 = vmatprep.subr.mxu0 0.0
      %3116 = vmatpush1.xpose.msra.mxu0 0.0
      %3117 = vmatprep.subr.mxu0 0.0
      %3118 = vmatpush1.xpose.msra.mxu0 0.0
      %3119 = vmatprep.mubr.f32.mxu0 0.0
      %3120 = vmatmul.mubr.f32.gmra.mrb[0].mxu0 %v3051
      %v3121 = vpop.f32.mrb[0].mxu0
      %v3122 = vadd.f32 0.0, %v3121
      %v3123 = vpop.f32.mrb[0].mxu0
      %3124 = vdwg.mxu0
      %v3125 = vsel %vm1190, -1e+30, %v3122
      %v3126 = vsel %vm1107, %v3125, -inf
      %3127 = vmax.xlane.f32.xlu0 %v3126
      %v3128 = vpop.xlane.xlu0 %3127
      %v3129 = vsub.f32 %v3125, %v3128
      %v3130 = vmul.f32 %v3129, 1.442695
      %v3131 = vpow.pop %v3130
      %v3132 = vsel %vm1107, %v3131, 0.0
      %3133 = vadd.xlane.f32.xlu0 %v3132
      %v3134 = vpop.xlane.xlu0 %3133
      %v3135 = vrcp.pop %v3134
      %v3136 = vmul.f32 %v3131, %v3135
      %3137 = vrot.lane.b32.xlu0 %v2565, 112
      %v3138 = vpop.permute.xlu0 %3137
      %v3141 = vsel %vm1107, %v3136, 0
      %3143 = vmatprep.subr.mxu0 0.0
      %3144 = vmatpush1.msra.mxu0 %v3138
      %3145 = vmatprep.subr.mxu0 0.0
      %3146 = vmatpush1.msra.mxu0 0.0
      %3147 = vmatprep.subr.mxu0 0.0
      %3148 = vmatpush1.msra.mxu0 0.0
      %3149 = vmatprep.subr.mxu0 0.0
      %3150 = vmatpush1.msra.mxu0 0.0
      %3151 = vmatprep.subr.mxu0 0.0
      %3152 = vmatpush1.msra.mxu0 0.0
      %3153 = vmatprep.subr.mxu0 0.0
      %3154 = vmatpush1.msra.mxu0 0.0
      %3155 = vmatprep.subr.mxu0 0.0
      %3156 = vmatpush1.msra.mxu0 0.0
      %3157 = vmatprep.subr.mxu0 0.0
      %3158 = vmatpush1.msra.mxu0 0.0
      %3159 = vmatprep.subr.mxu0 0.0
      %3160 = vmatpush1.msra.mxu0 0.0
      %3161 = vmatprep.subr.mxu0 0.0
      %3162 = vmatpush1.msra.mxu0 0.0
      %3163 = vmatprep.subr.mxu0 0.0
      %3164 = vmatpush1.msra.mxu0 0.0
      %3165 = vmatprep.subr.mxu0 0.0
      %3166 = vmatpush1.msra.mxu0 0.0
      %3167 = vmatprep.subr.mxu0 0.0
      %3168 = vmatpush1.msra.mxu0 0.0
      %3169 = vmatprep.subr.mxu0 0.0
      %3170 = vmatpush1.msra.mxu0 0.0
      %3171 = vmatprep.subr.mxu0 0.0
      %3172 = vmatpush1.msra.mxu0 0.0
      %3173 = vmatprep.subr.mxu0 0.0
      %3174 = vmatpush1.msra.mxu0 0.0
      %3175 = vmatprep.subr.mxu0 0.0
      %3176 = vmatpush1.msra.mxu0 0.0
      %3177 = vmatprep.subr.mxu0 0.0
      %3178 = vmatpush1.msra.mxu0 0.0
      %3179 = vmatprep.subr.mxu0 0.0
      %3180 = vmatpush1.msra.mxu0 0.0
      %3181 = vmatprep.subr.mxu0 0.0
      %3182 = vmatpush1.msra.mxu0 0.0
      %3183 = vmatprep.subr.mxu0 0.0
      %3184 = vmatpush1.msra.mxu0 0.0
      %3185 = vmatprep.subr.mxu0 0.0
      %3186 = vmatpush1.msra.mxu0 0.0
      %3187 = vmatprep.subr.mxu0 0.0
      %3188 = vmatpush1.msra.mxu0 0.0
      %3189 = vmatprep.subr.mxu0 0.0
      %3190 = vmatpush1.msra.mxu0 0.0
      %3191 = vmatprep.subr.mxu0 0.0
      %3192 = vmatpush1.msra.mxu0 0.0
      %3193 = vmatprep.subr.mxu0 0.0
      %3194 = vmatpush1.msra.mxu0 0.0
      %3195 = vmatprep.subr.mxu0 0.0
      %3196 = vmatpush1.msra.mxu0 0.0
      %3197 = vmatprep.subr.mxu0 0.0
      %3198 = vmatpush1.msra.mxu0 0.0
      %3199 = vmatprep.subr.mxu0 0.0
      %3200 = vmatpush1.msra.mxu0 0.0
      %3201 = vmatprep.subr.mxu0 0.0
      %3202 = vmatpush1.msra.mxu0 0.0
      %3203 = vmatprep.subr.mxu0 0.0
      %3204 = vmatpush1.msra.mxu0 0.0
      %3205 = vmatprep.subr.mxu0 0.0
      %3206 = vmatpush1.msra.mxu0 0.0
      %3207 = vmatprep.mubr.f32.mxu0 0.0
      %3208 = vmatmul.mubr.f32.gmra.mrb[0].mxu0 %v3141
      %v3209 = vpop.f32.mrb[0].mxu0
      %v3210 = vadd.f32 0.0, %v3209
      %v3211 = vpop.f32.mrb[0].mxu0
      %3212 = vdwg.mxu0
      %v3214 = vsel %vm1107, %v3210, 0
      %3216 = vmatprep.subr.mxu0 0.0
      %3217 = vmatpush1.msra.mxu0 %v2571
      %3218 = vmatprep.subr.mxu0 0.0
      %3219 = vmatpush1.msra.mxu0 0.0
      %3220 = vmatprep.subr.mxu0 0.0
      %3221 = vmatpush1.msra.mxu0 0.0
      %3222 = vmatprep.subr.mxu0 0.0
      %3223 = vmatpush1.msra.mxu0 0.0
      %3224 = vmatprep.subr.mxu0 0.0
      %3225 = vmatpush1.msra.mxu0 0.0
      %3226 = vmatprep.subr.mxu0 0.0
      %3227 = vmatpush1.msra.mxu0 0.0
      %3228 = vmatprep.subr.mxu0 0.0
      %3229 = vmatpush1.msra.mxu0 0.0
      %3230 = vmatprep.subr.mxu0 0.0
      %3231 = vmatpush1.msra.mxu0 0.0
      %3232 = vmatprep.subr.mxu0 0.0
      %3233 = vmatpush1.msra.mxu0 0.0
      %3234 = vmatprep.subr.mxu0 0.0
      %3235 = vmatpush1.msra.mxu0 0.0
      %3236 = vmatprep.subr.mxu0 0.0
      %3237 = vmatpush1.msra.mxu0 0.0
      %3238 = vmatprep.subr.mxu0 0.0
      %3239 = vmatpush1.msra.mxu0 0.0
      %3240 = vmatprep.subr.mxu0 0.0
      %3241 = vmatpush1.msra.mxu0 0.0
      %3242 = vmatprep.subr.mxu0 0.0
      %3243 = vmatpush1.msra.mxu0 0.0
      %3244 = vmatprep.subr.mxu0 0.0
      %3245 = vmatpush1.msra.mxu0 0.0
      %3246 = vmatprep.subr.mxu0 0.0
      %3247 = vmatpush1.msra.mxu0 0.0
      %3248 = vmatprep.subr.mxu0 0.0
      %3249 = vmatpush1.msra.mxu0 0.0
      %3250 = vmatprep.subr.mxu0 0.0
      %3251 = vmatpush1.msra.mxu0 0.0
      %3252 = vmatprep.subr.mxu0 0.0
      %3253 = vmatpush1.msra.mxu0 0.0
      %3254 = vmatprep.subr.mxu0 0.0
      %3255 = vmatpush1.msra.mxu0 0.0
      %3256 = vmatprep.subr.mxu0 0.0
      %3257 = vmatpush1.msra.mxu0 0.0
      %3258 = vmatprep.subr.mxu0 0.0
      %3259 = vmatpush1.msra.mxu0 0.0
      %3260 = vmatprep.subr.mxu0 0.0
      %3261 = vmatpush1.msra.mxu0 0.0
      %3262 = vmatprep.subr.mxu0 0.0
      %3263 = vmatpush1.msra.mxu0 0.0
      %3264 = vmatprep.subr.mxu0 0.0
      %3265 = vmatpush1.msra.mxu0 0.0
      %3266 = vmatprep.subr.mxu0 0.0
      %3267 = vmatpush1.msra.mxu0 0.0
      %3268 = vmatprep.subr.mxu0 0.0
      %3269 = vmatpush1.msra.mxu0 0.0
      %3270 = vmatprep.subr.mxu0 0.0
      %3271 = vmatpush1.msra.mxu0 0.0
      %3272 = vmatprep.subr.mxu0 0.0
      %3273 = vmatpush1.msra.mxu0 0.0
      %3274 = vmatprep.subr.mxu0 0.0
      %3275 = vmatpush1.msra.mxu0 0.0
      %3276 = vmatprep.subr.mxu0 0.0
      %3277 = vmatpush1.msra.mxu0 0.0
      %3278 = vmatprep.subr.mxu0 0.0
      %3279 = vmatpush1.msra.mxu0 0.0
      %3280 = vmatprep.mubr.f32.mxu0 0.0
      %3281 = vmatmul.mubr.f32.gmra.mrb[0].mxu0 %v3214
      %v3282 = vpop.f32.mrb[0].mxu0
      %v3283 = vadd.f32 0.0, %v3282
      %v3284 = vpop.f32.mrb[0].mxu0
      %3285 = vdwg.mxu0
      %v3286 = vadd.f32 %v3044, %v3283
      %3287 = vrot.lane.b32.xlu0 %v2401, 104
      %v3288 = vpop.permute.xlu0 %3287
      %3289 = vrot.lane.b32.xlu0 %v2482, 104
      %v3290 = vpop.permute.xlu0 %3289
      %v3291 = vsel %vm1107, %v3288, 0
      %v3293 = vsel %vm1107, %v3290, 0
      %3295 = vmatprep.subr.mxu0 0.0
      %3296 = vmatpush1.xpose.msra.mxu0 %v3293
      %3297 = vmatprep.subr.mxu0 0.0
      %3298 = vmatpush1.xpose.msra.mxu0 0.0
      %3299 = vmatprep.subr.mxu0 0.0
      %3300 = vmatpush1.xpose.msra.mxu0 0.0
      %3301 = vmatprep.subr.mxu0 0.0
      %3302 = vmatpush1.xpose.msra.mxu0 0.0
      %3303 = vmatprep.subr.mxu0 0.0
      %3304 = vmatpush1.xpose.msra.mxu0 0.0
      %3305 = vmatprep.subr.mxu0 0.0
      %3306 = vmatpush1.xpose.msra.mxu0 0.0
      %3307 = vmatprep.subr.mxu0 0.0
      %3308 = vmatpush1.xpose.msra.mxu0 0.0
      %3309 = vmatprep.subr.mxu0 0.0
      %3310 = vmatpush1.xpose.msra.mxu0 0.0
      %3311 = vmatprep.subr.mxu0 0.0
      %3312 = vmatpush1.xpose.msra.mxu0 0.0
      %3313 = vmatprep.subr.mxu0 0.0
      %3314 = vmatpush1.xpose.msra.mxu0 0.0
      %3315 = vmatprep.subr.mxu0 0.0
      %3316 = vmatpush1.xpose.msra.mxu0 0.0
      %3317 = vmatprep.subr.mxu0 0.0
      %3318 = vmatpush1.xpose.msra.mxu0 0.0
      %3319 = vmatprep.subr.mxu0 0.0
      %3320 = vmatpush1.xpose.msra.mxu0 0.0
      %3321 = vmatprep.subr.mxu0 0.0
      %3322 = vmatpush1.xpose.msra.mxu0 0.0
      %3323 = vmatprep.subr.mxu0 0.0
      %3324 = vmatpush1.xpose.msra.mxu0 0.0
      %3325 = vmatprep.subr.mxu0 0.0
      %3326 = vmatpush1.xpose.msra.mxu0 0.0
      %3327 = vmatprep.subr.mxu0 0.0
      %3328 = vmatpush1.xpose.msra.mxu0 0.0
      %3329 = vmatprep.subr.mxu0 0.0
      %3330 = vmatpush1.xpose.msra.mxu0 0.0
      %3331 = vmatprep.subr.mxu0 0.0
      %3332 = vmatpush1.xpose.msra.mxu0 0.0
      %3333 = vmatprep.subr.mxu0 0.0
      %3334 = vmatpush1.xpose.msra.mxu0 0.0
      %3335 = vmatprep.subr.mxu0 0.0
      %3336 = vmatpush1.xpose.msra.mxu0 0.0
      %3337 = vmatprep.subr.mxu0 0.0
      %3338 = vmatpush1.xpose.msra.mxu0 0.0
      %3339 = vmatprep.subr.mxu0 0.0
      %3340 = vmatpush1.xpose.msra.mxu0 0.0
      %3341 = vmatprep.subr.mxu0 0.0
      %3342 = vmatpush1.xpose.msra.mxu0 0.0
      %3343 = vmatprep.subr.mxu0 0.0
      %3344 = vmatpush1.xpose.msra.mxu0 0.0
      %3345 = vmatprep.subr.mxu0 0.0
      %3346 = vmatpush1.xpose.msra.mxu0 0.0
      %3347 = vmatprep.subr.mxu0 0.0
      %3348 = vmatpush1.xpose.msra.mxu0 0.0
      %3349 = vmatprep.subr.mxu0 0.0
      %3350 = vmatpush1.xpose.msra.mxu0 0.0
      %3351 = vmatprep.subr.mxu0 0.0
      %3352 = vmatpush1.xpose.msra.mxu0 0.0
      %3353 = vmatprep.subr.mxu0 0.0
      %3354 = vmatpush1.xpose.msra.mxu0 0.0
      %3355 = vmatprep.subr.mxu0 0.0
      %3356 = vmatpush1.xpose.msra.mxu0 0.0
      %3357 = vmatprep.subr.mxu0 0.0
      %3358 = vmatpush1.xpose.msra.mxu0 0.0
      %3359 = vmatprep.mubr.f32.mxu0 0.0
      %3360 = vmatmul.mubr.f32.gmra.mrb[0].mxu0 %v3291
      %v3361 = vpop.f32.mrb[0].mxu0
      %v3362 = vadd.f32 0.0, %v3361
      %v3363 = vpop.f32.mrb[0].mxu0
      %3364 = vdwg.mxu0
      %v3365 = vsel %vm1190, -1e+30, %v3362
      %v3366 = vsel %vm1107, %v3365, -inf
      %3367 = vmax.xlane.f32.xlu0 %v3366
      %v3368 = vpop.xlane.xlu0 %3367
      %v3369 = vsub.f32 %v3365, %v3368
      %v3370 = vmul.f32 %v3369, 1.442695
      %v3371 = vpow.pop %v3370
      %v3372 = vsel %vm1107, %v3371, 0.0
      %3373 = vadd.xlane.f32.xlu0 %v3372
      %v3374 = vpop.xlane.xlu0 %3373
      %v3375 = vrcp.pop %v3374
      %v3376 = vmul.f32 %v3371, %v3375
      %3377 = vrot.lane.b32.xlu0 %v2565, 104
      %v3378 = vpop.permute.xlu0 %3377
      %v3381 = vsel %vm1107, %v3376, 0
      %3383 = vmatprep.subr.mxu0 0.0
      %3384 = vmatpush1.msra.mxu0 %v3378
      %3385 = vmatprep.subr.mxu0 0.0
      %3386 = vmatpush1.msra.mxu0 0.0
      %3387 = vmatprep.subr.mxu0 0.0
      %3388 = vmatpush1.msra.mxu0 0.0
      %3389 = vmatprep.subr.mxu0 0.0
      %3390 = vmatpush1.msra.mxu0 0.0
      %3391 = vmatprep.subr.mxu0 0.0
      %3392 = vmatpush1.msra.mxu0 0.0
      %3393 = vmatprep.subr.mxu0 0.0
      %3394 = vmatpush1.msra.mxu0 0.0
      %3395 = vmatprep.subr.mxu0 0.0
      %3396 = vmatpush1.msra.mxu0 0.0
      %3397 = vmatprep.subr.mxu0 0.0
      %3398 = vmatpush1.msra.mxu0 0.0
      %3399 = vmatprep.subr.mxu0 0.0
      %3400 = vmatpush1.msra.mxu0 0.0
      %3401 = vmatprep.subr.mxu0 0.0
      %3402 = vmatpush1.msra.mxu0 0.0
      %3403 = vmatprep.subr.mxu0 0.0
      %3404 = vmatpush1.msra.mxu0 0.0
      %3405 = vmatprep.subr.mxu0 0.0
      %3406 = vmatpush1.msra.mxu0 0.0
      %3407 = vmatprep.subr.mxu0 0.0
      %3408 = vmatpush1.msra.mxu0 0.0
      %3409 = vmatprep.subr.mxu0 0.0
      %3410 = vmatpush1.msra.mxu0 0.0
      %3411 = vmatprep.subr.mxu0 0.0
      %3412 = vmatpush1.msra.mxu0 0.0
      %3413 = vmatprep.subr.mxu0 0.0
      %3414 = vmatpush1.msra.mxu0 0.0
      %3415 = vmatprep.subr.mxu0 0.0
      %3416 = vmatpush1.msra.mxu0 0.0
      %3417 = vmatprep.subr.mxu0 0.0
      %3418 = vmatpush1.msra.mxu0 0.0
      %3419 = vmatprep.subr.mxu0 0.0
      %3420 = vmatpush1.msra.mxu0 0.0
      %3421 = vmatprep.subr.mxu0 0.0
      %3422 = vmatpush1.msra.mxu0 0.0
      %3423 = vmatprep.subr.mxu0 0.0
      %3424 = vmatpush1.msra.mxu0 0.0
      %3425 = vmatprep.subr.mxu0 0.0
      %3426 = vmatpush1.msra.mxu0 0.0
      %3427 = vmatprep.subr.mxu0 0.0
      %3428 = vmatpush1.msra.mxu0 0.0
      %3429 = vmatprep.subr.mxu0 0.0
      %3430 = vmatpush1.msra.mxu0 0.0
      %3431 = vmatprep.subr.mxu0 0.0
      %3432 = vmatpush1.msra.mxu0 0.0
      %3433 = vmatprep.subr.mxu0 0.0
      %3434 = vmatpush1.msra.mxu0 0.0
      %3435 = vmatprep.subr.mxu0 0.0
      %3436 = vmatpush1.msra.mxu0 0.0
      %3437 = vmatprep.subr.mxu0 0.0
      %3438 = vmatpush1.msra.mxu0 0.0
      %3439 = vmatprep.subr.mxu0 0.0
      %3440 = vmatpush1.msra.mxu0 0.0
      %3441 = vmatprep.subr.mxu0 0.0
      %3442 = vmatpush1.msra.mxu0 0.0
      %3443 = vmatprep.subr.mxu0 0.0
      %3444 = vmatpush1.msra.mxu0 0.0
      %3445 = vmatprep.subr.mxu0 0.0
      %3446 = vmatpush1.msra.mxu0 0.0
      %3447 = vmatprep.mubr.f32.mxu0 0.0
      %3448 = vmatmul.mubr.f32.gmra.mrb[0].mxu0 %v3381
      %v3449 = vpop.f32.mrb[0].mxu0
      %v3450 = vadd.f32 0.0, %v3449
      %v3451 = vpop.f32.mrb[0].mxu0
      %3452 = vdwg.mxu0
      %v3454 = vsel %vm1107, %v3450, 0
      %3456 = vmatprep.subr.mxu0 0.0
      %3457 = vmatpush1.msra.mxu0 %v2572
      %3458 = vmatprep.subr.mxu0 0.0
      %3459 = vmatpush1.msra.mxu0 0.0
      %3460 = vmatprep.subr.mxu0 0.0
      %3461 = vmatpush1.msra.mxu0 0.0
      %3462 = vmatprep.subr.mxu0 0.0
      %3463 = vmatpush1.msra.mxu0 0.0
      %3464 = vmatprep.subr.mxu0 0.0
      %3465 = vmatpush1.msra.mxu0 0.0
      %3466 = vmatprep.subr.mxu0 0.0
      %3467 = vmatpush1.msra.mxu0 0.0
      %3468 = vmatprep.subr.mxu0 0.0
      %3469 = vmatpush1.msra.mxu0 0.0
      %3470 = vmatprep.subr.mxu0 0.0
      %3471 = vmatpush1.msra.mxu0 0.0
      %3472 = vmatprep.subr.mxu0 0.0
      %3473 = vmatpush1.msra.mxu0 0.0
      %3474 = vmatprep.subr.mxu0 0.0
      %3475 = vmatpush1.msra.mxu0 0.0
      %3476 = vmatprep.subr.mxu0 0.0
      %3477 = vmatpush1.msra.mxu0 0.0
      %3478 = vmatprep.subr.mxu0 0.0
      %3479 = vmatpush1.msra.mxu0 0.0
      %3480 = vmatprep.subr.mxu0 0.0
      %3481 = vmatpush1.msra.mxu0 0.0
      %3482 = vmatprep.subr.mxu0 0.0
      %3483 = vmatpush1.msra.mxu0 0.0
      %3484 = vmatprep.subr.mxu0 0.0
      %3485 = vmatpush1.msra.mxu0 0.0
      %3486 = vmatprep.subr.mxu0 0.0
      %3487 = vmatpush1.msra.mxu0 0.0
      %3488 = vmatprep.subr.mxu0 0.0
      %3489 = vmatpush1.msra.mxu0 0.0
      %3490 = vmatprep.subr.mxu0 0.0
      %3491 = vmatpush1.msra.mxu0 0.0
      %3492 = vmatprep.subr.mxu0 0.0
      %3493 = vmatpush1.msra.mxu0 0.0
      %3494 = vmatprep.subr.mxu0 0.0
      %3495 = vmatpush1.msra.mxu0 0.0
      %3496 = vmatprep.subr.mxu0 0.0
      %3497 = vmatpush1.msra.mxu0 0.0
      %3498 = vmatprep.subr.mxu0 0.0
      %3499 = vmatpush1.msra.mxu0 0.0
      %3500 = vmatprep.subr.mxu0 0.0
      %3501 = vmatpush1.msra.mxu0 0.0
      %3502 = vmatprep.subr.mxu0 0.0
      %3503 = vmatpush1.msra.mxu0 0.0
      %3504 = vmatprep.subr.mxu0 0.0
      %3505 = vmatpush1.msra.mxu0 0.0
      %3506 = vmatprep.subr.mxu0 0.0
      %3507 = vmatpush1.msra.mxu0 0.0
      %3508 = vmatprep.subr.mxu0 0.0
      %3509 = vmatpush1.msra.mxu0 0.0
      %3510 = vmatprep.subr.mxu0 0.0
      %3511 = vmatpush1.msra.mxu0 0.0
      %3512 = vmatprep.subr.mxu0 0.0
      %3513 = vmatpush1.msra.mxu0 0.0
      %3514 = vmatprep.subr.mxu0 0.0
      %3515 = vmatpush1.msra.mxu0 0.0
      %3516 = vmatprep.subr.mxu0 0.0
      %3517 = vmatpush1.msra.mxu0 0.0
      %3518 = vmatprep.subr.mxu0 0.0
      %3519 = vmatpush1.msra.mxu0 0.0
      %3520 = vmatprep.mubr.f32.mxu0 0.0
      %3521 = vmatmul.mubr.f32.gmra.mrb[0].mxu0 %v3454
      %v3522 = vpop.f32.mrb[0].mxu0
      %v3523 = vadd.f32 0.0, %v3522
      %v3524 = vpop.f32.mrb[0].mxu0
      %3525 = vdwg.mxu0
      %v3526 = vadd.f32 %v3286, %v3523
      %v3527 = vadd.f32 %v2282, %v3526
      %s3528 = scalar_lea.vmem %s14, 1
      %v3529 = vld [vmem:[%s3528] sm:$0x1]
      %v3531 = vlaneseq
      %v3532 = vshrl.u32 %v3531, 7
      %v3533 = vsub.s32 0, %v3532
      %v3534 = vrot.slane %v3529, %v3533
      %v3536 = vadd.f32 %v3527, %v3534
      %s3537 = scalar_lea.vmem %s15, 1
      %v3538 = vld [vmem:[%s3537] sm:$0x1]
      %s3539 = scalar_lea.vmem %s16, 1
      %v3540 = vld [vmem:[%s3539] sm:$0x1]
      %v3541 = vsel %vm827, %v3536, 0.0
      %3542 = vadd.xlane.f32.xlu0 %v3541
      %v3543 = vpop.xlane.xlu0 %3542
      %v3544 = vmul.f32 %v3543, %v831
      %v3545 = vsub.f32 %v3536, %v3544
      %v3546 = vmul.f32 %v3545, %v3545
      %v3547 = vsel %vm827, %v3546, 0.0
      %3548 = vadd.xlane.f32.xlu0 %v3547
      %v3549 = vpop.xlane.xlu0 %3548
      %v3550 = vmul.f32 %v3549, %v831
      %v3551 = vadd.f32 %v3550, 1e-05
      %v3552 = vrsqrt.pop %v3551
      %v3553 = vmul.f32 %v3545, %v3552
      %v3555 = vlaneseq
      %v3556 = vshrl.u32 %v3555, 7
      %v3557 = vsub.s32 0, %v3556
      %v3558 = vrot.slane %v3538, %v3557
      %v3560 = vmul.f32 %v3553, %v3558
      %v3562 = vlaneseq
      %v3563 = vshrl.u32 %v3562, 7
      %v3564 = vsub.s32 0, %v3563
      %v3565 = vrot.slane %v3540, %v3564
      %v3567 = vadd.f32 %v3560, %v3565
      %s3568 = scalar_lea.vmem %s17, 32
      %v3569 = vld [vmem:[%s3568] sm:$0xff]
      %v3570 = vld [vmem:[%s3568 + $0x8] sm:$0xff]
      %v3571 = vld [vmem:[%s3568 + $0x10] sm:$0xff]
      %v3572 = vld [vmem:[%s3568 + $0x18] sm:$0xff]
      %s3573 = scalar_lea.vmem %s18, 1
      %v3574 = vld [vmem:[%s3573] sm:$0x1]
      %v3576 = vlaneseq
      %v3577 = vshrl.u32 %v3576, 7
      %v3578 = vsub.s32 0, %v3577
      %v3579 = vrot.slane %v3574, %v3578
      %v3582 = vsel %vm827, %v3567, 0
      %3584 = vmatprep.subr.mxu0 0.0
      %3585 = vmatpush1.msra.mxu0 %v3569
      %3586 = vmatprep.subr.mxu0 0.0
      %3587 = vmatpush1.msra.mxu0 %v3570
      %3588 = vmatprep.subr.mxu0 0.0
      %3589 = vmatpush1.msra.mxu0 %v3571
      %3590 = vmatprep.subr.mxu0 0.0
      %3591 = vmatpush1.msra.mxu0 %v3572
      %3592 = vmatprep.subr.mxu0 0.0
      %3593 = vmatpush1.msra.mxu0 0.0
      %3594 = vmatprep.subr.mxu0 0.0
      %3595 = vmatpush1.msra.mxu0 0.0
      %3596 = vmatprep.subr.mxu0 0.0
      %3597 = vmatpush1.msra.mxu0 0.0
      %3598 = vmatprep.subr.mxu0 0.0
      %3599 = vmatpush1.msra.mxu0 0.0
      %3600 = vmatprep.subr.mxu0 0.0
      %3601 = vmatpush1.msra.mxu0 0.0
      %3602 = vmatprep.subr.mxu0 0.0
      %3603 = vmatpush1.msra.mxu0 0.0
      %3604 = vmatprep.subr.mxu0 0.0
      %3605 = vmatpush1.msra.mxu0 0.0
      %3606 = vmatprep.subr.mxu0 0.0
      %3607 = vmatpush1.msra.mxu0 0.0
      %3608 = vmatprep.subr.mxu0 0.0
      %3609 = vmatpush1.msra.mxu0 0.0
      %3610 = vmatprep.subr.mxu0 0.0
      %3611 = vmatpush1.msra.mxu0 0.0
      %3612 = vmatprep.subr.mxu0 0.0
      %3613 = vmatpush1.msra.mxu0 0.0
      %3614 = vmatprep.subr.mxu0 0.0
      %3615 = vmatpush1.msra.mxu0 0.0
      %3616 = vmatprep.subr.mxu0 0.0
      %3617 = vmatpush1.msra.mxu0 0.0
      %3618 = vmatprep.subr.mxu0 0.0
      %3619 = vmatpush1.msra.mxu0 0.0
      %3620 = vmatprep.subr.mxu0 0.0
      %3621 = vmatpush1.msra.mxu0 0.0
      %3622 = vmatprep.subr.mxu0 0.0
      %3623 = vmatpush1.msra.mxu0 0.0
      %3624 = vmatprep.subr.mxu0 0.0
      %3625 = vmatpush1.msra.mxu0 0.0
      %3626 = vmatprep.subr.mxu0 0.0
      %3627 = vmatpush1.msra.mxu0 0.0
      %3628 = vmatprep.subr.mxu0 0.0
      %3629 = vmatpush1.msra.mxu0 0.0
      %3630 = vmatprep.subr.mxu0 0.0
      %3631 = vmatpush1.msra.mxu0 0.0
      %3632 = vmatprep.subr.mxu0 0.0
      %3633 = vmatpush1.msra.mxu0 0.0
      %3634 = vmatprep.subr.mxu0 0.0
      %3635 = vmatpush1.msra.mxu0 0.0
      %3636 = vmatprep.subr.mxu0 0.0
      %3637 = vmatpush1.msra.mxu0 0.0
      %3638 = vmatprep.subr.mxu0 0.0
      %3639 = vmatpush1.msra.mxu0 0.0
      %3640 = vmatprep.subr.mxu0 0.0
      %3641 = vmatpush1.msra.mxu0 0.0
      %3642 = vmatprep.subr.mxu0 0.0
      %3643 = vmatpush1.msra.mxu0 0.0
      %3644 = vmatprep.subr.mxu0 0.0
      %3645 = vmatpush1.msra.mxu0 0.0
      %3646 = vmatprep.subr.mxu0 0.0
      %3647 = vmatpush1.msra.mxu0 0.0
      %3648 = vmatprep.mubr.f32.mxu0 0.0
      %3649 = vmatmul.mubr.f32.gmra.mrb[0].mxu0 %v3582
      %v3650 = vpop.f32.mrb[0].mxu0
      %v3651 = vadd.f32 %v3579, %v3650
      %v3652 = vpop.f32.mrb[0].mxu0
      %3653 = vdwg.mxu0
      %v3654 = vmax.f32 %v3651, 0.0
      %s3655 = scalar_lea.vmem %s19, 64
      %v3656 = vld [vmem:[%s3655] sm:$0xff]
      %v3657 = vld [vmem:[%s3655 + $0x8] sm:$0xff]
      %v3658 = vld [vmem:[%s3655 + $0x10] sm:$0xff]
      %v3659 = vld [vmem:[%s3655 + $0x18] sm:$0xff]
      %v3660 = vld [vmem:[%s3655 + $0x20] sm:$0xff]
      %v3661 = vld [vmem:[%s3655 + $0x28] sm:$0xff]
      %v3662 = vld [vmem:[%s3655 + $0x30] sm:$0xff]
      %v3663 = vld [vmem:[%s3655 + $0x38] sm:$0xff]
      %v3665 = vsel %vm2200, %v3654, 0
      %3667 = vmatprep.subr.mxu0 0.0
      %3668 = vmatpush1.msra.mxu0 %v3656
      %3669 = vmatprep.subr.mxu0 0.0
      %3670 = vmatpush1.msra.mxu0 %v3657
      %3671 = vmatprep.subr.mxu0 0.0
      %3672 = vmatpush1.msra.mxu0 %v3658
      %3673 = vmatprep.subr.mxu0 0.0
      %3674 = vmatpush1.msra.mxu0 %v3659
      %3675 = vmatprep.subr.mxu0 0.0
      %3676 = vmatpush1.msra.mxu0 %v3660
      %3677 = vmatprep.subr.mxu0 0.0
      %3678 = vmatpush1.msra.mxu0 %v3661
      %3679 = vmatprep.subr.mxu0 0.0
      %3680 = vmatpush1.msra.mxu0 %v3662
      %3681 = vmatprep.subr.mxu0 0.0
      %3682 = vmatpush1.msra.mxu0 %v3663
      %3683 = vmatprep.subr.mxu0 0.0
      %3684 = vmatpush1.msra.mxu0 0.0
      %3685 = vmatprep.subr.mxu0 0.0
      %3686 = vmatpush1.msra.mxu0 0.0
      %3687 = vmatprep.subr.mxu0 0.0
      %3688 = vmatpush1.msra.mxu0 0.0
      %3689 = vmatprep.subr.mxu0 0.0
      %3690 = vmatpush1.msra.mxu0 0.0
      %3691 = vmatprep.subr.mxu0 0.0
      %3692 = vmatpush1.msra.mxu0 0.0
      %3693 = vmatprep.subr.mxu0 0.0
      %3694 = vmatpush1.msra.mxu0 0.0
      %3695 = vmatprep.subr.mxu0 0.0
      %3696 = vmatpush1.msra.mxu0 0.0
      %3697 = vmatprep.subr.mxu0 0.0
      %3698 = vmatpush1.msra.mxu0 0.0
      %3699 = vmatprep.subr.mxu0 0.0
      %3700 = vmatpush1.msra.mxu0 0.0
      %3701 = vmatprep.subr.mxu0 0.0
      %3702 = vmatpush1.msra.mxu0 0.0
      %3703 = vmatprep.subr.mxu0 0.0
      %3704 = vmatpush1.msra.mxu0 0.0
      %3705 = vmatprep.subr.mxu0 0.0
      %3706 = vmatpush1.msra.mxu0 0.0
      %3707 = vmatprep.subr.mxu0 0.0
      %3708 = vmatpush1.msra.mxu0 0.0
      %3709 = vmatprep.subr.mxu0 0.0
      %3710 = vmatpush1.msra.mxu0 0.0
      %3711 = vmatprep.subr.mxu0 0.0
      %3712 = vmatpush1.msra.mxu0 0.0
      %3713 = vmatprep.subr.mxu0 0.0
      %3714 = vmatpush1.msra.mxu0 0.0
      %3715 = vmatprep.subr.mxu0 0.0
      %3716 = vmatpush1.msra.mxu0 0.0
      %3717 = vmatprep.subr.mxu0 0.0
      %3718 = vmatpush1.msra.mxu0 0.0
      %3719 = vmatprep.subr.mxu0 0.0
      %3720 = vmatpush1.msra.mxu0 0.0
      %3721 = vmatprep.subr.mxu0 0.0
      %3722 = vmatpush1.msra.mxu0 0.0
      %3723 = vmatprep.subr.mxu0 0.0
      %3724 = vmatpush1.msra.mxu0 0.0
      %3725 = vmatprep.subr.mxu0 0.0
      %3726 = vmatpush1.msra.mxu0 0.0
      %3727 = vmatprep.subr.mxu0 0.0
      %3728 = vmatpush1.msra.mxu0 0.0
      %3729 = vmatprep.subr.mxu0 0.0
      %3730 = vmatpush1.msra.mxu0 0.0
      %3731 = vmatprep.mubr.f32.mxu0 0.0
      %3732 = vmatmul.mubr.f32.gmra.mrb[0].mxu0 %v3665
      %v3733 = vpop.f32.mrb[0].mxu0
      %v3734 = vadd.f32 0.0, %v3733
      %v3735 = vpop.f32.mrb[0].mxu0
      %3736 = vdwg.mxu0
      %v3737 = vadd.f32 %v3536, %v3734
      %s3738 = scalar_lea.vmem %s20, 1
      %v3739 = vld [vmem:[%s3738] sm:$0x1]
      %v3741 = vlaneseq
      %v3742 = vshrl.u32 %v3741, 7
      %v3743 = vsub.s32 0, %v3742
      %v3744 = vrot.slane %v3739, %v3743
      %v3746 = vadd.f32 %v3737, %v3744
      %v3747 = vadd.f32 %v2283, %v3746
      %s3748 = scalar_lea.vmem %s5, 2
      %v3749 = vld [vmem:[%s3748] sm:$0x1]
      %s3750 = scalar_lea.vmem %s6, 2
      %v3751 = vld [vmem:[%s3750] sm:$0x1]
      %v3752 = vsel %vm827, %v3746, 0.0
      %3753 = vadd.xlane.f32.xlu0 %v3752
      %v3754 = vpop.xlane.xlu0 %3753
      %v3755 = vmul.f32 %v3754, %v831
      %v3756 = vsub.f32 %v3746, %v3755
      %v3757 = vmul.f32 %v3756, %v3756
      %v3758 = vsel %vm827, %v3757, 0.0
      %3759 = vadd.xlane.f32.xlu0 %v3758
      %v3760 = vpop.xlane.xlu0 %3759
      %v3761 = vmul.f32 %v3760, %v831
      %v3762 = vadd.f32 %v3761, 1e-05
      %v3763 = vrsqrt.pop %v3762
      %v3764 = vmul.f32 %v3756, %v3763
      %v3766 = vlaneseq
      %v3767 = vshrl.u32 %v3766, 7
      %v3768 = vsub.s32 0, %v3767
      %v3769 = vrot.slane %v3749, %v3768
      %v3771 = vmul.f32 %v3764, %v3769
      %v3773 = vlaneseq
      %v3774 = vshrl.u32 %v3773, 7
      %v3775 = vsub.s32 0, %v3774
      %v3776 = vrot.slane %v3751, %v3775
      %v3778 = vadd.f32 %v3771, %v3776
      %s3779 = scalar_lea.vmem %s7, 64
      %v3780 = vld [vmem:[%s3779] sm:$0xff]
      %v3781 = vld [vmem:[%s3779 + $0x8] sm:$0xff]
      %v3782 = vld [vmem:[%s3779 + $0x10] sm:$0xff]
      %v3783 = vld [vmem:[%s3779 + $0x18] sm:$0xff]
      %s3784 = scalar_lea.vmem %s8, 2
      %v3785 = vld [vmem:[%s3784] sm:$0x1]
      %v3787 = vlaneseq
      %v3788 = vshrl.u32 %v3787, 7
      %v3789 = vsub.s32 0, %v3788
      %v3790 = vrot.slane %v3785, %v3789
      %v3793 = vsel %vm827, %v3778, 0
      %3795 = vmatprep.subr.mxu0 0.0
      %3796 = vmatpush1.msra.mxu0 %v3780
      %3797 = vmatprep.subr.mxu0 0.0
      %3798 = vmatpush1.msra.mxu0 %v3781
      %3799 = vmatprep.subr.mxu0 0.0
      %3800 = vmatpush1.msra.mxu0 %v3782
      %3801 = vmatprep.subr.mxu0 0.0
      %3802 = vmatpush1.msra.mxu0 %v3783
      %3803 = vmatprep.subr.mxu0 0.0
      %3804 = vmatpush1.msra.mxu0 0.0
      %3805 = vmatprep.subr.mxu0 0.0
      %3806 = vmatpush1.msra.mxu0 0.0
      %3807 = vmatprep.subr.mxu0 0.0
      %3808 = vmatpush1.msra.mxu0 0.0
      %3809 = vmatprep.subr.mxu0 0.0
      %3810 = vmatpush1.msra.mxu0 0.0
      %3811 = vmatprep.subr.mxu0 0.0
      %3812 = vmatpush1.msra.mxu0 0.0
      %3813 = vmatprep.subr.mxu0 0.0
      %3814 = vmatpush1.msra.mxu0 0.0
      %3815 = vmatprep.subr.mxu0 0.0
      %3816 = vmatpush1.msra.mxu0 0.0
      %3817 = vmatprep.subr.mxu0 0.0
      %3818 = vmatpush1.msra.mxu0 0.0
      %3819 = vmatprep.subr.mxu0 0.0
      %3820 = vmatpush1.msra.mxu0 0.0
      %3821 = vmatprep.subr.mxu0 0.0
      %3822 = vmatpush1.msra.mxu0 0.0
      %3823 = vmatprep.subr.mxu0 0.0
      %3824 = vmatpush1.msra.mxu0 0.0
      %3825 = vmatprep.subr.mxu0 0.0
      %3826 = vmatpush1.msra.mxu0 0.0
      %3827 = vmatprep.subr.mxu0 0.0
      %3828 = vmatpush1.msra.mxu0 0.0
      %3829 = vmatprep.subr.mxu0 0.0
      %3830 = vmatpush1.msra.mxu0 0.0
      %3831 = vmatprep.subr.mxu0 0.0
      %3832 = vmatpush1.msra.mxu0 0.0
      %3833 = vmatprep.subr.mxu0 0.0
      %3834 = vmatpush1.msra.mxu0 0.0
      %3835 = vmatprep.subr.mxu0 0.0
      %3836 = vmatpush1.msra.mxu0 0.0
      %3837 = vmatprep.subr.mxu0 0.0
      %3838 = vmatpush1.msra.mxu0 0.0
      %3839 = vmatprep.subr.mxu0 0.0
      %3840 = vmatpush1.msra.mxu0 0.0
      %3841 = vmatprep.subr.mxu0 0.0
      %3842 = vmatpush1.msra.mxu0 0.0
      %3843 = vmatprep.subr.mxu0 0.0
      %3844 = vmatpush1.msra.mxu0 0.0
      %3845 = vmatprep.subr.mxu0 0.0
      %3846 = vmatpush1.msra.mxu0 0.0
      %3847 = vmatprep.subr.mxu0 0.0
      %3848 = vmatpush1.msra.mxu0 0.0
      %3849 = vmatprep.subr.mxu0 0.0
      %3850 = vmatpush1.msra.mxu0 0.0
      %3851 = vmatprep.subr.mxu0 0.0
      %3852 = vmatpush1.msra.mxu0 0.0
      %3853 = vmatprep.subr.mxu0 0.0
      %3854 = vmatpush1.msra.mxu0 0.0
      %3855 = vmatprep.subr.mxu0 0.0
      %3856 = vmatpush1.msra.mxu0 0.0
      %3857 = vmatprep.subr.mxu0 0.0
      %3858 = vmatpush1.msra.mxu0 0.0
      %3859 = vmatprep.mubr.f32.mxu0 0.0
      %3860 = vmatmul.mubr.f32.gmra.mrb[0].mxu0 %v3793
      %v3861 = vpop.f32.mrb[0].mxu0
      %v3862 = vadd.f32 %v3790, %v3861
      %v3863 = vpop.f32.mrb[0].mxu0
      %3864 = vdwg.mxu0
      %v3865 = vmul.f32 %v3862, 0.35355338
      %s3866 = scalar_lea.vmem %s9, 64
      %v3867 = vld [vmem:[%s3866] sm:$0xff]
      %v3868 = vld [vmem:[%s3866 + $0x8] sm:$0xff]
      %v3869 = vld [vmem:[%s3866 + $0x10] sm:$0xff]
      %v3870 = vld [vmem:[%s3866 + $0x18] sm:$0xff]
      %s3871 = scalar_lea.vmem %s10, 2
      %v3872 = vld [vmem:[%s3871] sm:$0x1]
      %v3874 = vlaneseq
      %v3875 = vshrl.u32 %v3874, 7
      %v3876 = vsub.s32 0, %v3875
      %v3877 = vrot.slane %v3872, %v3876
      %3879 = vmatprep.subr.mxu0 0.0
      %3880 = vmatpush1.msra.mxu0 %v3867
      %3881 = vmatprep.subr.mxu0 0.0
      %3882 = vmatpush1.msra.mxu0 %v3868
      %3883 = vmatprep.subr.mxu0 0.0
      %3884 = vmatpush1.msra.mxu0 %v3869
      %3885 = vmatprep.subr.mxu0 0.0
      %3886 = vmatpush1.msra.mxu0 %v3870
      %3887 = vmatprep.subr.mxu0 0.0
      %3888 = vmatpush1.msra.mxu0 0.0
      %3889 = vmatprep.subr.mxu0 0.0
      %3890 = vmatpush1.msra.mxu0 0.0
      %3891 = vmatprep.subr.mxu0 0.0
      %3892 = vmatpush1.msra.mxu0 0.0
      %3893 = vmatprep.subr.mxu0 0.0
      %3894 = vmatpush1.msra.mxu0 0.0
      %3895 = vmatprep.subr.mxu0 0.0
      %3896 = vmatpush1.msra.mxu0 0.0
      %3897 = vmatprep.subr.mxu0 0.0
      %3898 = vmatpush1.msra.mxu0 0.0
      %3899 = vmatprep.subr.mxu0 0.0
      %3900 = vmatpush1.msra.mxu0 0.0
      %3901 = vmatprep.subr.mxu0 0.0
      %3902 = vmatpush1.msra.mxu0 0.0
      %3903 = vmatprep.subr.mxu0 0.0
      %3904 = vmatpush1.msra.mxu0 0.0
      %3905 = vmatprep.subr.mxu0 0.0
      %3906 = vmatpush1.msra.mxu0 0.0
      %3907 = vmatprep.subr.mxu0 0.0
      %3908 = vmatpush1.msra.mxu0 0.0
      %3909 = vmatprep.subr.mxu0 0.0
      %3910 = vmatpush1.msra.mxu0 0.0
      %3911 = vmatprep.subr.mxu0 0.0
      %3912 = vmatpush1.msra.mxu0 0.0
      %3913 = vmatprep.subr.mxu0 0.0
      %3914 = vmatpush1.msra.mxu0 0.0
      %3915 = vmatprep.subr.mxu0 0.0
      %3916 = vmatpush1.msra.mxu0 0.0
      %3917 = vmatprep.subr.mxu0 0.0
      %3918 = vmatpush1.msra.mxu0 0.0
      %3919 = vmatprep.subr.mxu0 0.0
      %3920 = vmatpush1.msra.mxu0 0.0
      %3921 = vmatprep.subr.mxu0 0.0
      %3922 = vmatpush1.msra.mxu0 0.0
      %3923 = vmatprep.subr.mxu0 0.0
      %3924 = vmatpush1.msra.mxu0 0.0
      %3925 = vmatprep.subr.mxu0 0.0
      %3926 = vmatpush1.msra.mxu0 0.0
      %3927 = vmatprep.subr.mxu0 0.0
      %3928 = vmatpush1.msra.mxu0 0.0
      %3929 = vmatprep.subr.mxu0 0.0
      %3930 = vmatpush1.msra.mxu0 0.0
      %3931 = vmatprep.subr.mxu0 0.0
      %3932 = vmatpush1.msra.mxu0 0.0
      %3933 = vmatprep.subr.mxu0 0.0
      %3934 = vmatpush1.msra.mxu0 0.0
      %3935 = vmatprep.subr.mxu0 0.0
      %3936 = vmatpush1.msra.mxu0 0.0
      %3937 = vmatprep.subr.mxu0 0.0
      %3938 = vmatpush1.msra.mxu0 0.0
      %3939 = vmatprep.subr.mxu0 0.0
      %3940 = vmatpush1.msra.mxu0 0.0
      %3941 = vmatprep.subr.mxu0 0.0
      %3942 = vmatpush1.msra.mxu0 0.0
      %3943 = vmatprep.mubr.f32.mxu0 0.0
      %3944 = vmatmul.mubr.f32.gmra.mrb[0].mxu0 %v3793
      %v3945 = vpop.f32.mrb[0].mxu0
      %v3946 = vadd.f32 %v3877, %v3945
      %v3947 = vpop.f32.mrb[0].mxu0
      %3948 = vdwg.mxu0
      %s3949 = scalar_lea.vmem %s11, 64
      %v3950 = vld [vmem:[%s3949] sm:$0xff]
      %v3951 = vld [vmem:[%s3949 + $0x8] sm:$0xff]
      %v3952 = vld [vmem:[%s3949 + $0x10] sm:$0xff]
      %v3953 = vld [vmem:[%s3949 + $0x18] sm:$0xff]
      %s3954 = scalar_lea.vmem %s12, 2
      %v3955 = vld [vmem:[%s3954] sm:$0x1]
      %v3957 = vlaneseq
      %v3958 = vshrl.u32 %v3957, 7
      %v3959 = vsub.s32 0, %v3958
      %v3960 = vrot.slane %v3955, %v3959
      %3962 = vmatprep.subr.mxu0 0.0
      %3963 = vmatpush1.msra.mxu0 %v3950
      %3964 = vmatprep.subr.mxu0 0.0
      %3965 = vmatpush1.msra.mxu0 %v3951
      %3966 = vmatprep.subr.mxu0 0.0
      %3967 = vmatpush1.msra.mxu0 %v3952
      %3968 = vmatprep.subr.mxu0 0.0
      %3969 = vmatpush1.msra.mxu0 %v3953
      %3970 = vmatprep.subr.mxu0 0.0
      %3971 = vmatpush1.msra.mxu0 0.0
      %3972 = vmatprep.subr.mxu0 0.0
      %3973 = vmatpush1.msra.mxu0 0.0
      %3974 = vmatprep.subr.mxu0 0.0
      %3975 = vmatpush1.msra.mxu0 0.0
      %3976 = vmatprep.subr.mxu0 0.0
      %3977 = vmatpush1.msra.mxu0 0.0
      %3978 = vmatprep.subr.mxu0 0.0
      %3979 = vmatpush1.msra.mxu0 0.0
      %3980 = vmatprep.subr.mxu0 0.0
      %3981 = vmatpush1.msra.mxu0 0.0
      %3982 = vmatprep.subr.mxu0 0.0
      %3983 = vmatpush1.msra.mxu0 0.0
      %3984 = vmatprep.subr.mxu0 0.0
      %3985 = vmatpush1.msra.mxu0 0.0
      %3986 = vmatprep.subr.mxu0 0.0
      %3987 = vmatpush1.msra.mxu0 0.0
      %3988 = vmatprep.subr.mxu0 0.0
      %3989 = vmatpush1.msra.mxu0 0.0
      %3990 = vmatprep.subr.mxu0 0.0
      %3991 = vmatpush1.msra.mxu0 0.0
      %3992 = vmatprep.subr.mxu0 0.0
      %3993 = vmatpush1.msra.mxu0 0.0
      %3994 = vmatprep.subr.mxu0 0.0
      %3995 = vmatpush1.msra.mxu0 0.0
      %3996 = vmatprep.subr.mxu0 0.0
      %3997 = vmatpush1.msra.mxu0 0.0
      %3998 = vmatprep.subr.mxu0 0.0
      %3999 = vmatpush1.msra.mxu0 0.0
      %4000 = vmatprep.subr.mxu0 0.0
      %4001 = vmatpush1.msra.mxu0 0.0
      %4002 = vmatprep.subr.mxu0 0.0
      %4003 = vmatpush1.msra.mxu0 0.0
      %4004 = vmatprep.subr.mxu0 0.0
      %4005 = vmatpush1.msra.mxu0 0.0
      %4006 = vmatprep.subr.mxu0 0.0
      %4007 = vmatpush1.msra.mxu0 0.0
      %4008 = vmatprep.subr.mxu0 0.0
      %4009 = vmatpush1.msra.mxu0 0.0
      %4010 = vmatprep.subr.mxu0 0.0
      %4011 = vmatpush1.msra.mxu0 0.0
      %4012 = vmatprep.subr.mxu0 0.0
      %4013 = vmatpush1.msra.mxu0 0.0
      %4014 = vmatprep.subr.mxu0 0.0
      %4015 = vmatpush1.msra.mxu0 0.0
      %4016 = vmatprep.subr.mxu0 0.0
      %4017 = vmatpush1.msra.mxu0 0.0
      %4018 = vmatprep.subr.mxu0 0.0
      %4019 = vmatpush1.msra.mxu0 0.0
      %4020 = vmatprep.subr.mxu0 0.0
      %4021 = vmatpush1.msra.mxu0 0.0
      %4022 = vmatprep.subr.mxu0 0.0
      %4023 = vmatpush1.msra.mxu0 0.0
      %4024 = vmatprep.subr.mxu0 0.0
      %4025 = vmatpush1.msra.mxu0 0.0
      %4026 = vmatprep.mubr.f32.mxu0 0.0
      %4027 = vmatmul.mubr.f32.gmra.mrb[0].mxu0 %v3793
      %v4028 = vpop.f32.mrb[0].mxu0
      %v4029 = vadd.f32 %v3960, %v4028
      %v4030 = vpop.f32.mrb[0].mxu0
      %4031 = vdwg.mxu0
      %s4032 = scalar_lea.vmem %s13, 64
      %v4033 = vld [vmem:[%s4032] sm:$0xff]
      %v4034 = vld [vmem:[%s4032 + $0x8] sm:$0xff]
      %v4035 = vld [vmem:[%s4032 + $0x10] sm:$0xff]
      %v4036 = vld [vmem:[%s4032 + $0x18] sm:$0xff]
      %v4038 = vsel %vm1107, %v3865, 0
      %v4041 = vsel %vm1107, %v3946, 0
      %4043 = vmatprep.subr.mxu0 0.0
      %4044 = vmatpush1.xpose.msra.mxu0 %v4041
      %4045 = vmatprep.subr.mxu0 0.0
      %4046 = vmatpush1.xpose.msra.mxu0 0.0
      %4047 = vmatprep.subr.mxu0 0.0
      %4048 = vmatpush1.xpose.msra.mxu0 0.0
      %4049 = vmatprep.subr.mxu0 0.0
      %4050 = vmatpush1.xpose.msra.mxu0 0.0
      %4051 = vmatprep.subr.mxu0 0.0
      %4052 = vmatpush1.xpose.msra.mxu0 0.0
      %4053 = vmatprep.subr.mxu0 0.0
      %4054 = vmatpush1.xpose.msra.mxu0 0.0
      %4055 = vmatprep.subr.mxu0 0.0
      %4056 = vmatpush1.xpose.msra.mxu0 0.0
      %4057 = vmatprep.subr.mxu0 0.0
      %4058 = vmatpush1.xpose.msra.mxu0 0.0
      %4059 = vmatprep.subr.mxu0 0.0
      %4060 = vmatpush1.xpose.msra.mxu0 0.0
      %4061 = vmatprep.subr.mxu0 0.0
      %4062 = vmatpush1.xpose.msra.mxu0 0.0
      %4063 = vmatprep.subr.mxu0 0.0
      %4064 = vmatpush1.xpose.msra.mxu0 0.0
      %4065 = vmatprep.subr.mxu0 0.0
      %4066 = vmatpush1.xpose.msra.mxu0 0.0
      %4067 = vmatprep.subr.mxu0 0.0
      %4068 = vmatpush1.xpose.msra.mxu0 0.0
      %4069 = vmatprep.subr.mxu0 0.0
      %4070 = vmatpush1.xpose.msra.mxu0 0.0
      %4071 = vmatprep.subr.mxu0 0.0
      %4072 = vmatpush1.xpose.msra.mxu0 0.0
      %4073 = vmatprep.subr.mxu0 0.0
      %4074 = vmatpush1.xpose.msra.mxu0 0.0
      %4075 = vmatprep.subr.mxu0 0.0
      %4076 = vmatpush1.xpose.msra.mxu0 0.0
      %4077 = vmatprep.subr.mxu0 0.0
      %4078 = vmatpush1.xpose.msra.mxu0 0.0
      %4079 = vmatprep.subr.mxu0 0.0
      %4080 = vmatpush1.xpose.msra.mxu0 0.0
      %4081 = vmatprep.subr.mxu0 0.0
      %4082 = vmatpush1.xpose.msra.mxu0 0.0
      %4083 = vmatprep.subr.mxu0 0.0
      %4084 = vmatpush1.xpose.msra.mxu0 0.0
      %4085 = vmatprep.subr.mxu0 0.0
      %4086 = vmatpush1.xpose.msra.mxu0 0.0
      %4087 = vmatprep.subr.mxu0 0.0
      %4088 = vmatpush1.xpose.msra.mxu0 0.0
      %4089 = vmatprep.subr.mxu0 0.0
      %4090 = vmatpush1.xpose.msra.mxu0 0.0
      %4091 = vmatprep.subr.mxu0 0.0
      %4092 = vmatpush1.xpose.msra.mxu0 0.0
      %4093 = vmatprep.subr.mxu0 0.0
      %4094 = vmatpush1.xpose.msra.mxu0 0.0
      %4095 = vmatprep.subr.mxu0 0.0
      %4096 = vmatpush1.xpose.msra.mxu0 0.0
      %4097 = vmatprep.subr.mxu0 0.0
      %4098 = vmatpush1.xpose.msra.mxu0 0.0
      %4099 = vmatprep.subr.mxu0 0.0
      %4100 = vmatpush1.xpose.msra.mxu0 0.0
      %4101 = vmatprep.subr.mxu0 0.0
      %4102 = vmatpush1.xpose.msra.mxu0 0.0
      %4103 = vmatprep.subr.mxu0 0.0
      %4104 = vmatpush1.xpose.msra.mxu0 0.0
      %4105 = vmatprep.subr.mxu0 0.0
      %4106 = vmatpush1.xpose.msra.mxu0 0.0
      %4107 = vmatprep.mubr.f32.mxu0 0.0
      %4108 = vmatmul.mubr.f32.gmra.mrb[0].mxu0 %v4038
      %v4109 = vpop.f32.mrb[0].mxu0
      %v4110 = vadd.f32 0.0, %v4109
      %v4111 = vpop.f32.mrb[0].mxu0
      %4112 = vdwg.mxu0
      %v4113 = vsel %vm1190, -1e+30, %v4110
      %v4114 = vsel %vm1107, %v4113, -inf
      %4115 = vmax.xlane.f32.xlu0 %v4114
      %v4116 = vpop.xlane.xlu0 %4115
      %v4117 = vsub.f32 %v4113, %v4116
      %v4118 = vmul.f32 %v4117, 1.442695
      %v4119 = vpow.pop %v4118
      %v4120 = vsel %vm1107, %v4119, 0.0
      %4121 = vadd.xlane.f32.xlu0 %v4120
      %v4122 = vpop.xlane.xlu0 %4121
      %v4123 = vrcp.pop %v4122
      %v4124 = vmul.f32 %v4119, %v4123
      %v4126 = vsel %vm1107, %v4124, 0
      %4128 = vmatprep.subr.mxu0 0.0
      %4129 = vmatpush1.msra.mxu0 %v4029
      %4130 = vmatprep.subr.mxu0 0.0
      %4131 = vmatpush1.msra.mxu0 0.0
      %4132 = vmatprep.subr.mxu0 0.0
      %4133 = vmatpush1.msra.mxu0 0.0
      %4134 = vmatprep.subr.mxu0 0.0
      %4135 = vmatpush1.msra.mxu0 0.0
      %4136 = vmatprep.subr.mxu0 0.0
      %4137 = vmatpush1.msra.mxu0 0.0
      %4138 = vmatprep.subr.mxu0 0.0
      %4139 = vmatpush1.msra.mxu0 0.0
      %4140 = vmatprep.subr.mxu0 0.0
      %4141 = vmatpush1.msra.mxu0 0.0
      %4142 = vmatprep.subr.mxu0 0.0
      %4143 = vmatpush1.msra.mxu0 0.0
      %4144 = vmatprep.subr.mxu0 0.0
      %4145 = vmatpush1.msra.mxu0 0.0
      %4146 = vmatprep.subr.mxu0 0.0
      %4147 = vmatpush1.msra.mxu0 0.0
      %4148 = vmatprep.subr.mxu0 0.0
      %4149 = vmatpush1.msra.mxu0 0.0
      %4150 = vmatprep.subr.mxu0 0.0
      %4151 = vmatpush1.msra.mxu0 0.0
      %4152 = vmatprep.subr.mxu0 0.0
      %4153 = vmatpush1.msra.mxu0 0.0
      %4154 = vmatprep.subr.mxu0 0.0
      %4155 = vmatpush1.msra.mxu0 0.0
      %4156 = vmatprep.subr.mxu0 0.0
      %4157 = vmatpush1.msra.mxu0 0.0
      %4158 = vmatprep.subr.mxu0 0.0
      %4159 = vmatpush1.msra.mxu0 0.0
      %4160 = vmatprep.subr.mxu0 0.0
      %4161 = vmatpush1.msra.mxu0 0.0
      %4162 = vmatprep.subr.mxu0 0.0
      %4163 = vmatpush1.msra.mxu0 0.0
      %4164 = vmatprep.subr.mxu0 0.0
      %4165 = vmatpush1.msra.mxu0 0.0
      %4166 = vmatprep.subr.mxu0 0.0
      %4167 = vmatpush1.msra.mxu0 0.0
      %4168 = vmatprep.subr.mxu0 0.0
      %4169 = vmatpush1.msra.mxu0 0.0
      %4170 = vmatprep.subr.mxu0 0.0
      %4171 = vmatpush1.msra.mxu0 0.0
      %4172 = vmatprep.subr.mxu0 0.0
      %4173 = vmatpush1.msra.mxu0 0.0
      %4174 = vmatprep.subr.mxu0 0.0
      %4175 = vmatpush1.msra.mxu0 0.0
      %4176 = vmatprep.subr.mxu0 0.0
      %4177 = vmatpush1.msra.mxu0 0.0
      %4178 = vmatprep.subr.mxu0 0.0
      %4179 = vmatpush1.msra.mxu0 0.0
      %4180 = vmatprep.subr.mxu0 0.0
      %4181 = vmatpush1.msra.mxu0 0.0
      %4182 = vmatprep.subr.mxu0 0.0
      %4183 = vmatpush1.msra.mxu0 0.0
      %4184 = vmatprep.subr.mxu0 0.0
      %4185 = vmatpush1.msra.mxu0 0.0
      %4186 = vmatprep.subr.mxu0 0.0
      %4187 = vmatpush1.msra.mxu0 0.0
      %4188 = vmatprep.subr.mxu0 0.0
      %4189 = vmatpush1.msra.mxu0 0.0
      %4190 = vmatprep.subr.mxu0 0.0
      %4191 = vmatpush1.msra.mxu0 0.0
      %4192 = vmatprep.mubr.f32.mxu0 0.0
      %4193 = vmatmul.mubr.f32.gmra.mrb[0].mxu0 %v4126
      %v4194 = vpop.f32.mrb[0].mxu0
      %v4195 = vadd.f32 0.0, %v4194
      %v4196 = vpop.f32.mrb[0].mxu0
      %4197 = vdwg.mxu0
      %4198 = vrot.lane.b32.xlu0 %v3865, 120
      %v4199 = vpop.permute.xlu0 %4198
      %4200 = vrot.lane.b32.xlu0 %v3946, 120
      %v4201 = vpop.permute.xlu0 %4200
      %v4202 = vsel %vm1107, %v4199, 0
      %v4204 = vsel %vm1107, %v4201, 0
      %4206 = vmatprep.subr.mxu0 0.0
      %4207 = vmatpush1.xpose.msra.mxu0 %v4204
      %4208 = vmatprep.subr.mxu0 0.0
      %4209 = vmatpush1.xpose.msra.mxu0 0.0
      %4210 = vmatprep.subr.mxu0 0.0
      %4211 = vmatpush1.xpose.msra.mxu0 0.0
      %4212 = vmatprep.subr.mxu0 0.0
      %4213 = vmatpush1.xpose.msra.mxu0 0.0
      %4214 = vmatprep.subr.mxu0 0.0
      %4215 = vmatpush1.xpose.msra.mxu0 0.0
      %4216 = vmatprep.subr.mxu0 0.0
      %4217 = vmatpush1.xpose.msra.mxu0 0.0
      %4218 = vmatprep.subr.mxu0 0.0
      %4219 = vmatpush1.xpose.msra.mxu0 0.0
      %4220 = vmatprep.subr.mxu0 0.0
      %4221 = vmatpush1.xpose.msra.mxu0 0.0
      %4222 = vmatprep.subr.mxu0 0.0
      %4223 = vmatpush1.xpose.msra.mxu0 0.0
      %4224 = vmatprep.subr.mxu0 0.0
      %4225 = vmatpush1.xpose.msra.mxu0 0.0
      %4226 = vmatprep.subr.mxu0 0.0
      %4227 = vmatpush1.xpose.msra.mxu0 0.0
      %4228 = vmatprep.subr.mxu0 0.0
      %4229 = vmatpush1.xpose.msra.mxu0 0.0
      %4230 = vmatprep.subr.mxu0 0.0
      %4231 = vmatpush1.xpose.msra.mxu0 0.0
      %4232 = vmatprep.subr.mxu0 0.0
      %4233 = vmatpush1.xpose.msra.mxu0 0.0
      %4234 = vmatprep.subr.mxu0 0.0
      %4235 = vmatpush1.xpose.msra.mxu0 0.0
      %4236 = vmatprep.subr.mxu0 0.0
      %4237 = vmatpush1.xpose.msra.mxu0 0.0
      %4238 = vmatprep.subr.mxu0 0.0
      %4239 = vmatpush1.xpose.msra.mxu0 0.0
      %4240 = vmatprep.subr.mxu0 0.0
      %4241 = vmatpush1.xpose.msra.mxu0 0.0
      %4242 = vmatprep.subr.mxu0 0.0
      %4243 = vmatpush1.xpose.msra.mxu0 0.0
      %4244 = vmatprep.subr.mxu0 0.0
      %4245 = vmatpush1.xpose.msra.mxu0 0.0
      %4246 = vmatprep.subr.mxu0 0.0
      %4247 = vmatpush1.xpose.msra.mxu0 0.0
      %4248 = vmatprep.subr.mxu0 0.0
      %4249 = vmatpush1.xpose.msra.mxu0 0.0
      %4250 = vmatprep.subr.mxu0 0.0
      %4251 = vmatpush1.xpose.msra.mxu0 0.0
      %4252 = vmatprep.subr.mxu0 0.0
      %4253 = vmatpush1.xpose.msra.mxu0 0.0
      %4254 = vmatprep.subr.mxu0 0.0
      %4255 = vmatpush1.xpose.msra.mxu0 0.0
      %4256 = vmatprep.subr.mxu0 0.0
      %4257 = vmatpush1.xpose.msra.mxu0 0.0
      %4258 = vmatprep.subr.mxu0 0.0
      %4259 = vmatpush1.xpose.msra.mxu0 0.0
      %4260 = vmatprep.subr.mxu0 0.0
      %4261 = vmatpush1.xpose.msra.mxu0 0.0
      %4262 = vmatprep.subr.mxu0 0.0
      %4263 = vmatpush1.xpose.msra.mxu0 0.0
      %4264 = vmatprep.subr.mxu0 0.0
      %4265 = vmatpush1.xpose.msra.mxu0 0.0
      %4266 = vmatprep.subr.mxu0 0.0
      %4267 = vmatpush1.xpose.msra.mxu0 0.0
      %4268 = vmatprep.subr.mxu0 0.0
      %4269 = vmatpush1.xpose.msra.mxu0 0.0
      %4270 = vmatprep.mubr.f32.mxu0 0.0
      %4271 = vmatmul.mubr.f32.gmra.mrb[0].mxu0 %v4202
      %v4272 = vpop.f32.mrb[0].mxu0
      %v4273 = vadd.f32 0.0, %v4272
      %v4274 = vpop.f32.mrb[0].mxu0
      %4275 = vdwg.mxu0
      %v4276 = vsel %vm1190, -1e+30, %v4273
      %v4277 = vsel %vm1107, %v4276, -inf
      %4278 = vmax.xlane.f32.xlu0 %v4277
      %v4279 = vpop.xlane.xlu0 %4278
      %v4280 = vsub.f32 %v4276, %v4279
      %v4281 = vmul.f32 %v4280, 1.442695
      %v4282 = vpow.pop %v4281
      %v4283 = vsel %vm1107, %v4282, 0.0
      %4284 = vadd.xlane.f32.xlu0 %v4283
      %v4285 = vpop.xlane.xlu0 %4284
      %v4286 = vrcp.pop %v4285
      %v4287 = vmul.f32 %v4282, %v4286
      %4289 = vrot.lane.b32.xlu0 %v4029, 120
      %v4290 = vpop.permute.xlu0 %4289
      %v4293 = vsel %vm1107, %v4287, 0
      %4295 = vmatprep.subr.mxu0 0.0
      %4296 = vmatpush1.msra.mxu0 %v4290
      %4297 = vmatprep.subr.mxu0 0.0
      %4298 = vmatpush1.msra.mxu0 0.0
      %4299 = vmatprep.subr.mxu0 0.0
      %4300 = vmatpush1.msra.mxu0 0.0
      %4301 = vmatprep.subr.mxu0 0.0
      %4302 = vmatpush1.msra.mxu0 0.0
      %4303 = vmatprep.subr.mxu0 0.0
      %4304 = vmatpush1.msra.mxu0 0.0
      %4305 = vmatprep.subr.mxu0 0.0
      %4306 = vmatpush1.msra.mxu0 0.0
      %4307 = vmatprep.subr.mxu0 0.0
      %4308 = vmatpush1.msra.mxu0 0.0
      %4309 = vmatprep.subr.mxu0 0.0
      %4310 = vmatpush1.msra.mxu0 0.0
      %4311 = vmatprep.subr.mxu0 0.0
      %4312 = vmatpush1.msra.mxu0 0.0
      %4313 = vmatprep.subr.mxu0 0.0
      %4314 = vmatpush1.msra.mxu0 0.0
      %4315 = vmatprep.subr.mxu0 0.0
      %4316 = vmatpush1.msra.mxu0 0.0
      %4317 = vmatprep.subr.mxu0 0.0
      %4318 = vmatpush1.msra.mxu0 0.0
      %4319 = vmatprep.subr.mxu0 0.0
      %4320 = vmatpush1.msra.mxu0 0.0
      %4321 = vmatprep.subr.mxu0 0.0
      %4322 = vmatpush1.msra.mxu0 0.0
      %4323 = vmatprep.subr.mxu0 0.0
      %4324 = vmatpush1.msra.mxu0 0.0
      %4325 = vmatprep.subr.mxu0 0.0
      %4326 = vmatpush1.msra.mxu0 0.0
      %4327 = vmatprep.subr.mxu0 0.0
      %4328 = vmatpush1.msra.mxu0 0.0
      %4329 = vmatprep.subr.mxu0 0.0
      %4330 = vmatpush1.msra.mxu0 0.0
      %4331 = vmatprep.subr.mxu0 0.0
      %4332 = vmatpush1.msra.mxu0 0.0
      %4333 = vmatprep.subr.mxu0 0.0
      %4334 = vmatpush1.msra.mxu0 0.0
      %4335 = vmatprep.subr.mxu0 0.0
      %4336 = vmatpush1.msra.mxu0 0.0
      %4337 = vmatprep.subr.mxu0 0.0
      %4338 = vmatpush1.msra.mxu0 0.0
      %4339 = vmatprep.subr.mxu0 0.0
      %4340 = vmatpush1.msra.mxu0 0.0
      %4341 = vmatprep.subr.mxu0 0.0
      %4342 = vmatpush1.msra.mxu0 0.0
      %4343 = vmatprep.subr.mxu0 0.0
      %4344 = vmatpush1.msra.mxu0 0.0
      %4345 = vmatprep.subr.mxu0 0.0
      %4346 = vmatpush1.msra.mxu0 0.0
      %4347 = vmatprep.subr.mxu0 0.0
      %4348 = vmatpush1.msra.mxu0 0.0
      %4349 = vmatprep.subr.mxu0 0.0
      %4350 = vmatpush1.msra.mxu0 0.0
      %4351 = vmatprep.subr.mxu0 0.0
      %4352 = vmatpush1.msra.mxu0 0.0
      %4353 = vmatprep.subr.mxu0 0.0
      %4354 = vmatpush1.msra.mxu0 0.0
      %4355 = vmatprep.subr.mxu0 0.0
      %4356 = vmatpush1.msra.mxu0 0.0
      %4357 = vmatprep.subr.mxu0 0.0
      %4358 = vmatpush1.msra.mxu0 0.0
      %4359 = vmatprep.mubr.f32.mxu0 0.0
      %4360 = vmatmul.mubr.f32.gmra.mrb[0].mxu0 %v4293
      %v4361 = vpop.f32.mrb[0].mxu0
      %v4362 = vadd.f32 0.0, %v4361
      %v4363 = vpop.f32.mrb[0].mxu0
      %4364 = vdwg.mxu0
      %v4366 = vsel %vm1107, %v4362, 0
      %4368 = vmatprep.subr.mxu0 0.0
      %4369 = vmatpush1.msra.mxu0 %v4034
      %4370 = vmatprep.subr.mxu0 0.0
      %4371 = vmatpush1.msra.mxu0 0.0
      %4372 = vmatprep.subr.mxu0 0.0
      %4373 = vmatpush1.msra.mxu0 0.0
      %4374 = vmatprep.subr.mxu0 0.0
      %4375 = vmatpush1.msra.mxu0 0.0
      %4376 = vmatprep.subr.mxu0 0.0
      %4377 = vmatpush1.msra.mxu0 0.0
      %4378 = vmatprep.subr.mxu0 0.0
      %4379 = vmatpush1.msra.mxu0 0.0
      %4380 = vmatprep.subr.mxu0 0.0
      %4381 = vmatpush1.msra.mxu0 0.0
      %4382 = vmatprep.subr.mxu0 0.0
      %4383 = vmatpush1.msra.mxu0 0.0
      %4384 = vmatprep.subr.mxu0 0.0
      %4385 = vmatpush1.msra.mxu0 0.0
      %4386 = vmatprep.subr.mxu0 0.0
      %4387 = vmatpush1.msra.mxu0 0.0
      %4388 = vmatprep.subr.mxu0 0.0
      %4389 = vmatpush1.msra.mxu0 0.0
      %4390 = vmatprep.subr.mxu0 0.0
      %4391 = vmatpush1.msra.mxu0 0.0
      %4392 = vmatprep.subr.mxu0 0.0
      %4393 = vmatpush1.msra.mxu0 0.0
      %4394 = vmatprep.subr.mxu0 0.0
      %4395 = vmatpush1.msra.mxu0 0.0
      %4396 = vmatprep.subr.mxu0 0.0
      %4397 = vmatpush1.msra.mxu0 0.0
      %4398 = vmatprep.subr.mxu0 0.0
      %4399 = vmatpush1.msra.mxu0 0.0
      %4400 = vmatprep.subr.mxu0 0.0
      %4401 = vmatpush1.msra.mxu0 0.0
      %4402 = vmatprep.subr.mxu0 0.0
      %4403 = vmatpush1.msra.mxu0 0.0
      %4404 = vmatprep.subr.mxu0 0.0
      %4405 = vmatpush1.msra.mxu0 0.0
      %4406 = vmatprep.subr.mxu0 0.0
      %4407 = vmatpush1.msra.mxu0 0.0
      %4408 = vmatprep.subr.mxu0 0.0
      %4409 = vmatpush1.msra.mxu0 0.0
      %4410 = vmatprep.subr.mxu0 0.0
      %4411 = vmatpush1.msra.mxu0 0.0
      %4412 = vmatprep.subr.mxu0 0.0
      %4413 = vmatpush1.msra.mxu0 0.0
      %4414 = vmatprep.subr.mxu0 0.0
      %4415 = vmatpush1.msra.mxu0 0.0
      %4416 = vmatprep.subr.mxu0 0.0
      %4417 = vmatpush1.msra.mxu0 0.0
      %4418 = vmatprep.subr.mxu0 0.0
      %4419 = vmatpush1.msra.mxu0 0.0
      %4420 = vmatprep.subr.mxu0 0.0
      %4421 = vmatpush1.msra.mxu0 0.0
      %4422 = vmatprep.subr.mxu0 0.0
      %4423 = vmatpush1.msra.mxu0 0.0
      %4424 = vmatprep.subr.mxu0 0.0
      %4425 = vmatpush1.msra.mxu0 0.0
      %4426 = vmatprep.subr.mxu0 0.0
      %4427 = vmatpush1.msra.mxu0 0.0
      %4428 = vmatprep.subr.mxu0 0.0
      %4429 = vmatpush1.msra.mxu0 0.0
      %4430 = vmatprep.subr.mxu0 0.0
      %4431 = vmatpush1.msra.mxu0 0.0
      %4432 = vmatprep.mubr.f32.mxu0 0.0
      %4433 = vmatmul.mubr.f32.gmra.mrb[0].mxu0 %v4366
      %v4434 = vpop.f32.mrb[0].mxu0
      %v4435 = vadd.f32 0.0, %v4434
      %v4436 = vpop.f32.mrb[0].mxu0
      %4437 = vdwg.mxu0
      %v4439 = vsel %vm1107, %v4195, 0
      %4441 = vmatprep.subr.mxu0 0.0
      %4442 = vmatpush1.msra.mxu0 %v4033
      %4443 = vmatprep.subr.mxu0 0.0
      %4444 = vmatpush1.msra.mxu0 0.0
      %4445 = vmatprep.subr.mxu0 0.0
      %4446 = vmatpush1.msra.mxu0 0.0
      %4447 = vmatprep.subr.mxu0 0.0
      %4448 = vmatpush1.msra.mxu0 0.0
      %4449 = vmatprep.subr.mxu0 0.0
      %4450 = vmatpush1.msra.mxu0 0.0
      %4451 = vmatprep.subr.mxu0 0.0
      %4452 = vmatpush1.msra.mxu0 0.0
      %4453 = vmatprep.subr.mxu0 0.0
      %4454 = vmatpush1.msra.mxu0 0.0
      %4455 = vmatprep.subr.mxu0 0.0
      %4456 = vmatpush1.msra.mxu0 0.0
      %4457 = vmatprep.subr.mxu0 0.0
      %4458 = vmatpush1.msra.mxu0 0.0
      %4459 = vmatprep.subr.mxu0 0.0
      %4460 = vmatpush1.msra.mxu0 0.0
      %4461 = vmatprep.subr.mxu0 0.0
      %4462 = vmatpush1.msra.mxu0 0.0
      %4463 = vmatprep.subr.mxu0 0.0
      %4464 = vmatpush1.msra.mxu0 0.0
      %4465 = vmatprep.subr.mxu0 0.0
      %4466 = vmatpush1.msra.mxu0 0.0
      %4467 = vmatprep.subr.mxu0 0.0
      %4468 = vmatpush1.msra.mxu0 0.0
      %4469 = vmatprep.subr.mxu0 0.0
      %4470 = vmatpush1.msra.mxu0 0.0
      %4471 = vmatprep.subr.mxu0 0.0
      %4472 = vmatpush1.msra.mxu0 0.0
      %4473 = vmatprep.subr.mxu0 0.0
      %4474 = vmatpush1.msra.mxu0 0.0
      %4475 = vmatprep.subr.mxu0 0.0
      %4476 = vmatpush1.msra.mxu0 0.0
      %4477 = vmatprep.subr.mxu0 0.0
      %4478 = vmatpush1.msra.mxu0 0.0
      %4479 = vmatprep.subr.mxu0 0.0
      %4480 = vmatpush1.msra.mxu0 0.0
      %4481 = vmatprep.subr.mxu0 0.0
      %4482 = vmatpush1.msra.mxu0 0.0
      %4483 = vmatprep.subr.mxu0 0.0
      %4484 = vmatpush1.msra.mxu0 0.0
      %4485 = vmatprep.subr.mxu0 0.0
      %4486 = vmatpush1.msra.mxu0 0.0
      %4487 = vmatprep.subr.mxu0 0.0
      %4488 = vmatpush1.msra.mxu0 0.0
      %4489 = vmatprep.subr.mxu0 0.0
      %4490 = vmatpush1.msra.mxu0 0.0
      %4491 = vmatprep.subr.mxu0 0.0
      %4492 = vmatpush1.msra.mxu0 0.0
      %4493 = vmatprep.subr.mxu0 0.0
      %4494 = vmatpush1.msra.mxu0 0.0
      %4495 = vmatprep.subr.mxu0 0.0
      %4496 = vmatpush1.msra.mxu0 0.0
      %4497 = vmatprep.subr.mxu0 0.0
      %4498 = vmatpush1.msra.mxu0 0.0
      %4499 = vmatprep.subr.mxu0 0.0
      %4500 = vmatpush1.msra.mxu0 0.0
      %4501 = vmatprep.subr.mxu0 0.0
      %4502 = vmatpush1.msra.mxu0 0.0
      %4503 = vmatprep.subr.mxu0 0.0
      %4504 = vmatpush1.msra.mxu0 0.0
      %4505 = vmatprep.mubr.f32.mxu0 0.0
      %4506 = vmatmul.mubr.f32.gmra.mrb[0].mxu0 %v4439
      %v4507 = vpop.f32.mrb[0].mxu0
      %v4508 = vadd.f32 %v4435, %v4507
      %v4509 = vpop.f32.mrb[0].mxu0
      %4510 = vdwg.mxu0
      %4511 = vrot.lane.b32.xlu0 %v3865, 112
      %v4512 = vpop.permute.xlu0 %4511
      %4513 = vrot.lane.b32.xlu0 %v3946, 112
      %v4514 = vpop.permute.xlu0 %4513
      %v4515 = vsel %vm1107, %v4512, 0
      %v4517 = vsel %vm1107, %v4514, 0
      %4519 = vmatprep.subr.mxu0 0.0
      %4520 = vmatpush1.xpose.msra.mxu0 %v4517
      %4521 = vmatprep.subr.mxu0 0.0
      %4522 = vmatpush1.xpose.msra.mxu0 0.0
      %4523 = vmatprep.subr.mxu0 0.0
      %4524 = vmatpush1.xpose.msra.mxu0 0.0
      %4525 = vmatprep.subr.mxu0 0.0
      %4526 = vmatpush1.xpose.msra.mxu0 0.0
      %4527 = vmatprep.subr.mxu0 0.0
      %4528 = vmatpush1.xpose.msra.mxu0 0.0
      %4529 = vmatprep.subr.mxu0 0.0
      %4530 = vmatpush1.xpose.msra.mxu0 0.0
      %4531 = vmatprep.subr.mxu0 0.0
      %4532 = vmatpush1.xpose.msra.mxu0 0.0
      %4533 = vmatprep.subr.mxu0 0.0
      %4534 = vmatpush1.xpose.msra.mxu0 0.0
      %4535 = vmatprep.subr.mxu0 0.0
      %4536 = vmatpush1.xpose.msra.mxu0 0.0
      %4537 = vmatprep.subr.mxu0 0.0
      %4538 = vmatpush1.xpose.msra.mxu0 0.0
      %4539 = vmatprep.subr.mxu0 0.0
      %4540 = vmatpush1.xpose.msra.mxu0 0.0
      %4541 = vmatprep.subr.mxu0 0.0
      %4542 = vmatpush1.xpose.msra.mxu0 0.0
      %4543 = vmatprep.subr.mxu0 0.0
      %4544 = vmatpush1.xpose.msra.mxu0 0.0
      %4545 = vmatprep.subr.mxu0 0.0
      %4546 = vmatpush1.xpose.msra.mxu0 0.0
      %4547 = vmatprep.subr.mxu0 0.0
      %4548 = vmatpush1.xpose.msra.mxu0 0.0
      %4549 = vmatprep.subr.mxu0 0.0
      %4550 = vmatpush1.xpose.msra.mxu0 0.0
      %4551 = vmatprep.subr.mxu0 0.0
      %4552 = vmatpush1.xpose.msra.mxu0 0.0
      %4553 = vmatprep.subr.mxu0 0.0
      %4554 = vmatpush1.xpose.msra.mxu0 0.0
      %4555 = vmatprep.subr.mxu0 0.0
      %4556 = vmatpush1.xpose.msra.mxu0 0.0
      %4557 = vmatprep.subr.mxu0 0.0
      %4558 = vmatpush1.xpose.msra.mxu0 0.0
      %4559 = vmatprep.subr.mxu0 0.0
      %4560 = vmatpush1.xpose.msra.mxu0 0.0
      %4561 = vmatprep.subr.mxu0 0.0
      %4562 = vmatpush1.xpose.msra.mxu0 0.0
      %4563 = vmatprep.subr.mxu0 0.0
      %4564 = vmatpush1.xpose.msra.mxu0 0.0
      %4565 = vmatprep.subr.mxu0 0.0
      %4566 = vmatpush1.xpose.msra.mxu0 0.0
      %4567 = vmatprep.subr.mxu0 0.0
      %4568 = vmatpush1.xpose.msra.mxu0 0.0
      %4569 = vmatprep.subr.mxu0 0.0
      %4570 = vmatpush1.xpose.msra.mxu0 0.0
      %4571 = vmatprep.subr.mxu0 0.0
      %4572 = vmatpush1.xpose.msra.mxu0 0.0
      %4573 = vmatprep.subr.mxu0 0.0
      %4574 = vmatpush1.xpose.msra.mxu0 0.0
      %4575 = vmatprep.subr.mxu0 0.0
      %4576 = vmatpush1.xpose.msra.mxu0 0.0
      %4577 = vmatprep.subr.mxu0 0.0
      %4578 = vmatpush1.xpose.msra.mxu0 0.0
      %4579 = vmatprep.subr.mxu0 0.0
      %4580 = vmatpush1.xpose.msra.mxu0 0.0
      %4581 = vmatprep.subr.mxu0 0.0
      %4582 = vmatpush1.xpose.msra.mxu0 0.0
      %4583 = vmatprep.mubr.f32.mxu0 0.0
      %4584 = vmatmul.mubr.f32.gmra.mrb[0].mxu0 %v4515
      %v4585 = vpop.f32.mrb[0].mxu0
      %v4586 = vadd.f32 0.0, %v4585
      %v4587 = vpop.f32.mrb[0].mxu0
      %4588 = vdwg.mxu0
      %v4589 = vsel %vm1190, -1e+30, %v4586
      %v4590 = vsel %vm1107, %v4589, -inf
      %4591 = vmax.xlane.f32.xlu0 %v4590
      %v4592 = vpop.xlane.xlu0 %4591
      %v4593 = vsub.f32 %v4589, %v4592
      %v4594 = vmul.f32 %v4593, 1.442695
      %v4595 = vpow.pop %v4594
      %v4596 = vsel %vm1107, %v4595, 0.0
      %4597 = vadd.xlane.f32.xlu0 %v4596
      %v4598 = vpop.xlane.xlu0 %4597
      %v4599 = vrcp.pop %v4598
      %v4600 = vmul.f32 %v4595, %v4599
      %4601 = vrot.lane.b32.xlu0 %v4029, 112
      %v4602 = vpop.permute.xlu0 %4601
      %v4605 = vsel %vm1107, %v4600, 0
      %4607 = vmatprep.subr.mxu0 0.0
      %4608 = vmatpush1.msra.mxu0 %v4602
      %4609 = vmatprep.subr.mxu0 0.0
      %4610 = vmatpush1.msra.mxu0 0.0
      %4611 = vmatprep.subr.mxu0 0.0
      %4612 = vmatpush1.msra.mxu0 0.0
      %4613 = vmatprep.subr.mxu0 0.0
      %4614 = vmatpush1.msra.mxu0 0.0
      %4615 = vmatprep.subr.mxu0 0.0
      %4616 = vmatpush1.msra.mxu0 0.0
      %4617 = vmatprep.subr.mxu0 0.0
      %4618 = vmatpush1.msra.mxu0 0.0
      %4619 = vmatprep.subr.mxu0 0.0
      %4620 = vmatpush1.msra.mxu0 0.0
      %4621 = vmatprep.subr.mxu0 0.0
      %4622 = vmatpush1.msra.mxu0 0.0
      %4623 = vmatprep.subr.mxu0 0.0
      %4624 = vmatpush1.msra.mxu0 0.0
      %4625 = vmatprep.subr.mxu0 0.0
      %4626 = vmatpush1.msra.mxu0 0.0
      %4627 = vmatprep.subr.mxu0 0.0
      %4628 = vmatpush1.msra.mxu0 0.0
      %4629 = vmatprep.subr.mxu0 0.0
      %4630 = vmatpush1.msra.mxu0 0.0
      %4631 = vmatprep.subr.mxu0 0.0
      %4632 = vmatpush1.msra.mxu0 0.0
      %4633 = vmatprep.subr.mxu0 0.0
      %4634 = vmatpush1.msra.mxu0 0.0
      %4635 = vmatprep.subr.mxu0 0.0
      %4636 = vmatpush1.msra.mxu0 0.0
      %4637 = vmatprep.subr.mxu0 0.0
      %4638 = vmatpush1.msra.mxu0 0.0
      %4639 = vmatprep.subr.mxu0 0.0
      %4640 = vmatpush1.msra.mxu0 0.0
      %4641 = vmatprep.subr.mxu0 0.0
      %4642 = vmatpush1.msra.mxu0 0.0
      %4643 = vmatprep.subr.mxu0 0.0
      %4644 = vmatpush1.msra.mxu0 0.0
      %4645 = vmatprep.subr.mxu0 0.0
      %4646 = vmatpush1.msra.mxu0 0.0
      %4647 = vmatprep.subr.mxu0 0.0
      %4648 = vmatpush1.msra.mxu0 0.0
      %4649 = vmatprep.subr.mxu0 0.0
      %4650 = vmatpush1.msra.mxu0 0.0
      %4651 = vmatprep.subr.mxu0 0.0
      %4652 = vmatpush1.msra.mxu0 0.0
      %4653 = vmatprep.subr.mxu0 0.0
      %4654 = vmatpush1.msra.mxu0 0.0
      %4655 = vmatprep.subr.mxu0 0.0
      %4656 = vmatpush1.msra.mxu0 0.0
      %4657 = vmatprep.subr.mxu0 0.0
      %4658 = vmatpush1.msra.mxu0 0.0
      %4659 = vmatprep.subr.mxu0 0.0
      %4660 = vmatpush1.msra.mxu0 0.0
      %4661 = vmatprep.subr.mxu0 0.0
      %4662 = vmatpush1.msra.mxu0 0.0
      %4663 = vmatprep.subr.mxu0 0.0
      %4664 = vmatpush1.msra.mxu0 0.0
      %4665 = vmatprep.subr.mxu0 0.0
      %4666 = vmatpush1.msra.mxu0 0.0
      %4667 = vmatprep.subr.mxu0 0.0
      %4668 = vmatpush1.msra.mxu0 0.0
      %4669 = vmatprep.subr.mxu0 0.0
      %4670 = vmatpush1.msra.mxu0 0.0
      %4671 = vmatprep.mubr.f32.mxu0 0.0
      %4672 = vmatmul.mubr.f32.gmra.mrb[0].mxu0 %v4605
      %v4673 = vpop.f32.mrb[0].mxu0
      %v4674 = vadd.f32 0.0, %v4673
      %v4675 = vpop.f32.mrb[0].mxu0
      %4676 = vdwg.mxu0
      %v4678 = vsel %vm1107, %v4674, 0
      %4680 = vmatprep.subr.mxu0 0.0
      %4681 = vmatpush1.msra.mxu0 %v4035
      %4682 = vmatprep.subr.mxu0 0.0
      %4683 = vmatpush1.msra.mxu0 0.0
      %4684 = vmatprep.subr.mxu0 0.0
      %4685 = vmatpush1.msra.mxu0 0.0
      %4686 = vmatprep.subr.mxu0 0.0
      %4687 = vmatpush1.msra.mxu0 0.0
      %4688 = vmatprep.subr.mxu0 0.0
      %4689 = vmatpush1.msra.mxu0 0.0
      %4690 = vmatprep.subr.mxu0 0.0
      %4691 = vmatpush1.msra.mxu0 0.0
      %4692 = vmatprep.subr.mxu0 0.0
      %4693 = vmatpush1.msra.mxu0 0.0
      %4694 = vmatprep.subr.mxu0 0.0
      %4695 = vmatpush1.msra.mxu0 0.0
      %4696 = vmatprep.subr.mxu0 0.0
      %4697 = vmatpush1.msra.mxu0 0.0
      %4698 = vmatprep.subr.mxu0 0.0
      %4699 = vmatpush1.msra.mxu0 0.0
      %4700 = vmatprep.subr.mxu0 0.0
      %4701 = vmatpush1.msra.mxu0 0.0
      %4702 = vmatprep.subr.mxu0 0.0
      %4703 = vmatpush1.msra.mxu0 0.0
      %4704 = vmatprep.subr.mxu0 0.0
      %4705 = vmatpush1.msra.mxu0 0.0
      %4706 = vmatprep.subr.mxu0 0.0
      %4707 = vmatpush1.msra.mxu0 0.0
      %4708 = vmatprep.subr.mxu0 0.0
      %4709 = vmatpush1.msra.mxu0 0.0
      %4710 = vmatprep.subr.mxu0 0.0
      %4711 = vmatpush1.msra.mxu0 0.0
      %4712 = vmatprep.subr.mxu0 0.0
      %4713 = vmatpush1.msra.mxu0 0.0
      %4714 = vmatprep.subr.mxu0 0.0
      %4715 = vmatpush1.msra.mxu0 0.0
      %4716 = vmatprep.subr.mxu0 0.0
      %4717 = vmatpush1.msra.mxu0 0.0
      %4718 = vmatprep.subr.mxu0 0.0
      %4719 = vmatpush1.msra.mxu0 0.0
      %4720 = vmatprep.subr.mxu0 0.0
      %4721 = vmatpush1.msra.mxu0 0.0
      %4722 = vmatprep.subr.mxu0 0.0
      %4723 = vmatpush1.msra.mxu0 0.0
      %4724 = vmatprep.subr.mxu0 0.0
      %4725 = vmatpush1.msra.mxu0 0.0
      %4726 = vmatprep.subr.mxu0 0.0
      %4727 = vmatpush1.msra.mxu0 0.0
      %4728 = vmatprep.subr.mxu0 0.0
      %4729 = vmatpush1.msra.mxu0 0.0
      %4730 = vmatprep.subr.mxu0 0.0
      %4731 = vmatpush1.msra.mxu0 0.0
      %4732 = vmatprep.subr.mxu0 0.0
      %4733 = vmatpush1.msra.mxu0 0.0
      %4734 = vmatprep.subr.mxu0 0.0
      %4735 = vmatpush1.msra.mxu0 0.0
      %4736 = vmatprep.subr.mxu0 0.0
      %4737 = vmatpush1.msra.mxu0 0.0
      %4738 = vmatprep.subr.mxu0 0.0
      %4739 = vmatpush1.msra.mxu0 0.0
      %4740 = vmatprep.subr.mxu0 0.0
      %4741 = vmatpush1.msra.mxu0 0.0
      %4742 = vmatprep.subr.mxu0 0.0
      %4743 = vmatpush1.msra.mxu0 0.0
      %4744 = vmatprep.mubr.f32.mxu0 0.0
      %4745 = vmatmul.mubr.f32.gmra.mrb[0].mxu0 %v4678
      %v4746 = vpop.f32.mrb[0].mxu0
      %v4747 = vadd.f32 0.0, %v4746
      %v4748 = vpop.f32.mrb[0].mxu0
      %4749 = vdwg.mxu0
      %v4750 = vadd.f32 %v4508, %v4747
      %4751 = vrot.lane.b32.xlu0 %v3865, 104
      %v4752 = vpop.permute.xlu0 %4751
      %4753 = vrot.lane.b32.xlu0 %v3946, 104
      %v4754 = vpop.permute.xlu0 %4753
      %v4755 = vsel %vm1107, %v4752, 0
      %v4757 = vsel %vm1107, %v4754, 0
      %4759 = vmatprep.subr.mxu0 0.0
      %4760 = vmatpush1.xpose.msra.mxu0 %v4757
      %4761 = vmatprep.subr.mxu0 0.0
      %4762 = vmatpush1.xpose.msra.mxu0 0.0
      %4763 = vmatprep.subr.mxu0 0.0
      %4764 = vmatpush1.xpose.msra.mxu0 0.0
      %4765 = vmatprep.subr.mxu0 0.0
      %4766 = vmatpush1.xpose.msra.mxu0 0.0
      %4767 = vmatprep.subr.mxu0 0.0
      %4768 = vmatpush1.xpose.msra.mxu0 0.0
      %4769 = vmatprep.subr.mxu0 0.0
      %4770 = vmatpush1.xpose.msra.mxu0 0.0
      %4771 = vmatprep.subr.mxu0 0.0
      %4772 = vmatpush1.xpose.msra.mxu0 0.0
      %4773 = vmatprep.subr.mxu0 0.0
      %4774 = vmatpush1.xpose.msra.mxu0 0.0
      %4775 = vmatprep.subr.mxu0 0.0
      %4776 = vmatpush1.xpose.msra.mxu0 0.0
      %4777 = vmatprep.subr.mxu0 0.0
      %4778 = vmatpush1.xpose.msra.mxu0 0.0
      %4779 = vmatprep.subr.mxu0 0.0
      %4780 = vmatpush1.xpose.msra.mxu0 0.0
      %4781 = vmatprep.subr.mxu0 0.0
      %4782 = vmatpush1.xpose.msra.mxu0 0.0
      %4783 = vmatprep.subr.mxu0 0.0
      %4784 = vmatpush1.xpose.msra.mxu0 0.0
      %4785 = vmatprep.subr.mxu0 0.0
      %4786 = vmatpush1.xpose.msra.mxu0 0.0
      %4787 = vmatprep.subr.mxu0 0.0
      %4788 = vmatpush1.xpose.msra.mxu0 0.0
      %4789 = vmatprep.subr.mxu0 0.0
      %4790 = vmatpush1.xpose.msra.mxu0 0.0
      %4791 = vmatprep.subr.mxu0 0.0
      %4792 = vmatpush1.xpose.msra.mxu0 0.0
      %4793 = vmatprep.subr.mxu0 0.0
      %4794 = vmatpush1.xpose.msra.mxu0 0.0
      %4795 = vmatprep.subr.mxu0 0.0
      %4796 = vmatpush1.xpose.msra.mxu0 0.0
      %4797 = vmatprep.subr.mxu0 0.0
      %4798 = vmatpush1.xpose.msra.mxu0 0.0
      %4799 = vmatprep.subr.mxu0 0.0
      %4800 = vmatpush1.xpose.msra.mxu0 0.0
      %4801 = vmatprep.subr.mxu0 0.0
      %4802 = vmatpush1.xpose.msra.mxu0 0.0
      %4803 = vmatprep.subr.mxu0 0.0
      %4804 = vmatpush1.xpose.msra.mxu0 0.0
      %4805 = vmatprep.subr.mxu0 0.0
      %4806 = vmatpush1.xpose.msra.mxu0 0.0
      %4807 = vmatprep.subr.mxu0 0.0
      %4808 = vmatpush1.xpose.msra.mxu0 0.0
      %4809 = vmatprep.subr.mxu0 0.0
      %4810 = vmatpush1.xpose.msra.mxu0 0.0
      %4811 = vmatprep.subr.mxu0 0.0
      %4812 = vmatpush1.xpose.msra.mxu0 0.0
      %4813 = vmatprep.subr.mxu0 0.0
      %4814 = vmatpush1.xpose.msra.mxu0 0.0
      %4815 = vmatprep.subr.mxu0 0.0
      %4816 = vmatpush1.xpose.msra.mxu0 0.0
      %4817 = vmatprep.subr.mxu0 0.0
      %4818 = vmatpush1.xpose.msra.mxu0 0.0
      %4819 = vmatprep.subr.mxu0 0.0
      %4820 = vmatpush1.xpose.msra.mxu0 0.0
      %4821 = vmatprep.subr.mxu0 0.0
      %4822 = vmatpush1.xpose.msra.mxu0 0.0
      %4823 = vmatprep.mubr.f32.mxu0 0.0
      %4824 = vmatmul.mubr.f32.gmra.mrb[0].mxu0 %v4755
      %v4825 = vpop.f32.mrb[0].mxu0
      %v4826 = vadd.f32 0.0, %v4825
      %v4827 = vpop.f32.mrb[0].mxu0
      %4828 = vdwg.mxu0
      %v4829 = vsel %vm1190, -1e+30, %v4826
      %v4830 = vsel %vm1107, %v4829, -inf
      %4831 = vmax.xlane.f32.xlu0 %v4830
      %v4832 = vpop.xlane.xlu0 %4831
      %v4833 = vsub.f32 %v4829, %v4832
      %v4834 = vmul.f32 %v4833, 1.442695
      %v4835 = vpow.pop %v4834
      %v4836 = vsel %vm1107, %v4835, 0.0
      %4837 = vadd.xlane.f32.xlu0 %v4836
      %v4838 = vpop.xlane.xlu0 %4837
      %v4839 = vrcp.pop %v4838
      %v4840 = vmul.f32 %v4835, %v4839
      %4841 = vrot.lane.b32.xlu0 %v4029, 104
      %v4842 = vpop.permute.xlu0 %4841
      %v4845 = vsel %vm1107, %v4840, 0
      %4847 = vmatprep.subr.mxu0 0.0
      %4848 = vmatpush1.msra.mxu0 %v4842
      %4849 = vmatprep.subr.mxu0 0.0
      %4850 = vmatpush1.msra.mxu0 0.0
      %4851 = vmatprep.subr.mxu0 0.0
      %4852 = vmatpush1.msra.mxu0 0.0
      %4853 = vmatprep.subr.mxu0 0.0
      %4854 = vmatpush1.msra.mxu0 0.0
      %4855 = vmatprep.subr.mxu0 0.0
      %4856 = vmatpush1.msra.mxu0 0.0
      %4857 = vmatprep.subr.mxu0 0.0
      %4858 = vmatpush1.msra.mxu0 0.0
      %4859 = vmatprep.subr.mxu0 0.0
      %4860 = vmatpush1.msra.mxu0 0.0
      %4861 = vmatprep.subr.mxu0 0.0
      %4862 = vmatpush1.msra.mxu0 0.0
      %4863 = vmatprep.subr.mxu0 0.0
      %4864 = vmatpush1.msra.mxu0 0.0
      %4865 = vmatprep.subr.mxu0 0.0
      %4866 = vmatpush1.msra.mxu0 0.0
      %4867 = vmatprep.subr.mxu0 0.0
      %4868 = vmatpush1.msra.mxu0 0.0
      %4869 = vmatprep.subr.mxu0 0.0
      %4870 = vmatpush1.msra.mxu0 0.0
      %4871 = vmatprep.subr.mxu0 0.0
      %4872 = vmatpush1.msra.mxu0 0.0
      %4873 = vmatprep.subr.mxu0 0.0
      %4874 = vmatpush1.msra.mxu0 0.0
      %4875 = vmatprep.subr.mxu0 0.0
      %4876 = vmatpush1.msra.mxu0 0.0
      %4877 = vmatprep.subr.mxu0 0.0
      %4878 = vmatpush1.msra.mxu0 0.0
      %4879 = vmatprep.subr.mxu0 0.0
      %4880 = vmatpush1.msra.mxu0 0.0
      %4881 = vmatprep.subr.mxu0 0.0
      %4882 = vmatpush1.msra.mxu0 0.0
      %4883 = vmatprep.subr.mxu0 0.0
      %4884 = vmatpush1.msra.mxu0 0.0
      %4885 = vmatprep.subr.mxu0 0.0
      %4886 = vmatpush1.msra.mxu0 0.0
      %4887 = vmatprep.subr.mxu0 0.0
      %4888 = vmatpush1.msra.mxu0 0.0
      %4889 = vmatprep.subr.mxu0 0.0
      %4890 = vmatpush1.msra.mxu0 0.0
      %4891 = vmatprep.subr.mxu0 0.0
      %4892 = vmatpush1.msra.mxu0 0.0
      %4893 = vmatprep.subr.mxu0 0.0
      %4894 = vmatpush1.msra.mxu0 0.0
      %4895 = vmatprep.subr.mxu0 0.0
      %4896 = vmatpush1.msra.mxu0 0.0
      %4897 = vmatprep.subr.mxu0 0.0
      %4898 = vmatpush1.msra.mxu0 0.0
      %4899 = vmatprep.subr.mxu0 0.0
      %4900 = vmatpush1.msra.mxu0 0.0
      %4901 = vmatprep.subr.mxu0 0.0
      %4902 = vmatpush1.msra.mxu0 0.0
      %4903 = vmatprep.subr.mxu0 0.0
      %4904 = vmatpush1.msra.mxu0 0.0
      %4905 = vmatprep.subr.mxu0 0.0
      %4906 = vmatpush1.msra.mxu0 0.0
      %4907 = vmatprep.subr.mxu0 0.0
      %4908 = vmatpush1.msra.mxu0 0.0
      %4909 = vmatprep.subr.mxu0 0.0
      %4910 = vmatpush1.msra.mxu0 0.0
      %4911 = vmatprep.mubr.f32.mxu0 0.0
      %4912 = vmatmul.mubr.f32.gmra.mrb[0].mxu0 %v4845
      %v4913 = vpop.f32.mrb[0].mxu0
      %v4914 = vadd.f32 0.0, %v4913
      %v4915 = vpop.f32.mrb[0].mxu0
      %4916 = vdwg.mxu0
      %v4918 = vsel %vm1107, %v4914, 0
      %4920 = vmatprep.subr.mxu0 0.0
      %4921 = vmatpush1.msra.mxu0 %v4036
      %4922 = vmatprep.subr.mxu0 0.0
      %4923 = vmatpush1.msra.mxu0 0.0
      %4924 = vmatprep.subr.mxu0 0.0
      %4925 = vmatpush1.msra.mxu0 0.0
      %4926 = vmatprep.subr.mxu0 0.0
      %4927 = vmatpush1.msra.mxu0 0.0
      %4928 = vmatprep.subr.mxu0 0.0
      %4929 = vmatpush1.msra.mxu0 0.0
      %4930 = vmatprep.subr.mxu0 0.0
      %4931 = vmatpush1.msra.mxu0 0.0
      %4932 = vmatprep.subr.mxu0 0.0
      %4933 = vmatpush1.msra.mxu0 0.0
      %4934 = vmatprep.subr.mxu0 0.0
      %4935 = vmatpush1.msra.mxu0 0.0
      %4936 = vmatprep.subr.mxu0 0.0
      %4937 = vmatpush1.msra.mxu0 0.0
      %4938 = vmatprep.subr.mxu0 0.0
      %4939 = vmatpush1.msra.mxu0 0.0
      %4940 = vmatprep.subr.mxu0 0.0
      %4941 = vmatpush1.msra.mxu0 0.0
      %4942 = vmatprep.subr.mxu0 0.0
      %4943 = vmatpush1.msra.mxu0 0.0
      %4944 = vmatprep.subr.mxu0 0.0
      %4945 = vmatpush1.msra.mxu0 0.0
      %4946 = vmatprep.subr.mxu0 0.0
      %4947 = vmatpush1.msra.mxu0 0.0
      %4948 = vmatprep.subr.mxu0 0.0
      %4949 = vmatpush1.msra.mxu0 0.0
      %4950 = vmatprep.subr.mxu0 0.0
      %4951 = vmatpush1.msra.mxu0 0.0
      %4952 = vmatprep.subr.mxu0 0.0
      %4953 = vmatpush1.msra.mxu0 0.0
      %4954 = vmatprep.subr.mxu0 0.0
      %4955 = vmatpush1.msra.mxu0 0.0
      %4956 = vmatprep.subr.mxu0 0.0
      %4957 = vmatpush1.msra.mxu0 0.0
      %4958 = vmatprep.subr.mxu0 0.0
      %4959 = vmatpush1.msra.mxu0 0.0
      %4960 = vmatprep.subr.mxu0 0.0
      %4961 = vmatpush1.msra.mxu0 0.0
      %4962 = vmatprep.subr.mxu0 0.0
      %4963 = vmatpush1.msra.mxu0 0.0
      %4964 = vmatprep.subr.mxu0 0.0
      %4965 = vmatpush1.msra.mxu0 0.0
      %4966 = vmatprep.subr.mxu0 0.0
      %4967 = vmatpush1.msra.mxu0 0.0
      %4968 = vmatprep.subr.mxu0 0.0
      %4969 = vmatpush1.msra.mxu0 0.0
      %4970 = vmatprep.subr.mxu0 0.0
      %4971 = vmatpush1.msra.mxu0 0.0
      %4972 = vmatprep.subr.mxu0 0.0
      %4973 = vmatpush1.msra.mxu0 0.0
      %4974 = vmatprep.subr.mxu0 0.0
      %4975 = vmatpush1.msra.mxu0 0.0
      %4976 = vmatprep.subr.mxu0 0.0
      %4977 = vmatpush1.msra.mxu0 0.0
      %4978 = vmatprep.subr.mxu0 0.0
      %4979 = vmatpush1.msra.mxu0 0.0
      %4980 = vmatprep.subr.mxu0 0.0
      %4981 = vmatpush1.msra.mxu0 0.0
      %4982 = vmatprep.subr.mxu0 0.0
      %4983 = vmatpush1.msra.mxu0 0.0
      %4984 = vmatprep.mubr.f32.mxu0 0.0
      %4985 = vmatmul.mubr.f32.gmra.mrb[0].mxu0 %v4918
      %v4986 = vpop.f32.mrb[0].mxu0
      %v4987 = vadd.f32 0.0, %v4986
      %v4988 = vpop.f32.mrb[0].mxu0
      %4989 = vdwg.mxu0
      %v4990 = vadd.f32 %v4750, %v4987
      %v4991 = vadd.f32 %v3746, %v4990
      %s4992 = scalar_lea.vmem %s14, 2
      %v4993 = vld [vmem:[%s4992] sm:$0x1]
      %v4995 = vlaneseq
      %v4996 = vshrl.u32 %v4995, 7
      %v4997 = vsub.s32 0, %v4996
      %v4998 = vrot.slane %v4993, %v4997
      %v5000 = vadd.f32 %v4991, %v4998
      %s5001 = scalar_lea.vmem %s15, 2
      %v5002 = vld [vmem:[%s5001] sm:$0x1]
      %s5003 = scalar_lea.vmem %s16, 2
      %v5004 = vld [vmem:[%s5003] sm:$0x1]
      %v5005 = vsel %vm827, %v5000, 0.0
      %5006 = vadd.xlane.f32.xlu0 %v5005
      %v5007 = vpop.xlane.xlu0 %5006
      %v5008 = vmul.f32 %v5007, %v831
      %v5009 = vsub.f32 %v5000, %v5008
      %v5010 = vmul.f32 %v5009, %v5009
      %v5011 = vsel %vm827, %v5010, 0.0
      %5012 = vadd.xlane.f32.xlu0 %v5011
      %v5013 = vpop.xlane.xlu0 %5012
      %v5014 = vmul.f32 %v5013, %v831
      %v5015 = vadd.f32 %v5014, 1e-05
      %v5016 = vrsqrt.pop %v5015
      %v5017 = vmul.f32 %v5009, %v5016
      %v5019 = vlaneseq
      %v5020 = vshrl.u32 %v5019, 7
      %v5021 = vsub.s32 0, %v5020
      %v5022 = vrot.slane %v5002, %v5021
      %v5024 = vmul.f32 %v5017, %v5022
      %v5026 = vlaneseq
      %v5027 = vshrl.u32 %v5026, 7
      %v5028 = vsub.s32 0, %v5027
      %v5029 = vrot.slane %v5004, %v5028
      %v5031 = vadd.f32 %v5024, %v5029
      %s5032 = scalar_lea.vmem %s17, 64
      %v5033 = vld [vmem:[%s5032] sm:$0xff]
      %v5034 = vld [vmem:[%s5032 + $0x8] sm:$0xff]
      %v5035 = vld [vmem:[%s5032 + $0x10] sm:$0xff]
      %v5036 = vld [vmem:[%s5032 + $0x18] sm:$0xff]
      %s5037 = scalar_lea.vmem %s18, 2
      %v5038 = vld [vmem:[%s5037] sm:$0x1]
      %v5040 = vlaneseq
      %v5041 = vshrl.u32 %v5040, 7
      %v5042 = vsub.s32 0, %v5041
      %v5043 = vrot.slane %v5038, %v5042
      %v5046 = vsel %vm827, %v5031, 0
      %5048 = vmatprep.subr.mxu0 0.0
      %5049 = vmatpush1.msra.mxu0 %v5033
      %5050 = vmatprep.subr.mxu0 0.0
      %5051 = vmatpush1.msra.mxu0 %v5034
      %5052 = vmatprep.subr.mxu0 0.0
      %5053 = vmatpush1.msra.mxu0 %v5035
      %5054 = vmatprep.subr.mxu0 0.0
      %5055 = vmatpush1.msra.mxu0 %v5036
      %5056 = vmatprep.subr.mxu0 0.0
      %5057 = vmatpush1.msra.mxu0 0.0
      %5058 = vmatprep.subr.mxu0 0.0
      %5059 = vmatpush1.msra.mxu0 0.0
      %5060 = vmatprep.subr.mxu0 0.0
      %5061 = vmatpush1.msra.mxu0 0.0
      %5062 = vmatprep.subr.mxu0 0.0
      %5063 = vmatpush1.msra.mxu0 0.0
      %5064 = vmatprep.subr.mxu0 0.0
      %5065 = vmatpush1.msra.mxu0 0.0
      %5066 = vmatprep.subr.mxu0 0.0
      %5067 = vmatpush1.msra.mxu0 0.0
      %5068 = vmatprep.subr.mxu0 0.0
      %5069 = vmatpush1.msra.mxu0 0.0
      %5070 = vmatprep.subr.mxu0 0.0
      %5071 = vmatpush1.msra.mxu0 0.0
      %5072 = vmatprep.subr.mxu0 0.0
      %5073 = vmatpush1.msra.mxu0 0.0
      %5074 = vmatprep.subr.mxu0 0.0
      %5075 = vmatpush1.msra.mxu0 0.0
      %5076 = vmatprep.subr.mxu0 0.0
      %5077 = vmatpush1.msra.mxu0 0.0
      %5078 = vmatprep.subr.mxu0 0.0
      %5079 = vmatpush1.msra.mxu0 0.0
      %5080 = vmatprep.subr.mxu0 0.0
      %5081 = vmatpush1.msra.mxu0 0.0
      %5082 = vmatprep.subr.mxu0 0.0
      %5083 = vmatpush1.msra.mxu0 0.0
      %5084 = vmatprep.subr.mxu0 0.0
      %5085 = vmatpush1.msra.mxu0 0.0
      %5086 = vmatprep.subr.mxu0 0.0
      %5087 = vmatpush1.msra.mxu0 0.0
      %5088 = vmatprep.subr.mxu0 0.0
      %5089 = vmatpush1.msra.mxu0 0.0
      %5090 = vmatprep.subr.mxu0 0.0
      %5091 = vmatpush1.msra.mxu0 0.0
      %5092 = vmatprep.subr.mxu0 0.0
      %5093 = vmatpush1.msra.mxu0 0.0
      %5094 = vmatprep.subr.mxu0 0.0
      %5095 = vmatpush1.msra.mxu0 0.0
      %5096 = vmatprep.subr.mxu0 0.0
      %5097 = vmatpush1.msra.mxu0 0.0
      %5098 = vmatprep.subr.mxu0 0.0
      %5099 = vmatpush1.msra.mxu0 0.0
      %5100 = vmatprep.subr.mxu0 0.0
      %5101 = vmatpush1.msra.mxu0 0.0
      %5102 = vmatprep.subr.mxu0 0.0
      %5103 = vmatpush1.msra.mxu0 0.0
      %5104 = vmatprep.subr.mxu0 0.0
      %5105 = vmatpush1.msra.mxu0 0.0
      %5106 = vmatprep.subr.mxu0 0.0
      %5107 = vmatpush1.msra.mxu0 0.0
      %5108 = vmatprep.subr.mxu0 0.0
      %5109 = vmatpush1.msra.mxu0 0.0
      %5110 = vmatprep.subr.mxu0 0.0
      %5111 = vmatpush1.msra.mxu0 0.0
      %5112 = vmatprep.mubr.f32.mxu0 0.0
      %5113 = vmatmul.mubr.f32.gmra.mrb[0].mxu0 %v5046
      %v5114 = vpop.f32.mrb[0].mxu0
      %v5115 = vadd.f32 %v5043, %v5114
      %v5116 = vpop.f32.mrb[0].mxu0
      %5117 = vdwg.mxu0
      %v5118 = vmax.f32 %v5115, 0.0
      %s5119 = scalar_lea.vmem %s19, 128
      %v5120 = vld [vmem:[%s5119] sm:$0xff]
      %v5121 = vld [vmem:[%s5119 + $0x8] sm:$0xff]
      %v5122 = vld [vmem:[%s5119 + $0x10] sm:$0xff]
      %v5123 = vld [vmem:[%s5119 + $0x18] sm:$0xff]
      %v5124 = vld [vmem:[%s5119 + $0x20] sm:$0xff]
      %v5125 = vld [vmem:[%s5119 + $0x28] sm:$0xff]
      %v5126 = vld [vmem:[%s5119 + $0x30] sm:$0xff]
      %v5127 = vld [vmem:[%s5119 + $0x38] sm:$0xff]
      %v5129 = vsel %vm2200, %v5118, 0
      %5131 = vmatprep.subr.mxu0 0.0
      %5132 = vmatpush1.msra.mxu0 %v5120
      %5133 = vmatprep.subr.mxu0 0.0
      %5134 = vmatpush1.msra.mxu0 %v5121
      %5135 = vmatprep.subr.mxu0 0.0
      %5136 = vmatpush1.msra.mxu0 %v5122
      %5137 = vmatprep.subr.mxu0 0.0
      %5138 = vmatpush1.msra.mxu0 %v5123
      %5139 = vmatprep.subr.mxu0 0.0
      %5140 = vmatpush1.msra.mxu0 %v5124
      %5141 = vmatprep.subr.mxu0 0.0
      %5142 = vmatpush1.msra.mxu0 %v5125
      %5143 = vmatprep.subr.mxu0 0.0
      %5144 = vmatpush1.msra.mxu0 %v5126
      %5145 = vmatprep.subr.mxu0 0.0
      %5146 = vmatpush1.msra.mxu0 %v5127
      %5147 = vmatprep.subr.mxu0 0.0
      %5148 = vmatpush1.msra.mxu0 0.0
      %5149 = vmatprep.subr.mxu0 0.0
      %5150 = vmatpush1.msra.mxu0 0.0
      %5151 = vmatprep.subr.mxu0 0.0
      %5152 = vmatpush1.msra.mxu0 0.0
      %5153 = vmatprep.subr.mxu0 0.0
      %5154 = vmatpush1.msra.mxu0 0.0
      %5155 = vmatprep.subr.mxu0 0.0
      %5156 = vmatpush1.msra.mxu0 0.0
      %5157 = vmatprep.subr.mxu0 0.0
      %5158 = vmatpush1.msra.mxu0 0.0
      %5159 = vmatprep.subr.mxu0 0.0
      %5160 = vmatpush1.msra.mxu0 0.0
      %5161 = vmatprep.subr.mxu0 0.0
      %5162 = vmatpush1.msra.mxu0 0.0
      %5163 = vmatprep.subr.mxu0 0.0
      %5164 = vmatpush1.msra.mxu0 0.0
      %5165 = vmatprep.subr.mxu0 0.0
      %5166 = vmatpush1.msra.mxu0 0.0
      %5167 = vmatprep.subr.mxu0 0.0
      %5168 = vmatpush1.msra.mxu0 0.0
      %5169 = vmatprep.subr.mxu0 0.0
      %5170 = vmatpush1.msra.mxu0 0.0
      %5171 = vmatprep.subr.mxu0 0.0
      %5172 = vmatpush1.msra.mxu0 0.0
      %5173 = vmatprep.subr.mxu0 0.0
      %5174 = vmatpush1.msra.mxu0 0.0
      %5175 = vmatprep.subr.mxu0 0.0
      %5176 = vmatpush1.msra.mxu0 0.0
      %5177 = vmatprep.subr.mxu0 0.0
      %5178 = vmatpush1.msra.mxu0 0.0
      %5179 = vmatprep.subr.mxu0 0.0
      %5180 = vmatpush1.msra.mxu0 0.0
      %5181 = vmatprep.subr.mxu0 0.0
      %5182 = vmatpush1.msra.mxu0 0.0
      %5183 = vmatprep.subr.mxu0 0.0
      %5184 = vmatpush1.msra.mxu0 0.0
      %5185 = vmatprep.subr.mxu0 0.0
      %5186 = vmatpush1.msra.mxu0 0.0
      %5187 = vmatprep.subr.mxu0 0.0
      %5188 = vmatpush1.msra.mxu0 0.0
      %5189 = vmatprep.subr.mxu0 0.0
      %5190 = vmatpush1.msra.mxu0 0.0
      %5191 = vmatprep.subr.mxu0 0.0
      %5192 = vmatpush1.msra.mxu0 0.0
      %5193 = vmatprep.subr.mxu0 0.0
      %5194 = vmatpush1.msra.mxu0 0.0
      %5195 = vmatprep.mubr.f32.mxu0 0.0
      %5196 = vmatmul.mubr.f32.gmra.mrb[0].mxu0 %v5129
      %v5197 = vpop.f32.mrb[0].mxu0
      %v5198 = vadd.f32 0.0, %v5197
      %v5199 = vpop.f32.mrb[0].mxu0
      %5200 = vdwg.mxu0
      %v5201 = vadd.f32 %v5000, %v5198
      %s5202 = scalar_lea.vmem %s20, 2
      %v5203 = vld [vmem:[%s5202] sm:$0x1]
      %v5205 = vlaneseq
      %v5206 = vshrl.u32 %v5205, 7
      %v5207 = vsub.s32 0, %v5206
      %v5208 = vrot.slane %v5203, %v5207
      %v5210 = vadd.f32 %v5201, %v5208
      %v5211 = vadd.f32 %v3747, %v5210
      %s5212 = scalar_lea.vmem %s5, 3
      %v5213 = vld [vmem:[%s5212] sm:$0x1]
      %s5214 = scalar_lea.vmem %s6, 3
      %v5215 = vld [vmem:[%s5214] sm:$0x1]
      %v5216 = vsel %vm827, %v5210, 0.0
      %5217 = vadd.xlane.f32.xlu0 %v5216
      %v5218 = vpop.xlane.xlu0 %5217
      %v5219 = vmul.f32 %v5218, %v831
      %v5220 = vsub.f32 %v5210, %v5219
      %v5221 = vmul.f32 %v5220, %v5220
      %v5222 = vsel %vm827, %v5221, 0.0
      %5223 = vadd.xlane.f32.xlu0 %v5222
      %v5224 = vpop.xlane.xlu0 %5223
      %v5225 = vmul.f32 %v5224, %v831
      %v5226 = vadd.f32 %v5225, 1e-05
      %v5227 = vrsqrt.pop %v5226
      %v5228 = vmul.f32 %v5220, %v5227
      %v5230 = vlaneseq
      %v5231 = vshrl.u32 %v5230, 7
      %v5232 = vsub.s32 0, %v5231
      %v5233 = vrot.slane %v5213, %v5232
      %v5235 = vmul.f32 %v5228, %v5233
      %v5237 = vlaneseq
      %v5238 = vshrl.u32 %v5237, 7
      %v5239 = vsub.s32 0, %v5238
      %v5240 = vrot.slane %v5215, %v5239
      %v5242 = vadd.f32 %v5235, %v5240
      %s5243 = scalar_lea.vmem %s7, 96
      %v5244 = vld [vmem:[%s5243] sm:$0xff]
      %v5245 = vld [vmem:[%s5243 + $0x8] sm:$0xff]
      %v5246 = vld [vmem:[%s5243 + $0x10] sm:$0xff]
      %v5247 = vld [vmem:[%s5243 + $0x18] sm:$0xff]
      %s5248 = scalar_lea.vmem %s8, 3
      %v5249 = vld [vmem:[%s5248] sm:$0x1]
      %v5251 = vlaneseq
      %v5252 = vshrl.u32 %v5251, 7
      %v5253 = vsub.s32 0, %v5252
      %v5254 = vrot.slane %v5249, %v5253
      %v5257 = vsel %vm827, %v5242, 0
      %5259 = vmatprep.subr.mxu0 0.0
      %5260 = vmatpush1.msra.mxu0 %v5244
      %5261 = vmatprep.subr.mxu0 0.0
      %5262 = vmatpush1.msra.mxu0 %v5245
      %5263 = vmatprep.subr.mxu0 0.0
      %5264 = vmatpush1.msra.mxu0 %v5246
      %5265 = vmatprep.subr.mxu0 0.0
      %5266 = vmatpush1.msra.mxu0 %v5247
      %5267 = vmatprep.subr.mxu0 0.0
      %5268 = vmatpush1.msra.mxu0 0.0
      %5269 = vmatprep.subr.mxu0 0.0
      %5270 = vmatpush1.msra.mxu0 0.0
      %5271 = vmatprep.subr.mxu0 0.0
      %5272 = vmatpush1.msra.mxu0 0.0
      %5273 = vmatprep.subr.mxu0 0.0
      %5274 = vmatpush1.msra.mxu0 0.0
      %5275 = vmatprep.subr.mxu0 0.0
      %5276 = vmatpush1.msra.mxu0 0.0
      %5277 = vmatprep.subr.mxu0 0.0
      %5278 = vmatpush1.msra.mxu0 0.0
      %5279 = vmatprep.subr.mxu0 0.0
      %5280 = vmatpush1.msra.mxu0 0.0
      %5281 = vmatprep.subr.mxu0 0.0
      %5282 = vmatpush1.msra.mxu0 0.0
      %5283 = vmatprep.subr.mxu0 0.0
      %5284 = vmatpush1.msra.mxu0 0.0
      %5285 = vmatprep.subr.mxu0 0.0
      %5286 = vmatpush1.msra.mxu0 0.0
      %5287 = vmatprep.subr.mxu0 0.0
      %5288 = vmatpush1.msra.mxu0 0.0
      %5289 = vmatprep.subr.mxu0 0.0
      %5290 = vmatpush1.msra.mxu0 0.0
      %5291 = vmatprep.subr.mxu0 0.0
      %5292 = vmatpush1.msra.mxu0 0.0
      %5293 = vmatprep.subr.mxu0 0.0
      %5294 = vmatpush1.msra.mxu0 0.0
      %5295 = vmatprep.subr.mxu0 0.0
      %5296 = vmatpush1.msra.mxu0 0.0
      %5297 = vmatprep.subr.mxu0 0.0
      %5298 = vmatpush1.msra.mxu0 0.0
      %5299 = vmatprep.subr.mxu0 0.0
      %5300 = vmatpush1.msra.mxu0 0.0
      %5301 = vmatprep.subr.mxu0 0.0
      %5302 = vmatpush1.msra.mxu0 0.0
      %5303 = vmatprep.subr.mxu0 0.0
      %5304 = vmatpush1.msra.mxu0 0.0
      %5305 = vmatprep.subr.mxu0 0.0
      %5306 = vmatpush1.msra.mxu0 0.0
      %5307 = vmatprep.subr.mxu0 0.0
      %5308 = vmatpush1.msra.mxu0 0.0
      %5309 = vmatprep.subr.mxu0 0.0
      %5310 = vmatpush1.msra.mxu0 0.0
      %5311 = vmatprep.subr.mxu0 0.0
      %5312 = vmatpush1.msra.mxu0 0.0
      %5313 = vmatprep.subr.mxu0 0.0
      %5314 = vmatpush1.msra.mxu0 0.0
      %5315 = vmatprep.subr.mxu0 0.0
      %5316 = vmatpush1.msra.mxu0 0.0
      %5317 = vmatprep.subr.mxu0 0.0
      %5318 = vmatpush1.msra.mxu0 0.0
      %5319 = vmatprep.subr.mxu0 0.0
      %5320 = vmatpush1.msra.mxu0 0.0
      %5321 = vmatprep.subr.mxu0 0.0
      %5322 = vmatpush1.msra.mxu0 0.0
      %5323 = vmatprep.mubr.f32.mxu0 0.0
      %5324 = vmatmul.mubr.f32.gmra.mrb[0].mxu0 %v5257
      %v5325 = vpop.f32.mrb[0].mxu0
      %v5326 = vadd.f32 %v5254, %v5325
      %v5327 = vpop.f32.mrb[0].mxu0
      %5328 = vdwg.mxu0
      %v5329 = vmul.f32 %v5326, 0.35355338
      %s5330 = scalar_lea.vmem %s9, 96
      %v5331 = vld [vmem:[%s5330] sm:$0xff]
      %v5332 = vld [vmem:[%s5330 + $0x8] sm:$0xff]
      %v5333 = vld [vmem:[%s5330 + $0x10] sm:$0xff]
      %v5334 = vld [vmem:[%s5330 + $0x18] sm:$0xff]
      %s5335 = scalar_lea.vmem %s10, 3
      %v5336 = vld [vmem:[%s5335] sm:$0x1]
      %v5338 = vlaneseq
      %v5339 = vshrl.u32 %v5338, 7
      %v5340 = vsub.s32 0, %v5339
      %v5341 = vrot.slane %v5336, %v5340
      %5343 = vmatprep.subr.mxu0 0.0
      %5344 = vmatpush1.msra.mxu0 %v5331
      %5345 = vmatprep.subr.mxu0 0.0
      %5346 = vmatpush1.msra.mxu0 %v5332
      %5347 = vmatprep.subr.mxu0 0.0
      %5348 = vmatpush1.msra.mxu0 %v5333
      %5349 = vmatprep.subr.mxu0 0.0
      %5350 = vmatpush1.msra.mxu0 %v5334
      %5351 = vmatprep.subr.mxu0 0.0
      %5352 = vmatpush1.msra.mxu0 0.0
      %5353 = vmatprep.subr.mxu0 0.0
      %5354 = vmatpush1.msra.mxu0 0.0
      %5355 = vmatprep.subr.mxu0 0.0
      %5356 = vmatpush1.msra.mxu0 0.0
      %5357 = vmatprep.subr.mxu0 0.0
      %5358 = vmatpush1.msra.mxu0 0.0
      %5359 = vmatprep.subr.mxu0 0.0
      %5360 = vmatpush1.msra.mxu0 0.0
      %5361 = vmatprep.subr.mxu0 0.0
      %5362 = vmatpush1.msra.mxu0 0.0
      %5363 = vmatprep.subr.mxu0 0.0
      %5364 = vmatpush1.msra.mxu0 0.0
      %5365 = vmatprep.subr.mxu0 0.0
      %5366 = vmatpush1.msra.mxu0 0.0
      %5367 = vmatprep.subr.mxu0 0.0
      %5368 = vmatpush1.msra.mxu0 0.0
      %5369 = vmatprep.subr.mxu0 0.0
      %5370 = vmatpush1.msra.mxu0 0.0
      %5371 = vmatprep.subr.mxu0 0.0
      %5372 = vmatpush1.msra.mxu0 0.0
      %5373 = vmatprep.subr.mxu0 0.0
      %5374 = vmatpush1.msra.mxu0 0.0
      %5375 = vmatprep.subr.mxu0 0.0
      %5376 = vmatpush1.msra.mxu0 0.0
      %5377 = vmatprep.subr.mxu0 0.0
      %5378 = vmatpush1.msra.mxu0 0.0
      %5379 = vmatprep.subr.mxu0 0.0
      %5380 = vmatpush1.msra.mxu0 0.0
      %5381 = vmatprep.subr.mxu0 0.0
      %5382 = vmatpush1.msra.mxu0 0.0
      %5383 = vmatprep.subr.mxu0 0.0
      %5384 = vmatpush1.msra.mxu0 0.0
      %5385 = vmatprep.subr.mxu0 0.0
      %5386 = vmatpush1.msra.mxu0 0.0
      %5387 = vmatprep.subr.mxu0 0.0
      %5388 = vmatpush1.msra.mxu0 0.0
      %5389 = vmatprep.subr.mxu0 0.0
      %5390 = vmatpush1.msra.mxu0 0.0
      %5391 = vmatprep.subr.mxu0 0.0
      %5392 = vmatpush1.msra.mxu0 0.0
      %5393 = vmatprep.subr.mxu0 0.0
      %5394 = vmatpush1.msra.mxu0 0.0
      %5395 = vmatprep.subr.mxu0 0.0
      %5396 = vmatpush1.msra.mxu0 0.0
      %5397 = vmatprep.subr.mxu0 0.0
      %5398 = vmatpush1.msra.mxu0 0.0
      %5399 = vmatprep.subr.mxu0 0.0
      %5400 = vmatpush1.msra.mxu0 0.0
      %5401 = vmatprep.subr.mxu0 0.0
      %5402 = vmatpush1.msra.mxu0 0.0
      %5403 = vmatprep.subr.mxu0 0.0
      %5404 = vmatpush1.msra.mxu0 0.0
      %5405 = vmatprep.subr.mxu0 0.0
      %5406 = vmatpush1.msra.mxu0 0.0
      %5407 = vmatprep.mubr.f32.mxu0 0.0
      %5408 = vmatmul.mubr.f32.gmra.mrb[0].mxu0 %v5257
      %v5409 = vpop.f32.mrb[0].mxu0
      %v5410 = vadd.f32 %v5341, %v5409
      %v5411 = vpop.f32.mrb[0].mxu0
      %5412 = vdwg.mxu0
      %s5413 = scalar_lea.vmem %s11, 96
      %v5414 = vld [vmem:[%s5413] sm:$0xff]
      %v5415 = vld [vmem:[%s5413 + $0x8] sm:$0xff]
      %v5416 = vld [vmem:[%s5413 + $0x10] sm:$0xff]
      %v5417 = vld [vmem:[%s5413 + $0x18] sm:$0xff]
      %s5418 = scalar_lea.vmem %s12, 3
      %v5419 = vld [vmem:[%s5418] sm:$0x1]
      %v5421 = vlaneseq
      %v5422 = vshrl.u32 %v5421, 7
      %v5423 = vsub.s32 0, %v5422
      %v5424 = vrot.slane %v5419, %v5423
      %5426 = vmatprep.subr.mxu0 0.0
      %5427 = vmatpush1.msra.mxu0 %v5414
      %5428 = vmatprep.subr.mxu0 0.0
      %5429 = vmatpush1.msra.mxu0 %v5415
      %5430 = vmatprep.subr.mxu0 0.0
      %5431 = vmatpush1.msra.mxu0 %v5416
      %5432 = vmatprep.subr.mxu0 0.0
      %5433 = vmatpush1.msra.mxu0 %v5417
      %5434 = vmatprep.subr.mxu0 0.0
      %5435 = vmatpush1.msra.mxu0 0.0
      %5436 = vmatprep.subr.mxu0 0.0
      %5437 = vmatpush1.msra.mxu0 0.0
      %5438 = vmatprep.subr.mxu0 0.0
      %5439 = vmatpush1.msra.mxu0 0.0
      %5440 = vmatprep.subr.mxu0 0.0
      %5441 = vmatpush1.msra.mxu0 0.0
      %5442 = vmatprep.subr.mxu0 0.0
      %5443 = vmatpush1.msra.mxu0 0.0
      %5444 = vmatprep.subr.mxu0 0.0
      %5445 = vmatpush1.msra.mxu0 0.0
      %5446 = vmatprep.subr.mxu0 0.0
      %5447 = vmatpush1.msra.mxu0 0.0
      %5448 = vmatprep.subr.mxu0 0.0
      %5449 = vmatpush1.msra.mxu0 0.0
      %5450 = vmatprep.subr.mxu0 0.0
      %5451 = vmatpush1.msra.mxu0 0.0
      %5452 = vmatprep.subr.mxu0 0.0
      %5453 = vmatpush1.msra.mxu0 0.0
      %5454 = vmatprep.subr.mxu0 0.0
      %5455 = vmatpush1.msra.mxu0 0.0
      %5456 = vmatprep.subr.mxu0 0.0
      %5457 = vmatpush1.msra.mxu0 0.0
      %5458 = vmatprep.subr.mxu0 0.0
      %5459 = vmatpush1.msra.mxu0 0.0
      %5460 = vmatprep.subr.mxu0 0.0
      %5461 = vmatpush1.msra.mxu0 0.0
      %5462 = vmatprep.subr.mxu0 0.0
      %5463 = vmatpush1.msra.mxu0 0.0
      %5464 = vmatprep.subr.mxu0 0.0
      %5465 = vmatpush1.msra.mxu0 0.0
      %5466 = vmatprep.subr.mxu0 0.0
      %5467 = vmatpush1.msra.mxu0 0.0
      %5468 = vmatprep.subr.mxu0 0.0
      %5469 = vmatpush1.msra.mxu0 0.0
      %5470 = vmatprep.subr.mxu0 0.0
      %5471 = vmatpush1.msra.mxu0 0.0
      %5472 = vmatprep.subr.mxu0 0.0
      %5473 = vmatpush1.msra.mxu0 0.0
      %5474 = vmatprep.subr.mxu0 0.0
      %5475 = vmatpush1.msra.mxu0 0.0
      %5476 = vmatprep.subr.mxu0 0.0
      %5477 = vmatpush1.msra.mxu0 0.0
      %5478 = vmatprep.subr.mxu0 0.0
      %5479 = vmatpush1.msra.mxu0 0.0
      %5480 = vmatprep.subr.mxu0 0.0
      %5481 = vmatpush1.msra.mxu0 0.0
      %5482 = vmatprep.subr.mxu0 0.0
      %5483 = vmatpush1.msra.mxu0 0.0
      %5484 = vmatprep.subr.mxu0 0.0
      %5485 = vmatpush1.msra.mxu0 0.0
      %5486 = vmatprep.subr.mxu0 0.0
      %5487 = vmatpush1.msra.mxu0 0.0
      %5488 = vmatprep.subr.mxu0 0.0
      %5489 = vmatpush1.msra.mxu0 0.0
      %5490 = vmatprep.mubr.f32.mxu0 0.0
      %5491 = vmatmul.mubr.f32.gmra.mrb[0].mxu0 %v5257
      %v5492 = vpop.f32.mrb[0].mxu0
      %v5493 = vadd.f32 %v5424, %v5492
      %v5494 = vpop.f32.mrb[0].mxu0
      %5495 = vdwg.mxu0
      %s5496 = scalar_lea.vmem %s13, 96
      %v5497 = vld [vmem:[%s5496] sm:$0xff]
      %v5498 = vld [vmem:[%s5496 + $0x8] sm:$0xff]
      %v5499 = vld [vmem:[%s5496 + $0x10] sm:$0xff]
      %v5500 = vld [vmem:[%s5496 + $0x18] sm:$0xff]
      %v5502 = vsel %vm1107, %v5329, 0
      %v5505 = vsel %vm1107, %v5410, 0
      %5507 = vmatprep.subr.mxu0 0.0
      %5508 = vmatpush1.xpose.msra.mxu0 %v5505
      %5509 = vmatprep.subr.mxu0 0.0
      %5510 = vmatpush1.xpose.msra.mxu0 0.0
      %5511 = vmatprep.subr.mxu0 0.0
      %5512 = vmatpush1.xpose.msra.mxu0 0.0
      %5513 = vmatprep.subr.mxu0 0.0
      %5514 = vmatpush1.xpose.msra.mxu0 0.0
      %5515 = vmatprep.subr.mxu0 0.0
      %5516 = vmatpush1.xpose.msra.mxu0 0.0
      %5517 = vmatprep.subr.mxu0 0.0
      %5518 = vmatpush1.xpose.msra.mxu0 0.0
      %5519 = vmatprep.subr.mxu0 0.0
      %5520 = vmatpush1.xpose.msra.mxu0 0.0
      %5521 = vmatprep.subr.mxu0 0.0
      %5522 = vmatpush1.xpose.msra.mxu0 0.0
      %5523 = vmatprep.subr.mxu0 0.0
      %5524 = vmatpush1.xpose.msra.mxu0 0.0
      %5525 = vmatprep.subr.mxu0 0.0
      %5526 = vmatpush1.xpose.msra.mxu0 0.0
      %5527 = vmatprep.subr.mxu0 0.0
      %5528 = vmatpush1.xpose.msra.mxu0 0.0
      %5529 = vmatprep.subr.mxu0 0.0
      %5530 = vmatpush1.xpose.msra.mxu0 0.0
      %5531 = vmatprep.subr.mxu0 0.0
      %5532 = vmatpush1.xpose.msra.mxu0 0.0
      %5533 = vmatprep.subr.mxu0 0.0
      %5534 = vmatpush1.xpose.msra.mxu0 0.0
      %5535 = vmatprep.subr.mxu0 0.0
      %5536 = vmatpush1.xpose.msra.mxu0 0.0
      %5537 = vmatprep.subr.mxu0 0.0
      %5538 = vmatpush1.xpose.msra.mxu0 0.0
      %5539 = vmatprep.subr.mxu0 0.0
      %5540 = vmatpush1.xpose.msra.mxu0 0.0
      %5541 = vmatprep.subr.mxu0 0.0
      %5542 = vmatpush1.xpose.msra.mxu0 0.0
      %5543 = vmatprep.subr.mxu0 0.0
      %5544 = vmatpush1.xpose.msra.mxu0 0.0
      %5545 = vmatprep.subr.mxu0 0.0
      %5546 = vmatpush1.xpose.msra.mxu0 0.0
      %5547 = vmatprep.subr.mxu0 0.0
      %5548 = vmatpush1.xpose.msra.mxu0 0.0
      %5549 = vmatprep.subr.mxu0 0.0
      %5550 = vmatpush1.xpose.msra.mxu0 0.0
      %5551 = vmatprep.subr.mxu0 0.0
      %5552 = vmatpush1.xpose.msra.mxu0 0.0
      %5553 = vmatprep.subr.mxu0 0.0
      %5554 = vmatpush1.xpose.msra.mxu0 0.0
      %5555 = vmatprep.subr.mxu0 0.0
      %5556 = vmatpush1.xpose.msra.mxu0 0.0
      %5557 = vmatprep.subr.mxu0 0.0
      %5558 = vmatpush1.xpose.msra.mxu0 0.0
      %5559 = vmatprep.subr.mxu0 0.0
      %5560 = vmatpush1.xpose.msra.mxu0 0.0
      %5561 = vmatprep.subr.mxu0 0.0
      %5562 = vmatpush1.xpose.msra.mxu0 0.0
      %5563 = vmatprep.subr.mxu0 0.0
      %5564 = vmatpush1.xpose.msra.mxu0 0.0
      %5565 = vmatprep.subr.mxu0 0.0
      %5566 = vmatpush1.xpose.msra.mxu0 0.0
      %5567 = vmatprep.subr.mxu0 0.0
      %5568 = vmatpush1.xpose.msra.mxu0 0.0
      %5569 = vmatprep.subr.mxu0 0.0
      %5570 = vmatpush1.xpose.msra.mxu0 0.0
      %5571 = vmatprep.mubr.f32.mxu0 0.0
      %5572 = vmatmul.mubr.f32.gmra.mrb[0].mxu0 %v5502
      %v5573 = vpop.f32.mrb[0].mxu0
      %v5574 = vadd.f32 0.0, %v5573
      %v5575 = vpop.f32.mrb[0].mxu0
      %5576 = vdwg.mxu0
      %v5577 = vsel %vm1190, -1e+30, %v5574
      %v5578 = vsel %vm1107, %v5577, -inf
      %5579 = vmax.xlane.f32.xlu0 %v5578
      %v5580 = vpop.xlane.xlu0 %5579
      %v5581 = vsub.f32 %v5577, %v5580
      %v5582 = vmul.f32 %v5581, 1.442695
      %v5583 = vpow.pop %v5582
      %v5584 = vsel %vm1107, %v5583, 0.0
      %5585 = vadd.xlane.f32.xlu0 %v5584
      %v5586 = vpop.xlane.xlu0 %5585
      %v5587 = vrcp.pop %v5586
      %v5588 = vmul.f32 %v5583, %v5587
      %v5590 = vsel %vm1107, %v5588, 0
      %5592 = vmatprep.subr.mxu0 0.0
      %5593 = vmatpush1.msra.mxu0 %v5493
      %5594 = vmatprep.subr.mxu0 0.0
      %5595 = vmatpush1.msra.mxu0 0.0
      %5596 = vmatprep.subr.mxu0 0.0
      %5597 = vmatpush1.msra.mxu0 0.0
      %5598 = vmatprep.subr.mxu0 0.0
      %5599 = vmatpush1.msra.mxu0 0.0
      %5600 = vmatprep.subr.mxu0 0.0
      %5601 = vmatpush1.msra.mxu0 0.0
      %5602 = vmatprep.subr.mxu0 0.0
      %5603 = vmatpush1.msra.mxu0 0.0
      %5604 = vmatprep.subr.mxu0 0.0
      %5605 = vmatpush1.msra.mxu0 0.0
      %5606 = vmatprep.subr.mxu0 0.0
      %5607 = vmatpush1.msra.mxu0 0.0
      %5608 = vmatprep.subr.mxu0 0.0
      %5609 = vmatpush1.msra.mxu0 0.0
      %5610 = vmatprep.subr.mxu0 0.0
      %5611 = vmatpush1.msra.mxu0 0.0
      %5612 = vmatprep.subr.mxu0 0.0
      %5613 = vmatpush1.msra.mxu0 0.0
      %5614 = vmatprep.subr.mxu0 0.0
      %5615 = vmatpush1.msra.mxu0 0.0
      %5616 = vmatprep.subr.mxu0 0.0
      %5617 = vmatpush1.msra.mxu0 0.0
      %5618 = vmatprep.subr.mxu0 0.0
      %5619 = vmatpush1.msra.mxu0 0.0
      %5620 = vmatprep.subr.mxu0 0.0
      %5621 = vmatpush1.msra.mxu0 0.0
      %5622 = vmatprep.subr.mxu0 0.0
      %5623 = vmatpush1.msra.mxu0 0.0
      %5624 = vmatprep.subr.mxu0 0.0
      %5625 = vmatpush1.msra.mxu0 0.0
      %5626 = vmatprep.subr.mxu0 0.0
      %5627 = vmatpush1.msra.mxu0 0.0
      %5628 = vmatprep.subr.mxu0 0.0
      %5629 = vmatpush1.msra.mxu0 0.0
      %5630 = vmatprep.subr.mxu0 0.0
      %5631 = vmatpush1.msra.mxu0 0.0
      %5632 = vmatprep.subr.mxu0 0.0
      %5633 = vmatpush1.msra.mxu0 0.0
      %5634 = vmatprep.subr.mxu0 0.0
      %5635 = vmatpush1.msra.mxu0 0.0
      %5636 = vmatprep.subr.mxu0 0.0
      %5637 = vmatpush1.msra.mxu0 0.0
      %5638 = vmatprep.subr.mxu0 0.0
      %5639 = vmatpush1.msra.mxu0 0.0
      %5640 = vmatprep.subr.mxu0 0.0
      %5641 = vmatpush1.msra.mxu0 0.0
      %5642 = vmatprep.subr.mxu0 0.0
      %5643 = vmatpush1.msra.mxu0 0.0
      %5644 = vmatprep.subr.mxu0 0.0
      %5645 = vmatpush1.msra.mxu0 0.0
      %5646 = vmatprep.subr.mxu0 0.0
      %5647 = vmatpush1.msra.mxu0 0.0
      %5648 = vmatprep.subr.mxu0 0.0
      %5649 = vmatpush1.msra.mxu0 0.0
      %5650 = vmatprep.subr.mxu0 0.0
      %5651 = vmatpush1.msra.mxu0 0.0
      %5652 = vmatprep.subr.mxu0 0.0
      %5653 = vmatpush1.msra.mxu0 0.0
      %5654 = vmatprep.subr.mxu0 0.0
      %5655 = vmatpush1.msra.mxu0 0.0
      %5656 = vmatprep.mubr.f32.mxu0 0.0
      %5657 = vmatmul.mubr.f32.gmra.mrb[0].mxu0 %v5590
      %v5658 = vpop.f32.mrb[0].mxu0
      %v5659 = vadd.f32 0.0, %v5658
      %v5660 = vpop.f32.mrb[0].mxu0
      %5661 = vdwg.mxu0
      %5662 = vrot.lane.b32.xlu0 %v5329, 120
      %v5663 = vpop.permute.xlu0 %5662
      %5664 = vrot.lane.b32.xlu0 %v5410, 120
      %v5665 = vpop.permute.xlu0 %5664
      %v5666 = vsel %vm1107, %v5663, 0
      %v5668 = vsel %vm1107, %v5665, 0
      %5670 = vmatprep.subr.mxu0 0.0
      %5671 = vmatpush1.xpose.msra.mxu0 %v5668
      %5672 = vmatprep.subr.mxu0 0.0
      %5673 = vmatpush1.xpose.msra.mxu0 0.0
      %5674 = vmatprep.subr.mxu0 0.0
      %5675 = vmatpush1.xpose.msra.mxu0 0.0
      %5676 = vmatprep.subr.mxu0 0.0
      %5677 = vmatpush1.xpose.msra.mxu0 0.0
      %5678 = vmatprep.subr.mxu0 0.0
      %5679 = vmatpush1.xpose.msra.mxu0 0.0
      %5680 = vmatprep.subr.mxu0 0.0
      %5681 = vmatpush1.xpose.msra.mxu0 0.0
      %5682 = vmatprep.subr.mxu0 0.0
      %5683 = vmatpush1.xpose.msra.mxu0 0.0
      %5684 = vmatprep.subr.mxu0 0.0
      %5685 = vmatpush1.xpose.msra.mxu0 0.0
      %5686 = vmatprep.subr.mxu0 0.0
      %5687 = vmatpush1.xpose.msra.mxu0 0.0
      %5688 = vmatprep.subr.mxu0 0.0
      %5689 = vmatpush1.xpose.msra.mxu0 0.0
      %5690 = vmatprep.subr.mxu0 0.0
      %5691 = vmatpush1.xpose.msra.mxu0 0.0
      %5692 = vmatprep.subr.mxu0 0.0
      %5693 = vmatpush1.xpose.msra.mxu0 0.0
      %5694 = vmatprep.subr.mxu0 0.0
      %5695 = vmatpush1.xpose.msra.mxu0 0.0
      %5696 = vmatprep.subr.mxu0 0.0
      %5697 = vmatpush1.xpose.msra.mxu0 0.0
      %5698 = vmatprep.subr.mxu0 0.0
      %5699 = vmatpush1.xpose.msra.mxu0 0.0
      %5700 = vmatprep.subr.mxu0 0.0
      %5701 = vmatpush1.xpose.msra.mxu0 0.0
      %5702 = vmatprep.subr.mxu0 0.0
      %5703 = vmatpush1.xpose.msra.mxu0 0.0
      %5704 = vmatprep.subr.mxu0 0.0
      %5705 = vmatpush1.xpose.msra.mxu0 0.0
      %5706 = vmatprep.subr.mxu0 0.0
      %5707 = vmatpush1.xpose.msra.mxu0 0.0
      %5708 = vmatprep.subr.mxu0 0.0
      %5709 = vmatpush1.xpose.msra.mxu0 0.0
      %5710 = vmatprep.subr.mxu0 0.0
      %5711 = vmatpush1.xpose.msra.mxu0 0.0
      %5712 = vmatprep.subr.mxu0 0.0
      %5713 = vmatpush1.xpose.msra.mxu0 0.0
      %5714 = vmatprep.subr.mxu0 0.0
      %5715 = vmatpush1.xpose.msra.mxu0 0.0
      %5716 = vmatprep.subr.mxu0 0.0
      %5717 = vmatpush1.xpose.msra.mxu0 0.0
      %5718 = vmatprep.subr.mxu0 0.0
      %5719 = vmatpush1.xpose.msra.mxu0 0.0
      %5720 = vmatprep.subr.mxu0 0.0
      %5721 = vmatpush1.xpose.msra.mxu0 0.0
      %5722 = vmatprep.subr.mxu0 0.0
      %5723 = vmatpush1.xpose.msra.mxu0 0.0
      %5724 = vmatprep.subr.mxu0 0.0
      %5725 = vmatpush1.xpose.msra.mxu0 0.0
      %5726 = vmatprep.subr.mxu0 0.0
      %5727 = vmatpush1.xpose.msra.mxu0 0.0
      %5728 = vmatprep.subr.mxu0 0.0
      %5729 = vmatpush1.xpose.msra.mxu0 0.0
      %5730 = vmatprep.subr.mxu0 0.0
      %5731 = vmatpush1.xpose.msra.mxu0 0.0
      %5732 = vmatprep.subr.mxu0 0.0
      %5733 = vmatpush1.xpose.msra.mxu0 0.0
      %5734 = vmatprep.mubr.f32.mxu0 0.0
      %5735 = vmatmul.mubr.f32.gmra.mrb[0].mxu0 %v5666
      %v5736 = vpop.f32.mrb[0].mxu0
      %v5737 = vadd.f32 0.0, %v5736
      %v5738 = vpop.f32.mrb[0].mxu0
      %5739 = vdwg.mxu0
      %v5740 = vsel %vm1190, -1e+30, %v5737
      %v5741 = vsel %vm1107, %v5740, -inf
      %5742 = vmax.xlane.f32.xlu0 %v5741
      %v5743 = vpop.xlane.xlu0 %5742
      %v5744 = vsub.f32 %v5740, %v5743
      %v5745 = vmul.f32 %v5744, 1.442695
      %v5746 = vpow.pop %v5745
      %v5747 = vsel %vm1107, %v5746, 0.0
      %5748 = vadd.xlane.f32.xlu0 %v5747
      %v5749 = vpop.xlane.xlu0 %5748
      %v5750 = vrcp.pop %v5749
      %v5751 = vmul.f32 %v5746, %v5750
      %5753 = vrot.lane.b32.xlu0 %v5493, 120
      %v5754 = vpop.permute.xlu0 %5753
      %v5757 = vsel %vm1107, %v5751, 0
      %5759 = vmatprep.subr.mxu0 0.0
      %5760 = vmatpush1.msra.mxu0 %v5754
      %5761 = vmatprep.subr.mxu0 0.0
      %5762 = vmatpush1.msra.mxu0 0.0
      %5763 = vmatprep.subr.mxu0 0.0
      %5764 = vmatpush1.msra.mxu0 0.0
      %5765 = vmatprep.subr.mxu0 0.0
      %5766 = vmatpush1.msra.mxu0 0.0
      %5767 = vmatprep.subr.mxu0 0.0
      %5768 = vmatpush1.msra.mxu0 0.0
      %5769 = vmatprep.subr.mxu0 0.0
      %5770 = vmatpush1.msra.mxu0 0.0
      %5771 = vmatprep.subr.mxu0 0.0
      %5772 = vmatpush1.msra.mxu0 0.0
      %5773 = vmatprep.subr.mxu0 0.0
      %5774 = vmatpush1.msra.mxu0 0.0
      %5775 = vmatprep.subr.mxu0 0.0
      %5776 = vmatpush1.msra.mxu0 0.0
      %5777 = vmatprep.subr.mxu0 0.0
      %5778 = vmatpush1.msra.mxu0 0.0
      %5779 = vmatprep.subr.mxu0 0.0
      %5780 = vmatpush1.msra.mxu0 0.0
      %5781 = vmatprep.subr.mxu0 0.0
      %5782 = vmatpush1.msra.mxu0 0.0
      %5783 = vmatprep.subr.mxu0 0.0
      %5784 = vmatpush1.msra.mxu0 0.0
      %5785 = vmatprep.subr.mxu0 0.0
      %5786 = vmatpush1.msra.mxu0 0.0
      %5787 = vmatprep.subr.mxu0 0.0
      %5788 = vmatpush1.msra.mxu0 0.0
      %5789 = vmatprep.subr.mxu0 0.0
      %5790 = vmatpush1.msra.mxu0 0.0
      %5791 = vmatprep.subr.mxu0 0.0
      %5792 = vmatpush1.msra.mxu0 0.0
      %5793 = vmatprep.subr.mxu0 0.0
      %5794 = vmatpush1.msra.mxu0 0.0
      %5795 = vmatprep.subr.mxu0 0.0
      %5796 = vmatpush1.msra.mxu0 0.0
      %5797 = vmatprep.subr.mxu0 0.0
      %5798 = vmatpush1.msra.mxu0 0.0
      %5799 = vmatprep.subr.mxu0 0.0
      %5800 = vmatpush1.msra.mxu0 0.0
      %5801 = vmatprep.subr.mxu0 0.0
      %5802 = vmatpush1.msra.mxu0 0.0
      %5803 = vmatprep.subr.mxu0 0.0
      %5804 = vmatpush1.msra.mxu0 0.0
      %5805 = vmatprep.subr.mxu0 0.0
      %5806 = vmatpush1.msra.mxu0 0.0
      %5807 = vmatprep.subr.mxu0 0.0
      %5808 = vmatpush1.msra.mxu0 0.0
      %5809 = vmatprep.subr.mxu0 0.0
      %5810 = vmatpush1.msra.mxu0 0.0
      %5811 = vmatprep.subr.mxu0 0.0
      %5812 = vmatpush1.msra.mxu0 0.0
      %5813 = vmatprep.subr.mxu0 0.0
      %5814 = vmatpush1.msra.mxu0 0.0
      %5815 = vmatprep.subr.mxu0 0.0
      %5816 = vmatpush1.msra.mxu0 0.0
      %5817 = vmatprep.subr.mxu0 0.0
      %5818 = vmatpush1.msra.mxu0 0.0
      %5819 = vmatprep.subr.mxu0 0.0
      %5820 = vmatpush1.msra.mxu0 0.0
      %5821 = vmatprep.subr.mxu0 0.0
      %5822 = vmatpush1.msra.mxu0 0.0
      %5823 = vmatprep.mubr.f32.mxu0 0.0
      %5824 = vmatmul.mubr.f32.gmra.mrb[0].mxu0 %v5757
      %v5825 = vpop.f32.mrb[0].mxu0
      %v5826 = vadd.f32 0.0, %v5825
      %v5827 = vpop.f32.mrb[0].mxu0
      %5828 = vdwg.mxu0
      %v5830 = vsel %vm1107, %v5826, 0
      %5832 = vmatprep.subr.mxu0 0.0
      %5833 = vmatpush1.msra.mxu0 %v5498
      %5834 = vmatprep.subr.mxu0 0.0
      %5835 = vmatpush1.msra.mxu0 0.0
      %5836 = vmatprep.subr.mxu0 0.0
      %5837 = vmatpush1.msra.mxu0 0.0
      %5838 = vmatprep.subr.mxu0 0.0
      %5839 = vmatpush1.msra.mxu0 0.0
      %5840 = vmatprep.subr.mxu0 0.0
      %5841 = vmatpush1.msra.mxu0 0.0
      %5842 = vmatprep.subr.mxu0 0.0
      %5843 = vmatpush1.msra.mxu0 0.0
      %5844 = vmatprep.subr.mxu0 0.0
      %5845 = vmatpush1.msra.mxu0 0.0
      %5846 = vmatprep.subr.mxu0 0.0
      %5847 = vmatpush1.msra.mxu0 0.0
      %5848 = vmatprep.subr.mxu0 0.0
      %5849 = vmatpush1.msra.mxu0 0.0
      %5850 = vmatprep.subr.mxu0 0.0
      %5851 = vmatpush1.msra.mxu0 0.0
      %5852 = vmatprep.subr.mxu0 0.0
      %5853 = vmatpush1.msra.mxu0 0.0
      %5854 = vmatprep.subr.mxu0 0.0
      %5855 = vmatpush1.msra.mxu0 0.0
      %5856 = vmatprep.subr.mxu0 0.0
      %5857 = vmatpush1.msra.mxu0 0.0
      %5858 = vmatprep.subr.mxu0 0.0
      %5859 = vmatpush1.msra.mxu0 0.0
      %5860 = vmatprep.subr.mxu0 0.0
      %5861 = vmatpush1.msra.mxu0 0.0
      %5862 = vmatprep.subr.mxu0 0.0
      %5863 = vmatpush1.msra.mxu0 0.0
      %5864 = vmatprep.subr.mxu0 0.0
      %5865 = vmatpush1.msra.mxu0 0.0
      %5866 = vmatprep.subr.mxu0 0.0
      %5867 = vmatpush1.msra.mxu0 0.0
      %5868 = vmatprep.subr.mxu0 0.0
      %5869 = vmatpush1.msra.mxu0 0.0
      %5870 = vmatprep.subr.mxu0 0.0
      %5871 = vmatpush1.msra.mxu0 0.0
      %5872 = vmatprep.subr.mxu0 0.0
      %5873 = vmatpush1.msra.mxu0 0.0
      %5874 = vmatprep.subr.mxu0 0.0
      %5875 = vmatpush1.msra.mxu0 0.0
      %5876 = vmatprep.subr.mxu0 0.0
      %5877 = vmatpush1.msra.mxu0 0.0
      %5878 = vmatprep.subr.mxu0 0.0
      %5879 = vmatpush1.msra.mxu0 0.0
      %5880 = vmatprep.subr.mxu0 0.0
      %5881 = vmatpush1.msra.mxu0 0.0
      %5882 = vmatprep.subr.mxu0 0.0
      %5883 = vmatpush1.msra.mxu0 0.0
      %5884 = vmatprep.subr.mxu0 0.0
      %5885 = vmatpush1.msra.mxu0 0.0
      %5886 = vmatprep.subr.mxu0 0.0
      %5887 = vmatpush1.msra.mxu0 0.0
      %5888 = vmatprep.subr.mxu0 0.0
      %5889 = vmatpush1.msra.mxu0 0.0
      %5890 = vmatprep.subr.mxu0 0.0
      %5891 = vmatpush1.msra.mxu0 0.0
      %5892 = vmatprep.subr.mxu0 0.0
      %5893 = vmatpush1.msra.mxu0 0.0
      %5894 = vmatprep.subr.mxu0 0.0
      %5895 = vmatpush1.msra.mxu0 0.0
      %5896 = vmatprep.mubr.f32.mxu0 0.0
      %5897 = vmatmul.mubr.f32.gmra.mrb[0].mxu0 %v5830
      %v5898 = vpop.f32.mrb[0].mxu0
      %v5899 = vadd.f32 0.0, %v5898
      %v5900 = vpop.f32.mrb[0].mxu0
      %5901 = vdwg.mxu0
      %v5903 = vsel %vm1107, %v5659, 0
      %5905 = vmatprep.subr.mxu0 0.0
      %5906 = vmatpush1.msra.mxu0 %v5497
      %5907 = vmatprep.subr.mxu0 0.0
      %5908 = vmatpush1.msra.mxu0 0.0
      %5909 = vmatprep.subr.mxu0 0.0
      %5910 = vmatpush1.msra.mxu0 0.0
      %5911 = vmatprep.subr.mxu0 0.0
      %5912 = vmatpush1.msra.mxu0 0.0
      %5913 = vmatprep.subr.mxu0 0.0
      %5914 = vmatpush1.msra.mxu0 0.0
      %5915 = vmatprep.subr.mxu0 0.0
      %5916 = vmatpush1.msra.mxu0 0.0
      %5917 = vmatprep.subr.mxu0 0.0
      %5918 = vmatpush1.msra.mxu0 0.0
      %5919 = vmatprep.subr.mxu0 0.0
      %5920 = vmatpush1.msra.mxu0 0.0
      %5921 = vmatprep.subr.mxu0 0.0
      %5922 = vmatpush1.msra.mxu0 0.0
      %5923 = vmatprep.subr.mxu0 0.0
      %5924 = vmatpush1.msra.mxu0 0.0
      %5925 = vmatprep.subr.mxu0 0.0
      %5926 = vmatpush1.msra.mxu0 0.0
      %5927 = vmatprep.subr.mxu0 0.0
      %5928 = vmatpush1.msra.mxu0 0.0
      %5929 = vmatprep.subr.mxu0 0.0
      %5930 = vmatpush1.msra.mxu0 0.0
      %5931 = vmatprep.subr.mxu0 0.0
      %5932 = vmatpush1.msra.mxu0 0.0
      %5933 = vmatprep.subr.mxu0 0.0
      %5934 = vmatpush1.msra.mxu0 0.0
      %5935 = vmatprep.subr.mxu0 0.0
      %5936 = vmatpush1.msra.mxu0 0.0
      %5937 = vmatprep.subr.mxu0 0.0
      %5938 = vmatpush1.msra.mxu0 0.0
      %5939 = vmatprep.subr.mxu0 0.0
      %5940 = vmatpush1.msra.mxu0 0.0
      %5941 = vmatprep.subr.mxu0 0.0
      %5942 = vmatpush1.msra.mxu0 0.0
      %5943 = vmatprep.subr.mxu0 0.0
      %5944 = vmatpush1.msra.mxu0 0.0
      %5945 = vmatprep.subr.mxu0 0.0
      %5946 = vmatpush1.msra.mxu0 0.0
      %5947 = vmatprep.subr.mxu0 0.0
      %5948 = vmatpush1.msra.mxu0 0.0
      %5949 = vmatprep.subr.mxu0 0.0
      %5950 = vmatpush1.msra.mxu0 0.0
      %5951 = vmatprep.subr.mxu0 0.0
      %5952 = vmatpush1.msra.mxu0 0.0
      %5953 = vmatprep.subr.mxu0 0.0
      %5954 = vmatpush1.msra.mxu0 0.0
      %5955 = vmatprep.subr.mxu0 0.0
      %5956 = vmatpush1.msra.mxu0 0.0
      %5957 = vmatprep.subr.mxu0 0.0
      %5958 = vmatpush1.msra.mxu0 0.0
      %5959 = vmatprep.subr.mxu0 0.0
      %5960 = vmatpush1.msra.mxu0 0.0
      %5961 = vmatprep.subr.mxu0 0.0
      %5962 = vmatpush1.msra.mxu0 0.0
      %5963 = vmatprep.subr.mxu0 0.0
      %5964 = vmatpush1.msra.mxu0 0.0
      %5965 = vmatprep.subr.mxu0 0.0
      %5966 = vmatpush1.msra.mxu0 0.0
      %5967 = vmatprep.subr.mxu0 0.0
      %5968 = vmatpush1.msra.mxu0 0.0
      %5969 = vmatprep.mubr.f32.mxu0 0.0
      %5970 = vmatmul.mubr.f32.gmra.mrb[0].mxu0 %v5903
      %v5971 = vpop.f32.mrb[0].mxu0
      %v5972 = vadd.f32 %v5899, %v5971
      %v5973 = vpop.f32.mrb[0].mxu0
      %5974 = vdwg.mxu0
      %5975 = vrot.lane.b32.xlu0 %v5329, 112
      %v5976 = vpop.permute.xlu0 %5975
      %5977 = vrot.lane.b32.xlu0 %v5410, 112
      %v5978 = vpop.permute.xlu0 %5977
      %v5979 = vsel %vm1107, %v5976, 0
      %v5981 = vsel %vm1107, %v5978, 0
      %5983 = vmatprep.subr.mxu0 0.0
      %5984 = vmatpush1.xpose.msra.mxu0 %v5981
      %5985 = vmatprep.subr.mxu0 0.0
      %5986 = vmatpush1.xpose.msra.mxu0 0.0
      %5987 = vmatprep.subr.mxu0 0.0
      %5988 = vmatpush1.xpose.msra.mxu0 0.0
      %5989 = vmatprep.subr.mxu0 0.0
      %5990 = vmatpush1.xpose.msra.mxu0 0.0
      %5991 = vmatprep.subr.mxu0 0.0
      %5992 = vmatpush1.xpose.msra.mxu0 0.0
      %5993 = vmatprep.subr.mxu0 0.0
      %5994 = vmatpush1.xpose.msra.mxu0 0.0
      %5995 = vmatprep.subr.mxu0 0.0
      %5996 = vmatpush1.xpose.msra.mxu0 0.0
      %5997 = vmatprep.subr.mxu0 0.0
      %5998 = vmatpush1.xpose.msra.mxu0 0.0
      %5999 = vmatprep.subr.mxu0 0.0
      %6000 = vmatpush1.xpose.msra.mxu0 0.0
      %6001 = vmatprep.subr.mxu0 0.0
      %6002 = vmatpush1.xpose.msra.mxu0 0.0
      %6003 = vmatprep.subr.mxu0 0.0
      %6004 = vmatpush1.xpose.msra.mxu0 0.0
      %6005 = vmatprep.subr.mxu0 0.0
      %6006 = vmatpush1.xpose.msra.mxu0 0.0
      %6007 = vmatprep.subr.mxu0 0.0
      %6008 = vmatpush1.xpose.msra.mxu0 0.0
      %6009 = vmatprep.subr.mxu0 0.0
      %6010 = vmatpush1.xpose.msra.mxu0 0.0
      %6011 = vmatprep.subr.mxu0 0.0
      %6012 = vmatpush1.xpose.msra.mxu0 0.0
      %6013 = vmatprep.subr.mxu0 0.0
      %6014 = vmatpush1.xpose.msra.mxu0 0.0
      %6015 = vmatprep.subr.mxu0 0.0
      %6016 = vmatpush1.xpose.msra.mxu0 0.0
      %6017 = vmatprep.subr.mxu0 0.0
      %6018 = vmatpush1.xpose.msra.mxu0 0.0
      %6019 = vmatprep.subr.mxu0 0.0
      %6020 = vmatpush1.xpose.msra.mxu0 0.0
      %6021 = vmatprep.subr.mxu0 0.0
      %6022 = vmatpush1.xpose.msra.mxu0 0.0
      %6023 = vmatprep.subr.mxu0 0.0
      %6024 = vmatpush1.xpose.msra.mxu0 0.0
      %6025 = vmatprep.subr.mxu0 0.0
      %6026 = vmatpush1.xpose.msra.mxu0 0.0
      %6027 = vmatprep.subr.mxu0 0.0
      %6028 = vmatpush1.xpose.msra.mxu0 0.0
      %6029 = vmatprep.subr.mxu0 0.0
      %6030 = vmatpush1.xpose.msra.mxu0 0.0
      %6031 = vmatprep.subr.mxu0 0.0
      %6032 = vmatpush1.xpose.msra.mxu0 0.0
      %6033 = vmatprep.subr.mxu0 0.0
      %6034 = vmatpush1.xpose.msra.mxu0 0.0
      %6035 = vmatprep.subr.mxu0 0.0
      %6036 = vmatpush1.xpose.msra.mxu0 0.0
      %6037 = vmatprep.subr.mxu0 0.0
      %6038 = vmatpush1.xpose.msra.mxu0 0.0
      %6039 = vmatprep.subr.mxu0 0.0
      %6040 = vmatpush1.xpose.msra.mxu0 0.0
      %6041 = vmatprep.subr.mxu0 0.0
      %6042 = vmatpush1.xpose.msra.mxu0 0.0
      %6043 = vmatprep.subr.mxu0 0.0
      %6044 = vmatpush1.xpose.msra.mxu0 0.0
      %6045 = vmatprep.subr.mxu0 0.0
      %6046 = vmatpush1.xpose.msra.mxu0 0.0
      %6047 = vmatprep.mubr.f32.mxu0 0.0
      %6048 = vmatmul.mubr.f32.gmra.mrb[0].mxu0 %v5979
      %v6049 = vpop.f32.mrb[0].mxu0
      %v6050 = vadd.f32 0.0, %v6049
      %v6051 = vpop.f32.mrb[0].mxu0
      %6052 = vdwg.mxu0
      %v6053 = vsel %vm1190, -1e+30, %v6050
      %v6054 = vsel %vm1107, %v6053, -inf
      %6055 = vmax.xlane.f32.xlu0 %v6054
      %v6056 = vpop.xlane.xlu0 %6055
      %v6057 = vsub.f32 %v6053, %v6056
      %v6058 = vmul.f32 %v6057, 1.442695
      %v6059 = vpow.pop %v6058
      %v6060 = vsel %vm1107, %v6059, 0.0
      %6061 = vadd.xlane.f32.xlu0 %v6060
      %v6062 = vpop.xlane.xlu0 %6061
      %v6063 = vrcp.pop %v6062
      %v6064 = vmul.f32 %v6059, %v6063
      %6065 = vrot.lane.b32.xlu0 %v5493, 112
      %v6066 = vpop.permute.xlu0 %6065
      %v6069 = vsel %vm1107, %v6064, 0
      %6071 = vmatprep.subr.mxu0 0.0
      %6072 = vmatpush1.msra.mxu0 %v6066
      %6073 = vmatprep.subr.mxu0 0.0
      %6074 = vmatpush1.msra.mxu0 0.0
      %6075 = vmatprep.subr.mxu0 0.0
      %6076 = vmatpush1.msra.mxu0 0.0
      %6077 = vmatprep.subr.mxu0 0.0
      %6078 = vmatpush1.msra.mxu0 0.0
      %6079 = vmatprep.subr.mxu0 0.0
      %6080 = vmatpush1.msra.mxu0 0.0
      %6081 = vmatprep.subr.mxu0 0.0
      %6082 = vmatpush1.msra.mxu0 0.0
      %6083 = vmatprep.subr.mxu0 0.0
      %6084 = vmatpush1.msra.mxu0 0.0
      %6085 = vmatprep.subr.mxu0 0.0
      %6086 = vmatpush1.msra.mxu0 0.0
      %6087 = vmatprep.subr.mxu0 0.0
      %6088 = vmatpush1.msra.mxu0 0.0
      %6089 = vmatprep.subr.mxu0 0.0
      %6090 = vmatpush1.msra.mxu0 0.0
      %6091 = vmatprep.subr.mxu0 0.0
      %6092 = vmatpush1.msra.mxu0 0.0
      %6093 = vmatprep.subr.mxu0 0.0
      %6094 = vmatpush1.msra.mxu0 0.0
      %6095 = vmatprep.subr.mxu0 0.0
      %6096 = vmatpush1.msra.mxu0 0.0
      %6097 = vmatprep.subr.mxu0 0.0
      %6098 = vmatpush1.msra.mxu0 0.0
      %6099 = vmatprep.subr.mxu0 0.0
      %6100 = vmatpush1.msra.mxu0 0.0
      %6101 = vmatprep.subr.mxu0 0.0
      %6102 = vmatpush1.msra.mxu0 0.0
      %6103 = vmatprep.subr.mxu0 0.0
      %6104 = vmatpush1.msra.mxu0 0.0
      %6105 = vmatprep.subr.mxu0 0.0
      %6106 = vmatpush1.msra.mxu0 0.0
      %6107 = vmatprep.subr.mxu0 0.0
      %6108 = vmatpush1.msra.mxu0 0.0
      %6109 = vmatprep.subr.mxu0 0.0
      %6110 = vmatpush1.msra.mxu0 0.0
      %6111 = vmatprep.subr.mxu0 0.0
      %6112 = vmatpush1.msra.mxu0 0.0
      %6113 = vmatprep.subr.mxu0 0.0
      %6114 = vmatpush1.msra.mxu0 0.0
      %6115 = vmatprep.subr.mxu0 0.0
      %6116 = vmatpush1.msra.mxu0 0.0
      %6117 = vmatprep.subr.mxu0 0.0
      %6118 = vmatpush1.msra.mxu0 0.0
      %6119 = vmatprep.subr.mxu0 0.0
      %6120 = vmatpush1.msra.mxu0 0.0
      %6121 = vmatprep.subr.mxu0 0.0
      %6122 = vmatpush1.msra.mxu0 0.0
      %6123 = vmatprep.subr.mxu0 0.0
      %6124 = vmatpush1.msra.mxu0 0.0
      %6125 = vmatprep.subr.mxu0 0.0
      %6126 = vmatpush1.msra.mxu0 0.0
      %6127 = vmatprep.subr.mxu0 0.0
      %6128 = vmatpush1.msra.mxu0 0.0
      %6129 = vmatprep.subr.mxu0 0.0
      %6130 = vmatpush1.msra.mxu0 0.0
      %6131 = vmatprep.subr.mxu0 0.0
      %6132 = vmatpush1.msra.mxu0 0.0
      %6133 = vmatprep.subr.mxu0 0.0
      %6134 = vmatpush1.msra.mxu0 0.0
      %6135 = vmatprep.mubr.f32.mxu0 0.0
      %6136 = vmatmul.mubr.f32.gmra.mrb[0].mxu0 %v6069
      %v6137 = vpop.f32.mrb[0].mxu0
      %v6138 = vadd.f32 0.0, %v6137
      %v6139 = vpop.f32.mrb[0].mxu0
      %6140 = vdwg.mxu0
      %v6142 = vsel %vm1107, %v6138, 0
      %6144 = vmatprep.subr.mxu0 0.0
      %6145 = vmatpush1.msra.mxu0 %v5499
      %6146 = vmatprep.subr.mxu0 0.0
      %6147 = vmatpush1.msra.mxu0 0.0
      %6148 = vmatprep.subr.mxu0 0.0
      %6149 = vmatpush1.msra.mxu0 0.0
      %6150 = vmatprep.subr.mxu0 0.0
      %6151 = vmatpush1.msra.mxu0 0.0
      %6152 = vmatprep.subr.mxu0 0.0
      %6153 = vmatpush1.msra.mxu0 0.0
      %6154 = vmatprep.subr.mxu0 0.0
      %6155 = vmatpush1.msra.mxu0 0.0
      %6156 = vmatprep.subr.mxu0 0.0
      %6157 = vmatpush1.msra.mxu0 0.0
      %6158 = vmatprep.subr.mxu0 0.0
      %6159 = vmatpush1.msra.mxu0 0.0
      %6160 = vmatprep.subr.mxu0 0.0
      %6161 = vmatpush1.msra.mxu0 0.0
      %6162 = vmatprep.subr.mxu0 0.0
      %6163 = vmatpush1.msra.mxu0 0.0
      %6164 = vmatprep.subr.mxu0 0.0
      %6165 = vmatpush1.msra.mxu0 0.0
      %6166 = vmatprep.subr.mxu0 0.0
      %6167 = vmatpush1.msra.mxu0 0.0
      %6168 = vmatprep.subr.mxu0 0.0
      %6169 = vmatpush1.msra.mxu0 0.0
      %6170 = vmatprep.subr.mxu0 0.0
      %6171 = vmatpush1.msra.mxu0 0.0
      %6172 = vmatprep.subr.mxu0 0.0
      %6173 = vmatpush1.msra.mxu0 0.0
      %6174 = vmatprep.subr.mxu0 0.0
      %6175 = vmatpush1.msra.mxu0 0.0
      %6176 = vmatprep.subr.mxu0 0.0
      %6177 = vmatpush1.msra.mxu0 0.0
      %6178 = vmatprep.subr.mxu0 0.0
      %6179 = vmatpush1.msra.mxu0 0.0
      %6180 = vmatprep.subr.mxu0 0.0
      %6181 = vmatpush1.msra.mxu0 0.0
      %6182 = vmatprep.subr.mxu0 0.0
      %6183 = vmatpush1.msra.mxu0 0.0
      %6184 = vmatprep.subr.mxu0 0.0
      %6185 = vmatpush1.msra.mxu0 0.0
      %6186 = vmatprep.subr.mxu0 0.0
      %6187 = vmatpush1.msra.mxu0 0.0
      %6188 = vmatprep.subr.mxu0 0.0
      %6189 = vmatpush1.msra.mxu0 0.0
      %6190 = vmatprep.subr.mxu0 0.0
      %6191 = vmatpush1.msra.mxu0 0.0
      %6192 = vmatprep.subr.mxu0 0.0
      %6193 = vmatpush1.msra.mxu0 0.0
      %6194 = vmatprep.subr.mxu0 0.0
      %6195 = vmatpush1.msra.mxu0 0.0
      %6196 = vmatprep.subr.mxu0 0.0
      %6197 = vmatpush1.msra.mxu0 0.0
      %6198 = vmatprep.subr.mxu0 0.0
      %6199 = vmatpush1.msra.mxu0 0.0
      %6200 = vmatprep.subr.mxu0 0.0
      %6201 = vmatpush1.msra.mxu0 0.0
      %6202 = vmatprep.subr.mxu0 0.0
      %6203 = vmatpush1.msra.mxu0 0.0
      %6204 = vmatprep.subr.mxu0 0.0
      %6205 = vmatpush1.msra.mxu0 0.0
      %6206 = vmatprep.subr.mxu0 0.0
      %6207 = vmatpush1.msra.mxu0 0.0
      %6208 = vmatprep.mubr.f32.mxu0 0.0
      %6209 = vmatmul.mubr.f32.gmra.mrb[0].mxu0 %v6142
      %v6210 = vpop.f32.mrb[0].mxu0
      %v6211 = vadd.f32 0.0, %v6210
      %v6212 = vpop.f32.mrb[0].mxu0
      %6213 = vdwg.mxu0
      %v6214 = vadd.f32 %v5972, %v6211
      %6215 = vrot.lane.b32.xlu0 %v5329, 104
      %v6216 = vpop.permute.xlu0 %6215
      %6217 = vrot.lane.b32.xlu0 %v5410, 104
      %v6218 = vpop.permute.xlu0 %6217
      %v6219 = vsel %vm1107, %v6216, 0
      %v6221 = vsel %vm1107, %v6218, 0
      %6223 = vmatprep.subr.mxu0 0.0
      %6224 = vmatpush1.xpose.msra.mxu0 %v6221
      %6225 = vmatprep.subr.mxu0 0.0
      %6226 = vmatpush1.xpose.msra.mxu0 0.0
      %6227 = vmatprep.subr.mxu0 0.0
      %6228 = vmatpush1.xpose.msra.mxu0 0.0
      %6229 = vmatprep.subr.mxu0 0.0
      %6230 = vmatpush1.xpose.msra.mxu0 0.0
      %6231 = vmatprep.subr.mxu0 0.0
      %6232 = vmatpush1.xpose.msra.mxu0 0.0
      %6233 = vmatprep.subr.mxu0 0.0
      %6234 = vmatpush1.xpose.msra.mxu0 0.0
      %6235 = vmatprep.subr.mxu0 0.0
      %6236 = vmatpush1.xpose.msra.mxu0 0.0
      %6237 = vmatprep.subr.mxu0 0.0
      %6238 = vmatpush1.xpose.msra.mxu0 0.0
      %6239 = vmatprep.subr.mxu0 0.0
      %6240 = vmatpush1.xpose.msra.mxu0 0.0
      %6241 = vmatprep.subr.mxu0 0.0
      %6242 = vmatpush1.xpose.msra.mxu0 0.0
      %6243 = vmatprep.subr.mxu0 0.0
      %6244 = vmatpush1.xpose.msra.mxu0 0.0
      %6245 = vmatprep.subr.mxu0 0.0
      %6246 = vmatpush1.xpose.msra.mxu0 0.0
      %6247 = vmatprep.subr.mxu0 0.0
      %6248 = vmatpush1.xpose.msra.mxu0 0.0
      %6249 = vmatprep.subr.mxu0 0.0
      %6250 = vmatpush1.xpose.msra.mxu0 0.0
      %6251 = vmatprep.subr.mxu0 0.0
      %6252 = vmatpush1.xpose.msra.mxu0 0.0
      %6253 = vmatprep.subr.mxu0 0.0
      %6254 = vmatpush1.xpose.msra.mxu0 0.0
      %6255 = vmatprep.subr.mxu0 0.0
      %6256 = vmatpush1.xpose.msra.mxu0 0.0
      %6257 = vmatprep.subr.mxu0 0.0
      %6258 = vmatpush1.xpose.msra.mxu0 0.0
      %6259 = vmatprep.subr.mxu0 0.0
      %6260 = vmatpush1.xpose.msra.mxu0 0.0
      %6261 = vmatprep.subr.mxu0 0.0
      %6262 = vmatpush1.xpose.msra.mxu0 0.0
      %6263 = vmatprep.subr.mxu0 0.0
      %6264 = vmatpush1.xpose.msra.mxu0 0.0
      %6265 = vmatprep.subr.mxu0 0.0
      %6266 = vmatpush1.xpose.msra.mxu0 0.0
      %6267 = vmatprep.subr.mxu0 0.0
      %6268 = vmatpush1.xpose.msra.mxu0 0.0
      %6269 = vmatprep.subr.mxu0 0.0
      %6270 = vmatpush1.xpose.msra.mxu0 0.0
      %6271 = vmatprep.subr.mxu0 0.0
      %6272 = vmatpush1.xpose.msra.mxu0 0.0
      %6273 = vmatprep.subr.mxu0 0.0
      %6274 = vmatpush1.xpose.msra.mxu0 0.0
      %6275 = vmatprep.subr.mxu0 0.0
      %6276 = vmatpush1.xpose.msra.mxu0 0.0
      %6277 = vmatprep.subr.mxu0 0.0
      %6278 = vmatpush1.xpose.msra.mxu0 0.0
      %6279 = vmatprep.subr.mxu0 0.0
      %6280 = vmatpush1.xpose.msra.mxu0 0.0
      %6281 = vmatprep.subr.mxu0 0.0
      %6282 = vmatpush1.xpose.msra.mxu0 0.0
      %6283 = vmatprep.subr.mxu0 0.0
      %6284 = vmatpush1.xpose.msra.mxu0 0.0
      %6285 = vmatprep.subr.mxu0 0.0
      %6286 = vmatpush1.xpose.msra.mxu0 0.0
      %6287 = vmatprep.mubr.f32.mxu0 0.0
      %6288 = vmatmul.mubr.f32.gmra.mrb[0].mxu0 %v6219
      %v6289 = vpop.f32.mrb[0].mxu0
      %v6290 = vadd.f32 0.0, %v6289
      %v6291 = vpop.f32.mrb[0].mxu0
      %6292 = vdwg.mxu0
      %v6293 = vsel %vm1190, -1e+30, %v6290
      %v6294 = vsel %vm1107, %v6293, -inf
      %6295 = vmax.xlane.f32.xlu0 %v6294
      %v6296 = vpop.xlane.xlu0 %6295
      %v6297 = vsub.f32 %v6293, %v6296
      %v6298 = vmul.f32 %v6297, 1.442695
      %v6299 = vpow.pop %v6298
      %v6300 = vsel %vm1107, %v6299, 0.0
      %6301 = vadd.xlane.f32.xlu0 %v6300
      %v6302 = vpop.xlane.xlu0 %6301
      %v6303 = vrcp.pop %v6302
      %v6304 = vmul.f32 %v6299, %v6303
      %6305 = vrot.lane.b32.xlu0 %v5493, 104
      %v6306 = vpop.permute.xlu0 %6305
      %v6309 = vsel %vm1107, %v6304, 0
      %6311 = vmatprep.subr.mxu0 0.0
      %6312 = vmatpush1.msra.mxu0 %v6306
      %6313 = vmatprep.subr.mxu0 0.0
      %6314 = vmatpush1.msra.mxu0 0.0
      %6315 = vmatprep.subr.mxu0 0.0
      %6316 = vmatpush1.msra.mxu0 0.0
      %6317 = vmatprep.subr.mxu0 0.0
      %6318 = vmatpush1.msra.mxu0 0.0
      %6319 = vmatprep.subr.mxu0 0.0
      %6320 = vmatpush1.msra.mxu0 0.0
      %6321 = vmatprep.subr.mxu0 0.0
      %6322 = vmatpush1.msra.mxu0 0.0
      %6323 = vmatprep.subr.mxu0 0.0
      %6324 = vmatpush1.msra.mxu0 0.0
      %6325 = vmatprep.subr.mxu0 0.0
      %6326 = vmatpush1.msra.mxu0 0.0
      %6327 = vmatprep.subr.mxu0 0.0
      %6328 = vmatpush1.msra.mxu0 0.0
      %6329 = vmatprep.subr.mxu0 0.0
      %6330 = vmatpush1.msra.mxu0 0.0
      %6331 = vmatprep.subr.mxu0 0.0
      %6332 = vmatpush1.msra.mxu0 0.0
      %6333 = vmatprep.subr.mxu0 0.0
      %6334 = vmatpush1.msra.mxu0 0.0
      %6335 = vmatprep.subr.mxu0 0.0
      %6336 = vmatpush1.msra.mxu0 0.0
      %6337 = vmatprep.subr.mxu0 0.0
      %6338 = vmatpush1.msra.mxu0 0.0
      %6339 = vmatprep.subr.mxu0 0.0
      %6340 = vmatpush1.msra.mxu0 0.0
      %6341 = vmatprep.subr.mxu0 0.0
      %6342 = vmatpush1.msra.mxu0 0.0
      %6343 = vmatprep.subr.mxu0 0.0
      %6344 = vmatpush1.msra.mxu0 0.0
      %6345 = vmatprep.subr.mxu0 0.0
      %6346 = vmatpush1.msra.mxu0 0.0
      %6347 = vmatprep.subr.mxu0 0.0
      %6348 = vmatpush1.msra.mxu0 0.0
      %6349 = vmatprep.subr.mxu0 0.0
      %6350 = vmatpush1.msra.mxu0 0.0
      %6351 = vmatprep.subr.mxu0 0.0
      %6352 = vmatpush1.msra.mxu0 0.0
      %6353 = vmatprep.subr.mxu0 0.0
      %6354 = vmatpush1.msra.mxu0 0.0
      %6355 = vmatprep.subr.mxu0 0.0
      %6356 = vmatpush1.msra.mxu0 0.0
      %6357 = vmatprep.subr.mxu0 0.0
      %6358 = vmatpush1.msra.mxu0 0.0
      %6359 = vmatprep.subr.mxu0 0.0
      %6360 = vmatpush1.msra.mxu0 0.0
      %6361 = vmatprep.subr.mxu0 0.0
      %6362 = vmatpush1.msra.mxu0 0.0
      %6363 = vmatprep.subr.mxu0 0.0
      %6364 = vmatpush1.msra.mxu0 0.0
      %6365 = vmatprep.subr.mxu0 0.0
      %6366 = vmatpush1.msra.mxu0 0.0
      %6367 = vmatprep.subr.mxu0 0.0
      %6368 = vmatpush1.msra.mxu0 0.0
      %6369 = vmatprep.subr.mxu0 0.0
      %6370 = vmatpush1.msra.mxu0 0.0
      %6371 = vmatprep.subr.mxu0 0.0
      %6372 = vmatpush1.msra.mxu0 0.0
      %6373 = vmatprep.subr.mxu0 0.0
      %6374 = vmatpush1.msra.mxu0 0.0
      %6375 = vmatprep.mubr.f32.mxu0 0.0
      %6376 = vmatmul.mubr.f32.gmra.mrb[0].mxu0 %v6309
      %v6377 = vpop.f32.mrb[0].mxu0
      %v6378 = vadd.f32 0.0, %v6377
      %v6379 = vpop.f32.mrb[0].mxu0
      %6380 = vdwg.mxu0
      %v6382 = vsel %vm1107, %v6378, 0
      %6384 = vmatprep.subr.mxu0 0.0
      %6385 = vmatpush1.msra.mxu0 %v5500
      %6386 = vmatprep.subr.mxu0 0.0
      %6387 = vmatpush1.msra.mxu0 0.0
      %6388 = vmatprep.subr.mxu0 0.0
      %6389 = vmatpush1.msra.mxu0 0.0
      %6390 = vmatprep.subr.mxu0 0.0
      %6391 = vmatpush1.msra.mxu0 0.0
      %6392 = vmatprep.subr.mxu0 0.0
      %6393 = vmatpush1.msra.mxu0 0.0
      %6394 = vmatprep.subr.mxu0 0.0
      %6395 = vmatpush1.msra.mxu0 0.0
      %6396 = vmatprep.subr.mxu0 0.0
      %6397 = vmatpush1.msra.mxu0 0.0
      %6398 = vmatprep.subr.mxu0 0.0
      %6399 = vmatpush1.msra.mxu0 0.0
      %6400 = vmatprep.subr.mxu0 0.0
      %6401 = vmatpush1.msra.mxu0 0.0
      %6402 = vmatprep.subr.mxu0 0.0
      %6403 = vmatpush1.msra.mxu0 0.0
      %6404 = vmatprep.subr.mxu0 0.0
      %6405 = vmatpush1.msra.mxu0 0.0
      %6406 = vmatprep.subr.mxu0 0.0
      %6407 = vmatpush1.msra.mxu0 0.0
      %6408 = vmatprep.subr.mxu0 0.0
      %6409 = vmatpush1.msra.mxu0 0.0
      %6410 = vmatprep.subr.mxu0 0.0
      %6411 = vmatpush1.msra.mxu0 0.0
      %6412 = vmatprep.subr.mxu0 0.0
      %6413 = vmatpush1.msra.mxu0 0.0
      %6414 = vmatprep.subr.mxu0 0.0
      %6415 = vmatpush1.msra.mxu0 0.0
      %6416 = vmatprep.subr.mxu0 0.0
      %6417 = vmatpush1.msra.mxu0 0.0
      %6418 = vmatprep.subr.mxu0 0.0
      %6419 = vmatpush1.msra.mxu0 0.0
      %6420 = vmatprep.subr.mxu0 0.0
      %6421 = vmatpush1.msra.mxu0 0.0
      %6422 = vmatprep.subr.mxu0 0.0
      %6423 = vmatpush1.msra.mxu0 0.0
      %6424 = vmatprep.subr.mxu0 0.0
      %6425 = vmatpush1.msra.mxu0 0.0
      %6426 = vmatprep.subr.mxu0 0.0
      %6427 = vmatpush1.msra.mxu0 0.0
      %6428 = vmatprep.subr.mxu0 0.0
      %6429 = vmatpush1.msra.mxu0 0.0
      %6430 = vmatprep.subr.mxu0 0.0
      %6431 = vmatpush1.msra.mxu0 0.0
      %6432 = vmatprep.subr.mxu0 0.0
      %6433 = vmatpush1.msra.mxu0 0.0
      %6434 = vmatprep.subr.mxu0 0.0
      %6435 = vmatpush1.msra.mxu0 0.0
      %6436 = vmatprep.subr.mxu0 0.0
      %6437 = vmatpush1.msra.mxu0 0.0
      %6438 = vmatprep.subr.mxu0 0.0
      %6439 = vmatpush1.msra.mxu0 0.0
      %6440 = vmatprep.subr.mxu0 0.0
      %6441 = vmatpush1.msra.mxu0 0.0
      %6442 = vmatprep.subr.mxu0 0.0
      %6443 = vmatpush1.msra.mxu0 0.0
      %6444 = vmatprep.subr.mxu0 0.0
      %6445 = vmatpush1.msra.mxu0 0.0
      %6446 = vmatprep.subr.mxu0 0.0
      %6447 = vmatpush1.msra.mxu0 0.0
      %6448 = vmatprep.mubr.f32.mxu0 0.0
      %6449 = vmatmul.mubr.f32.gmra.mrb[0].mxu0 %v6382
      %v6450 = vpop.f32.mrb[0].mxu0
      %v6451 = vadd.f32 0.0, %v6450
      %v6452 = vpop.f32.mrb[0].mxu0
      %6453 = vdwg.mxu0
      %v6454 = vadd.f32 %v6214, %v6451
      %v6455 = vadd.f32 %v5210, %v6454
      %s6456 = scalar_lea.vmem %s14, 3
      %v6457 = vld [vmem:[%s6456] sm:$0x1]
      %v6459 = vlaneseq
      %v6460 = vshrl.u32 %v6459, 7
      %v6461 = vsub.s32 0, %v6460
      %v6462 = vrot.slane %v6457, %v6461
      %v6464 = vadd.f32 %v6455, %v6462
      %s6465 = scalar_lea.vmem %s15, 3
      %v6466 = vld [vmem:[%s6465] sm:$0x1]
      %s6467 = scalar_lea.vmem %s16, 3
      %v6468 = vld [vmem:[%s6467] sm:$0x1]
      %v6469 = vsel %vm827, %v6464, 0.0
      %6470 = vadd.xlane.f32.xlu0 %v6469
      %v6471 = vpop.xlane.xlu0 %6470
      %v6472 = vmul.f32 %v6471, %v831
      %v6473 = vsub.f32 %v6464, %v6472
      %v6474 = vmul.f32 %v6473, %v6473
      %v6475 = vsel %vm827, %v6474, 0.0
      %6476 = vadd.xlane.f32.xlu0 %v6475
      %v6477 = vpop.xlane.xlu0 %6476
      %v6478 = vmul.f32 %v6477, %v831
      %v6479 = vadd.f32 %v6478, 1e-05
      %v6480 = vrsqrt.pop %v6479
      %v6481 = vmul.f32 %v6473, %v6480
      %v6483 = vlaneseq
      %v6484 = vshrl.u32 %v6483, 7
      %v6485 = vsub.s32 0, %v6484
      %v6486 = vrot.slane %v6466, %v6485
      %v6488 = vmul.f32 %v6481, %v6486
      %v6490 = vlaneseq
      %v6491 = vshrl.u32 %v6490, 7
      %v6492 = vsub.s32 0, %v6491
      %v6493 = vrot.slane %v6468, %v6492
      %v6495 = vadd.f32 %v6488, %v6493
      %s6496 = scalar_lea.vmem %s17, 96
      %v6497 = vld [vmem:[%s6496] sm:$0xff]
      %v6498 = vld [vmem:[%s6496 + $0x8] sm:$0xff]
      %v6499 = vld [vmem:[%s6496 + $0x10] sm:$0xff]
      %v6500 = vld [vmem:[%s6496 + $0x18] sm:$0xff]
      %s6501 = scalar_lea.vmem %s18, 3
      %v6502 = vld [vmem:[%s6501] sm:$0x1]
      %v6504 = vlaneseq
      %v6505 = vshrl.u32 %v6504, 7
      %v6506 = vsub.s32 0, %v6505
      %v6507 = vrot.slane %v6502, %v6506
      %v6510 = vsel %vm827, %v6495, 0
      %6512 = vmatprep.subr.mxu0 0.0
      %6513 = vmatpush1.msra.mxu0 %v6497
      %6514 = vmatprep.subr.mxu0 0.0
      %6515 = vmatpush1.msra.mxu0 %v6498
      %6516 = vmatprep.subr.mxu0 0.0
      %6517 = vmatpush1.msra.mxu0 %v6499
      %6518 = vmatprep.subr.mxu0 0.0
      %6519 = vmatpush1.msra.mxu0 %v6500
      %6520 = vmatprep.subr.mxu0 0.0
      %6521 = vmatpush1.msra.mxu0 0.0
      %6522 = vmatprep.subr.mxu0 0.0
      %6523 = vmatpush1.msra.mxu0 0.0
      %6524 = vmatprep.subr.mxu0 0.0
      %6525 = vmatpush1.msra.mxu0 0.0
      %6526 = vmatprep.subr.mxu0 0.0
      %6527 = vmatpush1.msra.mxu0 0.0
      %6528 = vmatprep.subr.mxu0 0.0
      %6529 = vmatpush1.msra.mxu0 0.0
      %6530 = vmatprep.subr.mxu0 0.0
      %6531 = vmatpush1.msra.mxu0 0.0
      %6532 = vmatprep.subr.mxu0 0.0
      %6533 = vmatpush1.msra.mxu0 0.0
      %6534 = vmatprep.subr.mxu0 0.0
      %6535 = vmatpush1.msra.mxu0 0.0
      %6536 = vmatprep.subr.mxu0 0.0
      %6537 = vmatpush1.msra.mxu0 0.0
      %6538 = vmatprep.subr.mxu0 0.0
      %6539 = vmatpush1.msra.mxu0 0.0
      %6540 = vmatprep.subr.mxu0 0.0
      %6541 = vmatpush1.msra.mxu0 0.0
      %6542 = vmatprep.subr.mxu0 0.0
      %6543 = vmatpush1.msra.mxu0 0.0
      %6544 = vmatprep.subr.mxu0 0.0
      %6545 = vmatpush1.msra.mxu0 0.0
      %6546 = vmatprep.subr.mxu0 0.0
      %6547 = vmatpush1.msra.mxu0 0.0
      %6548 = vmatprep.subr.mxu0 0.0
      %6549 = vmatpush1.msra.mxu0 0.0
      %6550 = vmatprep.subr.mxu0 0.0
      %6551 = vmatpush1.msra.mxu0 0.0
      %6552 = vmatprep.subr.mxu0 0.0
      %6553 = vmatpush1.msra.mxu0 0.0
      %6554 = vmatprep.subr.mxu0 0.0
      %6555 = vmatpush1.msra.mxu0 0.0
      %6556 = vmatprep.subr.mxu0 0.0
      %6557 = vmatpush1.msra.mxu0 0.0
      %6558 = vmatprep.subr.mxu0 0.0
      %6559 = vmatpush1.msra.mxu0 0.0
      %6560 = vmatprep.subr.mxu0 0.0
      %6561 = vmatpush1.msra.mxu0 0.0
      %6562 = vmatprep.subr.mxu0 0.0
      %6563 = vmatpush1.msra.mxu0 0.0
      %6564 = vmatprep.subr.mxu0 0.0
      %6565 = vmatpush1.msra.mxu0 0.0
      %6566 = vmatprep.subr.mxu0 0.0
      %6567 = vmatpush1.msra.mxu0 0.0
      %6568 = vmatprep.subr.mxu0 0.0
      %6569 = vmatpush1.msra.mxu0 0.0
      %6570 = vmatprep.subr.mxu0 0.0
      %6571 = vmatpush1.msra.mxu0 0.0
      %6572 = vmatprep.subr.mxu0 0.0
      %6573 = vmatpush1.msra.mxu0 0.0
      %6574 = vmatprep.subr.mxu0 0.0
      %6575 = vmatpush1.msra.mxu0 0.0
      %6576 = vmatprep.mubr.f32.mxu0 0.0
      %6577 = vmatmul.mubr.f32.gmra.mrb[0].mxu0 %v6510
      %v6578 = vpop.f32.mrb[0].mxu0
      %v6579 = vadd.f32 %v6507, %v6578
      %v6580 = vpop.f32.mrb[0].mxu0
      %6581 = vdwg.mxu0
      %v6582 = vmax.f32 %v6579, 0.0
      %s6583 = scalar_lea.vmem %s19, 192
      %v6584 = vld [vmem:[%s6583] sm:$0xff]
      %v6585 = vld [vmem:[%s6583 + $0x8] sm:$0xff]
      %v6586 = vld [vmem:[%s6583 + $0x10] sm:$0xff]
      %v6587 = vld [vmem:[%s6583 + $0x18] sm:$0xff]
      %v6588 = vld [vmem:[%s6583 + $0x20] sm:$0xff]
      %v6589 = vld [vmem:[%s6583 + $0x28] sm:$0xff]
      %v6590 = vld [vmem:[%s6583 + $0x30] sm:$0xff]
      %v6591 = vld [vmem:[%s6583 + $0x38] sm:$0xff]
      %v6593 = vsel %vm2200, %v6582, 0
      %6595 = vmatprep.subr.mxu0 0.0
      %6596 = vmatpush1.msra.mxu0 %v6584
      %6597 = vmatprep.subr.mxu0 0.0
      %6598 = vmatpush1.msra.mxu0 %v6585
      %6599 = vmatprep.subr.mxu0 0.0
      %6600 = vmatpush1.msra.mxu0 %v6586
      %6601 = vmatprep.subr.mxu0 0.0
      %6602 = vmatpush1.msra.mxu0 %v6587
      %6603 = vmatprep.subr.mxu0 0.0
      %6604 = vmatpush1.msra.mxu0 %v6588
      %6605 = vmatprep.subr.mxu0 0.0
      %6606 = vmatpush1.msra.mxu0 %v6589
      %6607 = vmatprep.subr.mxu0 0.0
      %6608 = vmatpush1.msra.mxu0 %v6590
      %6609 = vmatprep.subr.mxu0 0.0
      %6610 = vmatpush1.msra.mxu0 %v6591
      %6611 = vmatprep.subr.mxu0 0.0
      %6612 = vmatpush1.msra.mxu0 0.0
      %6613 = vmatprep.subr.mxu0 0.0
      %6614 = vmatpush1.msra.mxu0 0.0
      %6615 = vmatprep.subr.mxu0 0.0
      %6616 = vmatpush1.msra.mxu0 0.0
      %6617 = vmatprep.subr.mxu0 0.0
      %6618 = vmatpush1.msra.mxu0 0.0
      %6619 = vmatprep.subr.mxu0 0.0
      %6620 = vmatpush1.msra.mxu0 0.0
      %6621 = vmatprep.subr.mxu0 0.0
      %6622 = vmatpush1.msra.mxu0 0.0
      %6623 = vmatprep.subr.mxu0 0.0
      %6624 = vmatpush1.msra.mxu0 0.0
      %6625 = vmatprep.subr.mxu0 0.0
      %6626 = vmatpush1.msra.mxu0 0.0
      %6627 = vmatprep.subr.mxu0 0.0
      %6628 = vmatpush1.msra.mxu0 0.0
      %6629 = vmatprep.subr.mxu0 0.0
      %6630 = vmatpush1.msra.mxu0 0.0
      %6631 = vmatprep.subr.mxu0 0.0
      %6632 = vmatpush1.msra.mxu0 0.0
      %6633 = vmatprep.subr.mxu0 0.0
      %6634 = vmatpush1.msra.mxu0 0.0
      %6635 = vmatprep.subr.mxu0 0.0
      %6636 = vmatpush1.msra.mxu0 0.0
      %6637 = vmatprep.subr.mxu0 0.0
      %6638 = vmatpush1.msra.mxu0 0.0
      %6639 = vmatprep.subr.mxu0 0.0
      %6640 = vmatpush1.msra.mxu0 0.0
      %6641 = vmatprep.subr.mxu0 0.0
      %6642 = vmatpush1.msra.mxu0 0.0
      %6643 = vmatprep.subr.mxu0 0.0
      %6644 = vmatpush1.msra.mxu0 0.0
      %6645 = vmatprep.subr.mxu0 0.0
      %6646 = vmatpush1.msra.mxu0 0.0
      %6647 = vmatprep.subr.mxu0 0.0
      %6648 = vmatpush1.msra.mxu0 0.0
      %6649 = vmatprep.subr.mxu0 0.0
      %6650 = vmatpush1.msra.mxu0 0.0
      %6651 = vmatprep.subr.mxu0 0.0
      %6652 = vmatpush1.msra.mxu0 0.0
      %6653 = vmatprep.subr.mxu0 0.0
      %6654 = vmatpush1.msra.mxu0 0.0
      %6655 = vmatprep.subr.mxu0 0.0
      %6656 = vmatpush1.msra.mxu0 0.0
      %6657 = vmatprep.subr.mxu0 0.0
      %6658 = vmatpush1.msra.mxu0 0.0
      %6659 = vmatprep.mubr.f32.mxu0 0.0
      %6660 = vmatmul.mubr.f32.gmra.mrb[0].mxu0 %v6593
      %v6661 = vpop.f32.mrb[0].mxu0
      %v6662 = vadd.f32 0.0, %v6661
      %v6663 = vpop.f32.mrb[0].mxu0
      %6664 = vdwg.mxu0
      %v6665 = vadd.f32 %v6464, %v6662
      %s6666 = scalar_lea.vmem %s20, 3
      %v6667 = vld [vmem:[%s6666] sm:$0x1]
      %v6669 = vlaneseq
      %v6670 = vshrl.u32 %v6669, 7
      %v6671 = vsub.s32 0, %v6670
      %v6672 = vrot.slane %v6667, %v6671
      %v6674 = vadd.f32 %v6665, %v6672
      %v6675 = vadd.f32 %v5211, %v6674
      %v6676 = vld [vmem:[%s21] sm:$0xff]
      %v6677 = vld [vmem:[%s21 + $0x8] sm:$0xff]
      %v6678 = vld [vmem:[%s21 + $0x10] sm:$0xff]
      %v6679 = vld [vmem:[%s21 + $0x18] sm:$0xff]
      %v6680 = vld [vmem:[%s22] sm:$0x1]
      %v6682 = vlaneseq
      %v6683 = vshrl.u32 %v6682, 7
      %v6684 = vsub.s32 0, %v6683
      %v6685 = vrot.slane %v6680, %v6684
      %v6688 = vsel %vm827, %v6675, 0
      %6690 = vmatprep.subr.mxu0 0.0
      %6691 = vmatpush1.msra.mxu0 %v6676
      %6692 = vmatprep.subr.mxu0 0.0
      %6693 = vmatpush1.msra.mxu0 %v6677
      %6694 = vmatprep.subr.mxu0 0.0
      %6695 = vmatpush1.msra.mxu0 %v6678
      %6696 = vmatprep.subr.mxu0 0.0
      %6697 = vmatpush1.msra.mxu0 %v6679
      %6698 = vmatprep.subr.mxu0 0.0
      %6699 = vmatpush1.msra.mxu0 0.0
      %6700 = vmatprep.subr.mxu0 0.0
      %6701 = vmatpush1.msra.mxu0 0.0
      %6702 = vmatprep.subr.mxu0 0.0
      %6703 = vmatpush1.msra.mxu0 0.0
      %6704 = vmatprep.subr.mxu0 0.0
      %6705 = vmatpush1.msra.mxu0 0.0
      %6706 = vmatprep.subr.mxu0 0.0
      %6707 = vmatpush1.msra.mxu0 0.0
      %6708 = vmatprep.subr.mxu0 0.0
      %6709 = vmatpush1.msra.mxu0 0.0
      %6710 = vmatprep.subr.mxu0 0.0
      %6711 = vmatpush1.msra.mxu0 0.0
      %6712 = vmatprep.subr.mxu0 0.0
      %6713 = vmatpush1.msra.mxu0 0.0
      %6714 = vmatprep.subr.mxu0 0.0
      %6715 = vmatpush1.msra.mxu0 0.0
      %6716 = vmatprep.subr.mxu0 0.0
      %6717 = vmatpush1.msra.mxu0 0.0
      %6718 = vmatprep.subr.mxu0 0.0
      %6719 = vmatpush1.msra.mxu0 0.0
      %6720 = vmatprep.subr.mxu0 0.0
      %6721 = vmatpush1.msra.mxu0 0.0
      %6722 = vmatprep.subr.mxu0 0.0
      %6723 = vmatpush1.msra.mxu0 0.0
      %6724 = vmatprep.subr.mxu0 0.0
      %6725 = vmatpush1.msra.mxu0 0.0
      %6726 = vmatprep.subr.mxu0 0.0
      %6727 = vmatpush1.msra.mxu0 0.0
      %6728 = vmatprep.subr.mxu0 0.0
      %6729 = vmatpush1.msra.mxu0 0.0
      %6730 = vmatprep.subr.mxu0 0.0
      %6731 = vmatpush1.msra.mxu0 0.0
      %6732 = vmatprep.subr.mxu0 0.0
      %6733 = vmatpush1.msra.mxu0 0.0
      %6734 = vmatprep.subr.mxu0 0.0
      %6735 = vmatpush1.msra.mxu0 0.0
      %6736 = vmatprep.subr.mxu0 0.0
      %6737 = vmatpush1.msra.mxu0 0.0
      %6738 = vmatprep.subr.mxu0 0.0
      %6739 = vmatpush1.msra.mxu0 0.0
      %6740 = vmatprep.subr.mxu0 0.0
      %6741 = vmatpush1.msra.mxu0 0.0
      %6742 = vmatprep.subr.mxu0 0.0
      %6743 = vmatpush1.msra.mxu0 0.0
      %6744 = vmatprep.subr.mxu0 0.0
      %6745 = vmatpush1.msra.mxu0 0.0
      %6746 = vmatprep.subr.mxu0 0.0
      %6747 = vmatpush1.msra.mxu0 0.0
      %6748 = vmatprep.subr.mxu0 0.0
      %6749 = vmatpush1.msra.mxu0 0.0
      %6750 = vmatprep.subr.mxu0 0.0
      %6751 = vmatpush1.msra.mxu0 0.0
      %6752 = vmatprep.subr.mxu0 0.0
      %6753 = vmatpush1.msra.mxu0 0.0
      %6754 = vmatprep.mubr.f32.mxu0 0.0
      %6755 = vmatmul.mubr.f32.gmra.mrb[0].mxu0 %v6688
      %v6756 = vpop.f32.mrb[0].mxu0
      %v6757 = vadd.f32 %v6685, %v6756
      %v6758 = vpop.f32.mrb[0].mxu0
      %6759 = vdwg.mxu0
      %6760 = vst [vmem:[%s736] sm:$0xff] %v6757
      %p6761 = scmp.lt.s32.totalorder %s34, 1
      %s6762 = scalar_select %p6761, %s34, 1
      %s6763 = smul.addr %s6762, 8
      %s6764 = scalar_lea.vmem %s23, %s6763
      // Predicated region
      $region113: #{_lambda_.3} parent=111 // pred_check
        %p6765 = pneg %p550
      $region114: #{_lambda_.3} parent=111 // pred_check_branch
        %6767 = sbr.rel (%p6765) target = $region116
      $region115: #{_lambda_.3} parent=111 // pred_region
        _
      $region116: #{_lambda_.3} parent=111 // pred_fallthru
        _
    $region112: #{_lambda_.3} parent=5 // pred_fallthru
      _
    %p6768 = scmp.le.s32.totalorder 2, %s29
    // Predicated region
    $region117: #{_lambda_.3} parent=5 // pred_check
      %p6769 = pneg %p6768
    $region118: #{_lambda_.3} parent=5 // pred_check_branch
      %6771 = sbr.rel (%p6769) target = $region120
    $region119: #{_lambda_.3} parent=5 // pred_region
      %s6772 = ssub.s32 %s29, 2
      // Predicated region
      $region121: #{_lambda_.3} parent=119 // pred_check
        %p6773 = pneg %p556
      $region122: #{_lambda_.3} parent=119 // pred_check_branch
        %6775 = sbr.rel (%p6773) target = $region124
      $region123: #{_lambda_.3} parent=119 // pred_region
        %p6776 = scmp.lt.s32.totalorder %s35, 1
        %s6777 = scalar_select %p6776, %s35, 1
        %s6778 = smul.addr %s6777, 8
        %s6779 = scalar_lea.vmem %s23, %s6778
      $region124: #{_lambda_.3} parent=119 // pred_fallthru
        _
    $region120: #{_lambda_.3} parent=5 // pred_fallthru
      _
  $region6: #{_lambda_.3} parent=0 // loop_footer
    %s33 = sadd.s32 1, %s29
  $region7: #{_lambda_.3} parent=0 // loop_footer_branch
    %28 = sbr.rel target = $region3
  $region8: #{_lambda_.3} parent=0 // loop_exit
    _

</llo_original>
